<compile_context>
chip_gen: v6e
topology: v6e:2x2x1
jax: 0.10.0
libtpu: 0.0.40
codegen_flags: <defaults>
</compile_context>

<pallas_src>
import jax
import jax.numpy as jnp
from jax import lax
from jax.experimental import pallas as pl
from jax.experimental.pallas import tpu as pltpu


def lstm_kernel(x_ref, wih_ref, whh_ref, b_ref, wlin_ref, blin_ref,
                out_ref, h_scr, c_scr, xw_scr):
    """One time-tile of a single-layer LSTM + (on the last tile) Linear head.

    x_ref:    (t_tile, B, I)  matmul dtype (f32 or bf16)
    wih_ref:  (I, 4H)         matmul dtype   (W_ih^T)
    whh_ref:  (H, 4H)         matmul dtype   (W_hh^T)
    b_ref:    (1, 4H)         f32            (b_ih + b_hh)
    wlin_ref: (O, H)          f32            (Linear.weight, PyTorch layout)
    blin_ref: (1, O)          f32            (Linear.bias)
    out_ref:  (B, O)          f32
    h_scr, c_scr: (B, H) f32 scratch (hidden / cell state, carried over grid)
    xw_scr:   (t_tile*B, 4H) f32 scratch (hoisted input projection)
    """
    t_tile, B, I = x_ref.shape
    H = h_scr.shape[1]
    O = blin_ref.shape[1]
    mm_dtype = whh_ref.dtype

    @pl.when(pl.program_id(0) == 0)
    def _init():
        h_scr[...] = jnp.zeros_like(h_scr)
        c_scr[...] = jnp.zeros_like(c_scr)

    # ---- Hoisted input projection for this whole time tile (one MXU call,
    #      one bias broadcast) -----------------------------------------------
    x_flat = x_ref[...].reshape(t_tile * B, I)
    xw_scr[...] = (jnp.dot(x_flat, wih_ref[...],
                           preferred_element_type=jnp.float32)
                   + b_ref[...])

    # ---- Serial recurrence over the tile (static unroll) --------------------
    for t in range(t_tile):
        h_prev = h_scr[...]
        gates = (xw_scr[t * B:(t + 1) * B, :]
                 + jnp.dot(h_prev.astype(mm_dtype), whh_ref[...],
                           preferred_element_type=jnp.float32))   # (B, 4H) f32
        # H is a multiple of 128 -> these are whole-vreg, lane-aligned slices.
        i_g = jax.nn.sigmoid(gates[:, 0 * H:1 * H])
        f_g = jax.nn.sigmoid(gates[:, 1 * H:2 * H])
        g_g = jnp.tanh(gates[:, 2 * H:3 * H])
        o_g = jax.nn.sigmoid(gates[:, 3 * H:4 * H])
        c_new = f_g * c_scr[...] + i_g * g_g
        c_scr[...] = c_new
        h_scr[...] = o_g * jnp.tanh(c_new)

    # ---- Final head (only after the last time tile) -------------------------
    # Dropout on lstm_out[:, -1, :] is identity in eval mode.
    @pl.when(pl.program_id(0) == pl.num_programs(0) - 1)
    def _finalize():
        h_last = h_scr[...]                                    # (B, H) f32
        if O == 1:
            # VPU multiply + lane reduction instead of an (H, 1) MXU matmul.
            out_ref[...] = (jnp.sum(h_last * wlin_ref[...], axis=-1,
                                    keepdims=True)
                            + blin_ref[...])
        else:
            out_ref[...] = (lax.dot_general(
                h_last, wlin_ref[...],
                (((1,), (1,)), ((), ())),
                preferred_element_type=jnp.float32) + blin_ref[...])


def lstm_model_forward(x, w_ih, w_hh, b_ih, b_hh, w_lin, b_lin,
                       *, t_tile=8, matmul_dtype=jnp.bfloat16):
    """x: (B, T, I) float32.  Returns (B, output_size) float32."""
    B, T, I = x.shape
    four_h = w_ih.shape[0]
    H = four_h // 4
    O = w_lin.shape[0]

    # Pick a time-tile size that divides T.
    t_tile = max(1, min(t_tile, T))
    while T % t_tile:
        t_tile -= 1

    x_tbi = jnp.transpose(x, (1, 0, 2)).astype(matmul_dtype)   # (T, B, I)
    wih_t = w_ih.T.astype(matmul_dtype)                        # (I, 4H)
    whh_t = w_hh.T.astype(matmul_dtype)                        # (H, 4H)
    bias = (b_ih + b_hh).reshape(1, four_h).astype(jnp.float32)
    wlin = w_lin.reshape(O, H).astype(jnp.float32)             # (O, H)
    blin = b_lin.reshape(1, O).astype(jnp.float32)

    grid = (T // t_tile,)
    return pl.pallas_call(
        lstm_kernel,
        out_shape=jax.ShapeDtypeStruct((B, O), jnp.float32),
        grid_spec=pltpu.PrefetchScalarGridSpec(
            num_scalar_prefetch=0,
            grid=grid,
            in_specs=[
                pl.BlockSpec((t_tile, B, I), lambda t: (t, 0, 0)),  # x (streamed)
                pl.BlockSpec((I, four_h), lambda t: (0, 0)),        # W_ih^T
                pl.BlockSpec((H, four_h), lambda t: (0, 0)),        # W_hh^T
                pl.BlockSpec((1, four_h), lambda t: (0, 0)),        # bias
                pl.BlockSpec((O, H), lambda t: (0, 0)),             # W_lin
                pl.BlockSpec((1, O), lambda t: (0, 0)),             # b_lin
            ],
            out_specs=pl.BlockSpec((B, O), lambda t: (0, 0)),
            scratch_shapes=[
                pltpu.VMEM((B, H), jnp.float32),              # h state
                pltpu.VMEM((B, H), jnp.float32),              # c state
                pltpu.VMEM((t_tile * B, four_h), jnp.float32),  # hoisted x@W_ih
            ],
        ),
        compiler_params=pltpu.CompilerParams(
            dimension_semantics=("arbitrary",),               # state carried over T
            vmem_limit_bytes=32 * 1024 * 1024,
        ),
    )(x_tbi, wih_t, whh_t, bias, wlin, blin)


def lstm_model_reference(x, w_ih, w_hh, b_ih, b_hh, w_lin, b_lin,
                         matmul_dtype=jnp.float32):
    """Pure-JAX reference of the PyTorch forward (eval mode)."""
    B, T, I = x.shape
    H = w_hh.shape[1]
    xd = x.astype(matmul_dtype)
    wih = w_ih.T.astype(matmul_dtype)
    whh = w_hh.T.astype(matmul_dtype)
    bias = (b_ih + b_hh).astype(jnp.float32)
    h = jnp.zeros((B, H), jnp.float32)
    c = jnp.zeros((B, H), jnp.float32)
    for t in range(T):
        gates = (jnp.dot(xd[:, t, :], wih, preferred_element_type=jnp.float32)
                 + jnp.dot(h.astype(matmul_dtype), whh,
                           preferred_element_type=jnp.float32)
                 + bias)
        i_g = jax.nn.sigmoid(gates[:, 0 * H:1 * H])
        f_g = jax.nn.sigmoid(gates[:, 1 * H:2 * H])
        g_g = jnp.tanh(gates[:, 2 * H:3 * H])
        o_g = jax.nn.sigmoid(gates[:, 3 * H:4 * H])
        c = f_g * c + i_g * g_g
        h = o_g * jnp.tanh(c)
    return h @ w_lin.T + b_lin


if __name__ == "__main__":
    # Shapes consistent with the module: input_size=32, hidden_size=256,
    # num_layers=1, output_size=1; small batch/sequence.
    B, T, I, H, O = 8, 16, 32, 256, 1

    key = jax.random.PRNGKey(0)
    kx, k1, k2, k3, k4, k5, k6 = jax.random.split(key, 7)

    bound = 1.0 / jnp.sqrt(H)
    x = jax.random.normal(kx, (B, T, I), jnp.float32)
    w_ih = jax.random.uniform(k1, (4 * H, I), jnp.float32, -bound, bound)
    w_hh = jax.random.uniform(k2, (4 * H, H), jnp.float32, -bound, bound)
    b_ih = jax.random.uniform(k3, (4 * H,), jnp.float32, -bound, bound)
    b_hh = jax.random.uniform(k4, (4 * H,), jnp.float32, -bound, bound)
    w_lin = jax.random.uniform(k5, (O, H), jnp.float32, -bound, bound)
    b_lin = jax.random.uniform(k6, (O,), jnp.float32, -bound, bound)

    # Exact-precision path: f32 MXU operands, strict match vs PyTorch-faithful
    # f32 reference.
    out_f32 = lstm_model_forward(x, w_ih, w_hh, b_ih, b_hh, w_lin, b_lin,
                                 t_tile=8, matmul_dtype=jnp.float32)
    out_f32 = jax.block_until_ready(out_f32)
    ref_f32 = lstm_model_reference(x, w_ih, w_hh, b_ih, b_hh, w_lin, b_lin,
                                   matmul_dtype=jnp.float32)
    assert out_f32.shape == (B, O)
    assert jnp.allclose(out_f32, ref_f32, atol=1e-4, rtol=1e-4), \
        "f32 kernel mismatch vs reference"

    # Fast path: bf16 MXU operands with f32 accumulation (v6e/v7x perf path);
    # compare against a reference using the same operand quantization.
    out_bf16 = lstm_model_forward(x, w_ih, w_hh, b_ih, b_hh, w_lin, b_lin,
                                  t_tile=8, matmul_dtype=jnp.bfloat16)
    out_bf16 = jax.block_until_ready(out_bf16)
    ref_bf16 = lstm_model_reference(x, w_ih, w_hh, b_ih, b_hh, w_lin, b_lin,
                                    matmul_dtype=jnp.bfloat16)
    assert jnp.allclose(out_bf16, ref_bf16, atol=5e-3, rtol=5e-3), \
        "bf16 kernel mismatch vs bf16 reference"

    print("KERNEL_OK")
</pallas_src>

<mosaic_0001>
module attributes {stable_mosaic.version = 11 : i64} {
  func.func @lstm_kernel(%arg0: i32, %arg1: memref<8x8x32xf32, #tpu.memory_space<vmem>>, %arg2: memref<32x1024xf32, #tpu.memory_space<vmem>>, %arg3: memref<256x1024xf32, #tpu.memory_space<vmem>>, %arg4: memref<1x1024xf32, #tpu.memory_space<vmem>>, %arg5: memref<1x256xf32, #tpu.memory_space<vmem>>, %arg6: memref<1x1xf32, #tpu.memory_space<vmem>>, %arg7: memref<8x1xf32, #tpu.memory_space<vmem>>, %arg8: memref<8x256xf32, #tpu.memory_space<vmem>>, %arg9: memref<8x256xf32, #tpu.memory_space<vmem>>, %arg10: memref<64x1024xf32, #tpu.memory_space<vmem>>) attributes {dimension_semantics = [#tpu.dimension_semantics<arbitrary>], iteration_bounds = array<i64: 2>, scalar_prefetch = 0 : i64, scratch_operands = 3 : i64, tpu.core_type = #tpu.core_type<tc>, window_params = [{transform_indices = @transform_0, window_bounds = array<i64: 8, 8, 32>}, {pipeline_mode = #tpu.pipeline_mode<synchronous>, transform_indices = @transform_1, window_bounds = array<i64: 32, 1024>}, {pipeline_mode = #tpu.pipeline_mode<synchronous>, transform_indices = @transform_2, window_bounds = array<i64: 256, 1024>}, {pipeline_mode = #tpu.pipeline_mode<synchronous>, transform_indices = @transform_3, window_bounds = array<i64: 1, 1024>}, {pipeline_mode = #tpu.pipeline_mode<synchronous>, transform_indices = @transform_4, window_bounds = array<i64: 1, 256>}, {pipeline_mode = #tpu.pipeline_mode<synchronous>, transform_indices = @transform_5, window_bounds = array<i64: 1, 1>}, {pipeline_mode = #tpu.pipeline_mode<synchronous>, transform_indices = @transform_6, window_bounds = array<i64: 8, 1>}]} {
    %c0_i32 = arith.constant 0 : i32
    %0 = arith.cmpi eq, %arg0, %c0_i32 : i32
    %1 = arith.extui %0 : i1 to i32
    %c0_i32_0 = arith.constant 0 : i32
    %2 = arith.cmpi ne, %1, %c0_i32_0 : i32
    scf.if %2 {
      %cst_131 = arith.constant 0.000000e+00 : f32
      %278 = vector.broadcast %cst_131 : f32 to vector<8x256xf32>
      %c0_132 = arith.constant 0 : index
      %c0_133 = arith.constant 0 : index
      %279 = vector.load %arg8[%c0_132, %c0_133] : memref<8x256xf32, #tpu.memory_space<vmem>>, vector<8x256xf32>
      tpu.vector_store %arg8[%c0_132, %c0_133], %278 {strides = array<i32>} : memref<8x256xf32, #tpu.memory_space<vmem>>, vector<8x256xf32>,
      %cst_134 = arith.constant 0.000000e+00 : f32
      %280 = vector.broadcast %cst_134 : f32 to vector<8x256xf32>
      %c0_135 = arith.constant 0 : index
      %c0_136 = arith.constant 0 : index
      %281 = vector.load %arg9[%c0_135, %c0_136] : memref<8x256xf32, #tpu.memory_space<vmem>>, vector<8x256xf32>
      tpu.vector_store %arg9[%c0_135, %c0_136], %280 {strides = array<i32>} : memref<8x256xf32, #tpu.memory_space<vmem>>, vector<8x256xf32>,
    } else {
    }
    %c0 = arith.constant 0 : index
    %c0_1 = arith.constant 0 : index
    %c0_2 = arith.constant 0 : index
    %3 = vector.load %arg1[%c0, %c0_1, %c0_2] : memref<8x8x32xf32, #tpu.memory_space<vmem>>, vector<8x8x32xf32>
    %4 = vector.shape_cast %3 : vector<8x8x32xf32> to vector<64x32xf32>
    %c0_3 = arith.constant 0 : index
    %c0_4 = arith.constant 0 : index
    %5 = vector.load %arg2[%c0_3, %c0_4] : memref<32x1024xf32, #tpu.memory_space<vmem>>, vector<32x1024xf32>
    %cst = arith.constant dense<0.000000e+00> : vector<64x1024xf32>
    %6 = tpu.matmul %4, %5, %cst {dimension_numbers = #tpu.dot_dimension_numbers<[1], [0], [0], [1], [0, 0, 1, 1], [], []>} : vector<64x32xf32>, vector<32x1024xf32>, vector<64x1024xf32> -> vector<64x1024xf32>
    %c0_5 = arith.constant 0 : index
    %c0_6 = arith.constant 0 : index
    %7 = vector.load %arg4[%c0_5, %c0_6] : memref<1x1024xf32, #tpu.memory_space<vmem>>, vector<1x1024xf32>
    %8 = vector.broadcast %7 : vector<1x1024xf32> to vector<64x1024xf32>
    %9 = arith.addf %6, %8 : vector<64x1024xf32>
    %c0_7 = arith.constant 0 : index
    %c0_8 = arith.constant 0 : index
    %10 = vector.load %arg10[%c0_7, %c0_8] : memref<64x1024xf32, #tpu.memory_space<vmem>>, vector<64x1024xf32>
    tpu.vector_store %arg10[%c0_7, %c0_8], %9 {strides = array<i32>} : memref<64x1024xf32, #tpu.memory_space<vmem>>, vector<64x1024xf32>,
    %c0_9 = arith.constant 0 : index
    %c0_10 = arith.constant 0 : index
    %11 = vector.load %arg8[%c0_9, %c0_10] : memref<8x256xf32, #tpu.memory_space<vmem>>, vector<8x256xf32>
    %c0_11 = arith.constant 0 : index
    %c0_12 = arith.constant 0 : index
    %12 = vector.load %arg10[%c0_11, %c0_12] : memref<64x1024xf32, #tpu.memory_space<vmem>>, vector<8x1024xf32>
    %c0_13 = arith.constant 0 : index
    %c0_14 = arith.constant 0 : index
    %13 = vector.load %arg3[%c0_13, %c0_14] : memref<256x1024xf32, #tpu.memory_space<vmem>>, vector<256x1024xf32>
    %cst_15 = arith.constant dense<0.000000e+00> : vector<8x1024xf32>
    %14 = tpu.matmul %11, %13, %cst_15 {dimension_numbers = #tpu.dot_dimension_numbers<[1], [0], [0], [1], [0, 0, 1, 1], [], []>} : vector<8x256xf32>, vector<256x1024xf32>, vector<8x1024xf32> -> vector<8x1024xf32>
    %15 = arith.addf %12, %14 : vector<8x1024xf32>
    %16 = vector.extract_strided_slice %15 {offsets = [0, 0], sizes = [8, 256], strides = [1, 1]} : vector<8x1024xf32> to vector<8x256xf32>
    %17 = arith.negf %16 : vector<8x256xf32>
    %18 = math.exp %17 : vector<8x256xf32>
    %cst_16 = arith.constant 1.000000e+00 : f32
    %19 = vector.broadcast %cst_16 : f32 to vector<8x256xf32>
    %20 = arith.addf %19, %18 : vector<8x256xf32>
    %21 = arith.divf %19, %20 : vector<8x256xf32>
    %22 = vector.extract_strided_slice %15 {offsets = [0, 256], sizes = [8, 256], strides = [1, 1]} : vector<8x1024xf32> to vector<8x256xf32>
    %23 = arith.negf %22 : vector<8x256xf32>
    %24 = math.exp %23 : vector<8x256xf32>
    %cst_17 = arith.constant 1.000000e+00 : f32
    %25 = vector.broadcast %cst_17 : f32 to vector<8x256xf32>
    %26 = arith.addf %25, %24 : vector<8x256xf32>
    %27 = arith.divf %25, %26 : vector<8x256xf32>
    %28 = vector.extract_strided_slice %15 {offsets = [0, 512], sizes = [8, 256], strides = [1, 1]} : vector<8x1024xf32> to vector<8x256xf32>
    %29 = math.tanh %28 : vector<8x256xf32>
    %30 = vector.extract_strided_slice %15 {offsets = [0, 768], sizes = [8, 256], strides = [1, 1]} : vector<8x1024xf32> to vector<8x256xf32>
    %31 = arith.negf %30 : vector<8x256xf32>
    %32 = math.exp %31 : vector<8x256xf32>
    %cst_18 = arith.constant 1.000000e+00 : f32
    %33 = vector.broadcast %cst_18 : f32 to vector<8x256xf32>
    %34 = arith.addf %33, %32 : vector<8x256xf32>
    %35 = arith.divf %33, %34 : vector<8x256xf32>
    %c0_19 = arith.constant 0 : index
    %c0_20 = arith.constant 0 : index
    %36 = vector.load %arg9[%c0_19, %c0_20] : memref<8x256xf32, #tpu.memory_space<vmem>>, vector<8x256xf32>
    %37 = arith.mulf %27, %36 : vector<8x256xf32>
    %38 = arith.mulf %21, %29 : vector<8x256xf32>
    %39 = arith.addf %37, %38 : vector<8x256xf32>
    %c0_21 = arith.constant 0 : index
    %c0_22 = arith.constant 0 : index
    %40 = vector.load %arg9[%c0_21, %c0_22] : memref<8x256xf32, #tpu.memory_space<vmem>>, vector<8x256xf32>
    tpu.vector_store %arg9[%c0_21, %c0_22], %39 {strides = array<i32>} : memref<8x256xf32, #tpu.memory_space<vmem>>, vector<8x256xf32>,
    %41 = math.tanh %39 : vector<8x256xf32>
    %42 = arith.mulf %35, %41 : vector<8x256xf32>
    %c0_23 = arith.constant 0 : index
    %c0_24 = arith.constant 0 : index
    %43 = vector.load %arg8[%c0_23, %c0_24] : memref<8x256xf32, #tpu.memory_space<vmem>>, vector<8x256xf32>
    tpu.vector_store %arg8[%c0_23, %c0_24], %42 {strides = array<i32>} : memref<8x256xf32, #tpu.memory_space<vmem>>, vector<8x256xf32>,
    %c0_25 = arith.constant 0 : index
    %c0_26 = arith.constant 0 : index
    %44 = vector.load %arg8[%c0_25, %c0_26] : memref<8x256xf32, #tpu.memory_space<vmem>>, vector<8x256xf32>
    %c8 = arith.constant 8 : index
    %c0_27 = arith.constant 0 : index
    %45 = vector.load %arg10[%c8, %c0_27] : memref<64x1024xf32, #tpu.memory_space<vmem>>, vector<8x1024xf32>
    %c0_28 = arith.constant 0 : index
    %c0_29 = arith.constant 0 : index
    %46 = vector.load %arg3[%c0_28, %c0_29] : memref<256x1024xf32, #tpu.memory_space<vmem>>, vector<256x1024xf32>
    %cst_30 = arith.constant dense<0.000000e+00> : vector<8x1024xf32>
    %47 = tpu.matmul %44, %46, %cst_30 {dimension_numbers = #tpu.dot_dimension_numbers<[1], [0], [0], [1], [0, 0, 1, 1], [], []>} : vector<8x256xf32>, vector<256x1024xf32>, vector<8x1024xf32> -> vector<8x1024xf32>
    %48 = arith.addf %45, %47 : vector<8x1024xf32>
    %49 = vector.extract_strided_slice %48 {offsets = [0, 0], sizes = [8, 256], strides = [1, 1]} : vector<8x1024xf32> to vector<8x256xf32>
    %50 = arith.negf %49 : vector<8x256xf32>
    %51 = math.exp %50 : vector<8x256xf32>
    %cst_31 = arith.constant 1.000000e+00 : f32
    %52 = vector.broadcast %cst_31 : f32 to vector<8x256xf32>
    %53 = arith.addf %52, %51 : vector<8x256xf32>
    %54 = arith.divf %52, %53 : vector<8x256xf32>
    %55 = vector.extract_strided_slice %48 {offsets = [0, 256], sizes = [8, 256], strides = [1, 1]} : vector<8x1024xf32> to vector<8x256xf32>
    %56 = arith.negf %55 : vector<8x256xf32>
    %57 = math.exp %56 : vector<8x256xf32>
    %cst_32 = arith.constant 1.000000e+00 : f32
    %58 = vector.broadcast %cst_32 : f32 to vector<8x256xf32>
    %59 = arith.addf %58, %57 : vector<8x256xf32>
    %60 = arith.divf %58, %59 : vector<8x256xf32>
    %61 = vector.extract_strided_slice %48 {offsets = [0, 512], sizes = [8, 256], strides = [1, 1]} : vector<8x1024xf32> to vector<8x256xf32>
    %62 = math.tanh %61 : vector<8x256xf32>
    %63 = vector.extract_strided_slice %48 {offsets = [0, 768], sizes = [8, 256], strides = [1, 1]} : vector<8x1024xf32> to vector<8x256xf32>
    %64 = arith.negf %63 : vector<8x256xf32>
    %65 = math.exp %64 : vector<8x256xf32>
    %cst_33 = arith.constant 1.000000e+00 : f32
    %66 = vector.broadcast %cst_33 : f32 to vector<8x256xf32>
    %67 = arith.addf %66, %65 : vector<8x256xf32>
    %68 = arith.divf %66, %67 : vector<8x256xf32>
    %c0_34 = arith.constant 0 : index
    %c0_35 = arith.constant 0 : index
    %69 = vector.load %arg9[%c0_34, %c0_35] : memref<8x256xf32, #tpu.memory_space<vmem>>, vector<8x256xf32>
    %70 = arith.mulf %60, %69 : vector<8x256xf32>
    %71 = arith.mulf %54, %62 : vector<8x256xf32>
    %72 = arith.addf %70, %71 : vector<8x256xf32>
    %c0_36 = arith.constant 0 : index
    %c0_37 = arith.constant 0 : index
    %73 = vector.load %arg9[%c0_36, %c0_37] : memref<8x256xf32, #tpu.memory_space<vmem>>, vector<8x256xf32>
    tpu.vector_store %arg9[%c0_36, %c0_37], %72 {strides = array<i32>} : memref<8x256xf32, #tpu.memory_space<vmem>>, vector<8x256xf32>,
    %74 = math.tanh %72 : vector<8x256xf32>
    %75 = arith.mulf %68, %74 : vector<8x256xf32>
    %c0_38 = arith.constant 0 : index
    %c0_39 = arith.constant 0 : index
    %76 = vector.load %arg8[%c0_38, %c0_39] : memref<8x256xf32, #tpu.memory_space<vmem>>, vector<8x256xf32>
    tpu.vector_store %arg8[%c0_38, %c0_39], %75 {strides = array<i32>} : memref<8x256xf32, #tpu.memory_space<vmem>>, vector<8x256xf32>,
    %c0_40 = arith.constant 0 : index
    %c0_41 = arith.constant 0 : index
    %77 = vector.load %arg8[%c0_40, %c0_41] : memref<8x256xf32, #tpu.memory_space<vmem>>, vector<8x256xf32>
    %c16 = arith.constant 16 : index
    %c0_42 = arith.constant 0 : index
    %78 = vector.load %arg10[%c16, %c0_42] : memref<64x1024xf32, #tpu.memory_space<vmem>>, vector<8x1024xf32>
    %c0_43 = arith.constant 0 : index
    %c0_44 = arith.constant 0 : index
    %79 = vector.load %arg3[%c0_43, %c0_44] : memref<256x1024xf32, #tpu.memory_space<vmem>>, vector<256x1024xf32>
    %cst_45 = arith.constant dense<0.000000e+00> : vector<8x1024xf32>
    %80 = tpu.matmul %77, %79, %cst_45 {dimension_numbers = #tpu.dot_dimension_numbers<[1], [0], [0], [1], [0, 0, 1, 1], [], []>} : vector<8x256xf32>, vector<256x1024xf32>, vector<8x1024xf32> -> vector<8x1024xf32>
    %81 = arith.addf %78, %80 : vector<8x1024xf32>
    %82 = vector.extract_strided_slice %81 {offsets = [0, 0], sizes = [8, 256], strides = [1, 1]} : vector<8x1024xf32> to vector<8x256xf32>
    %83 = arith.negf %82 : vector<8x256xf32>
    %84 = math.exp %83 : vector<8x256xf32>
    %cst_46 = arith.constant 1.000000e+00 : f32
    %85 = vector.broadcast %cst_46 : f32 to vector<8x256xf32>
    %86 = arith.addf %85, %84 : vector<8x256xf32>
    %87 = arith.divf %85, %86 : vector<8x256xf32>
    %88 = vector.extract_strided_slice %81 {offsets = [0, 256], sizes = [8, 256], strides = [1, 1]} : vector<8x1024xf32> to vector<8x256xf32>
    %89 = arith.negf %88 : vector<8x256xf32>
    %90 = math.exp %89 : vector<8x256xf32>
    %cst_47 = arith.constant 1.000000e+00 : f32
    %91 = vector.broadcast %cst_47 : f32 to vector<8x256xf32>
    %92 = arith.addf %91, %90 : vector<8x256xf32>
    %93 = arith.divf %91, %92 : vector<8x256xf32>
    %94 = vector.extract_strided_slice %81 {offsets = [0, 512], sizes = [8, 256], strides = [1, 1]} : vector<8x1024xf32> to vector<8x256xf32>
    %95 = math.tanh %94 : vector<8x256xf32>
    %96 = vector.extract_strided_slice %81 {offsets = [0, 768], sizes = [8, 256], strides = [1, 1]} : vector<8x1024xf32> to vector<8x256xf32>
    %97 = arith.negf %96 : vector<8x256xf32>
    %98 = math.exp %97 : vector<8x256xf32>
    %cst_48 = arith.constant 1.000000e+00 : f32
    %99 = vector.broadcast %cst_48 : f32 to vector<8x256xf32>
    %100 = arith.addf %99, %98 : vector<8x256xf32>
    %101 = arith.divf %99, %100 : vector<8x256xf32>
    %c0_49 = arith.constant 0 : index
    %c0_50 = arith.constant 0 : index
    %102 = vector.load %arg9[%c0_49, %c0_50] : memref<8x256xf32, #tpu.memory_space<vmem>>, vector<8x256xf32>
    %103 = arith.mulf %93, %102 : vector<8x256xf32>
    %104 = arith.mulf %87, %95 : vector<8x256xf32>
    %105 = arith.addf %103, %104 : vector<8x256xf32>
    %c0_51 = arith.constant 0 : index
    %c0_52 = arith.constant 0 : index
    %106 = vector.load %arg9[%c0_51, %c0_52] : memref<8x256xf32, #tpu.memory_space<vmem>>, vector<8x256xf32>
    tpu.vector_store %arg9[%c0_51, %c0_52], %105 {strides = array<i32>} : memref<8x256xf32, #tpu.memory_space<vmem>>, vector<8x256xf32>,
    %107 = math.tanh %105 : vector<8x256xf32>
    %108 = arith.mulf %101, %107 : vector<8x256xf32>
    %c0_53 = arith.constant 0 : index
    %c0_54 = arith.constant 0 : index
    %109 = vector.load %arg8[%c0_53, %c0_54] : memref<8x256xf32, #tpu.memory_space<vmem>>, vector<8x256xf32>
    tpu.vector_store %arg8[%c0_53, %c0_54], %108 {strides = array<i32>} : memref<8x256xf32, #tpu.memory_space<vmem>>, vector<8x256xf32>,
    %c0_55 = arith.constant 0 : index
    %c0_56 = arith.constant 0 : index
    %110 = vector.load %arg8[%c0_55, %c0_56] : memref<8x256xf32, #tpu.memory_space<vmem>>, vector<8x256xf32>
    %c24 = arith.constant 24 : index
    %c0_57 = arith.constant 0 : index
    %111 = vector.load %arg10[%c24, %c0_57] : memref<64x1024xf32, #tpu.memory_space<vmem>>, vector<8x1024xf32>
    %c0_58 = arith.constant 0 : index
    %c0_59 = arith.constant 0 : index
    %112 = vector.load %arg3[%c0_58, %c0_59] : memref<256x1024xf32, #tpu.memory_space<vmem>>, vector<256x1024xf32>
    %cst_60 = arith.constant dense<0.000000e+00> : vector<8x1024xf32>
    %113 = tpu.matmul %110, %112, %cst_60 {dimension_numbers = #tpu.dot_dimension_numbers<[1], [0], [0], [1], [0, 0, 1, 1], [], []>} : vector<8x256xf32>, vector<256x1024xf32>, vector<8x1024xf32> -> vector<8x1024xf32>
    %114 = arith.addf %111, %113 : vector<8x1024xf32>
    %115 = vector.extract_strided_slice %114 {offsets = [0, 0], sizes = [8, 256], strides = [1, 1]} : vector<8x1024xf32> to vector<8x256xf32>
    %116 = arith.negf %115 : vector<8x256xf32>
    %117 = math.exp %116 : vector<8x256xf32>
    %cst_61 = arith.constant 1.000000e+00 : f32
    %118 = vector.broadcast %cst_61 : f32 to vector<8x256xf32>
    %119 = arith.addf %118, %117 : vector<8x256xf32>
    %120 = arith.divf %118, %119 : vector<8x256xf32>
    %121 = vector.extract_strided_slice %114 {offsets = [0, 256], sizes = [8, 256], strides = [1, 1]} : vector<8x1024xf32> to vector<8x256xf32>
    %122 = arith.negf %121 : vector<8x256xf32>
    %123 = math.exp %122 : vector<8x256xf32>
    %cst_62 = arith.constant 1.000000e+00 : f32
    %124 = vector.broadcast %cst_62 : f32 to vector<8x256xf32>
    %125 = arith.addf %124, %123 : vector<8x256xf32>
    %126 = arith.divf %124, %125 : vector<8x256xf32>
    %127 = vector.extract_strided_slice %114 {offsets = [0, 512], sizes = [8, 256], strides = [1, 1]} : vector<8x1024xf32> to vector<8x256xf32>
    %128 = math.tanh %127 : vector<8x256xf32>
    %129 = vector.extract_strided_slice %114 {offsets = [0, 768], sizes = [8, 256], strides = [1, 1]} : vector<8x1024xf32> to vector<8x256xf32>
    %130 = arith.negf %129 : vector<8x256xf32>
    %131 = math.exp %130 : vector<8x256xf32>
    %cst_63 = arith.constant 1.000000e+00 : f32
    %132 = vector.broadcast %cst_63 : f32 to vector<8x256xf32>
    %133 = arith.addf %132, %131 : vector<8x256xf32>
    %134 = arith.divf %132, %133 : vector<8x256xf32>
    %c0_64 = arith.constant 0 : index
    %c0_65 = arith.constant 0 : index
    %135 = vector.load %arg9[%c0_64, %c0_65] : memref<8x256xf32, #tpu.memory_space<vmem>>, vector<8x256xf32>
    %136 = arith.mulf %126, %135 : vector<8x256xf32>
    %137 = arith.mulf %120, %128 : vector<8x256xf32>
    %138 = arith.addf %136, %137 : vector<8x256xf32>
    %c0_66 = arith.constant 0 : index
    %c0_67 = arith.constant 0 : index
    %139 = vector.load %arg9[%c0_66, %c0_67] : memref<8x256xf32, #tpu.memory_space<vmem>>, vector<8x256xf32>
    tpu.vector_store %arg9[%c0_66, %c0_67], %138 {strides = array<i32>} : memref<8x256xf32, #tpu.memory_space<vmem>>, vector<8x256xf32>,
    %140 = math.tanh %138 : vector<8x256xf32>
    %141 = arith.mulf %134, %140 : vector<8x256xf32>
    %c0_68 = arith.constant 0 : index
    %c0_69 = arith.constant 0 : index
    %142 = vector.load %arg8[%c0_68, %c0_69] : memref<8x256xf32, #tpu.memory_space<vmem>>, vector<8x256xf32>
    tpu.vector_store %arg8[%c0_68, %c0_69], %141 {strides = array<i32>} : memref<8x256xf32, #tpu.memory_space<vmem>>, vector<8x256xf32>,
    %c0_70 = arith.constant 0 : index
    %c0_71 = arith.constant 0 : index
    %143 = vector.load %arg8[%c0_70, %c0_71] : memref<8x256xf32, #tpu.memory_space<vmem>>, vector<8x256xf32>
    %c32 = arith.constant 32 : index
    %c0_72 = arith.constant 0 : index
    %144 = vector.load %arg10[%c32, %c0_72] : memref<64x1024xf32, #tpu.memory_space<vmem>>, vector<8x1024xf32>
    %c0_73 = arith.constant 0 : index
    %c0_74 = arith.constant 0 : index
    %145 = vector.load %arg3[%c0_73, %c0_74] : memref<256x1024xf32, #tpu.memory_space<vmem>>, vector<256x1024xf32>
    %cst_75 = arith.constant dense<0.000000e+00> : vector<8x1024xf32>
    %146 = tpu.matmul %143, %145, %cst_75 {dimension_numbers = #tpu.dot_dimension_numbers<[1], [0], [0], [1], [0, 0, 1, 1], [], []>} : vector<8x256xf32>, vector<256x1024xf32>, vector<8x1024xf32> -> vector<8x1024xf32>
    %147 = arith.addf %144, %146 : vector<8x1024xf32>
    %148 = vector.extract_strided_slice %147 {offsets = [0, 0], sizes = [8, 256], strides = [1, 1]} : vector<8x1024xf32> to vector<8x256xf32>
    %149 = arith.negf %148 : vector<8x256xf32>
    %150 = math.exp %149 : vector<8x256xf32>
    %cst_76 = arith.constant 1.000000e+00 : f32
    %151 = vector.broadcast %cst_76 : f32 to vector<8x256xf32>
    %152 = arith.addf %151, %150 : vector<8x256xf32>
    %153 = arith.divf %151, %152 : vector<8x256xf32>
    %154 = vector.extract_strided_slice %147 {offsets = [0, 256], sizes = [8, 256], strides = [1, 1]} : vector<8x1024xf32> to vector<8x256xf32>
    %155 = arith.negf %154 : vector<8x256xf32>
    %156 = math.exp %155 : vector<8x256xf32>
    %cst_77 = arith.constant 1.000000e+00 : f32
    %157 = vector.broadcast %cst_77 : f32 to vector<8x256xf32>
    %158 = arith.addf %157, %156 : vector<8x256xf32>
    %159 = arith.divf %157, %158 : vector<8x256xf32>
    %160 = vector.extract_strided_slice %147 {offsets = [0, 512], sizes = [8, 256], strides = [1, 1]} : vector<8x1024xf32> to vector<8x256xf32>
    %161 = math.tanh %160 : vector<8x256xf32>
    %162 = vector.extract_strided_slice %147 {offsets = [0, 768], sizes = [8, 256], strides = [1, 1]} : vector<8x1024xf32> to vector<8x256xf32>
    %163 = arith.negf %162 : vector<8x256xf32>
    %164 = math.exp %163 : vector<8x256xf32>
    %cst_78 = arith.constant 1.000000e+00 : f32
    %165 = vector.broadcast %cst_78 : f32 to vector<8x256xf32>
    %166 = arith.addf %165, %164 : vector<8x256xf32>
    %167 = arith.divf %165, %166 : vector<8x256xf32>
    %c0_79 = arith.constant 0 : index
    %c0_80 = arith.constant 0 : index
    %168 = vector.load %arg9[%c0_79, %c0_80] : memref<8x256xf32, #tpu.memory_space<vmem>>, vector<8x256xf32>
    %169 = arith.mulf %159, %168 : vector<8x256xf32>
    %170 = arith.mulf %153, %161 : vector<8x256xf32>
    %171 = arith.addf %169, %170 : vector<8x256xf32>
    %c0_81 = arith.constant 0 : index
    %c0_82 = arith.constant 0 : index
    %172 = vector.load %arg9[%c0_81, %c0_82] : memref<8x256xf32, #tpu.memory_space<vmem>>, vector<8x256xf32>
    tpu.vector_store %arg9[%c0_81, %c0_82], %171 {strides = array<i32>} : memref<8x256xf32, #tpu.memory_space<vmem>>, vector<8x256xf32>,
    %173 = math.tanh %171 : vector<8x256xf32>
    %174 = arith.mulf %167, %173 : vector<8x256xf32>
    %c0_83 = arith.constant 0 : index
    %c0_84 = arith.constant 0 : index
    %175 = vector.load %arg8[%c0_83, %c0_84] : memref<8x256xf32, #tpu.memory_space<vmem>>, vector<8x256xf32>
    tpu.vector_store %arg8[%c0_83, %c0_84], %174 {strides = array<i32>} : memref<8x256xf32, #tpu.memory_space<vmem>>, vector<8x256xf32>,
    %c0_85 = arith.constant 0 : index
    %c0_86 = arith.constant 0 : index
    %176 = vector.load %arg8[%c0_85, %c0_86] : memref<8x256xf32, #tpu.memory_space<vmem>>, vector<8x256xf32>
    %c40 = arith.constant 40 : index
    %c0_87 = arith.constant 0 : index
    %177 = vector.load %arg10[%c40, %c0_87] : memref<64x1024xf32, #tpu.memory_space<vmem>>, vector<8x1024xf32>
    %c0_88 = arith.constant 0 : index
    %c0_89 = arith.constant 0 : index
    %178 = vector.load %arg3[%c0_88, %c0_89] : memref<256x1024xf32, #tpu.memory_space<vmem>>, vector<256x1024xf32>
    %cst_90 = arith.constant dense<0.000000e+00> : vector<8x1024xf32>
    %179 = tpu.matmul %176, %178, %cst_90 {dimension_numbers = #tpu.dot_dimension_numbers<[1], [0], [0], [1], [0, 0, 1, 1], [], []>} : vector<8x256xf32>, vector<256x1024xf32>, vector<8x1024xf32> -> vector<8x1024xf32>
    %180 = arith.addf %177, %179 : vector<8x1024xf32>
    %181 = vector.extract_strided_slice %180 {offsets = [0, 0], sizes = [8, 256], strides = [1, 1]} : vector<8x1024xf32> to vector<8x256xf32>
    %182 = arith.negf %181 : vector<8x256xf32>
    %183 = math.exp %182 : vector<8x256xf32>
    %cst_91 = arith.constant 1.000000e+00 : f32
    %184 = vector.broadcast %cst_91 : f32 to vector<8x256xf32>
    %185 = arith.addf %184, %183 : vector<8x256xf32>
    %186 = arith.divf %184, %185 : vector<8x256xf32>
    %187 = vector.extract_strided_slice %180 {offsets = [0, 256], sizes = [8, 256], strides = [1, 1]} : vector<8x1024xf32> to vector<8x256xf32>
    %188 = arith.negf %187 : vector<8x256xf32>
    %189 = math.exp %188 : vector<8x256xf32>
    %cst_92 = arith.constant 1.000000e+00 : f32
    %190 = vector.broadcast %cst_92 : f32 to vector<8x256xf32>
    %191 = arith.addf %190, %189 : vector<8x256xf32>
    %192 = arith.divf %190, %191 : vector<8x256xf32>
    %193 = vector.extract_strided_slice %180 {offsets = [0, 512], sizes = [8, 256], strides = [1, 1]} : vector<8x1024xf32> to vector<8x256xf32>
    %194 = math.tanh %193 : vector<8x256xf32>
    %195 = vector.extract_strided_slice %180 {offsets = [0, 768], sizes = [8, 256], strides = [1, 1]} : vector<8x1024xf32> to vector<8x256xf32>
    %196 = arith.negf %195 : vector<8x256xf32>
    %197 = math.exp %196 : vector<8x256xf32>
    %cst_93 = arith.constant 1.000000e+00 : f32
    %198 = vector.broadcast %cst_93 : f32 to vector<8x256xf32>
    %199 = arith.addf %198, %197 : vector<8x256xf32>
    %200 = arith.divf %198, %199 : vector<8x256xf32>
    %c0_94 = arith.constant 0 : index
    %c0_95 = arith.constant 0 : index
    %201 = vector.load %arg9[%c0_94, %c0_95] : memref<8x256xf32, #tpu.memory_space<vmem>>, vector<8x256xf32>
    %202 = arith.mulf %192, %201 : vector<8x256xf32>
    %203 = arith.mulf %186, %194 : vector<8x256xf32>
    %204 = arith.addf %202, %203 : vector<8x256xf32>
    %c0_96 = arith.constant 0 : index
    %c0_97 = arith.constant 0 : index
    %205 = vector.load %arg9[%c0_96, %c0_97] : memref<8x256xf32, #tpu.memory_space<vmem>>, vector<8x256xf32>
    tpu.vector_store %arg9[%c0_96, %c0_97], %204 {strides = array<i32>} : memref<8x256xf32, #tpu.memory_space<vmem>>, vector<8x256xf32>,
    %206 = math.tanh %204 : vector<8x256xf32>
    %207 = arith.mulf %200, %206 : vector<8x256xf32>
    %c0_98 = arith.constant 0 : index
    %c0_99 = arith.constant 0 : index
    %208 = vector.load %arg8[%c0_98, %c0_99] : memref<8x256xf32, #tpu.memory_space<vmem>>, vector<8x256xf32>
    tpu.vector_store %arg8[%c0_98, %c0_99], %207 {strides = array<i32>} : memref<8x256xf32, #tpu.memory_space<vmem>>, vector<8x256xf32>,
    %c0_100 = arith.constant 0 : index
    %c0_101 = arith.constant 0 : index
    %209 = vector.load %arg8[%c0_100, %c0_101] : memref<8x256xf32, #tpu.memory_space<vmem>>, vector<8x256xf32>
    %c48 = arith.constant 48 : index
    %c0_102 = arith.constant 0 : index
    %210 = vector.load %arg10[%c48, %c0_102] : memref<64x1024xf32, #tpu.memory_space<vmem>>, vector<8x1024xf32>
    %c0_103 = arith.constant 0 : index
    %c0_104 = arith.constant 0 : index
    %211 = vector.load %arg3[%c0_103, %c0_104] : memref<256x1024xf32, #tpu.memory_space<vmem>>, vector<256x1024xf32>
    %cst_105 = arith.constant dense<0.000000e+00> : vector<8x1024xf32>
    %212 = tpu.matmul %209, %211, %cst_105 {dimension_numbers = #tpu.dot_dimension_numbers<[1], [0], [0], [1], [0, 0, 1, 1], [], []>} : vector<8x256xf32>, vector<256x1024xf32>, vector<8x1024xf32> -> vector<8x1024xf32>
    %213 = arith.addf %210, %212 : vector<8x1024xf32>
    %214 = vector.extract_strided_slice %213 {offsets = [0, 0], sizes = [8, 256], strides = [1, 1]} : vector<8x1024xf32> to vector<8x256xf32>
    %215 = arith.negf %214 : vector<8x256xf32>
    %216 = math.exp %215 : vector<8x256xf32>
    %cst_106 = arith.constant 1.000000e+00 : f32
    %217 = vector.broadcast %cst_106 : f32 to vector<8x256xf32>
    %218 = arith.addf %217, %216 : vector<8x256xf32>
    %219 = arith.divf %217, %218 : vector<8x256xf32>
    %220 = vector.extract_strided_slice %213 {offsets = [0, 256], sizes = [8, 256], strides = [1, 1]} : vector<8x1024xf32> to vector<8x256xf32>
    %221 = arith.negf %220 : vector<8x256xf32>
    %222 = math.exp %221 : vector<8x256xf32>
    %cst_107 = arith.constant 1.000000e+00 : f32
    %223 = vector.broadcast %cst_107 : f32 to vector<8x256xf32>
    %224 = arith.addf %223, %222 : vector<8x256xf32>
    %225 = arith.divf %223, %224 : vector<8x256xf32>
    %226 = vector.extract_strided_slice %213 {offsets = [0, 512], sizes = [8, 256], strides = [1, 1]} : vector<8x1024xf32> to vector<8x256xf32>
    %227 = math.tanh %226 : vector<8x256xf32>
    %228 = vector.extract_strided_slice %213 {offsets = [0, 768], sizes = [8, 256], strides = [1, 1]} : vector<8x1024xf32> to vector<8x256xf32>
    %229 = arith.negf %228 : vector<8x256xf32>
    %230 = math.exp %229 : vector<8x256xf32>
    %cst_108 = arith.constant 1.000000e+00 : f32
    %231 = vector.broadcast %cst_108 : f32 to vector<8x256xf32>
    %232 = arith.addf %231, %230 : vector<8x256xf32>
    %233 = arith.divf %231, %232 : vector<8x256xf32>
    %c0_109 = arith.constant 0 : index
    %c0_110 = arith.constant 0 : index
    %234 = vector.load %arg9[%c0_109, %c0_110] : memref<8x256xf32, #tpu.memory_space<vmem>>, vector<8x256xf32>
    %235 = arith.mulf %225, %234 : vector<8x256xf32>
    %236 = arith.mulf %219, %227 : vector<8x256xf32>
    %237 = arith.addf %235, %236 : vector<8x256xf32>
    %c0_111 = arith.constant 0 : index
    %c0_112 = arith.constant 0 : index
    %238 = vector.load %arg9[%c0_111, %c0_112] : memref<8x256xf32, #tpu.memory_space<vmem>>, vector<8x256xf32>
    tpu.vector_store %arg9[%c0_111, %c0_112], %237 {strides = array<i32>} : memref<8x256xf32, #tpu.memory_space<vmem>>, vector<8x256xf32>,
    %239 = math.tanh %237 : vector<8x256xf32>
    %240 = arith.mulf %233, %239 : vector<8x256xf32>
    %c0_113 = arith.constant 0 : index
    %c0_114 = arith.constant 0 : index
    %241 = vector.load %arg8[%c0_113, %c0_114] : memref<8x256xf32, #tpu.memory_space<vmem>>, vector<8x256xf32>
    tpu.vector_store %arg8[%c0_113, %c0_114], %240 {strides = array<i32>} : memref<8x256xf32, #tpu.memory_space<vmem>>, vector<8x256xf32>,
    %c0_115 = arith.constant 0 : index
    %c0_116 = arith.constant 0 : index
    %242 = vector.load %arg8[%c0_115, %c0_116] : memref<8x256xf32, #tpu.memory_space<vmem>>, vector<8x256xf32>
    %c56 = arith.constant 56 : index
    %c0_117 = arith.constant 0 : index
    %243 = vector.load %arg10[%c56, %c0_117] : memref<64x1024xf32, #tpu.memory_space<vmem>>, vector<8x1024xf32>
    %c0_118 = arith.constant 0 : index
    %c0_119 = arith.constant 0 : index
    %244 = vector.load %arg3[%c0_118, %c0_119] : memref<256x1024xf32, #tpu.memory_space<vmem>>, vector<256x1024xf32>
    %cst_120 = arith.constant dense<0.000000e+00> : vector<8x1024xf32>
    %245 = tpu.matmul %242, %244, %cst_120 {dimension_numbers = #tpu.dot_dimension_numbers<[1], [0], [0], [1], [0, 0, 1, 1], [], []>} : vector<8x256xf32>, vector<256x1024xf32>, vector<8x1024xf32> -> vector<8x1024xf32>
    %246 = arith.addf %243, %245 : vector<8x1024xf32>
    %247 = vector.extract_strided_slice %246 {offsets = [0, 0], sizes = [8, 256], strides = [1, 1]} : vector<8x1024xf32> to vector<8x256xf32>
    %248 = arith.negf %247 : vector<8x256xf32>
    %249 = math.exp %248 : vector<8x256xf32>
    %cst_121 = arith.constant 1.000000e+00 : f32
    %250 = vector.broadcast %cst_121 : f32 to vector<8x256xf32>
    %251 = arith.addf %250, %249 : vector<8x256xf32>
    %252 = arith.divf %250, %251 : vector<8x256xf32>
    %253 = vector.extract_strided_slice %246 {offsets = [0, 256], sizes = [8, 256], strides = [1, 1]} : vector<8x1024xf32> to vector<8x256xf32>
    %254 = arith.negf %253 : vector<8x256xf32>
    %255 = math.exp %254 : vector<8x256xf32>
    %cst_122 = arith.constant 1.000000e+00 : f32
    %256 = vector.broadcast %cst_122 : f32 to vector<8x256xf32>
    %257 = arith.addf %256, %255 : vector<8x256xf32>
    %258 = arith.divf %256, %257 : vector<8x256xf32>
    %259 = vector.extract_strided_slice %246 {offsets = [0, 512], sizes = [8, 256], strides = [1, 1]} : vector<8x1024xf32> to vector<8x256xf32>
    %260 = math.tanh %259 : vector<8x256xf32>
    %261 = vector.extract_strided_slice %246 {offsets = [0, 768], sizes = [8, 256], strides = [1, 1]} : vector<8x1024xf32> to vector<8x256xf32>
    %262 = arith.negf %261 : vector<8x256xf32>
    %263 = math.exp %262 : vector<8x256xf32>
    %cst_123 = arith.constant 1.000000e+00 : f32
    %264 = vector.broadcast %cst_123 : f32 to vector<8x256xf32>
    %265 = arith.addf %264, %263 : vector<8x256xf32>
    %266 = arith.divf %264, %265 : vector<8x256xf32>
    %c0_124 = arith.constant 0 : index
    %c0_125 = arith.constant 0 : index
    %267 = vector.load %arg9[%c0_124, %c0_125] : memref<8x256xf32, #tpu.memory_space<vmem>>, vector<8x256xf32>
    %268 = arith.mulf %258, %267 : vector<8x256xf32>
    %269 = arith.mulf %252, %260 : vector<8x256xf32>
    %270 = arith.addf %268, %269 : vector<8x256xf32>
    %c0_126 = arith.constant 0 : index
    %c0_127 = arith.constant 0 : index
    %271 = vector.load %arg9[%c0_126, %c0_127] : memref<8x256xf32, #tpu.memory_space<vmem>>, vector<8x256xf32>
    tpu.vector_store %arg9[%c0_126, %c0_127], %270 {strides = array<i32>} : memref<8x256xf32, #tpu.memory_space<vmem>>, vector<8x256xf32>,
    %272 = math.tanh %270 : vector<8x256xf32>
    %273 = arith.mulf %266, %272 : vector<8x256xf32>
    %c0_128 = arith.constant 0 : index
    %c0_129 = arith.constant 0 : index
    %274 = vector.load %arg8[%c0_128, %c0_129] : memref<8x256xf32, #tpu.memory_space<vmem>>, vector<8x256xf32>
    tpu.vector_store %arg8[%c0_128, %c0_129], %273 {strides = array<i32>} : memref<8x256xf32, #tpu.memory_space<vmem>>, vector<8x256xf32>,
    %c1_i32 = arith.constant 1 : i32
    %275 = arith.cmpi eq, %arg0, %c1_i32 : i32
    %276 = arith.extui %275 : i1 to i32
    %c0_i32_130 = arith.constant 0 : i32
    %277 = arith.cmpi ne, %276, %c0_i32_130 : i32
    scf.if %277 {
      %c0_131 = arith.constant 0 : index
      %c0_132 = arith.constant 0 : index
      %278 = vector.load %arg8[%c0_131, %c0_132] : memref<8x256xf32, #tpu.memory_space<vmem>>, vector<8x256xf32>
      %c0_133 = arith.constant 0 : index
      %c0_134 = arith.constant 0 : index
      %279 = vector.load %arg5[%c0_133, %c0_134] : memref<1x256xf32, #tpu.memory_space<vmem>>, vector<1x256xf32>
      %280 = vector.broadcast %279 : vector<1x256xf32> to vector<8x256xf32>
      %281 = arith.mulf %278, %280 : vector<8x256xf32>
      %cst_135 = arith.constant dense<0.000000e+00> : vector<8xf32>
      %282 = vector.multi_reduction <add>, %281, %cst_135 [1] : vector<8x256xf32> to vector<8xf32>
      %283 = vector.shape_cast %282 : vector<8xf32> to vector<8x1xf32>
      %c0_136 = arith.constant 0 : index
      %c0_137 = arith.constant 0 : index
      %284 = vector.load %arg6[%c0_136, %c0_137] : memref<1x1xf32, #tpu.memory_space<vmem>>, vector<1x1xf32>
      %285 = vector.broadcast %284 : vector<1x1xf32> to vector<8x1xf32>
      %286 = arith.addf %283, %285 : vector<8x1xf32>
      %c0_138 = arith.constant 0 : index
      %c0_139 = arith.constant 0 : index
      %287 = vector.load %arg7[%c0_138, %c0_139] : memref<8x1xf32, #tpu.memory_space<vmem>>, vector<8x1xf32>
      tpu.vector_store %arg7[%c0_138, %c0_139], %286 {strides = array<i32>} : memref<8x1xf32, #tpu.memory_space<vmem>>, vector<8x1xf32>,
    } else {
    }
    return
  }
  func.func @transform_0(%arg0: i32) -> (i32, i32, i32) {
    %c0_i32 = arith.constant 0 : i32
    %c0_i32_0 = arith.constant 0 : i32
    %c0_i32_1 = arith.constant 0 : i32
    return %arg0, %c0_i32, %c0_i32_0 : i32, i32, i32
  }
  func.func @transform_1(%arg0: i32) -> (i32, i32) {
    %c0_i32 = arith.constant 0 : i32
    %c0_i32_0 = arith.constant 0 : i32
    %c0_i32_1 = arith.constant 0 : i32
    return %c0_i32, %c0_i32_0 : i32, i32
  }
  func.func @transform_2(%arg0: i32) -> (i32, i32) {
    %c0_i32 = arith.constant 0 : i32
    %c0_i32_0 = arith.constant 0 : i32
    %c0_i32_1 = arith.constant 0 : i32
    return %c0_i32, %c0_i32_0 : i32, i32
  }
  func.func @transform_3(%arg0: i32) -> (i32, i32) {
    %c0_i32 = arith.constant 0 : i32
    %c0_i32_0 = arith.constant 0 : i32
    %c0_i32_1 = arith.constant 0 : i32
    return %c0_i32, %c0_i32_0 : i32, i32
  }
  func.func @transform_4(%arg0: i32) -> (i32, i32) {
    %c0_i32 = arith.constant 0 : i32
    %c0_i32_0 = arith.constant 0 : i32
    %c0_i32_1 = arith.constant 0 : i32
    return %c0_i32, %c0_i32_0 : i32, i32
  }
  func.func @transform_5(%arg0: i32) -> (i32, i32) {
    %c0_i32 = arith.constant 0 : i32
    %c0_i32_0 = arith.constant 0 : i32
    %c0_i32_1 = arith.constant 0 : i32
    return %c0_i32, %c0_i32_0 : i32, i32
  }
  func.func @transform_6(%arg0: i32) -> (i32, i32) {
    %c0_i32 = arith.constant 0 : i32
    %c0_i32_0 = arith.constant 0 : i32
    %c0_i32_1 = arith.constant 0 : i32
    return %c0_i32, %c0_i32_0 : i32, i32
  }
}

</mosaic_0001>

<llo_original>
// kernel: tpu_custom_call.1
$region0: #{tpu_custom_call.1}
  #allocation0 [shape = 'u32[]', space=smem, size = 0x4, offset = 0x4, fixed_abs, tag = 'smem constant byte address 0x4 - core index']
  #allocation1 [shape = 'u32[144,128]{1,0:T(1,128)}', space=vmem, size = 0x12000, scoped, tag = 'internal scratch']
  #allocation2 [shape = 'f32[8,256]{1,0:T(8,128)}', space=vmem, size = 0x2000, scoped, tag = 'scratch operand']
  #allocation3 [shape = 'f32[8,256]{1,0:T(8,128)}', space=vmem, size = 0x2000, scoped, tag = 'scratch operand']
  #allocation4 [shape = 'f32[64,1024]{1,0:T(8,128)}', space=vmem, size = 0x40000, scoped, tag = 'scratch operand']
  #allocation5 [shape = 'f32[1,1]{1,0:T(1,128)S(1)}', space=vmem, size = 0x200, scoped, tag = 'scoped memory for tpu_custom_call.1']
  %s0 = inlined_call_operand.hbm [shape: f32[16,8,32], index: 0, kind: input, shape index: {}]
  %s1 = inlined_call_operand.hbm [shape: f32[32,1024], index: 1, kind: input, shape index: {}]
  %s2 = inlined_call_operand.hbm [shape: f32[256,1024], index: 2, kind: input, shape index: {}]
  %s3 = inlined_call_operand.hbm [shape: f32[1,1024], index: 3, kind: input, shape index: {}]
  %s4 = inlined_call_operand.vmem [shape: f32[1,256], index: 4, kind: input, shape index: {}]
  %s5 = inlined_call_operand.<no memory space> [shape: f32[1,1], index: 5, kind: input, shape index: {}]
  %s6 = inlined_call_operand.vmem [shape: f32[8,1], index: 6, kind: output, shape index: {}]
  %s7 = sld [smem:[#allocation0]]
  $region81: #{tpu_custom_call.1} parent=0
    _
  %s9 = ssub.s32 1, %s7
  %s10 = scalar_select 0, %s9, %s7
  %v11 = vstv %s5
  %12 = vst [vmem:[#allocation5] sm:$0x1] %v11
  $region1: #{tpu_custom_call.1} parent=0
    #allocation6 [shape = 'u8[65536]{0}', space=vmem, size = 0x10000, scoped, tag = 'input window, operand 0']
    #allocation7 [shape = 's32[2]{0}', space=sflag, size = 0x8, scoped, tag = 'scoped memory for tpu_custom_call.1']
    #allocation8 [shape = 'u8[131072]{0}', space=vmem, size = 0x20000, scoped, tag = 'input window, operand 1, single buffered']
    #allocation9 [shape = 's32[1]{0}', space=sflag, size = 0x4, scoped, tag = 'scoped memory for tpu_custom_call.1']
    #allocation10 [shape = 'u8[1048576]{0}', space=vmem, size = 0x100000, scoped, tag = 'input window, operand 2, single buffered']
    #allocation11 [shape = 'u8[4096]{0}', space=vmem, size = 0x1000, scoped, tag = 'input window, operand 3, single buffered']
    #allocation12 [shape = 's32[1]{0}', space=sflag, size = 0x4, scoped, tag = 'scoped memory for tpu_custom_call.1']
    %13 = vsyncpa [#allocation7], 0
    %s14 = scalar_lea.sflag [#allocation7], 1
    %15 = vsyncpa %s14, 0
    %16 = vsyncpa [#allocation9], 0
    %17 = vsyncpa [#allocation12], 0
    loop: start=0, step=1, limit=4
    $region2: #{tpu_custom_call.1} parent=1 // loop_pre_header
      _
    $region3: #{tpu_custom_call.1} parent=1 // loop_header
      %s19 = sphi 0, %s23
      %p20 = scmp.ge.s32.totalorder %s19, 4
      %s29 = sphi 0, %s31
      %s32 = sphi 0, %s29
      %s33 = sphi 0, %s32
      %s49 = sphi 0, %s33
      %s53 = sphi 0, %s53
      %s55 = sphi 0, %s53
      %s56 = sphi 0, %s55
      %s70 = sphi 0, %s56
      %s74 = sphi 0, %s74
      %s76 = sphi 0, %s74
      %s77 = sphi 0, %s76
      %s91 = sphi 0, %s77
      %s95 = sphi 0, %s95
      %s97 = sphi 0, %s95
      %s98 = sphi 0, %s97
      %s112 = sphi 0, %s98
      %s116 = sphi 0, %s116
      %s118 = sphi 0, %s116
      %s119 = sphi 0, %s118
      %s133 = sphi 0, %s119
      %s137 = sphi 0, %s137
      %s139 = sphi 0, %s137
      %s140 = sphi 0, %s139
      %s154 = sphi 0, %s140
      %s158 = sphi 0, %s158
      %s160 = sphi 0, %s158
      %s161 = sphi 0, %s160
      %s175 = sphi 0, %s161
    $region4: #{tpu_custom_call.1} parent=1 // loop_header_branch
      %22 = sbr.rel (%p20) target = $region8
    $region5: #{tpu_custom_call.1} parent=1 // loop_body
      %s24 = ssub.s32 %s19, 1
      %s25 = ssub.s32 %s19, 2
      %s26 = sadd.s32 %s19, 1
      %s27 = ssub.s32 %s19, %s26
      %p28 = scmp.eq.s32.totalorder %s27, 0
      %s30 = sadd.s32 %s29, 1
      %s31 = scalar_select %p28, %s29, %s30
      %p34 = pneg %p28
      %p35 = scmp.eq.s32.totalorder %s19, 1
      %p36 = por %p34, %p35
      %p37 = scmp.ne.s32.totalorder %s29, %s32
      %p38 = scmp.eq.s32.totalorder %s19, 0
      %p39 = por %p37, %p38
      %p40 = scmp.ne.s32.totalorder %s29, %s32
      %p41 = scmp.eq.s32.totalorder %s24, 1
      %p42 = por %p40, %p41
      %p43 = scmp.ne.s32.totalorder %s32, %s33
      %p44 = scmp.eq.s32.totalorder %s24, 0
      %p45 = por %p43, %p44
      %p46 = scmp.ne.s32.totalorder %s32, %s33
      %p47 = scmp.eq.s32.totalorder %s25, 1
      %p48 = por %p46, %p47
      %p50 = scmp.ne.s32.totalorder %s33, %s49
      %p51 = scmp.eq.s32.totalorder %s25, 0
      %p52 = por %p50, %p51
      %s54 = sadd.s32 %s53, 1
      %p57 = scmp.eq.s32.totalorder %s19, 1
      %p58 = scmp.ne.s32.totalorder %s53, %s55
      %p59 = scmp.eq.s32.totalorder %s19, 0
      %p60 = por %p58, %p59
      %p61 = scmp.ne.s32.totalorder %s53, %s55
      %p62 = scmp.eq.s32.totalorder %s24, 1
      %p63 = por %p61, %p62
      %p64 = scmp.ne.s32.totalorder %s55, %s56
      %p65 = scmp.eq.s32.totalorder %s24, 0
      %p66 = por %p64, %p65
      %p67 = scmp.ne.s32.totalorder %s55, %s56
      %p68 = scmp.eq.s32.totalorder %s25, 1
      %p69 = por %p67, %p68
      %p71 = scmp.ne.s32.totalorder %s56, %s70
      %p72 = scmp.eq.s32.totalorder %s25, 0
      %p73 = por %p71, %p72
      %s75 = sadd.s32 %s74, 1
      %p78 = scmp.eq.s32.totalorder %s19, 1
      %p79 = scmp.ne.s32.totalorder %s74, %s76
      %p80 = scmp.eq.s32.totalorder %s19, 0
      %p81 = por %p79, %p80
      %p82 = scmp.ne.s32.totalorder %s74, %s76
      %p83 = scmp.eq.s32.totalorder %s24, 1
      %p84 = por %p82, %p83
      %p85 = scmp.ne.s32.totalorder %s76, %s77
      %p86 = scmp.eq.s32.totalorder %s24, 0
      %p87 = por %p85, %p86
      %p88 = scmp.ne.s32.totalorder %s76, %s77
      %p89 = scmp.eq.s32.totalorder %s25, 1
      %p90 = por %p88, %p89
      %p92 = scmp.ne.s32.totalorder %s77, %s91
      %p93 = scmp.eq.s32.totalorder %s25, 0
      %p94 = por %p92, %p93
      %s96 = sadd.s32 %s95, 1
      %p99 = scmp.eq.s32.totalorder %s19, 1
      %p100 = scmp.ne.s32.totalorder %s95, %s97
      %p101 = scmp.eq.s32.totalorder %s19, 0
      %p102 = por %p100, %p101
      %p103 = scmp.ne.s32.totalorder %s95, %s97
      %p104 = scmp.eq.s32.totalorder %s24, 1
      %p105 = por %p103, %p104
      %p106 = scmp.ne.s32.totalorder %s97, %s98
      %p107 = scmp.eq.s32.totalorder %s24, 0
      %p108 = por %p106, %p107
      %p109 = scmp.ne.s32.totalorder %s97, %s98
      %p110 = scmp.eq.s32.totalorder %s25, 1
      %p111 = por %p109, %p110
      %p113 = scmp.ne.s32.totalorder %s98, %s112
      %p114 = scmp.eq.s32.totalorder %s25, 0
      %p115 = por %p113, %p114
      %s117 = sadd.s32 %s116, 1
      %p120 = scmp.eq.s32.totalorder %s19, 1
      %p121 = scmp.ne.s32.totalorder %s116, %s118
      %p122 = scmp.eq.s32.totalorder %s19, 0
      %p123 = por %p121, %p122
      %p124 = scmp.ne.s32.totalorder %s116, %s118
      %p125 = scmp.eq.s32.totalorder %s24, 1
      %p126 = por %p124, %p125
      %p127 = scmp.ne.s32.totalorder %s118, %s119
      %p128 = scmp.eq.s32.totalorder %s24, 0
      %p129 = por %p127, %p128
      %p130 = scmp.ne.s32.totalorder %s118, %s119
      %p131 = scmp.eq.s32.totalorder %s25, 1
      %p132 = por %p130, %p131
      %p134 = scmp.ne.s32.totalorder %s119, %s133
      %p135 = scmp.eq.s32.totalorder %s25, 0
      %p136 = por %p134, %p135
      %s138 = sadd.s32 %s137, 1
      %p141 = scmp.eq.s32.totalorder %s19, 1
      %p142 = scmp.ne.s32.totalorder %s137, %s139
      %p143 = scmp.eq.s32.totalorder %s19, 0
      %p144 = por %p142, %p143
      %p145 = scmp.ne.s32.totalorder %s137, %s139
      %p146 = scmp.eq.s32.totalorder %s24, 1
      %p147 = por %p145, %p146
      %p148 = scmp.ne.s32.totalorder %s139, %s140
      %p149 = scmp.eq.s32.totalorder %s24, 0
      %p150 = por %p148, %p149
      %p151 = scmp.ne.s32.totalorder %s139, %s140
      %p152 = scmp.eq.s32.totalorder %s25, 1
      %p153 = por %p151, %p152
      %p155 = scmp.ne.s32.totalorder %s140, %s154
      %p156 = scmp.eq.s32.totalorder %s25, 0
      %p157 = por %p155, %p156
      %s159 = sadd.s32 %s158, 1
      %p162 = scmp.eq.s32.totalorder %s19, 1
      %p163 = scmp.ne.s32.totalorder %s158, %s160
      %p164 = scmp.eq.s32.totalorder %s19, 0
      %p165 = por %p163, %p164
      %p166 = scmp.ne.s32.totalorder %s158, %s160
      %p167 = scmp.eq.s32.totalorder %s24, 1
      %p168 = por %p166, %p167
      %p169 = scmp.ne.s32.totalorder %s160, %s161
      %p170 = scmp.eq.s32.totalorder %s24, 0
      %p171 = por %p169, %p170
      %p172 = scmp.ne.s32.totalorder %s160, %s161
      %p173 = scmp.eq.s32.totalorder %s25, 1
      %p174 = por %p172, %p173
      %p176 = scmp.ne.s32.totalorder %s161, %s175
      %p177 = scmp.eq.s32.totalorder %s25, 0
      %p178 = por %p176, %p177
      %p179 = scmp.le.s32.totalorder 1, %s19
      %p180 = scmp.lt.s32.totalorder %s19, 3
      %p181 = pnand %p179, %p180
      %p182 = pneg %p181
      // Predicated region
      $region9: #{tpu_custom_call.1} parent=5 // pred_check
        _
      $region10: #{tpu_custom_call.1} parent=5 // pred_check_branch
        %184 = sbr.rel (%p181) target = $region12
      $region11: #{tpu_custom_call.1} parent=5 // pred_region
        %s185 = ssub.s32 %s19, 1
        // Predicated region
        $region13: #{tpu_custom_call.1} parent=11 // pred_check
          %p186 = pneg %p66
        $region14: #{tpu_custom_call.1} parent=11 // pred_check_branch
          %188 = sbr.rel (%p186) target = $region16
        $region15: #{tpu_custom_call.1} parent=11 // pred_region
          %s190 = ssub.s32 4096, 4096
          %191 = vsyncadd [#allocation9], %s190
          %s192 = sshll.u32 [#allocation8], 4
          %s193 = int_to_ptr.vmem [resolvable:$true] %s192
          %198 = dma.hbm_to_vmem [thread:$0]  %s1, 4096, %s193, [#allocation9], 1024, 1024, 64
        $region16: #{tpu_custom_call.1} parent=11 // pred_fallthru
          _
        // Predicated region
        $region17: #{tpu_custom_call.1} parent=11 // pred_check
          %p199 = pneg %p87
        $region18: #{tpu_custom_call.1} parent=11 // pred_check_branch
          %201 = sbr.rel (%p199) target = $region20
        $region19: #{tpu_custom_call.1} parent=11 // pred_region
          %s203 = ssub.s32 32768, 32768
          %204 = vsyncadd [#allocation9], %s203
          %s205 = sshll.u32 [#allocation10], 4
          %s206 = int_to_ptr.vmem [resolvable:$true] %s205
          %211 = dma.hbm_to_vmem [thread:$0]  %s2, 32768, %s206, [#allocation9], 1024, 1024, 64
        $region20: #{tpu_custom_call.1} parent=11 // pred_fallthru
          _
        // Predicated region
        $region21: #{tpu_custom_call.1} parent=11 // pred_check
          %p212 = pneg %p108
        $region22: #{tpu_custom_call.1} parent=11 // pred_check_branch
          %214 = sbr.rel (%p212) target = $region24
        $region23: #{tpu_custom_call.1} parent=11 // pred_region
          %s216 = ssub.s32 128, 128
          %217 = vsyncadd [#allocation12], %s216
          %s219 = sshll.u32 [#allocation11], 4
          %s220 = int_to_ptr.vmem [resolvable:$true] %s219
          %222 = dma.hbm_to_vmem [thread:$0]  %s3, 128, %s220, [#allocation12]
        $region24: #{tpu_custom_call.1} parent=11 // pred_fallthru
          _
        // Predicated region
        $region25: #{tpu_custom_call.1} parent=11 // pred_check
          %p223 = pneg %p129
        $region26: #{tpu_custom_call.1} parent=11 // pred_check_branch
          %225 = sbr.rel (%p223) target = $region28
        $region27: #{tpu_custom_call.1} parent=11 // pred_region
          _
        $region28: #{tpu_custom_call.1} parent=11 // pred_fallthru
          _
        // Predicated region
        $region29: #{tpu_custom_call.1} parent=11 // pred_check
          %p226 = pneg %p150
        $region30: #{tpu_custom_call.1} parent=11 // pred_check_branch
          %228 = sbr.rel (%p226) target = $region32
        $region31: #{tpu_custom_call.1} parent=11 // pred_region
          _
        $region32: #{tpu_custom_call.1} parent=11 // pred_fallthru
          _
      $region12: #{tpu_custom_call.1} parent=5 // pred_fallthru
        _
      %p229 = scmp.lt.s32.totalorder %s19, 2
      // Predicated region
      $region33: #{tpu_custom_call.1} parent=5 // pred_check
        %p230 = pneg %p229
      $region34: #{tpu_custom_call.1} parent=5 // pred_check_branch
        %232 = sbr.rel (%p230) target = $region36
      $region35: #{tpu_custom_call.1} parent=5 // pred_region
        // Predicated region
        $region37: #{tpu_custom_call.1} parent=35 // pred_check
          %p233 = pneg %p39
        $region38: #{tpu_custom_call.1} parent=35 // pred_check_branch
          %235 = sbr.rel (%p233) target = $region40
        $region39: #{tpu_custom_call.1} parent=35 // pred_region
          %s236 = sand.u32 %s29, 1
          %s237 = scalar_lea.sflag [#allocation7], %s236
          %s238 = sand.u32 %s29, 1
          %s239 = smul.addr %s238, 64
          %s240 = scalar_lea.vmem [#allocation6], %s239
          %s241 = smul.u32 8, %s19
          %s243 = ssub.s32 1024, 1024
          %244 = vsyncadd %s237, %s243
          %s245 = smul.addr %s241, 128
          %s246 = scalar_lea.hbm %s0, %s245
          %s247 = sshll.u32 %s240, 4
          %s248 = int_to_ptr.vmem [resolvable:$true] %s247
          %253 = dma.hbm_to_vmem [thread:$0]  %s246, 1024, %s248, %s237, 128, 128, 8
        $region40: #{tpu_custom_call.1} parent=35 // pred_fallthru
          _
      $region36: #{tpu_custom_call.1} parent=5 // pred_fallthru
        _
      %p254 = scmp.le.s32.totalorder 1, %s19
      %p255 = scmp.lt.s32.totalorder %s19, 3
      %p256 = pnand %p254, %p255
      %p257 = pneg %p256
      // Predicated region
      $region41: #{tpu_custom_call.1} parent=5 // pred_check
        _
      $region42: #{tpu_custom_call.1} parent=5 // pred_check_branch
        %259 = sbr.rel (%p256) target = $region44
      $region43: #{tpu_custom_call.1} parent=5 // pred_region
        %s260 = ssub.s32 %s19, 1
        %s261 = sand.u32 %s32, 1
        %s262 = scalar_lea.sflag [#allocation7], %s261
        %s263 = sand.u32 %s32, 1
        %s264 = smul.addr %s263, 64
        %s265 = scalar_lea.vmem [#allocation6], %s264
        // Predicated region
        $region45: #{tpu_custom_call.1} parent=43 // pred_check
          %p266 = pneg %p45
        $region46: #{tpu_custom_call.1} parent=43 // pred_check_branch
          %268 = sbr.rel (%p266) target = $region48
        $region47: #{tpu_custom_call.1} parent=43 // pred_region
          %269 = dma.done %s262, 1024
        $region48: #{tpu_custom_call.1} parent=43 // pred_fallthru
          _
        // Predicated region
        $region49: #{tpu_custom_call.1} parent=43 // pred_check
          %p270 = pneg %p66
        $region50: #{tpu_custom_call.1} parent=43 // pred_check_branch
          %272 = sbr.rel (%p270) target = $region52
        $region51: #{tpu_custom_call.1} parent=43 // pred_region
          %273 = dma.done [#allocation9], 4096
        $region52: #{tpu_custom_call.1} parent=43 // pred_fallthru
          _
        // Predicated region
        $region53: #{tpu_custom_call.1} parent=43 // pred_check
          %p274 = pneg %p87
        $region54: #{tpu_custom_call.1} parent=43 // pred_check_branch
          %276 = sbr.rel (%p274) target = $region56
        $region55: #{tpu_custom_call.1} parent=43 // pred_region
          %277 = dma.done [#allocation9], 32768
        $region56: #{tpu_custom_call.1} parent=43 // pred_fallthru
          _
        // Predicated region
        $region57: #{tpu_custom_call.1} parent=43 // pred_check
          %p278 = pneg %p108
        $region58: #{tpu_custom_call.1} parent=43 // pred_check_branch
          %280 = sbr.rel (%p278) target = $region60
        $region59: #{tpu_custom_call.1} parent=43 // pred_region
          %281 = dma.done [#allocation12], 128
        $region60: #{tpu_custom_call.1} parent=43 // pred_fallthru
          _
        %s282 = sand.u32 %s32, 1
        %s283 = scalar_lea.sflag [#allocation7], %s282
        %s284 = sand.u32 %s32, 1
        %s285 = smul.addr %s284, 64
        %s286 = scalar_lea.vmem [#allocation6], %s285
        %p287 = pneg %p45
        %p288 = pneg %p42
        %p289 = pneg %p66
        %p290 = pneg %p63
        %p291 = pneg %p87
        %p292 = pneg %p84
        %p293 = pneg %p108
        %p294 = pneg %p105
        %p295 = pneg %p129
        %p296 = pneg %p126
        %p297 = pneg %p150
        %p298 = pneg %p147
        %p299 = pneg %p171
        %p300 = pneg %p168
        %s301 = smul.u32 8, %s24
        %p302 = scmp.eq.s32.totalorder %s24, 0
        // Predicated region
        $region61: #{tpu_custom_call.1} parent=43 // pred_check
          %p303 = pneg %p302
        $region62: #{tpu_custom_call.1} parent=43 // pred_check_branch
          %305 = sbr.rel (%p303) target = $region64
        $region63: #{tpu_custom_call.1} parent=43 // pred_region
          %306 = vst [vmem:[#allocation2] sm:$0xff] 0.0
          %307 = vst [vmem:[#allocation2 + $0x8] sm:$0xff] 0.0
          %308 = vst [vmem:[#allocation3] sm:$0xff] 0.0
          %309 = vst [vmem:[#allocation3 + $0x8] sm:$0xff] 0.0
        $region64: #{tpu_custom_call.1} parent=43 // pred_fallthru
          _
        %v310 = vld [vmem:[%s265] sm:$0xff]
        %v311 = vld [vmem:[%s265 + $0x8] sm:$0xff]
        %v312 = vld [vmem:[%s265 + $0x10] sm:$0xff]
        %v313 = vld [vmem:[%s265 + $0x18] sm:$0xff]
        %v314 = vld [vmem:[%s265 + $0x20] sm:$0xff]
        %v315 = vld [vmem:[%s265 + $0x28] sm:$0xff]
        %v316 = vld [vmem:[%s265 + $0x30] sm:$0xff]
        %v317 = vld [vmem:[%s265 + $0x38] sm:$0xff]
        %v318 = vld [vmem:[#allocation8] sm:$0xff]
        %v319 = vld [vmem:[#allocation8 + $0x8] sm:$0xff]
        %v320 = vld [vmem:[#allocation8 + $0x10] sm:$0xff]
        %v321 = vld [vmem:[#allocation8 + $0x18] sm:$0xff]
        %v322 = vld [vmem:[#allocation8 + $0x20] sm:$0xff]
        %v323 = vld [vmem:[#allocation8 + $0x28] sm:$0xff]
        %v324 = vld [vmem:[#allocation8 + $0x30] sm:$0xff]
        %v325 = vld [vmem:[#allocation8 + $0x38] sm:$0xff]
        %v326 = vld [vmem:[#allocation8 + $0x40] sm:$0xff]
        %v327 = vld [vmem:[#allocation8 + $0x48] sm:$0xff]
        %v328 = vld [vmem:[#allocation8 + $0x50] sm:$0xff]
        %v329 = vld [vmem:[#allocation8 + $0x58] sm:$0xff]
        %v330 = vld [vmem:[#allocation8 + $0x60] sm:$0xff]
        %v331 = vld [vmem:[#allocation8 + $0x68] sm:$0xff]
        %v332 = vld [vmem:[#allocation8 + $0x70] sm:$0xff]
        %v333 = vld [vmem:[#allocation8 + $0x78] sm:$0xff]
        %v334 = vld [vmem:[#allocation8 + $0x80] sm:$0xff]
        %v335 = vld [vmem:[#allocation8 + $0x88] sm:$0xff]
        %v336 = vld [vmem:[#allocation8 + $0x90] sm:$0xff]
        %v337 = vld [vmem:[#allocation8 + $0x98] sm:$0xff]
        %v338 = vld [vmem:[#allocation8 + $0xa0] sm:$0xff]
        %v339 = vld [vmem:[#allocation8 + $0xa8] sm:$0xff]
        %v340 = vld [vmem:[#allocation8 + $0xb0] sm:$0xff]
        %v341 = vld [vmem:[#allocation8 + $0xb8] sm:$0xff]
        %v342 = vld [vmem:[#allocation8 + $0xc0] sm:$0xff]
        %v343 = vld [vmem:[#allocation8 + $0xc8] sm:$0xff]
        %v344 = vld [vmem:[#allocation8 + $0xd0] sm:$0xff]
        %v345 = vld [vmem:[#allocation8 + $0xd8] sm:$0xff]
        %v346 = vld [vmem:[#allocation8 + $0xe0] sm:$0xff]
        %v347 = vld [vmem:[#allocation8 + $0xe8] sm:$0xff]
        %v348 = vld [vmem:[#allocation8 + $0xf0] sm:$0xff]
        %v349 = vld [vmem:[#allocation8 + $0xf8] sm:$0xff]
        %v350 = vld [vmem:[#allocation11] sm:$0xff]
        %v352 = vlaneseq
        %v353 = vshrl.u32 %v352, 7
        %v354 = vsub.s32 0, %v353
        %v355 = vrot.slane %v350, %v354
        %v356 = vlaneseq
        %v357 = vshrl.u32 %v356, 7
        %v358 = vsub.s32 1, %v357
        %v359 = vrot.slane %v350, %v358
        %v360 = vlaneseq
        %v361 = vshrl.u32 %v360, 7
        %v362 = vsub.s32 2, %v361
        %v363 = vrot.slane %v350, %v362
        %v364 = vlaneseq
        %v365 = vshrl.u32 %v364, 7
        %v366 = vsub.s32 3, %v365
        %v367 = vrot.slane %v350, %v366
        %v368 = vlaneseq
        %v369 = vshrl.u32 %v368, 7
        %v370 = vsub.s32 4, %v369
        %v371 = vrot.slane %v350, %v370
        %v372 = vlaneseq
        %v373 = vshrl.u32 %v372, 7
        %v374 = vsub.s32 5, %v373
        %v375 = vrot.slane %v350, %v374
        %v376 = vlaneseq
        %v377 = vshrl.u32 %v376, 7
        %v378 = vsub.s32 6, %v377
        %v379 = vrot.slane %v350, %v378
        %v380 = vlaneseq
        %v381 = vshrl.u32 %v380, 7
        %v382 = vsub.s32 7, %v381
        %v383 = vrot.slane %v350, %v382
        %vm392 = vcmask 261120
        %v394 = vsel %vm392, %v310, 0
        %v397 = vsel %vm392, %v311, 0
        %v400 = vsel %vm392, %v312, 0
        %v403 = vsel %vm392, %v313, 0
        %v406 = vsel %vm392, %v314, 0
        %v409 = vsel %vm392, %v315, 0
        %v412 = vsel %vm392, %v316, 0
        %v415 = vsel %vm392, %v317, 0
        %417 = vmatprep.subr.mxu0 0.0
        %418 = vmatpush1.msra.mxu0 0.0
        %419 = vmatprep.subr.mxu0 0.0
        %420 = vmatpush1.msra.mxu0 0.0
        %421 = vmatprep.subr.mxu0 0.0
        %422 = vmatpush1.msra.mxu0 0.0
        %423 = vmatprep.subr.mxu0 0.0
        %424 = vmatpush1.msra.mxu0 0.0
        %425 = vmatprep.subr.mxu0 0.0
        %426 = vmatpush1.msra.mxu0 0.0
        %427 = vmatprep.subr.mxu0 0.0
        %428 = vmatpush1.msra.mxu0 0.0
        %429 = vmatprep.subr.mxu0 0.0
        %430 = vmatpush1.msra.mxu0 0.0
        %431 = vmatprep.subr.mxu0 0.0
        %432 = vmatpush1.msra.mxu0 0.0
        %433 = vmatprep.subr.mxu0 0.0
        %434 = vmatpush1.msra.mxu0 0.0
        %435 = vmatprep.subr.mxu0 0.0
        %436 = vmatpush1.msra.mxu0 0.0
        %437 = vmatprep.subr.mxu0 0.0
        %438 = vmatpush1.msra.mxu0 0.0
        %439 = vmatprep.subr.mxu0 0.0
        %440 = vmatpush1.msra.mxu0 0.0
        %441 = vmatprep.subr.mxu0 %v343
        %442 = vmatpush1.msra.mxu0 %v342
        %443 = vmatprep.subr.mxu0 %v335
        %444 = vmatpush1.msra.mxu0 %v334
        %445 = vmatprep.subr.mxu0 %v327
        %446 = vmatpush1.msra.mxu0 %v326
        %447 = vmatprep.subr.mxu0 %v319
        %448 = vmatpush1.msra.mxu0 %v318
        %449 = vmatprep.subr.mxu0 0.0
        %450 = vmatpush2.msra.mxu0 0.0
        %451 = vmatprep.subr.mxu0 0.0
        %452 = vmatpush2.msra.mxu0 0.0
        %453 = vmatprep.subr.mxu0 0.0
        %454 = vmatpush2.msra.mxu0 0.0
        %455 = vmatprep.subr.mxu0 0.0
        %456 = vmatpush2.msra.mxu0 0.0
        %457 = vmatprep.subr.mxu0 0.0
        %458 = vmatpush2.msra.mxu0 0.0
        %459 = vmatprep.subr.mxu0 0.0
        %460 = vmatpush2.msra.mxu0 0.0
        %461 = vmatprep.subr.mxu0 0.0
        %462 = vmatpush2.msra.mxu0 0.0
        %463 = vmatprep.subr.mxu0 0.0
        %464 = vmatpush2.msra.mxu0 0.0
        %465 = vmatprep.subr.mxu0 0.0
        %466 = vmatpush2.msra.mxu0 0.0
        %467 = vmatprep.subr.mxu0 0.0
        %468 = vmatpush2.msra.mxu0 0.0
        %469 = vmatprep.subr.mxu0 0.0
        %470 = vmatpush2.msra.mxu0 0.0
        %471 = vmatprep.subr.mxu0 0.0
        %472 = vmatpush2.msra.mxu0 0.0
        %473 = vmatprep.subr.mxu0 0.0
        %474 = vmatpush2.msra.mxu0 0.0
        %475 = vmatprep.subr.mxu0 0.0
        %476 = vmatpush2.msra.mxu0 0.0
        %477 = vmatprep.subr.mxu0 0.0
        %478 = vmatpush2.msra.mxu0 0.0
        %479 = vmatprep.subr.mxu0 0.0
        %480 = vmatpush2.msra.mxu0 0.0
        %481 = vmatprep.mubr.f32.mxu0 0.0
        %482 = vmatmul.mubr.f32.gmra.mxu0 %v394
        %v483 = vpop.f32.mrf.mxu0
        %v484 = vadd.f32 %v355, %v483
        %v485 = vpop.f32.mrf.mxu0
        %v486 = vadd.f32 %v359, %v485
        %487 = vmatprep.mubr.f32.mxu0 0.0
        %488 = vmatmul.mubr.f32.gmra.mxu0 %v397
        %v489 = vpop.f32.mrf.mxu0
        %v490 = vadd.f32 %v355, %v489
        %v491 = vpop.f32.mrf.mxu0
        %v492 = vadd.f32 %v359, %v491
        %493 = vmatprep.mubr.f32.mxu0 0.0
        %494 = vmatmul.mubr.f32.gmra.mxu0 %v400
        %v495 = vpop.f32.mrf.mxu0
        %v496 = vadd.f32 %v355, %v495
        %v497 = vpop.f32.mrf.mxu0
        %v498 = vadd.f32 %v359, %v497
        %499 = vmatprep.mubr.f32.mxu0 0.0
        %500 = vmatmul.mubr.f32.gmra.mxu0 %v403
        %v501 = vpop.f32.mrf.mxu0
        %v502 = vadd.f32 %v355, %v501
        %v503 = vpop.f32.mrf.mxu0
        %v504 = vadd.f32 %v359, %v503
        %505 = vmatprep.mubr.f32.mxu0 0.0
        %506 = vmatmul.mubr.f32.gmra.mxu0 %v406
        %v507 = vpop.f32.mrf.mxu0
        %v508 = vadd.f32 %v355, %v507
        %v509 = vpop.f32.mrf.mxu0
        %v510 = vadd.f32 %v359, %v509
        %511 = vmatprep.mubr.f32.mxu0 0.0
        %512 = vmatmul.mubr.f32.gmra.mxu0 %v409
        %v513 = vpop.f32.mrf.mxu0
        %v514 = vadd.f32 %v355, %v513
        %v515 = vpop.f32.mrf.mxu0
        %v516 = vadd.f32 %v359, %v515
        %517 = vmatprep.mubr.f32.mxu0 0.0
        %518 = vmatmul.mubr.f32.gmra.mxu0 %v412
        %v519 = vpop.f32.mrf.mxu0
        %v520 = vadd.f32 %v355, %v519
        %v521 = vpop.f32.mrf.mxu0
        %v522 = vadd.f32 %v359, %v521
        %523 = vmatprep.mubr.f32.mxu0 0.0
        %524 = vmatmul.mubr.f32.gmra.mxu0 %v415
        %v525 = vpop.f32.mrf.mxu0
        %v526 = vadd.f32 %v355, %v525
        %v527 = vpop.f32.mrf.mxu0
        %v528 = vadd.f32 %v359, %v527
        %529 = vdwg.mxu0
        %530 = vmatprep.subr.mxu0 0.0
        %531 = vmatpush1.msra.mxu0 0.0
        %532 = vmatprep.subr.mxu0 0.0
        %533 = vmatpush1.msra.mxu0 0.0
        %534 = vmatprep.subr.mxu0 0.0
        %535 = vmatpush1.msra.mxu0 0.0
        %536 = vmatprep.subr.mxu0 0.0
        %537 = vmatpush1.msra.mxu0 0.0
        %538 = vmatprep.subr.mxu0 0.0
        %539 = vmatpush1.msra.mxu0 0.0
        %540 = vmatprep.subr.mxu0 0.0
        %541 = vmatpush1.msra.mxu0 0.0
        %542 = vmatprep.subr.mxu0 0.0
        %543 = vmatpush1.msra.mxu0 0.0
        %544 = vmatprep.subr.mxu0 0.0
        %545 = vmatpush1.msra.mxu0 0.0
        %546 = vmatprep.subr.mxu0 0.0
        %547 = vmatpush1.msra.mxu0 0.0
        %548 = vmatprep.subr.mxu0 0.0
        %549 = vmatpush1.msra.mxu0 0.0
        %550 = vmatprep.subr.mxu0 0.0
        %551 = vmatpush1.msra.mxu0 0.0
        %552 = vmatprep.subr.mxu0 0.0
        %553 = vmatpush1.msra.mxu0 0.0
        %554 = vmatprep.subr.mxu0 %v345
        %555 = vmatpush1.msra.mxu0 %v344
        %556 = vmatprep.subr.mxu0 %v337
        %557 = vmatpush1.msra.mxu0 %v336
        %558 = vmatprep.subr.mxu0 %v329
        %559 = vmatpush1.msra.mxu0 %v328
        %560 = vmatprep.subr.mxu0 %v321
        %561 = vmatpush1.msra.mxu0 %v320
        %562 = vmatprep.subr.mxu0 0.0
        %563 = vmatpush2.msra.mxu0 0.0
        %564 = vmatprep.subr.mxu0 0.0
        %565 = vmatpush2.msra.mxu0 0.0
        %566 = vmatprep.subr.mxu0 0.0
        %567 = vmatpush2.msra.mxu0 0.0
        %568 = vmatprep.subr.mxu0 0.0
        %569 = vmatpush2.msra.mxu0 0.0
        %570 = vmatprep.subr.mxu0 0.0
        %571 = vmatpush2.msra.mxu0 0.0
        %572 = vmatprep.subr.mxu0 0.0
        %573 = vmatpush2.msra.mxu0 0.0
        %574 = vmatprep.subr.mxu0 0.0
        %575 = vmatpush2.msra.mxu0 0.0
        %576 = vmatprep.subr.mxu0 0.0
        %577 = vmatpush2.msra.mxu0 0.0
        %578 = vmatprep.subr.mxu0 0.0
        %579 = vmatpush2.msra.mxu0 0.0
        %580 = vmatprep.subr.mxu0 0.0
        %581 = vmatpush2.msra.mxu0 0.0
        %582 = vmatprep.subr.mxu0 0.0
        %583 = vmatpush2.msra.mxu0 0.0
        %584 = vmatprep.subr.mxu0 0.0
        %585 = vmatpush2.msra.mxu0 0.0
        %586 = vmatprep.subr.mxu0 0.0
        %587 = vmatpush2.msra.mxu0 0.0
        %588 = vmatprep.subr.mxu0 0.0
        %589 = vmatpush2.msra.mxu0 0.0
        %590 = vmatprep.subr.mxu0 0.0
        %591 = vmatpush2.msra.mxu0 0.0
        %592 = vmatprep.subr.mxu0 0.0
        %593 = vmatpush2.msra.mxu0 0.0
        %594 = vmatprep.mubr.f32.mxu0 0.0
        %595 = vmatmul.mubr.f32.gmra.mxu0 %v394
        %v596 = vpop.f32.mrf.mxu0
        %v597 = vadd.f32 %v363, %v596
        %v598 = vpop.f32.mrf.mxu0
        %v599 = vadd.f32 %v367, %v598
        %600 = vmatprep.mubr.f32.mxu0 0.0
        %601 = vmatmul.mubr.f32.gmra.mxu0 %v397
        %v602 = vpop.f32.mrf.mxu0
        %v603 = vadd.f32 %v363, %v602
        %v604 = vpop.f32.mrf.mxu0
        %v605 = vadd.f32 %v367, %v604
        %606 = vmatprep.mubr.f32.mxu0 0.0
        %607 = vmatmul.mubr.f32.gmra.mxu0 %v400
        %v608 = vpop.f32.mrf.mxu0
        %v609 = vadd.f32 %v363, %v608
        %v610 = vpop.f32.mrf.mxu0
        %v611 = vadd.f32 %v367, %v610
        %612 = vmatprep.mubr.f32.mxu0 0.0
        %613 = vmatmul.mubr.f32.gmra.mxu0 %v403
        %v614 = vpop.f32.mrf.mxu0
        %v615 = vadd.f32 %v363, %v614
        %v616 = vpop.f32.mrf.mxu0
        %v617 = vadd.f32 %v367, %v616
        %618 = vmatprep.mubr.f32.mxu0 0.0
        %619 = vmatmul.mubr.f32.gmra.mxu0 %v406
        %v620 = vpop.f32.mrf.mxu0
        %v621 = vadd.f32 %v363, %v620
        %v622 = vpop.f32.mrf.mxu0
        %v623 = vadd.f32 %v367, %v622
        %624 = vmatprep.mubr.f32.mxu0 0.0
        %625 = vmatmul.mubr.f32.gmra.mxu0 %v409
        %v626 = vpop.f32.mrf.mxu0
        %v627 = vadd.f32 %v363, %v626
        %v628 = vpop.f32.mrf.mxu0
        %v629 = vadd.f32 %v367, %v628
        %630 = vmatprep.mubr.f32.mxu0 0.0
        %631 = vmatmul.mubr.f32.gmra.mxu0 %v412
        %v632 = vpop.f32.mrf.mxu0
        %v633 = vadd.f32 %v363, %v632
        %v634 = vpop.f32.mrf.mxu0
        %v635 = vadd.f32 %v367, %v634
        %636 = vmatprep.mubr.f32.mxu0 0.0
        %637 = vmatmul.mubr.f32.gmra.mxu0 %v415
        %v638 = vpop.f32.mrf.mxu0
        %v639 = vadd.f32 %v363, %v638
        %v640 = vpop.f32.mrf.mxu0
        %v641 = vadd.f32 %v367, %v640
        %642 = vdwg.mxu0
        %643 = vmatprep.subr.mxu0 0.0
        %644 = vmatpush1.msra.mxu0 0.0
        %645 = vmatprep.subr.mxu0 0.0
        %646 = vmatpush1.msra.mxu0 0.0
        %647 = vmatprep.subr.mxu0 0.0
        %648 = vmatpush1.msra.mxu0 0.0
        %649 = vmatprep.subr.mxu0 0.0
        %650 = vmatpush1.msra.mxu0 0.0
        %651 = vmatprep.subr.mxu0 0.0
        %652 = vmatpush1.msra.mxu0 0.0
        %653 = vmatprep.subr.mxu0 0.0
        %654 = vmatpush1.msra.mxu0 0.0
        %655 = vmatprep.subr.mxu0 0.0
        %656 = vmatpush1.msra.mxu0 0.0
        %657 = vmatprep.subr.mxu0 0.0
        %658 = vmatpush1.msra.mxu0 0.0
        %659 = vmatprep.subr.mxu0 0.0
        %660 = vmatpush1.msra.mxu0 0.0
        %661 = vmatprep.subr.mxu0 0.0
        %662 = vmatpush1.msra.mxu0 0.0
        %663 = vmatprep.subr.mxu0 0.0
        %664 = vmatpush1.msra.mxu0 0.0
        %665 = vmatprep.subr.mxu0 0.0
        %666 = vmatpush1.msra.mxu0 0.0
        %667 = vmatprep.subr.mxu0 %v347
        %668 = vmatpush1.msra.mxu0 %v346
        %669 = vmatprep.subr.mxu0 %v339
        %670 = vmatpush1.msra.mxu0 %v338
        %671 = vmatprep.subr.mxu0 %v331
        %672 = vmatpush1.msra.mxu0 %v330
        %673 = vmatprep.subr.mxu0 %v323
        %674 = vmatpush1.msra.mxu0 %v322
        %675 = vmatprep.subr.mxu0 0.0
        %676 = vmatpush2.msra.mxu0 0.0
        %677 = vmatprep.subr.mxu0 0.0
        %678 = vmatpush2.msra.mxu0 0.0
        %679 = vmatprep.subr.mxu0 0.0
        %680 = vmatpush2.msra.mxu0 0.0
        %681 = vmatprep.subr.mxu0 0.0
        %682 = vmatpush2.msra.mxu0 0.0
        %683 = vmatprep.subr.mxu0 0.0
        %684 = vmatpush2.msra.mxu0 0.0
        %685 = vmatprep.subr.mxu0 0.0
        %686 = vmatpush2.msra.mxu0 0.0
        %687 = vmatprep.subr.mxu0 0.0
        %688 = vmatpush2.msra.mxu0 0.0
        %689 = vmatprep.subr.mxu0 0.0
        %690 = vmatpush2.msra.mxu0 0.0
        %691 = vmatprep.subr.mxu0 0.0
        %692 = vmatpush2.msra.mxu0 0.0
        %693 = vmatprep.subr.mxu0 0.0
        %694 = vmatpush2.msra.mxu0 0.0
        %695 = vmatprep.subr.mxu0 0.0
        %696 = vmatpush2.msra.mxu0 0.0
        %697 = vmatprep.subr.mxu0 0.0
        %698 = vmatpush2.msra.mxu0 0.0
        %699 = vmatprep.subr.mxu0 0.0
        %700 = vmatpush2.msra.mxu0 0.0
        %701 = vmatprep.subr.mxu0 0.0
        %702 = vmatpush2.msra.mxu0 0.0
        %703 = vmatprep.subr.mxu0 0.0
        %704 = vmatpush2.msra.mxu0 0.0
        %705 = vmatprep.subr.mxu0 0.0
        %706 = vmatpush2.msra.mxu0 0.0
        %707 = vmatprep.mubr.f32.mxu0 0.0
        %708 = vmatmul.mubr.f32.gmra.mxu0 %v394
        %v709 = vpop.f32.mrf.mxu0
        %v710 = vadd.f32 %v371, %v709
        %v711 = vpop.f32.mrf.mxu0
        %v712 = vadd.f32 %v375, %v711
        %713 = vmatprep.mubr.f32.mxu0 0.0
        %714 = vmatmul.mubr.f32.gmra.mxu0 %v397
        %v715 = vpop.f32.mrf.mxu0
        %v716 = vadd.f32 %v371, %v715
        %v717 = vpop.f32.mrf.mxu0
        %v718 = vadd.f32 %v375, %v717
        %719 = vmatprep.mubr.f32.mxu0 0.0
        %720 = vmatmul.mubr.f32.gmra.mxu0 %v400
        %v721 = vpop.f32.mrf.mxu0
        %v722 = vadd.f32 %v371, %v721
        %v723 = vpop.f32.mrf.mxu0
        %v724 = vadd.f32 %v375, %v723
        %725 = vmatprep.mubr.f32.mxu0 0.0
        %726 = vmatmul.mubr.f32.gmra.mxu0 %v403
        %v727 = vpop.f32.mrf.mxu0
        %v728 = vadd.f32 %v371, %v727
        %v729 = vpop.f32.mrf.mxu0
        %v730 = vadd.f32 %v375, %v729
        %731 = vmatprep.mubr.f32.mxu0 0.0
        %732 = vmatmul.mubr.f32.gmra.mxu0 %v406
        %v733 = vpop.f32.mrf.mxu0
        %v734 = vadd.f32 %v371, %v733
        %v735 = vpop.f32.mrf.mxu0
        %v736 = vadd.f32 %v375, %v735
        %737 = vmatprep.mubr.f32.mxu0 0.0
        %738 = vmatmul.mubr.f32.gmra.mxu0 %v409
        %v739 = vpop.f32.mrf.mxu0
        %v740 = vadd.f32 %v371, %v739
        %v741 = vpop.f32.mrf.mxu0
        %v742 = vadd.f32 %v375, %v741
        %743 = vmatprep.mubr.f32.mxu0 0.0
        %744 = vmatmul.mubr.f32.gmra.mxu0 %v412
        %v745 = vpop.f32.mrf.mxu0
        %v746 = vadd.f32 %v371, %v745
        %v747 = vpop.f32.mrf.mxu0
        %v748 = vadd.f32 %v375, %v747
        %749 = vmatprep.mubr.f32.mxu0 0.0
        %750 = vmatmul.mubr.f32.gmra.mxu0 %v415
        %v751 = vpop.f32.mrf.mxu0
        %v752 = vadd.f32 %v371, %v751
        %v753 = vpop.f32.mrf.mxu0
        %v754 = vadd.f32 %v375, %v753
        %755 = vdwg.mxu0
        %756 = vmatprep.subr.mxu0 0.0
        %757 = vmatpush1.msra.mxu0 0.0
        %758 = vmatprep.subr.mxu0 0.0
        %759 = vmatpush1.msra.mxu0 0.0
        %760 = vmatprep.subr.mxu0 0.0
        %761 = vmatpush1.msra.mxu0 0.0
        %762 = vmatprep.subr.mxu0 0.0
        %763 = vmatpush1.msra.mxu0 0.0
        %764 = vmatprep.subr.mxu0 0.0
        %765 = vmatpush1.msra.mxu0 0.0
        %766 = vmatprep.subr.mxu0 0.0
        %767 = vmatpush1.msra.mxu0 0.0
        %768 = vmatprep.subr.mxu0 0.0
        %769 = vmatpush1.msra.mxu0 0.0
        %770 = vmatprep.subr.mxu0 0.0
        %771 = vmatpush1.msra.mxu0 0.0
        %772 = vmatprep.subr.mxu0 0.0
        %773 = vmatpush1.msra.mxu0 0.0
        %774 = vmatprep.subr.mxu0 0.0
        %775 = vmatpush1.msra.mxu0 0.0
        %776 = vmatprep.subr.mxu0 0.0
        %777 = vmatpush1.msra.mxu0 0.0
        %778 = vmatprep.subr.mxu0 0.0
        %779 = vmatpush1.msra.mxu0 0.0
        %780 = vmatprep.subr.mxu0 %v349
        %781 = vmatpush1.msra.mxu0 %v348
        %782 = vmatprep.subr.mxu0 %v341
        %783 = vmatpush1.msra.mxu0 %v340
        %784 = vmatprep.subr.mxu0 %v333
        %785 = vmatpush1.msra.mxu0 %v332
        %786 = vmatprep.subr.mxu0 %v325
        %787 = vmatpush1.msra.mxu0 %v324
        %788 = vmatprep.subr.mxu0 0.0
        %789 = vmatpush2.msra.mxu0 0.0
        %790 = vmatprep.subr.mxu0 0.0
        %791 = vmatpush2.msra.mxu0 0.0
        %792 = vmatprep.subr.mxu0 0.0
        %793 = vmatpush2.msra.mxu0 0.0
        %794 = vmatprep.subr.mxu0 0.0
        %795 = vmatpush2.msra.mxu0 0.0
        %796 = vmatprep.subr.mxu0 0.0
        %797 = vmatpush2.msra.mxu0 0.0
        %798 = vmatprep.subr.mxu0 0.0
        %799 = vmatpush2.msra.mxu0 0.0
        %800 = vmatprep.subr.mxu0 0.0
        %801 = vmatpush2.msra.mxu0 0.0
        %802 = vmatprep.subr.mxu0 0.0
        %803 = vmatpush2.msra.mxu0 0.0
        %804 = vmatprep.subr.mxu0 0.0
        %805 = vmatpush2.msra.mxu0 0.0
        %806 = vmatprep.subr.mxu0 0.0
        %807 = vmatpush2.msra.mxu0 0.0
        %808 = vmatprep.subr.mxu0 0.0
        %809 = vmatpush2.msra.mxu0 0.0
        %810 = vmatprep.subr.mxu0 0.0
        %811 = vmatpush2.msra.mxu0 0.0
        %812 = vmatprep.subr.mxu0 0.0
        %813 = vmatpush2.msra.mxu0 0.0
        %814 = vmatprep.subr.mxu0 0.0
        %815 = vmatpush2.msra.mxu0 0.0
        %816 = vmatprep.subr.mxu0 0.0
        %817 = vmatpush2.msra.mxu0 0.0
        %818 = vmatprep.subr.mxu0 0.0
        %819 = vmatpush2.msra.mxu0 0.0
        %820 = vmatprep.mubr.f32.mxu0 0.0
        %821 = vmatmul.mubr.f32.gmra.mxu0 %v394
        %v822 = vpop.f32.mrf.mxu0
        %v823 = vadd.f32 %v379, %v822
        %v824 = vpop.f32.mrf.mxu0
        %v825 = vadd.f32 %v383, %v824
        %826 = vmatprep.mubr.f32.mxu0 0.0
        %827 = vmatmul.mubr.f32.gmra.mxu0 %v397
        %v828 = vpop.f32.mrf.mxu0
        %v829 = vadd.f32 %v379, %v828
        %v830 = vpop.f32.mrf.mxu0
        %v831 = vadd.f32 %v383, %v830
        %832 = vmatprep.mubr.f32.mxu0 0.0
        %833 = vmatmul.mubr.f32.gmra.mxu0 %v400
        %v834 = vpop.f32.mrf.mxu0
        %v835 = vadd.f32 %v379, %v834
        %v836 = vpop.f32.mrf.mxu0
        %v837 = vadd.f32 %v383, %v836
        %838 = vmatprep.mubr.f32.mxu0 0.0
        %839 = vmatmul.mubr.f32.gmra.mxu0 %v403
        %v840 = vpop.f32.mrf.mxu0
        %v841 = vadd.f32 %v379, %v840
        %v842 = vpop.f32.mrf.mxu0
        %v843 = vadd.f32 %v383, %v842
        %844 = vmatprep.mubr.f32.mxu0 0.0
        %845 = vmatmul.mubr.f32.gmra.mxu0 %v406
        %v846 = vpop.f32.mrf.mxu0
        %v847 = vadd.f32 %v379, %v846
        %v848 = vpop.f32.mrf.mxu0
        %v849 = vadd.f32 %v383, %v848
        %850 = vmatprep.mubr.f32.mxu0 0.0
        %851 = vmatmul.mubr.f32.gmra.mxu0 %v409
        %v852 = vpop.f32.mrf.mxu0
        %v853 = vadd.f32 %v379, %v852
        %v854 = vpop.f32.mrf.mxu0
        %v855 = vadd.f32 %v383, %v854
        %856 = vmatprep.mubr.f32.mxu0 0.0
        %857 = vmatmul.mubr.f32.gmra.mxu0 %v412
        %v858 = vpop.f32.mrf.mxu0
        %v859 = vadd.f32 %v379, %v858
        %v860 = vpop.f32.mrf.mxu0
        %v861 = vadd.f32 %v383, %v860
        %862 = vmatprep.mubr.f32.mxu0 0.0
        %863 = vmatmul.mubr.f32.gmra.mxu0 %v415
        %v864 = vpop.f32.mrf.mxu0
        %v865 = vadd.f32 %v379, %v864
        %v866 = vpop.f32.mrf.mxu0
        %v867 = vadd.f32 %v383, %v866
        %868 = vdwg.mxu0
        %869 = vst [vmem:[#allocation4] sm:$0xff] %v484
        %870 = vst [vmem:[#allocation4 + $0x8] sm:$0xff] %v486
        %871 = vst [vmem:[#allocation4 + $0x10] sm:$0xff] %v597
        %872 = vst [vmem:[#allocation4 + $0x18] sm:$0xff] %v599
        %873 = vst [vmem:[#allocation4 + $0x20] sm:$0xff] %v710
        %874 = vst [vmem:[#allocation4 + $0x28] sm:$0xff] %v712
        %875 = vst [vmem:[#allocation4 + $0x30] sm:$0xff] %v823
        %876 = vst [vmem:[#allocation4 + $0x38] sm:$0xff] %v825
        %877 = vst [vmem:[#allocation4 + $0x40] sm:$0xff] %v490
        %878 = vst [vmem:[#allocation4 + $0x48] sm:$0xff] %v492
        %879 = vst [vmem:[#allocation4 + $0x50] sm:$0xff] %v603
        %880 = vst [vmem:[#allocation4 + $0x58] sm:$0xff] %v605
        %881 = vst [vmem:[#allocation4 + $0x60] sm:$0xff] %v716
        %882 = vst [vmem:[#allocation4 + $0x68] sm:$0xff] %v718
        %883 = vst [vmem:[#allocation4 + $0x70] sm:$0xff] %v829
        %884 = vst [vmem:[#allocation4 + $0x78] sm:$0xff] %v831
        %885 = vst [vmem:[#allocation4 + $0x80] sm:$0xff] %v496
        %886 = vst [vmem:[#allocation4 + $0x88] sm:$0xff] %v498
        %887 = vst [vmem:[#allocation4 + $0x90] sm:$0xff] %v609
        %888 = vst [vmem:[#allocation4 + $0x98] sm:$0xff] %v611
        %889 = vst [vmem:[#allocation4 + $0xa0] sm:$0xff] %v722
        %890 = vst [vmem:[#allocation4 + $0xa8] sm:$0xff] %v724
        %891 = vst [vmem:[#allocation4 + $0xb0] sm:$0xff] %v835
        %892 = vst [vmem:[#allocation4 + $0xb8] sm:$0xff] %v837
        %893 = vst [vmem:[#allocation4 + $0xc0] sm:$0xff] %v502
        %894 = vst [vmem:[#allocation4 + $0xc8] sm:$0xff] %v504
        %895 = vst [vmem:[#allocation4 + $0xd0] sm:$0xff] %v615
        %896 = vst [vmem:[#allocation4 + $0xd8] sm:$0xff] %v617
        %897 = vst [vmem:[#allocation4 + $0xe0] sm:$0xff] %v728
        %898 = vst [vmem:[#allocation4 + $0xe8] sm:$0xff] %v730
        %899 = vst [vmem:[#allocation4 + $0xf0] sm:$0xff] %v841
        %900 = vst [vmem:[#allocation4 + $0xf8] sm:$0xff] %v843
        %901 = vst [vmem:[#allocation4 + $0x100] sm:$0xff] %v508
        %902 = vst [vmem:[#allocation4 + $0x108] sm:$0xff] %v510
        %903 = vst [vmem:[#allocation4 + $0x110] sm:$0xff] %v621
        %904 = vst [vmem:[#allocation4 + $0x118] sm:$0xff] %v623
        %905 = vst [vmem:[#allocation4 + $0x120] sm:$0xff] %v734
        %906 = vst [vmem:[#allocation4 + $0x128] sm:$0xff] %v736
        %907 = vst [vmem:[#allocation4 + $0x130] sm:$0xff] %v847
        %908 = vst [vmem:[#allocation4 + $0x138] sm:$0xff] %v849
        %909 = vst [vmem:[#allocation4 + $0x140] sm:$0xff] %v514
        %910 = vst [vmem:[#allocation4 + $0x148] sm:$0xff] %v516
        %911 = vst [vmem:[#allocation4 + $0x150] sm:$0xff] %v627
        %912 = vst [vmem:[#allocation4 + $0x158] sm:$0xff] %v629
        %913 = vst [vmem:[#allocation4 + $0x160] sm:$0xff] %v740
        %914 = vst [vmem:[#allocation4 + $0x168] sm:$0xff] %v742
        %915 = vst [vmem:[#allocation4 + $0x170] sm:$0xff] %v853
        %916 = vst [vmem:[#allocation4 + $0x178] sm:$0xff] %v855
        %917 = vst [vmem:[#allocation4 + $0x180] sm:$0xff] %v520
        %918 = vst [vmem:[#allocation4 + $0x188] sm:$0xff] %v522
        %919 = vst [vmem:[#allocation4 + $0x190] sm:$0xff] %v633
        %920 = vst [vmem:[#allocation4 + $0x198] sm:$0xff] %v635
        %921 = vst [vmem:[#allocation4 + $0x1a0] sm:$0xff] %v746
        %922 = vst [vmem:[#allocation4 + $0x1a8] sm:$0xff] %v748
        %923 = vst [vmem:[#allocation4 + $0x1b0] sm:$0xff] %v859
        %924 = vst [vmem:[#allocation4 + $0x1b8] sm:$0xff] %v861
        %925 = vst [vmem:[#allocation4 + $0x1c0] sm:$0xff] %v526
        %926 = vst [vmem:[#allocation4 + $0x1c8] sm:$0xff] %v528
        %927 = vst [vmem:[#allocation4 + $0x1d0] sm:$0xff] %v639
        %928 = vst [vmem:[#allocation4 + $0x1d8] sm:$0xff] %v641
        %929 = vst [vmem:[#allocation4 + $0x1e0] sm:$0xff] %v752
        %930 = vst [vmem:[#allocation4 + $0x1e8] sm:$0xff] %v754
        %931 = vst [vmem:[#allocation4 + $0x1f0] sm:$0xff] %v865
        %932 = vst [vmem:[#allocation4 + $0x1f8] sm:$0xff] %v867
        %v933 = vld [vmem:[#allocation2] sm:$0xff]
        %v934 = vld [vmem:[#allocation2 + $0x8] sm:$0xff]
        %v935 = vld [vmem:[#allocation4] sm:$0xff]
        %v936 = vld [vmem:[#allocation4 + $0x8] sm:$0xff]
        %v937 = vld [vmem:[#allocation4 + $0x10] sm:$0xff]
        %v938 = vld [vmem:[#allocation4 + $0x18] sm:$0xff]
        %v939 = vld [vmem:[#allocation4 + $0x20] sm:$0xff]
        %v940 = vld [vmem:[#allocation4 + $0x28] sm:$0xff]
        %v941 = vld [vmem:[#allocation4 + $0x30] sm:$0xff]
        %v942 = vld [vmem:[#allocation4 + $0x38] sm:$0xff]
        %v943 = vld [vmem:[#allocation10] sm:$0xff]
        %v944 = vld [vmem:[#allocation10 + $0x8] sm:$0xff]
        %v945 = vld [vmem:[#allocation10 + $0x10] sm:$0xff]
        %v946 = vld [vmem:[#allocation10 + $0x18] sm:$0xff]
        %v947 = vld [vmem:[#allocation10 + $0x20] sm:$0xff]
        %v948 = vld [vmem:[#allocation10 + $0x28] sm:$0xff]
        %v949 = vld [vmem:[#allocation10 + $0x30] sm:$0xff]
        %v950 = vld [vmem:[#allocation10 + $0x38] sm:$0xff]
        %v951 = vld [vmem:[#allocation10 + $0x40] sm:$0xff]
        %v952 = vld [vmem:[#allocation10 + $0x48] sm:$0xff]
        %v953 = vld [vmem:[#allocation10 + $0x50] sm:$0xff]
        %v954 = vld [vmem:[#allocation10 + $0x58] sm:$0xff]
        %v955 = vld [vmem:[#allocation10 + $0x60] sm:$0xff]
        %v956 = vld [vmem:[#allocation10 + $0x68] sm:$0xff]
        %v957 = vld [vmem:[#allocation10 + $0x70] sm:$0xff]
        %v958 = vld [vmem:[#allocation10 + $0x78] sm:$0xff]
        %v959 = vld [vmem:[#allocation10 + $0x80] sm:$0xff]
        %v960 = vld [vmem:[#allocation10 + $0x88] sm:$0xff]
        %v961 = vld [vmem:[#allocation10 + $0x90] sm:$0xff]
        %v962 = vld [vmem:[#allocation10 + $0x98] sm:$0xff]
        %v963 = vld [vmem:[#allocation10 + $0xa0] sm:$0xff]
        %v964 = vld [vmem:[#allocation10 + $0xa8] sm:$0xff]
        %v965 = vld [vmem:[#allocation10 + $0xb0] sm:$0xff]
        %v966 = vld [vmem:[#allocation10 + $0xb8] sm:$0xff]
        %v967 = vld [vmem:[#allocation10 + $0xc0] sm:$0xff]
        %v968 = vld [vmem:[#allocation10 + $0xc8] sm:$0xff]
        %v969 = vld [vmem:[#allocation10 + $0xd0] sm:$0xff]
        %v970 = vld [vmem:[#allocation10 + $0xd8] sm:$0xff]
        %v971 = vld [vmem:[#allocation10 + $0xe0] sm:$0xff]
        %v972 = vld [vmem:[#allocation10 + $0xe8] sm:$0xff]
        %v973 = vld [vmem:[#allocation10 + $0xf0] sm:$0xff]
        %v974 = vld [vmem:[#allocation10 + $0xf8] sm:$0xff]
        %v975 = vld [vmem:[#allocation10 + $0x100] sm:$0xff]
        %v976 = vld [vmem:[#allocation10 + $0x108] sm:$0xff]
        %v977 = vld [vmem:[#allocation10 + $0x110] sm:$0xff]
        %v978 = vld [vmem:[#allocation10 + $0x118] sm:$0xff]
        %v979 = vld [vmem:[#allocation10 + $0x120] sm:$0xff]
        %v980 = vld [vmem:[#allocation10 + $0x128] sm:$0xff]
        %v981 = vld [vmem:[#allocation10 + $0x130] sm:$0xff]
        %v982 = vld [vmem:[#allocation10 + $0x138] sm:$0xff]
        %v983 = vld [vmem:[#allocation10 + $0x140] sm:$0xff]
        %v984 = vld [vmem:[#allocation10 + $0x148] sm:$0xff]
        %v985 = vld [vmem:[#allocation10 + $0x150] sm:$0xff]
        %v986 = vld [vmem:[#allocation10 + $0x158] sm:$0xff]
        %v987 = vld [vmem:[#allocation10 + $0x160] sm:$0xff]
        %v988 = vld [vmem:[#allocation10 + $0x168] sm:$0xff]
        %v989 = vld [vmem:[#allocation10 + $0x170] sm:$0xff]
        %v990 = vld [vmem:[#allocation10 + $0x178] sm:$0xff]
        %v991 = vld [vmem:[#allocation10 + $0x180] sm:$0xff]
        %v992 = vld [vmem:[#allocation10 + $0x188] sm:$0xff]
        %v993 = vld [vmem:[#allocation10 + $0x190] sm:$0xff]
        %v994 = vld [vmem:[#allocation10 + $0x198] sm:$0xff]
        %v995 = vld [vmem:[#allocation10 + $0x1a0] sm:$0xff]
        %v996 = vld [vmem:[#allocation10 + $0x1a8] sm:$0xff]
        %v997 = vld [vmem:[#allocation10 + $0x1b0] sm:$0xff]
        %v998 = vld [vmem:[#allocation10 + $0x1b8] sm:$0xff]
        %v999 = vld [vmem:[#allocation10 + $0x1c0] sm:$0xff]
        %v1000 = vld [vmem:[#allocation10 + $0x1c8] sm:$0xff]
        %v1001 = vld [vmem:[#allocation10 + $0x1d0] sm:$0xff]
        %v1002 = vld [vmem:[#allocation10 + $0x1d8] sm:$0xff]
        %v1003 = vld [vmem:[#allocation10 + $0x1e0] sm:$0xff]
        %v1004 = vld [vmem:[#allocation10 + $0x1e8] sm:$0xff]
        %v1005 = vld [vmem:[#allocation10 + $0x1f0] sm:$0xff]
        %v1006 = vld [vmem:[#allocation10 + $0x1f8] sm:$0xff]
        %v1007 = vld [vmem:[#allocation10 + $0x200] sm:$0xff]
        %v1008 = vld [vmem:[#allocation10 + $0x208] sm:$0xff]
        %v1009 = vld [vmem:[#allocation10 + $0x210] sm:$0xff]
        %v1010 = vld [vmem:[#allocation10 + $0x218] sm:$0xff]
        %v1011 = vld [vmem:[#allocation10 + $0x220] sm:$0xff]
        %v1012 = vld [vmem:[#allocation10 + $0x228] sm:$0xff]
        %v1013 = vld [vmem:[#allocation10 + $0x230] sm:$0xff]
        %v1014 = vld [vmem:[#allocation10 + $0x238] sm:$0xff]
        %v1015 = vld [vmem:[#allocation10 + $0x240] sm:$0xff]
        %v1016 = vld [vmem:[#allocation10 + $0x248] sm:$0xff]
        %v1017 = vld [vmem:[#allocation10 + $0x250] sm:$0xff]
        %v1018 = vld [vmem:[#allocation10 + $0x258] sm:$0xff]
        %v1019 = vld [vmem:[#allocation10 + $0x260] sm:$0xff]
        %v1020 = vld [vmem:[#allocation10 + $0x268] sm:$0xff]
        %v1021 = vld [vmem:[#allocation10 + $0x270] sm:$0xff]
        %v1022 = vld [vmem:[#allocation10 + $0x278] sm:$0xff]
        %v1023 = vld [vmem:[#allocation10 + $0x280] sm:$0xff]
        %v1024 = vld [vmem:[#allocation10 + $0x288] sm:$0xff]
        %v1025 = vld [vmem:[#allocation10 + $0x290] sm:$0xff]
        %v1026 = vld [vmem:[#allocation10 + $0x298] sm:$0xff]
        %v1027 = vld [vmem:[#allocation10 + $0x2a0] sm:$0xff]
        %v1028 = vld [vmem:[#allocation10 + $0x2a8] sm:$0xff]
        %v1029 = vld [vmem:[#allocation10 + $0x2b0] sm:$0xff]
        %v1030 = vld [vmem:[#allocation10 + $0x2b8] sm:$0xff]
        %v1031 = vld [vmem:[#allocation10 + $0x2c0] sm:$0xff]
        %v1032 = vld [vmem:[#allocation10 + $0x2c8] sm:$0xff]
        %v1033 = vld [vmem:[#allocation10 + $0x2d0] sm:$0xff]
        %v1034 = vld [vmem:[#allocation10 + $0x2d8] sm:$0xff]
        %v1035 = vld [vmem:[#allocation10 + $0x2e0] sm:$0xff]
        %v1036 = vld [vmem:[#allocation10 + $0x2e8] sm:$0xff]
        %v1037 = vld [vmem:[#allocation10 + $0x2f0] sm:$0xff]
        %v1038 = vld [vmem:[#allocation10 + $0x2f8] sm:$0xff]
        %v1039 = vld [vmem:[#allocation10 + $0x300] sm:$0xff]
        %v1040 = vld [vmem:[#allocation10 + $0x308] sm:$0xff]
        %v1041 = vld [vmem:[#allocation10 + $0x310] sm:$0xff]
        %v1042 = vld [vmem:[#allocation10 + $0x318] sm:$0xff]
        %v1043 = vld [vmem:[#allocation10 + $0x320] sm:$0xff]
        %v1044 = vld [vmem:[#allocation10 + $0x328] sm:$0xff]
        %v1045 = vld [vmem:[#allocation10 + $0x330] sm:$0xff]
        %v1046 = vld [vmem:[#allocation10 + $0x338] sm:$0xff]
        %v1047 = vld [vmem:[#allocation10 + $0x340] sm:$0xff]
        %v1048 = vld [vmem:[#allocation10 + $0x348] sm:$0xff]
        %v1049 = vld [vmem:[#allocation10 + $0x350] sm:$0xff]
        %v1050 = vld [vmem:[#allocation10 + $0x358] sm:$0xff]
        %v1051 = vld [vmem:[#allocation10 + $0x360] sm:$0xff]
        %v1052 = vld [vmem:[#allocation10 + $0x368] sm:$0xff]
        %v1053 = vld [vmem:[#allocation10 + $0x370] sm:$0xff]
        %v1054 = vld [vmem:[#allocation10 + $0x378] sm:$0xff]
        %v1055 = vld [vmem:[#allocation10 + $0x380] sm:$0xff]
        %v1056 = vld [vmem:[#allocation10 + $0x388] sm:$0xff]
        %v1057 = vld [vmem:[#allocation10 + $0x390] sm:$0xff]
        %v1058 = vld [vmem:[#allocation10 + $0x398] sm:$0xff]
        %v1059 = vld [vmem:[#allocation10 + $0x3a0] sm:$0xff]
        %v1060 = vld [vmem:[#allocation10 + $0x3a8] sm:$0xff]
        %v1061 = vld [vmem:[#allocation10 + $0x3b0] sm:$0xff]
        %v1062 = vld [vmem:[#allocation10 + $0x3b8] sm:$0xff]
        %v1063 = vld [vmem:[#allocation10 + $0x3c0] sm:$0xff]
        %v1064 = vld [vmem:[#allocation10 + $0x3c8] sm:$0xff]
        %v1065 = vld [vmem:[#allocation10 + $0x3d0] sm:$0xff]
        %v1066 = vld [vmem:[#allocation10 + $0x3d8] sm:$0xff]
        %v1067 = vld [vmem:[#allocation10 + $0x3e0] sm:$0xff]
        %v1068 = vld [vmem:[#allocation10 + $0x3e8] sm:$0xff]
        %v1069 = vld [vmem:[#allocation10 + $0x3f0] sm:$0xff]
        %v1070 = vld [vmem:[#allocation10 + $0x3f8] sm:$0xff]
        %v1071 = vld [vmem:[#allocation10 + $0x400] sm:$0xff]
        %v1072 = vld [vmem:[#allocation10 + $0x408] sm:$0xff]
        %v1073 = vld [vmem:[#allocation10 + $0x410] sm:$0xff]
        %v1074 = vld [vmem:[#allocation10 + $0x418] sm:$0xff]
        %v1075 = vld [vmem:[#allocation10 + $0x420] sm:$0xff]
        %v1076 = vld [vmem:[#allocation10 + $0x428] sm:$0xff]
        %v1077 = vld [vmem:[#allocation10 + $0x430] sm:$0xff]
        %v1078 = vld [vmem:[#allocation10 + $0x438] sm:$0xff]
        %v1079 = vld [vmem:[#allocation10 + $0x440] sm:$0xff]
        %v1080 = vld [vmem:[#allocation10 + $0x448] sm:$0xff]
        %v1081 = vld [vmem:[#allocation10 + $0x450] sm:$0xff]
        %v1082 = vld [vmem:[#allocation10 + $0x458] sm:$0xff]
        %v1083 = vld [vmem:[#allocation10 + $0x460] sm:$0xff]
        %v1084 = vld [vmem:[#allocation10 + $0x468] sm:$0xff]
        %v1085 = vld [vmem:[#allocation10 + $0x470] sm:$0xff]
        %v1086 = vld [vmem:[#allocation10 + $0x478] sm:$0xff]
        %v1087 = vld [vmem:[#allocation10 + $0x480] sm:$0xff]
        %v1088 = vld [vmem:[#allocation10 + $0x488] sm:$0xff]
        %v1089 = vld [vmem:[#allocation10 + $0x490] sm:$0xff]
        %v1090 = vld [vmem:[#allocation10 + $0x498] sm:$0xff]
        %v1091 = vld [vmem:[#allocation10 + $0x4a0] sm:$0xff]
        %v1092 = vld [vmem:[#allocation10 + $0x4a8] sm:$0xff]
        %v1093 = vld [vmem:[#allocation10 + $0x4b0] sm:$0xff]
        %v1094 = vld [vmem:[#allocation10 + $0x4b8] sm:$0xff]
        %v1095 = vld [vmem:[#allocation10 + $0x4c0] sm:$0xff]
        %v1096 = vld [vmem:[#allocation10 + $0x4c8] sm:$0xff]
        %v1097 = vld [vmem:[#allocation10 + $0x4d0] sm:$0xff]
        %v1098 = vld [vmem:[#allocation10 + $0x4d8] sm:$0xff]
        %v1099 = vld [vmem:[#allocation10 + $0x4e0] sm:$0xff]
        %v1100 = vld [vmem:[#allocation10 + $0x4e8] sm:$0xff]
        %v1101 = vld [vmem:[#allocation10 + $0x4f0] sm:$0xff]
        %v1102 = vld [vmem:[#allocation10 + $0x4f8] sm:$0xff]
        %v1103 = vld [vmem:[#allocation10 + $0x500] sm:$0xff]
        %v1104 = vld [vmem:[#allocation10 + $0x508] sm:$0xff]
        %v1105 = vld [vmem:[#allocation10 + $0x510] sm:$0xff]
        %v1106 = vld [vmem:[#allocation10 + $0x518] sm:$0xff]
        %v1107 = vld [vmem:[#allocation10 + $0x520] sm:$0xff]
        %v1108 = vld [vmem:[#allocation10 + $0x528] sm:$0xff]
        %v1109 = vld [vmem:[#allocation10 + $0x530] sm:$0xff]
        %v1110 = vld [vmem:[#allocation10 + $0x538] sm:$0xff]
        %v1111 = vld [vmem:[#allocation10 + $0x540] sm:$0xff]
        %v1112 = vld [vmem:[#allocation10 + $0x548] sm:$0xff]
        %v1113 = vld [vmem:[#allocation10 + $0x550] sm:$0xff]
        %v1114 = vld [vmem:[#allocation10 + $0x558] sm:$0xff]
        %v1115 = vld [vmem:[#allocation10 + $0x560] sm:$0xff]
        %v1116 = vld [vmem:[#allocation10 + $0x568] sm:$0xff]
        %v1117 = vld [vmem:[#allocation10 + $0x570] sm:$0xff]
        %v1118 = vld [vmem:[#allocation10 + $0x578] sm:$0xff]
        %v1119 = vld [vmem:[#allocation10 + $0x580] sm:$0xff]
        %v1120 = vld [vmem:[#allocation10 + $0x588] sm:$0xff]
        %v1121 = vld [vmem:[#allocation10 + $0x590] sm:$0xff]
        %v1122 = vld [vmem:[#allocation10 + $0x598] sm:$0xff]
        %v1123 = vld [vmem:[#allocation10 + $0x5a0] sm:$0xff]
        %v1124 = vld [vmem:[#allocation10 + $0x5a8] sm:$0xff]
        %v1125 = vld [vmem:[#allocation10 + $0x5b0] sm:$0xff]
        %v1126 = vld [vmem:[#allocation10 + $0x5b8] sm:$0xff]
        %v1127 = vld [vmem:[#allocation10 + $0x5c0] sm:$0xff]
        %v1128 = vld [vmem:[#allocation10 + $0x5c8] sm:$0xff]
        %v1129 = vld [vmem:[#allocation10 + $0x5d0] sm:$0xff]
        %v1130 = vld [vmem:[#allocation10 + $0x5d8] sm:$0xff]
        %v1131 = vld [vmem:[#allocation10 + $0x5e0] sm:$0xff]
        %v1132 = vld [vmem:[#allocation10 + $0x5e8] sm:$0xff]
        %v1133 = vld [vmem:[#allocation10 + $0x5f0] sm:$0xff]
        %v1134 = vld [vmem:[#allocation10 + $0x5f8] sm:$0xff]
        %v1135 = vld [vmem:[#allocation10 + $0x600] sm:$0xff]
        %v1136 = vld [vmem:[#allocation10 + $0x608] sm:$0xff]
        %v1137 = vld [vmem:[#allocation10 + $0x610] sm:$0xff]
        %v1138 = vld [vmem:[#allocation10 + $0x618] sm:$0xff]
        %v1139 = vld [vmem:[#allocation10 + $0x620] sm:$0xff]
        %v1140 = vld [vmem:[#allocation10 + $0x628] sm:$0xff]
        %v1141 = vld [vmem:[#allocation10 + $0x630] sm:$0xff]
        %v1142 = vld [vmem:[#allocation10 + $0x638] sm:$0xff]
        %v1143 = vld [vmem:[#allocation10 + $0x640] sm:$0xff]
        %v1144 = vld [vmem:[#allocation10 + $0x648] sm:$0xff]
        %v1145 = vld [vmem:[#allocation10 + $0x650] sm:$0xff]
        %v1146 = vld [vmem:[#allocation10 + $0x658] sm:$0xff]
        %v1147 = vld [vmem:[#allocation10 + $0x660] sm:$0xff]
        %v1148 = vld [vmem:[#allocation10 + $0x668] sm:$0xff]
        %v1149 = vld [vmem:[#allocation10 + $0x670] sm:$0xff]
        %v1150 = vld [vmem:[#allocation10 + $0x678] sm:$0xff]
        %v1151 = vld [vmem:[#allocation10 + $0x680] sm:$0xff]
        %v1152 = vld [vmem:[#allocation10 + $0x688] sm:$0xff]
        %v1153 = vld [vmem:[#allocation10 + $0x690] sm:$0xff]
        %v1154 = vld [vmem:[#allocation10 + $0x698] sm:$0xff]
        %v1155 = vld [vmem:[#allocation10 + $0x6a0] sm:$0xff]
        %v1156 = vld [vmem:[#allocation10 + $0x6a8] sm:$0xff]
        %v1157 = vld [vmem:[#allocation10 + $0x6b0] sm:$0xff]
        %v1158 = vld [vmem:[#allocation10 + $0x6b8] sm:$0xff]
        %v1159 = vld [vmem:[#allocation10 + $0x6c0] sm:$0xff]
        %v1160 = vld [vmem:[#allocation10 + $0x6c8] sm:$0xff]
        %v1161 = vld [vmem:[#allocation10 + $0x6d0] sm:$0xff]
        %v1162 = vld [vmem:[#allocation10 + $0x6d8] sm:$0xff]
        %v1163 = vld [vmem:[#allocation10 + $0x6e0] sm:$0xff]
        %v1164 = vld [vmem:[#allocation10 + $0x6e8] sm:$0xff]
        %v1165 = vld [vmem:[#allocation10 + $0x6f0] sm:$0xff]
        %v1166 = vld [vmem:[#allocation10 + $0x6f8] sm:$0xff]
        %v1167 = vld [vmem:[#allocation10 + $0x700] sm:$0xff]
        %v1168 = vld [vmem:[#allocation10 + $0x708] sm:$0xff]
        %v1169 = vld [vmem:[#allocation10 + $0x710] sm:$0xff]
        %v1170 = vld [vmem:[#allocation10 + $0x718] sm:$0xff]
        %v1171 = vld [vmem:[#allocation10 + $0x720] sm:$0xff]
        %v1172 = vld [vmem:[#allocation10 + $0x728] sm:$0xff]
        %v1173 = vld [vmem:[#allocation10 + $0x730] sm:$0xff]
        %v1174 = vld [vmem:[#allocation10 + $0x738] sm:$0xff]
        %v1175 = vld [vmem:[#allocation10 + $0x740] sm:$0xff]
        %v1176 = vld [vmem:[#allocation10 + $0x748] sm:$0xff]
        %v1177 = vld [vmem:[#allocation10 + $0x750] sm:$0xff]
        %v1178 = vld [vmem:[#allocation10 + $0x758] sm:$0xff]
        %v1179 = vld [vmem:[#allocation10 + $0x760] sm:$0xff]
        %v1180 = vld [vmem:[#allocation10 + $0x768] sm:$0xff]
        %v1181 = vld [vmem:[#allocation10 + $0x770] sm:$0xff]
        %v1182 = vld [vmem:[#allocation10 + $0x778] sm:$0xff]
        %v1183 = vld [vmem:[#allocation10 + $0x780] sm:$0xff]
        %v1184 = vld [vmem:[#allocation10 + $0x788] sm:$0xff]
        %v1185 = vld [vmem:[#allocation10 + $0x790] sm:$0xff]
        %v1186 = vld [vmem:[#allocation10 + $0x798] sm:$0xff]
        %v1187 = vld [vmem:[#allocation10 + $0x7a0] sm:$0xff]
        %v1188 = vld [vmem:[#allocation10 + $0x7a8] sm:$0xff]
        %v1189 = vld [vmem:[#allocation10 + $0x7b0] sm:$0xff]
        %v1190 = vld [vmem:[#allocation10 + $0x7b8] sm:$0xff]
        %v1191 = vld [vmem:[#allocation10 + $0x7c0] sm:$0xff]
        %v1192 = vld [vmem:[#allocation10 + $0x7c8] sm:$0xff]
        %v1193 = vld [vmem:[#allocation10 + $0x7d0] sm:$0xff]
        %v1194 = vld [vmem:[#allocation10 + $0x7d8] sm:$0xff]
        %v1195 = vld [vmem:[#allocation10 + $0x7e0] sm:$0xff]
        %v1196 = vld [vmem:[#allocation10 + $0x7e8] sm:$0xff]
        %v1197 = vld [vmem:[#allocation10 + $0x7f0] sm:$0xff]
        %v1198 = vld [vmem:[#allocation10 + $0x7f8] sm:$0xff]
        %1199 = vmatprep.subr.mxu0 %v1064
        %1200 = vmatpush1.msra.mxu0 %v1063
        %1201 = vmatprep.subr.mxu0 %v1056
        %1202 = vmatpush1.msra.mxu0 %v1055
        %1203 = vmatprep.subr.mxu0 %v1048
        %1204 = vmatpush1.msra.mxu0 %v1047
        %1205 = vmatprep.subr.mxu0 %v1040
        %1206 = vmatpush1.msra.mxu0 %v1039
        %1207 = vmatprep.subr.mxu0 %v1032
        %1208 = vmatpush1.msra.mxu0 %v1031
        %1209 = vmatprep.subr.mxu0 %v1024
        %1210 = vmatpush1.msra.mxu0 %v1023
        %1211 = vmatprep.subr.mxu0 %v1016
        %1212 = vmatpush1.msra.mxu0 %v1015
        %1213 = vmatprep.subr.mxu0 %v1008
        %1214 = vmatpush1.msra.mxu0 %v1007
        %1215 = vmatprep.subr.mxu0 %v1000
        %1216 = vmatpush1.msra.mxu0 %v999
        %1217 = vmatprep.subr.mxu0 %v992
        %1218 = vmatpush1.msra.mxu0 %v991
        %1219 = vmatprep.subr.mxu0 %v984
        %1220 = vmatpush1.msra.mxu0 %v983
        %1221 = vmatprep.subr.mxu0 %v976
        %1222 = vmatpush1.msra.mxu0 %v975
        %1223 = vmatprep.subr.mxu0 %v968
        %1224 = vmatpush1.msra.mxu0 %v967
        %1225 = vmatprep.subr.mxu0 %v960
        %1226 = vmatpush1.msra.mxu0 %v959
        %1227 = vmatprep.subr.mxu0 %v952
        %1228 = vmatpush1.msra.mxu0 %v951
        %1229 = vmatprep.subr.mxu0 %v944
        %1230 = vmatpush1.msra.mxu0 %v943
        %1231 = vmatprep.subr.mxu0 %v1192
        %1232 = vmatpush2.msra.mxu0 %v1191
        %1233 = vmatprep.subr.mxu0 %v1184
        %1234 = vmatpush2.msra.mxu0 %v1183
        %1235 = vmatprep.subr.mxu0 %v1176
        %1236 = vmatpush2.msra.mxu0 %v1175
        %1237 = vmatprep.subr.mxu0 %v1168
        %1238 = vmatpush2.msra.mxu0 %v1167
        %1239 = vmatprep.subr.mxu0 %v1160
        %1240 = vmatpush2.msra.mxu0 %v1159
        %1241 = vmatprep.subr.mxu0 %v1152
        %1242 = vmatpush2.msra.mxu0 %v1151
        %1243 = vmatprep.subr.mxu0 %v1144
        %1244 = vmatpush2.msra.mxu0 %v1143
        %1245 = vmatprep.subr.mxu0 %v1136
        %1246 = vmatpush2.msra.mxu0 %v1135
        %1247 = vmatprep.subr.mxu0 %v1128
        %1248 = vmatpush2.msra.mxu0 %v1127
        %1249 = vmatprep.subr.mxu0 %v1120
        %1250 = vmatpush2.msra.mxu0 %v1119
        %1251 = vmatprep.subr.mxu0 %v1112
        %1252 = vmatpush2.msra.mxu0 %v1111
        %1253 = vmatprep.subr.mxu0 %v1104
        %1254 = vmatpush2.msra.mxu0 %v1103
        %1255 = vmatprep.subr.mxu0 %v1096
        %1256 = vmatpush2.msra.mxu0 %v1095
        %1257 = vmatprep.subr.mxu0 %v1088
        %1258 = vmatpush2.msra.mxu0 %v1087
        %1259 = vmatprep.subr.mxu0 %v1080
        %1260 = vmatpush2.msra.mxu0 %v1079
        %1261 = vmatprep.subr.mxu0 %v1072
        %1262 = vmatpush2.msra.mxu0 %v1071
        %1263 = vmatprep.mubr.f32.mxu0 %v934
        %1264 = vmatmul.mubr.f32.gmra.mxu0 %v933
        %v1265 = vpop.f32.mrf.mxu0
        %v1266 = vadd.f32 0.0, %v1265
        %v1267 = vpop.f32.mrf.mxu0
        %v1268 = vadd.f32 0.0, %v1267
        %1269 = vdwg.mxu0
        %1270 = vmatprep.subr.mxu0 %v1066
        %1271 = vmatpush1.msra.mxu0 %v1065
        %1272 = vmatprep.subr.mxu0 %v1058
        %1273 = vmatpush1.msra.mxu0 %v1057
        %1274 = vmatprep.subr.mxu0 %v1050
        %1275 = vmatpush1.msra.mxu0 %v1049
        %1276 = vmatprep.subr.mxu0 %v1042
        %1277 = vmatpush1.msra.mxu0 %v1041
        %1278 = vmatprep.subr.mxu0 %v1034
        %1279 = vmatpush1.msra.mxu0 %v1033
        %1280 = vmatprep.subr.mxu0 %v1026
        %1281 = vmatpush1.msra.mxu0 %v1025
        %1282 = vmatprep.subr.mxu0 %v1018
        %1283 = vmatpush1.msra.mxu0 %v1017
        %1284 = vmatprep.subr.mxu0 %v1010
        %1285 = vmatpush1.msra.mxu0 %v1009
        %1286 = vmatprep.subr.mxu0 %v1002
        %1287 = vmatpush1.msra.mxu0 %v1001
        %1288 = vmatprep.subr.mxu0 %v994
        %1289 = vmatpush1.msra.mxu0 %v993
        %1290 = vmatprep.subr.mxu0 %v986
        %1291 = vmatpush1.msra.mxu0 %v985
        %1292 = vmatprep.subr.mxu0 %v978
        %1293 = vmatpush1.msra.mxu0 %v977
        %1294 = vmatprep.subr.mxu0 %v970
        %1295 = vmatpush1.msra.mxu0 %v969
        %1296 = vmatprep.subr.mxu0 %v962
        %1297 = vmatpush1.msra.mxu0 %v961
        %1298 = vmatprep.subr.mxu0 %v954
        %1299 = vmatpush1.msra.mxu0 %v953
        %1300 = vmatprep.subr.mxu0 %v946
        %1301 = vmatpush1.msra.mxu0 %v945
        %1302 = vmatprep.subr.mxu0 %v1194
        %1303 = vmatpush2.msra.mxu0 %v1193
        %1304 = vmatprep.subr.mxu0 %v1186
        %1305 = vmatpush2.msra.mxu0 %v1185
        %1306 = vmatprep.subr.mxu0 %v1178
        %1307 = vmatpush2.msra.mxu0 %v1177
        %1308 = vmatprep.subr.mxu0 %v1170
        %1309 = vmatpush2.msra.mxu0 %v1169
        %1310 = vmatprep.subr.mxu0 %v1162
        %1311 = vmatpush2.msra.mxu0 %v1161
        %1312 = vmatprep.subr.mxu0 %v1154
        %1313 = vmatpush2.msra.mxu0 %v1153
        %1314 = vmatprep.subr.mxu0 %v1146
        %1315 = vmatpush2.msra.mxu0 %v1145
        %1316 = vmatprep.subr.mxu0 %v1138
        %1317 = vmatpush2.msra.mxu0 %v1137
        %1318 = vmatprep.subr.mxu0 %v1130
        %1319 = vmatpush2.msra.mxu0 %v1129
        %1320 = vmatprep.subr.mxu0 %v1122
        %1321 = vmatpush2.msra.mxu0 %v1121
        %1322 = vmatprep.subr.mxu0 %v1114
        %1323 = vmatpush2.msra.mxu0 %v1113
        %1324 = vmatprep.subr.mxu0 %v1106
        %1325 = vmatpush2.msra.mxu0 %v1105
        %1326 = vmatprep.subr.mxu0 %v1098
        %1327 = vmatpush2.msra.mxu0 %v1097
        %1328 = vmatprep.subr.mxu0 %v1090
        %1329 = vmatpush2.msra.mxu0 %v1089
        %1330 = vmatprep.subr.mxu0 %v1082
        %1331 = vmatpush2.msra.mxu0 %v1081
        %1332 = vmatprep.subr.mxu0 %v1074
        %1333 = vmatpush2.msra.mxu0 %v1073
        %1334 = vmatprep.mubr.f32.mxu0 %v934
        %1335 = vmatmul.mubr.f32.gmra.mxu0 %v933
        %v1336 = vpop.f32.mrf.mxu0
        %v1337 = vadd.f32 0.0, %v1336
        %v1338 = vpop.f32.mrf.mxu0
        %v1339 = vadd.f32 0.0, %v1338
        %1340 = vdwg.mxu0
        %1341 = vmatprep.subr.mxu0 %v1068
        %1342 = vmatpush1.msra.mxu0 %v1067
        %1343 = vmatprep.subr.mxu0 %v1060
        %1344 = vmatpush1.msra.mxu0 %v1059
        %1345 = vmatprep.subr.mxu0 %v1052
        %1346 = vmatpush1.msra.mxu0 %v1051
        %1347 = vmatprep.subr.mxu0 %v1044
        %1348 = vmatpush1.msra.mxu0 %v1043
        %1349 = vmatprep.subr.mxu0 %v1036
        %1350 = vmatpush1.msra.mxu0 %v1035
        %1351 = vmatprep.subr.mxu0 %v1028
        %1352 = vmatpush1.msra.mxu0 %v1027
        %1353 = vmatprep.subr.mxu0 %v1020
        %1354 = vmatpush1.msra.mxu0 %v1019
        %1355 = vmatprep.subr.mxu0 %v1012
        %1356 = vmatpush1.msra.mxu0 %v1011
        %1357 = vmatprep.subr.mxu0 %v1004
        %1358 = vmatpush1.msra.mxu0 %v1003
        %1359 = vmatprep.subr.mxu0 %v996
        %1360 = vmatpush1.msra.mxu0 %v995
        %1361 = vmatprep.subr.mxu0 %v988
        %1362 = vmatpush1.msra.mxu0 %v987
        %1363 = vmatprep.subr.mxu0 %v980
        %1364 = vmatpush1.msra.mxu0 %v979
        %1365 = vmatprep.subr.mxu0 %v972
        %1366 = vmatpush1.msra.mxu0 %v971
        %1367 = vmatprep.subr.mxu0 %v964
        %1368 = vmatpush1.msra.mxu0 %v963
        %1369 = vmatprep.subr.mxu0 %v956
        %1370 = vmatpush1.msra.mxu0 %v955
        %1371 = vmatprep.subr.mxu0 %v948
        %1372 = vmatpush1.msra.mxu0 %v947
        %1373 = vmatprep.subr.mxu0 %v1196
        %1374 = vmatpush2.msra.mxu0 %v1195
        %1375 = vmatprep.subr.mxu0 %v1188
        %1376 = vmatpush2.msra.mxu0 %v1187
        %1377 = vmatprep.subr.mxu0 %v1180
        %1378 = vmatpush2.msra.mxu0 %v1179
        %1379 = vmatprep.subr.mxu0 %v1172
        %1380 = vmatpush2.msra.mxu0 %v1171
        %1381 = vmatprep.subr.mxu0 %v1164
        %1382 = vmatpush2.msra.mxu0 %v1163
        %1383 = vmatprep.subr.mxu0 %v1156
        %1384 = vmatpush2.msra.mxu0 %v1155
        %1385 = vmatprep.subr.mxu0 %v1148
        %1386 = vmatpush2.msra.mxu0 %v1147
        %1387 = vmatprep.subr.mxu0 %v1140
        %1388 = vmatpush2.msra.mxu0 %v1139
        %1389 = vmatprep.subr.mxu0 %v1132
        %1390 = vmatpush2.msra.mxu0 %v1131
        %1391 = vmatprep.subr.mxu0 %v1124
        %1392 = vmatpush2.msra.mxu0 %v1123
        %1393 = vmatprep.subr.mxu0 %v1116
        %1394 = vmatpush2.msra.mxu0 %v1115
        %1395 = vmatprep.subr.mxu0 %v1108
        %1396 = vmatpush2.msra.mxu0 %v1107
        %1397 = vmatprep.subr.mxu0 %v1100
        %1398 = vmatpush2.msra.mxu0 %v1099
        %1399 = vmatprep.subr.mxu0 %v1092
        %1400 = vmatpush2.msra.mxu0 %v1091
        %1401 = vmatprep.subr.mxu0 %v1084
        %1402 = vmatpush2.msra.mxu0 %v1083
        %1403 = vmatprep.subr.mxu0 %v1076
        %1404 = vmatpush2.msra.mxu0 %v1075
        %1405 = vmatprep.mubr.f32.mxu0 %v934
        %1406 = vmatmul.mubr.f32.gmra.mxu0 %v933
        %v1407 = vpop.f32.mrf.mxu0
        %v1408 = vadd.f32 0.0, %v1407
        %v1409 = vpop.f32.mrf.mxu0
        %v1410 = vadd.f32 0.0, %v1409
        %1411 = vdwg.mxu0
        %1412 = vmatprep.subr.mxu0 %v1070
        %1413 = vmatpush1.msra.mxu0 %v1069
        %1414 = vmatprep.subr.mxu0 %v1062
        %1415 = vmatpush1.msra.mxu0 %v1061
        %1416 = vmatprep.subr.mxu0 %v1054
        %1417 = vmatpush1.msra.mxu0 %v1053
        %1418 = vmatprep.subr.mxu0 %v1046
        %1419 = vmatpush1.msra.mxu0 %v1045
        %1420 = vmatprep.subr.mxu0 %v1038
        %1421 = vmatpush1.msra.mxu0 %v1037
        %1422 = vmatprep.subr.mxu0 %v1030
        %1423 = vmatpush1.msra.mxu0 %v1029
        %1424 = vmatprep.subr.mxu0 %v1022
        %1425 = vmatpush1.msra.mxu0 %v1021
        %1426 = vmatprep.subr.mxu0 %v1014
        %1427 = vmatpush1.msra.mxu0 %v1013
        %1428 = vmatprep.subr.mxu0 %v1006
        %1429 = vmatpush1.msra.mxu0 %v1005
        %1430 = vmatprep.subr.mxu0 %v998
        %1431 = vmatpush1.msra.mxu0 %v997
        %1432 = vmatprep.subr.mxu0 %v990
        %1433 = vmatpush1.msra.mxu0 %v989
        %1434 = vmatprep.subr.mxu0 %v982
        %1435 = vmatpush1.msra.mxu0 %v981
        %1436 = vmatprep.subr.mxu0 %v974
        %1437 = vmatpush1.msra.mxu0 %v973
        %1438 = vmatprep.subr.mxu0 %v966
        %1439 = vmatpush1.msra.mxu0 %v965
        %1440 = vmatprep.subr.mxu0 %v958
        %1441 = vmatpush1.msra.mxu0 %v957
        %1442 = vmatprep.subr.mxu0 %v950
        %1443 = vmatpush1.msra.mxu0 %v949
        %1444 = vmatprep.subr.mxu0 %v1198
        %1445 = vmatpush2.msra.mxu0 %v1197
        %1446 = vmatprep.subr.mxu0 %v1190
        %1447 = vmatpush2.msra.mxu0 %v1189
        %1448 = vmatprep.subr.mxu0 %v1182
        %1449 = vmatpush2.msra.mxu0 %v1181
        %1450 = vmatprep.subr.mxu0 %v1174
        %1451 = vmatpush2.msra.mxu0 %v1173
        %1452 = vmatprep.subr.mxu0 %v1166
        %1453 = vmatpush2.msra.mxu0 %v1165
        %1454 = vmatprep.subr.mxu0 %v1158
        %1455 = vmatpush2.msra.mxu0 %v1157
        %1456 = vmatprep.subr.mxu0 %v1150
        %1457 = vmatpush2.msra.mxu0 %v1149
        %1458 = vmatprep.subr.mxu0 %v1142
        %1459 = vmatpush2.msra.mxu0 %v1141
        %1460 = vmatprep.subr.mxu0 %v1134
        %1461 = vmatpush2.msra.mxu0 %v1133
        %1462 = vmatprep.subr.mxu0 %v1126
        %1463 = vmatpush2.msra.mxu0 %v1125
        %1464 = vmatprep.subr.mxu0 %v1118
        %1465 = vmatpush2.msra.mxu0 %v1117
        %1466 = vmatprep.subr.mxu0 %v1110
        %1467 = vmatpush2.msra.mxu0 %v1109
        %1468 = vmatprep.subr.mxu0 %v1102
        %1469 = vmatpush2.msra.mxu0 %v1101
        %1470 = vmatprep.subr.mxu0 %v1094
        %1471 = vmatpush2.msra.mxu0 %v1093
        %1472 = vmatprep.subr.mxu0 %v1086
        %1473 = vmatpush2.msra.mxu0 %v1085
        %1474 = vmatprep.subr.mxu0 %v1078
        %1475 = vmatpush2.msra.mxu0 %v1077
        %1476 = vmatprep.mubr.f32.mxu0 %v934
        %1477 = vmatmul.mubr.f32.gmra.mxu0 %v933
        %v1478 = vpop.f32.mrf.mxu0
        %v1479 = vadd.f32 0.0, %v1478
        %v1480 = vpop.f32.mrf.mxu0
        %v1481 = vadd.f32 0.0, %v1480
        %1482 = vdwg.mxu0
        %v1483 = vadd.f32 %v935, %v1266
        %v1484 = vadd.f32 %v936, %v1268
        %v1485 = vadd.f32 %v937, %v1337
        %v1486 = vadd.f32 %v938, %v1339
        %v1487 = vadd.f32 %v939, %v1408
        %v1488 = vadd.f32 %v940, %v1410
        %v1489 = vadd.f32 %v941, %v1479
        %v1490 = vadd.f32 %v942, %v1481
        %v1491 = vxor.u32 %v1483, 2147483648
        %v1492 = vxor.u32 %v1484, 2147483648
        %v1493 = vmul.f32 %v1491, 1.442695
        %v1494 = vpow.pop %v1493
        %v1495 = vmul.f32 %v1492, 1.442695
        %v1496 = vpow.pop %v1495
        %v1497 = vadd.f32 %v1494, 1.0
        %v1498 = vadd.f32 %v1496, 1.0
        %v1499 = vrcp.pop %v1497
        %v1500 = vmul.f32 1.0, %v1499
        %v1501 = vrcp.pop %v1498
        %v1502 = vmul.f32 1.0, %v1501
        %v1503 = vxor.u32 %v1485, 2147483648
        %v1504 = vxor.u32 %v1486, 2147483648
        %v1505 = vmul.f32 %v1503, 1.442695
        %v1506 = vpow.pop %v1505
        %v1507 = vmul.f32 %v1504, 1.442695
        %v1508 = vpow.pop %v1507
        %v1509 = vadd.f32 %v1506, 1.0
        %v1510 = vadd.f32 %v1508, 1.0
        %v1511 = vrcp.pop %v1509
        %v1512 = vmul.f32 1.0, %v1511
        %v1513 = vrcp.pop %v1510
        %v1514 = vmul.f32 1.0, %v1513
        %v1515 = vtanh.pop %v1487
        %v1516 = vtanh.pop %v1488
        %v1517 = vxor.u32 %v1489, 2147483648
        %v1518 = vxor.u32 %v1490, 2147483648
        %v1519 = vmul.f32 %v1517, 1.442695
        %v1520 = vpow.pop %v1519
        %v1521 = vmul.f32 %v1518, 1.442695
        %v1522 = vpow.pop %v1521
        %v1523 = vadd.f32 %v1520, 1.0
        %v1524 = vadd.f32 %v1522, 1.0
        %v1525 = vrcp.pop %v1523
        %v1526 = vmul.f32 1.0, %v1525
        %v1527 = vrcp.pop %v1524
        %v1528 = vmul.f32 1.0, %v1527
        %v1529 = vld [vmem:[#allocation3] sm:$0xff]
        %v1530 = vld [vmem:[#allocation3 + $0x8] sm:$0xff]
        %v1531 = vmul.f32 %v1512, %v1529
        %v1532 = vmul.f32 %v1514, %v1530
        %v1533 = vmul.f32 %v1500, %v1515
        %v1534 = vmul.f32 %v1502, %v1516
        %v1535 = vadd.f32 %v1531, %v1533
        %v1536 = vadd.f32 %v1532, %v1534
        %1537 = vst [vmem:[#allocation3] sm:$0xff] %v1535
        %1538 = vst [vmem:[#allocation3 + $0x8] sm:$0xff] %v1536
        %v1539 = vtanh.pop %v1535
        %v1540 = vtanh.pop %v1536
        %v1541 = vmul.f32 %v1526, %v1539
        %v1542 = vmul.f32 %v1528, %v1540
        %1543 = vst [vmem:[#allocation2] sm:$0xff] %v1541
        %1544 = vst [vmem:[#allocation2 + $0x8] sm:$0xff] %v1542
        %v1545 = vld [vmem:[#allocation2] sm:$0xff]
        %v1546 = vld [vmem:[#allocation2 + $0x8] sm:$0xff]
        %v1547 = vld [vmem:[#allocation4 + $0x40] sm:$0xff]
        %v1548 = vld [vmem:[#allocation4 + $0x48] sm:$0xff]
        %v1549 = vld [vmem:[#allocation4 + $0x50] sm:$0xff]
        %v1550 = vld [vmem:[#allocation4 + $0x58] sm:$0xff]
        %v1551 = vld [vmem:[#allocation4 + $0x60] sm:$0xff]
        %v1552 = vld [vmem:[#allocation4 + $0x68] sm:$0xff]
        %v1553 = vld [vmem:[#allocation4 + $0x70] sm:$0xff]
        %v1554 = vld [vmem:[#allocation4 + $0x78] sm:$0xff]
        %v1555 = vld [vmem:[#allocation10] sm:$0xff]
        %v1556 = vld [vmem:[#allocation10 + $0x8] sm:$0xff]
        %v1557 = vld [vmem:[#allocation10 + $0x10] sm:$0xff]
        %v1558 = vld [vmem:[#allocation10 + $0x18] sm:$0xff]
        %v1559 = vld [vmem:[#allocation10 + $0x20] sm:$0xff]
        %v1560 = vld [vmem:[#allocation10 + $0x28] sm:$0xff]
        %v1561 = vld [vmem:[#allocation10 + $0x30] sm:$0xff]
        %v1562 = vld [vmem:[#allocation10 + $0x38] sm:$0xff]
        %v1563 = vld [vmem:[#allocation10 + $0x40] sm:$0xff]
        %v1564 = vld [vmem:[#allocation10 + $0x48] sm:$0xff]
        %v1565 = vld [vmem:[#allocation10 + $0x50] sm:$0xff]
        %v1566 = vld [vmem:[#allocation10 + $0x58] sm:$0xff]
        %v1567 = vld [vmem:[#allocation10 + $0x60] sm:$0xff]
        %v1568 = vld [vmem:[#allocation10 + $0x68] sm:$0xff]
        %v1569 = vld [vmem:[#allocation10 + $0x70] sm:$0xff]
        %v1570 = vld [vmem:[#allocation10 + $0x78] sm:$0xff]
        %v1571 = vld [vmem:[#allocation10 + $0x80] sm:$0xff]
        %v1572 = vld [vmem:[#allocation10 + $0x88] sm:$0xff]
        %v1573 = vld [vmem:[#allocation10 + $0x90] sm:$0xff]
        %v1574 = vld [vmem:[#allocation10 + $0x98] sm:$0xff]
        %v1575 = vld [vmem:[#allocation10 + $0xa0] sm:$0xff]
        %v1576 = vld [vmem:[#allocation10 + $0xa8] sm:$0xff]
        %v1577 = vld [vmem:[#allocation10 + $0xb0] sm:$0xff]
        %v1578 = vld [vmem:[#allocation10 + $0xb8] sm:$0xff]
        %v1579 = vld [vmem:[#allocation10 + $0xc0] sm:$0xff]
        %v1580 = vld [vmem:[#allocation10 + $0xc8] sm:$0xff]
        %v1581 = vld [vmem:[#allocation10 + $0xd0] sm:$0xff]
        %v1582 = vld [vmem:[#allocation10 + $0xd8] sm:$0xff]
        %v1583 = vld [vmem:[#allocation10 + $0xe0] sm:$0xff]
        %v1584 = vld [vmem:[#allocation10 + $0xe8] sm:$0xff]
        %v1585 = vld [vmem:[#allocation10 + $0xf0] sm:$0xff]
        %v1586 = vld [vmem:[#allocation10 + $0xf8] sm:$0xff]
        %v1587 = vld [vmem:[#allocation10 + $0x100] sm:$0xff]
        %v1588 = vld [vmem:[#allocation10 + $0x108] sm:$0xff]
        %v1589 = vld [vmem:[#allocation10 + $0x110] sm:$0xff]
        %v1590 = vld [vmem:[#allocation10 + $0x118] sm:$0xff]
        %v1591 = vld [vmem:[#allocation10 + $0x120] sm:$0xff]
        %v1592 = vld [vmem:[#allocation10 + $0x128] sm:$0xff]
        %v1593 = vld [vmem:[#allocation10 + $0x130] sm:$0xff]
        %v1594 = vld [vmem:[#allocation10 + $0x138] sm:$0xff]
        %v1595 = vld [vmem:[#allocation10 + $0x140] sm:$0xff]
        %v1596 = vld [vmem:[#allocation10 + $0x148] sm:$0xff]
        %v1597 = vld [vmem:[#allocation10 + $0x150] sm:$0xff]
        %v1598 = vld [vmem:[#allocation10 + $0x158] sm:$0xff]
        %v1599 = vld [vmem:[#allocation10 + $0x160] sm:$0xff]
        %v1600 = vld [vmem:[#allocation10 + $0x168] sm:$0xff]
        %v1601 = vld [vmem:[#allocation10 + $0x170] sm:$0xff]
        %v1602 = vld [vmem:[#allocation10 + $0x178] sm:$0xff]
        %v1603 = vld [vmem:[#allocation10 + $0x180] sm:$0xff]
        %v1604 = vld [vmem:[#allocation10 + $0x188] sm:$0xff]
        %v1605 = vld [vmem:[#allocation10 + $0x190] sm:$0xff]
        %v1606 = vld [vmem:[#allocation10 + $0x198] sm:$0xff]
        %v1607 = vld [vmem:[#allocation10 + $0x1a0] sm:$0xff]
        %v1608 = vld [vmem:[#allocation10 + $0x1a8] sm:$0xff]
        %v1609 = vld [vmem:[#allocation10 + $0x1b0] sm:$0xff]
        %v1610 = vld [vmem:[#allocation10 + $0x1b8] sm:$0xff]
        %v1611 = vld [vmem:[#allocation10 + $0x1c0] sm:$0xff]
        %v1612 = vld [vmem:[#allocation10 + $0x1c8] sm:$0xff]
        %v1613 = vld [vmem:[#allocation10 + $0x1d0] sm:$0xff]
        %v1614 = vld [vmem:[#allocation10 + $0x1d8] sm:$0xff]
        %v1615 = vld [vmem:[#allocation10 + $0x1e0] sm:$0xff]
        %v1616 = vld [vmem:[#allocation10 + $0x1e8] sm:$0xff]
        %v1617 = vld [vmem:[#allocation10 + $0x1f0] sm:$0xff]
        %v1618 = vld [vmem:[#allocation10 + $0x1f8] sm:$0xff]
        %v1619 = vld [vmem:[#allocation10 + $0x200] sm:$0xff]
        %v1620 = vld [vmem:[#allocation10 + $0x208] sm:$0xff]
        %v1621 = vld [vmem:[#allocation10 + $0x210] sm:$0xff]
        %v1622 = vld [vmem:[#allocation10 + $0x218] sm:$0xff]
        %v1623 = vld [vmem:[#allocation10 + $0x220] sm:$0xff]
        %v1624 = vld [vmem:[#allocation10 + $0x228] sm:$0xff]
        %v1625 = vld [vmem:[#allocation10 + $0x230] sm:$0xff]
        %v1626 = vld [vmem:[#allocation10 + $0x238] sm:$0xff]
        %v1627 = vld [vmem:[#allocation10 + $0x240] sm:$0xff]
        %v1628 = vld [vmem:[#allocation10 + $0x248] sm:$0xff]
        %v1629 = vld [vmem:[#allocation10 + $0x250] sm:$0xff]
        %v1630 = vld [vmem:[#allocation10 + $0x258] sm:$0xff]
        %v1631 = vld [vmem:[#allocation10 + $0x260] sm:$0xff]
        %v1632 = vld [vmem:[#allocation10 + $0x268] sm:$0xff]
        %v1633 = vld [vmem:[#allocation10 + $0x270] sm:$0xff]
        %v1634 = vld [vmem:[#allocation10 + $0x278] sm:$0xff]
        %v1635 = vld [vmem:[#allocation10 + $0x280] sm:$0xff]
        %v1636 = vld [vmem:[#allocation10 + $0x288] sm:$0xff]
        %v1637 = vld [vmem:[#allocation10 + $0x290] sm:$0xff]
        %v1638 = vld [vmem:[#allocation10 + $0x298] sm:$0xff]
        %v1639 = vld [vmem:[#allocation10 + $0x2a0] sm:$0xff]
        %v1640 = vld [vmem:[#allocation10 + $0x2a8] sm:$0xff]
        %v1641 = vld [vmem:[#allocation10 + $0x2b0] sm:$0xff]
        %v1642 = vld [vmem:[#allocation10 + $0x2b8] sm:$0xff]
        %v1643 = vld [vmem:[#allocation10 + $0x2c0] sm:$0xff]
        %v1644 = vld [vmem:[#allocation10 + $0x2c8] sm:$0xff]
        %v1645 = vld [vmem:[#allocation10 + $0x2d0] sm:$0xff]
        %v1646 = vld [vmem:[#allocation10 + $0x2d8] sm:$0xff]
        %v1647 = vld [vmem:[#allocation10 + $0x2e0] sm:$0xff]
        %v1648 = vld [vmem:[#allocation10 + $0x2e8] sm:$0xff]
        %v1649 = vld [vmem:[#allocation10 + $0x2f0] sm:$0xff]
        %v1650 = vld [vmem:[#allocation10 + $0x2f8] sm:$0xff]
        %v1651 = vld [vmem:[#allocation10 + $0x300] sm:$0xff]
        %v1652 = vld [vmem:[#allocation10 + $0x308] sm:$0xff]
        %v1653 = vld [vmem:[#allocation10 + $0x310] sm:$0xff]
        %v1654 = vld [vmem:[#allocation10 + $0x318] sm:$0xff]
        %v1655 = vld [vmem:[#allocation10 + $0x320] sm:$0xff]
        %v1656 = vld [vmem:[#allocation10 + $0x328] sm:$0xff]
        %v1657 = vld [vmem:[#allocation10 + $0x330] sm:$0xff]
        %v1658 = vld [vmem:[#allocation10 + $0x338] sm:$0xff]
        %v1659 = vld [vmem:[#allocation10 + $0x340] sm:$0xff]
        %v1660 = vld [vmem:[#allocation10 + $0x348] sm:$0xff]
        %v1661 = vld [vmem:[#allocation10 + $0x350] sm:$0xff]
        %v1662 = vld [vmem:[#allocation10 + $0x358] sm:$0xff]
        %v1663 = vld [vmem:[#allocation10 + $0x360] sm:$0xff]
        %v1664 = vld [vmem:[#allocation10 + $0x368] sm:$0xff]
        %v1665 = vld [vmem:[#allocation10 + $0x370] sm:$0xff]
        %v1666 = vld [vmem:[#allocation10 + $0x378] sm:$0xff]
        %v1667 = vld [vmem:[#allocation10 + $0x380] sm:$0xff]
        %v1668 = vld [vmem:[#allocation10 + $0x388] sm:$0xff]
        %v1669 = vld [vmem:[#allocation10 + $0x390] sm:$0xff]
        %v1670 = vld [vmem:[#allocation10 + $0x398] sm:$0xff]
        %v1671 = vld [vmem:[#allocation10 + $0x3a0] sm:$0xff]
        %v1672 = vld [vmem:[#allocation10 + $0x3a8] sm:$0xff]
        %v1673 = vld [vmem:[#allocation10 + $0x3b0] sm:$0xff]
        %v1674 = vld [vmem:[#allocation10 + $0x3b8] sm:$0xff]
        %v1675 = vld [vmem:[#allocation10 + $0x3c0] sm:$0xff]
        %v1676 = vld [vmem:[#allocation10 + $0x3c8] sm:$0xff]
        %v1677 = vld [vmem:[#allocation10 + $0x3d0] sm:$0xff]
        %v1678 = vld [vmem:[#allocation10 + $0x3d8] sm:$0xff]
        %v1679 = vld [vmem:[#allocation10 + $0x3e0] sm:$0xff]
        %v1680 = vld [vmem:[#allocation10 + $0x3e8] sm:$0xff]
        %v1681 = vld [vmem:[#allocation10 + $0x3f0] sm:$0xff]
        %v1682 = vld [vmem:[#allocation10 + $0x3f8] sm:$0xff]
        %v1683 = vld [vmem:[#allocation10 + $0x400] sm:$0xff]
        %v1684 = vld [vmem:[#allocation10 + $0x408] sm:$0xff]
        %v1685 = vld [vmem:[#allocation10 + $0x410] sm:$0xff]
        %v1686 = vld [vmem:[#allocation10 + $0x418] sm:$0xff]
        %v1687 = vld [vmem:[#allocation10 + $0x420] sm:$0xff]
        %v1688 = vld [vmem:[#allocation10 + $0x428] sm:$0xff]
        %v1689 = vld [vmem:[#allocation10 + $0x430] sm:$0xff]
        %v1690 = vld [vmem:[#allocation10 + $0x438] sm:$0xff]
        %v1691 = vld [vmem:[#allocation10 + $0x440] sm:$0xff]
        %v1692 = vld [vmem:[#allocation10 + $0x448] sm:$0xff]
        %v1693 = vld [vmem:[#allocation10 + $0x450] sm:$0xff]
        %v1694 = vld [vmem:[#allocation10 + $0x458] sm:$0xff]
        %v1695 = vld [vmem:[#allocation10 + $0x460] sm:$0xff]
        %v1696 = vld [vmem:[#allocation10 + $0x468] sm:$0xff]
        %v1697 = vld [vmem:[#allocation10 + $0x470] sm:$0xff]
        %v1698 = vld [vmem:[#allocation10 + $0x478] sm:$0xff]
        %v1699 = vld [vmem:[#allocation10 + $0x480] sm:$0xff]
        %v1700 = vld [vmem:[#allocation10 + $0x488] sm:$0xff]
        %v1701 = vld [vmem:[#allocation10 + $0x490] sm:$0xff]
        %v1702 = vld [vmem:[#allocation10 + $0x498] sm:$0xff]
        %v1703 = vld [vmem:[#allocation10 + $0x4a0] sm:$0xff]
        %v1704 = vld [vmem:[#allocation10 + $0x4a8] sm:$0xff]
        %v1705 = vld [vmem:[#allocation10 + $0x4b0] sm:$0xff]
        %v1706 = vld [vmem:[#allocation10 + $0x4b8] sm:$0xff]
        %v1707 = vld [vmem:[#allocation10 + $0x4c0] sm:$0xff]
        %v1708 = vld [vmem:[#allocation10 + $0x4c8] sm:$0xff]
        %v1709 = vld [vmem:[#allocation10 + $0x4d0] sm:$0xff]
        %v1710 = vld [vmem:[#allocation10 + $0x4d8] sm:$0xff]
        %v1711 = vld [vmem:[#allocation10 + $0x4e0] sm:$0xff]
        %v1712 = vld [vmem:[#allocation10 + $0x4e8] sm:$0xff]
        %v1713 = vld [vmem:[#allocation10 + $0x4f0] sm:$0xff]
        %v1714 = vld [vmem:[#allocation10 + $0x4f8] sm:$0xff]
        %v1715 = vld [vmem:[#allocation10 + $0x500] sm:$0xff]
        %v1716 = vld [vmem:[#allocation10 + $0x508] sm:$0xff]
        %v1717 = vld [vmem:[#allocation10 + $0x510] sm:$0xff]
        %v1718 = vld [vmem:[#allocation10 + $0x518] sm:$0xff]
        %v1719 = vld [vmem:[#allocation10 + $0x520] sm:$0xff]
        %v1720 = vld [vmem:[#allocation10 + $0x528] sm:$0xff]
        %v1721 = vld [vmem:[#allocation10 + $0x530] sm:$0xff]
        %v1722 = vld [vmem:[#allocation10 + $0x538] sm:$0xff]
        %v1723 = vld [vmem:[#allocation10 + $0x540] sm:$0xff]
        %v1724 = vld [vmem:[#allocation10 + $0x548] sm:$0xff]
        %v1725 = vld [vmem:[#allocation10 + $0x550] sm:$0xff]
        %v1726 = vld [vmem:[#allocation10 + $0x558] sm:$0xff]
        %v1727 = vld [vmem:[#allocation10 + $0x560] sm:$0xff]
        %v1728 = vld [vmem:[#allocation10 + $0x568] sm:$0xff]
        %v1729 = vld [vmem:[#allocation10 + $0x570] sm:$0xff]
        %v1730 = vld [vmem:[#allocation10 + $0x578] sm:$0xff]
        %v1731 = vld [vmem:[#allocation10 + $0x580] sm:$0xff]
        %v1732 = vld [vmem:[#allocation10 + $0x588] sm:$0xff]
        %v1733 = vld [vmem:[#allocation10 + $0x590] sm:$0xff]
        %v1734 = vld [vmem:[#allocation10 + $0x598] sm:$0xff]
        %v1735 = vld [vmem:[#allocation10 + $0x5a0] sm:$0xff]
        %v1736 = vld [vmem:[#allocation10 + $0x5a8] sm:$0xff]
        %v1737 = vld [vmem:[#allocation10 + $0x5b0] sm:$0xff]
        %v1738 = vld [vmem:[#allocation10 + $0x5b8] sm:$0xff]
        %v1739 = vld [vmem:[#allocation10 + $0x5c0] sm:$0xff]
        %v1740 = vld [vmem:[#allocation10 + $0x5c8] sm:$0xff]
        %v1741 = vld [vmem:[#allocation10 + $0x5d0] sm:$0xff]
        %v1742 = vld [vmem:[#allocation10 + $0x5d8] sm:$0xff]
        %v1743 = vld [vmem:[#allocation10 + $0x5e0] sm:$0xff]
        %v1744 = vld [vmem:[#allocation10 + $0x5e8] sm:$0xff]
        %v1745 = vld [vmem:[#allocation10 + $0x5f0] sm:$0xff]
        %v1746 = vld [vmem:[#allocation10 + $0x5f8] sm:$0xff]
        %v1747 = vld [vmem:[#allocation10 + $0x600] sm:$0xff]
        %v1748 = vld [vmem:[#allocation10 + $0x608] sm:$0xff]
        %v1749 = vld [vmem:[#allocation10 + $0x610] sm:$0xff]
        %v1750 = vld [vmem:[#allocation10 + $0x618] sm:$0xff]
        %v1751 = vld [vmem:[#allocation10 + $0x620] sm:$0xff]
        %v1752 = vld [vmem:[#allocation10 + $0x628] sm:$0xff]
        %v1753 = vld [vmem:[#allocation10 + $0x630] sm:$0xff]
        %v1754 = vld [vmem:[#allocation10 + $0x638] sm:$0xff]
        %v1755 = vld [vmem:[#allocation10 + $0x640] sm:$0xff]
        %v1756 = vld [vmem:[#allocation10 + $0x648] sm:$0xff]
        %v1757 = vld [vmem:[#allocation10 + $0x650] sm:$0xff]
        %v1758 = vld [vmem:[#allocation10 + $0x658] sm:$0xff]
        %v1759 = vld [vmem:[#allocation10 + $0x660] sm:$0xff]
        %v1760 = vld [vmem:[#allocation10 + $0x668] sm:$0xff]
        %v1761 = vld [vmem:[#allocation10 + $0x670] sm:$0xff]
        %v1762 = vld [vmem:[#allocation10 + $0x678] sm:$0xff]
        %v1763 = vld [vmem:[#allocation10 + $0x680] sm:$0xff]
        %v1764 = vld [vmem:[#allocation10 + $0x688] sm:$0xff]
        %v1765 = vld [vmem:[#allocation10 + $0x690] sm:$0xff]
        %v1766 = vld [vmem:[#allocation10 + $0x698] sm:$0xff]
        %v1767 = vld [vmem:[#allocation10 + $0x6a0] sm:$0xff]
        %v1768 = vld [vmem:[#allocation10 + $0x6a8] sm:$0xff]
        %v1769 = vld [vmem:[#allocation10 + $0x6b0] sm:$0xff]
        %v1770 = vld [vmem:[#allocation10 + $0x6b8] sm:$0xff]
        %v1771 = vld [vmem:[#allocation10 + $0x6c0] sm:$0xff]
        %v1772 = vld [vmem:[#allocation10 + $0x6c8] sm:$0xff]
        %v1773 = vld [vmem:[#allocation10 + $0x6d0] sm:$0xff]
        %v1774 = vld [vmem:[#allocation10 + $0x6d8] sm:$0xff]
        %v1775 = vld [vmem:[#allocation10 + $0x6e0] sm:$0xff]
        %v1776 = vld [vmem:[#allocation10 + $0x6e8] sm:$0xff]
        %v1777 = vld [vmem:[#allocation10 + $0x6f0] sm:$0xff]
        %v1778 = vld [vmem:[#allocation10 + $0x6f8] sm:$0xff]
        %v1779 = vld [vmem:[#allocation10 + $0x700] sm:$0xff]
        %v1780 = vld [vmem:[#allocation10 + $0x708] sm:$0xff]
        %v1781 = vld [vmem:[#allocation10 + $0x710] sm:$0xff]
        %v1782 = vld [vmem:[#allocation10 + $0x718] sm:$0xff]
        %v1783 = vld [vmem:[#allocation10 + $0x720] sm:$0xff]
        %v1784 = vld [vmem:[#allocation10 + $0x728] sm:$0xff]
        %v1785 = vld [vmem:[#allocation10 + $0x730] sm:$0xff]
        %v1786 = vld [vmem:[#allocation10 + $0x738] sm:$0xff]
        %v1787 = vld [vmem:[#allocation10 + $0x740] sm:$0xff]
        %v1788 = vld [vmem:[#allocation10 + $0x748] sm:$0xff]
        %v1789 = vld [vmem:[#allocation10 + $0x750] sm:$0xff]
        %v1790 = vld [vmem:[#allocation10 + $0x758] sm:$0xff]
        %v1791 = vld [vmem:[#allocation10 + $0x760] sm:$0xff]
        %v1792 = vld [vmem:[#allocation10 + $0x768] sm:$0xff]
        %v1793 = vld [vmem:[#allocation10 + $0x770] sm:$0xff]
        %v1794 = vld [vmem:[#allocation10 + $0x778] sm:$0xff]
        %v1795 = vld [vmem:[#allocation10 + $0x780] sm:$0xff]
        %v1796 = vld [vmem:[#allocation10 + $0x788] sm:$0xff]
        %v1797 = vld [vmem:[#allocation10 + $0x790] sm:$0xff]
        %v1798 = vld [vmem:[#allocation10 + $0x798] sm:$0xff]
        %v1799 = vld [vmem:[#allocation10 + $0x7a0] sm:$0xff]
        %v1800 = vld [vmem:[#allocation10 + $0x7a8] sm:$0xff]
        %v1801 = vld [vmem:[#allocation10 + $0x7b0] sm:$0xff]
        %v1802 = vld [vmem:[#allocation10 + $0x7b8] sm:$0xff]
        %v1803 = vld [vmem:[#allocation10 + $0x7c0] sm:$0xff]
        %v1804 = vld [vmem:[#allocation10 + $0x7c8] sm:$0xff]
        %v1805 = vld [vmem:[#allocation10 + $0x7d0] sm:$0xff]
        %v1806 = vld [vmem:[#allocation10 + $0x7d8] sm:$0xff]
        %v1807 = vld [vmem:[#allocation10 + $0x7e0] sm:$0xff]
        %v1808 = vld [vmem:[#allocation10 + $0x7e8] sm:$0xff]
        %v1809 = vld [vmem:[#allocation10 + $0x7f0] sm:$0xff]
        %v1810 = vld [vmem:[#allocation10 + $0x7f8] sm:$0xff]
        %1811 = vmatprep.subr.mxu0 %v1676
        %1812 = vmatpush1.msra.mxu0 %v1675
        %1813 = vmatprep.subr.mxu0 %v1668
        %1814 = vmatpush1.msra.mxu0 %v1667
        %1815 = vmatprep.subr.mxu0 %v1660
        %1816 = vmatpush1.msra.mxu0 %v1659
        %1817 = vmatprep.subr.mxu0 %v1652
        %1818 = vmatpush1.msra.mxu0 %v1651
        %1819 = vmatprep.subr.mxu0 %v1644
        %1820 = vmatpush1.msra.mxu0 %v1643
        %1821 = vmatprep.subr.mxu0 %v1636
        %1822 = vmatpush1.msra.mxu0 %v1635
        %1823 = vmatprep.subr.mxu0 %v1628
        %1824 = vmatpush1.msra.mxu0 %v1627
        %1825 = vmatprep.subr.mxu0 %v1620
        %1826 = vmatpush1.msra.mxu0 %v1619
        %1827 = vmatprep.subr.mxu0 %v1612
        %1828 = vmatpush1.msra.mxu0 %v1611
        %1829 = vmatprep.subr.mxu0 %v1604
        %1830 = vmatpush1.msra.mxu0 %v1603
        %1831 = vmatprep.subr.mxu0 %v1596
        %1832 = vmatpush1.msra.mxu0 %v1595
        %1833 = vmatprep.subr.mxu0 %v1588
        %1834 = vmatpush1.msra.mxu0 %v1587
        %1835 = vmatprep.subr.mxu0 %v1580
        %1836 = vmatpush1.msra.mxu0 %v1579
        %1837 = vmatprep.subr.mxu0 %v1572
        %1838 = vmatpush1.msra.mxu0 %v1571
        %1839 = vmatprep.subr.mxu0 %v1564
        %1840 = vmatpush1.msra.mxu0 %v1563
        %1841 = vmatprep.subr.mxu0 %v1556
        %1842 = vmatpush1.msra.mxu0 %v1555
        %1843 = vmatprep.subr.mxu0 %v1804
        %1844 = vmatpush2.msra.mxu0 %v1803
        %1845 = vmatprep.subr.mxu0 %v1796
        %1846 = vmatpush2.msra.mxu0 %v1795
        %1847 = vmatprep.subr.mxu0 %v1788
        %1848 = vmatpush2.msra.mxu0 %v1787
        %1849 = vmatprep.subr.mxu0 %v1780
        %1850 = vmatpush2.msra.mxu0 %v1779
        %1851 = vmatprep.subr.mxu0 %v1772
        %1852 = vmatpush2.msra.mxu0 %v1771
        %1853 = vmatprep.subr.mxu0 %v1764
        %1854 = vmatpush2.msra.mxu0 %v1763
        %1855 = vmatprep.subr.mxu0 %v1756
        %1856 = vmatpush2.msra.mxu0 %v1755
        %1857 = vmatprep.subr.mxu0 %v1748
        %1858 = vmatpush2.msra.mxu0 %v1747
        %1859 = vmatprep.subr.mxu0 %v1740
        %1860 = vmatpush2.msra.mxu0 %v1739
        %1861 = vmatprep.subr.mxu0 %v1732
        %1862 = vmatpush2.msra.mxu0 %v1731
        %1863 = vmatprep.subr.mxu0 %v1724
        %1864 = vmatpush2.msra.mxu0 %v1723
        %1865 = vmatprep.subr.mxu0 %v1716
        %1866 = vmatpush2.msra.mxu0 %v1715
        %1867 = vmatprep.subr.mxu0 %v1708
        %1868 = vmatpush2.msra.mxu0 %v1707
        %1869 = vmatprep.subr.mxu0 %v1700
        %1870 = vmatpush2.msra.mxu0 %v1699
        %1871 = vmatprep.subr.mxu0 %v1692
        %1872 = vmatpush2.msra.mxu0 %v1691
        %1873 = vmatprep.subr.mxu0 %v1684
        %1874 = vmatpush2.msra.mxu0 %v1683
        %1875 = vmatprep.mubr.f32.mxu0 %v1546
        %1876 = vmatmul.mubr.f32.gmra.mxu0 %v1545
        %v1877 = vpop.f32.mrf.mxu0
        %v1878 = vadd.f32 0.0, %v1877
        %v1879 = vpop.f32.mrf.mxu0
        %v1880 = vadd.f32 0.0, %v1879
        %1881 = vdwg.mxu0
        %1882 = vmatprep.subr.mxu0 %v1678
        %1883 = vmatpush1.msra.mxu0 %v1677
        %1884 = vmatprep.subr.mxu0 %v1670
        %1885 = vmatpush1.msra.mxu0 %v1669
        %1886 = vmatprep.subr.mxu0 %v1662
        %1887 = vmatpush1.msra.mxu0 %v1661
        %1888 = vmatprep.subr.mxu0 %v1654
        %1889 = vmatpush1.msra.mxu0 %v1653
        %1890 = vmatprep.subr.mxu0 %v1646
        %1891 = vmatpush1.msra.mxu0 %v1645
        %1892 = vmatprep.subr.mxu0 %v1638
        %1893 = vmatpush1.msra.mxu0 %v1637
        %1894 = vmatprep.subr.mxu0 %v1630
        %1895 = vmatpush1.msra.mxu0 %v1629
        %1896 = vmatprep.subr.mxu0 %v1622
        %1897 = vmatpush1.msra.mxu0 %v1621
        %1898 = vmatprep.subr.mxu0 %v1614
        %1899 = vmatpush1.msra.mxu0 %v1613
        %1900 = vmatprep.subr.mxu0 %v1606
        %1901 = vmatpush1.msra.mxu0 %v1605
        %1902 = vmatprep.subr.mxu0 %v1598
        %1903 = vmatpush1.msra.mxu0 %v1597
        %1904 = vmatprep.subr.mxu0 %v1590
        %1905 = vmatpush1.msra.mxu0 %v1589
        %1906 = vmatprep.subr.mxu0 %v1582
        %1907 = vmatpush1.msra.mxu0 %v1581
        %1908 = vmatprep.subr.mxu0 %v1574
        %1909 = vmatpush1.msra.mxu0 %v1573
        %1910 = vmatprep.subr.mxu0 %v1566
        %1911 = vmatpush1.msra.mxu0 %v1565
        %1912 = vmatprep.subr.mxu0 %v1558
        %1913 = vmatpush1.msra.mxu0 %v1557
        %1914 = vmatprep.subr.mxu0 %v1806
        %1915 = vmatpush2.msra.mxu0 %v1805
        %1916 = vmatprep.subr.mxu0 %v1798
        %1917 = vmatpush2.msra.mxu0 %v1797
        %1918 = vmatprep.subr.mxu0 %v1790
        %1919 = vmatpush2.msra.mxu0 %v1789
        %1920 = vmatprep.subr.mxu0 %v1782
        %1921 = vmatpush2.msra.mxu0 %v1781
        %1922 = vmatprep.subr.mxu0 %v1774
        %1923 = vmatpush2.msra.mxu0 %v1773
        %1924 = vmatprep.subr.mxu0 %v1766
        %1925 = vmatpush2.msra.mxu0 %v1765
        %1926 = vmatprep.subr.mxu0 %v1758
        %1927 = vmatpush2.msra.mxu0 %v1757
        %1928 = vmatprep.subr.mxu0 %v1750
        %1929 = vmatpush2.msra.mxu0 %v1749
        %1930 = vmatprep.subr.mxu0 %v1742
        %1931 = vmatpush2.msra.mxu0 %v1741
        %1932 = vmatprep.subr.mxu0 %v1734
        %1933 = vmatpush2.msra.mxu0 %v1733
        %1934 = vmatprep.subr.mxu0 %v1726
        %1935 = vmatpush2.msra.mxu0 %v1725
        %1936 = vmatprep.subr.mxu0 %v1718
        %1937 = vmatpush2.msra.mxu0 %v1717
        %1938 = vmatprep.subr.mxu0 %v1710
        %1939 = vmatpush2.msra.mxu0 %v1709
        %1940 = vmatprep.subr.mxu0 %v1702
        %1941 = vmatpush2.msra.mxu0 %v1701
        %1942 = vmatprep.subr.mxu0 %v1694
        %1943 = vmatpush2.msra.mxu0 %v1693
        %1944 = vmatprep.subr.mxu0 %v1686
        %1945 = vmatpush2.msra.mxu0 %v1685
        %1946 = vmatprep.mubr.f32.mxu0 %v1546
        %1947 = vmatmul.mubr.f32.gmra.mxu0 %v1545
        %v1948 = vpop.f32.mrf.mxu0
        %v1949 = vadd.f32 0.0, %v1948
        %v1950 = vpop.f32.mrf.mxu0
        %v1951 = vadd.f32 0.0, %v1950
        %1952 = vdwg.mxu0
        %1953 = vmatprep.subr.mxu0 %v1680
        %1954 = vmatpush1.msra.mxu0 %v1679
        %1955 = vmatprep.subr.mxu0 %v1672
        %1956 = vmatpush1.msra.mxu0 %v1671
        %1957 = vmatprep.subr.mxu0 %v1664
        %1958 = vmatpush1.msra.mxu0 %v1663
        %1959 = vmatprep.subr.mxu0 %v1656
        %1960 = vmatpush1.msra.mxu0 %v1655
        %1961 = vmatprep.subr.mxu0 %v1648
        %1962 = vmatpush1.msra.mxu0 %v1647
        %1963 = vmatprep.subr.mxu0 %v1640
        %1964 = vmatpush1.msra.mxu0 %v1639
        %1965 = vmatprep.subr.mxu0 %v1632
        %1966 = vmatpush1.msra.mxu0 %v1631
        %1967 = vmatprep.subr.mxu0 %v1624
        %1968 = vmatpush1.msra.mxu0 %v1623
        %1969 = vmatprep.subr.mxu0 %v1616
        %1970 = vmatpush1.msra.mxu0 %v1615
        %1971 = vmatprep.subr.mxu0 %v1608
        %1972 = vmatpush1.msra.mxu0 %v1607
        %1973 = vmatprep.subr.mxu0 %v1600
        %1974 = vmatpush1.msra.mxu0 %v1599
        %1975 = vmatprep.subr.mxu0 %v1592
        %1976 = vmatpush1.msra.mxu0 %v1591
        %1977 = vmatprep.subr.mxu0 %v1584
        %1978 = vmatpush1.msra.mxu0 %v1583
        %1979 = vmatprep.subr.mxu0 %v1576
        %1980 = vmatpush1.msra.mxu0 %v1575
        %1981 = vmatprep.subr.mxu0 %v1568
        %1982 = vmatpush1.msra.mxu0 %v1567
        %1983 = vmatprep.subr.mxu0 %v1560
        %1984 = vmatpush1.msra.mxu0 %v1559
        %1985 = vmatprep.subr.mxu0 %v1808
        %1986 = vmatpush2.msra.mxu0 %v1807
        %1987 = vmatprep.subr.mxu0 %v1800
        %1988 = vmatpush2.msra.mxu0 %v1799
        %1989 = vmatprep.subr.mxu0 %v1792
        %1990 = vmatpush2.msra.mxu0 %v1791
        %1991 = vmatprep.subr.mxu0 %v1784
        %1992 = vmatpush2.msra.mxu0 %v1783
        %1993 = vmatprep.subr.mxu0 %v1776
        %1994 = vmatpush2.msra.mxu0 %v1775
        %1995 = vmatprep.subr.mxu0 %v1768
        %1996 = vmatpush2.msra.mxu0 %v1767
        %1997 = vmatprep.subr.mxu0 %v1760
        %1998 = vmatpush2.msra.mxu0 %v1759
        %1999 = vmatprep.subr.mxu0 %v1752
        %2000 = vmatpush2.msra.mxu0 %v1751
        %2001 = vmatprep.subr.mxu0 %v1744
        %2002 = vmatpush2.msra.mxu0 %v1743
        %2003 = vmatprep.subr.mxu0 %v1736
        %2004 = vmatpush2.msra.mxu0 %v1735
        %2005 = vmatprep.subr.mxu0 %v1728
        %2006 = vmatpush2.msra.mxu0 %v1727
        %2007 = vmatprep.subr.mxu0 %v1720
        %2008 = vmatpush2.msra.mxu0 %v1719
        %2009 = vmatprep.subr.mxu0 %v1712
        %2010 = vmatpush2.msra.mxu0 %v1711
        %2011 = vmatprep.subr.mxu0 %v1704
        %2012 = vmatpush2.msra.mxu0 %v1703
        %2013 = vmatprep.subr.mxu0 %v1696
        %2014 = vmatpush2.msra.mxu0 %v1695
        %2015 = vmatprep.subr.mxu0 %v1688
        %2016 = vmatpush2.msra.mxu0 %v1687
        %2017 = vmatprep.mubr.f32.mxu0 %v1546
        %2018 = vmatmul.mubr.f32.gmra.mxu0 %v1545
        %v2019 = vpop.f32.mrf.mxu0
        %v2020 = vadd.f32 0.0, %v2019
        %v2021 = vpop.f32.mrf.mxu0
        %v2022 = vadd.f32 0.0, %v2021
        %2023 = vdwg.mxu0
        %2024 = vmatprep.subr.mxu0 %v1682
        %2025 = vmatpush1.msra.mxu0 %v1681
        %2026 = vmatprep.subr.mxu0 %v1674
        %2027 = vmatpush1.msra.mxu0 %v1673
        %2028 = vmatprep.subr.mxu0 %v1666
        %2029 = vmatpush1.msra.mxu0 %v1665
        %2030 = vmatprep.subr.mxu0 %v1658
        %2031 = vmatpush1.msra.mxu0 %v1657
        %2032 = vmatprep.subr.mxu0 %v1650
        %2033 = vmatpush1.msra.mxu0 %v1649
        %2034 = vmatprep.subr.mxu0 %v1642
        %2035 = vmatpush1.msra.mxu0 %v1641
        %2036 = vmatprep.subr.mxu0 %v1634
        %2037 = vmatpush1.msra.mxu0 %v1633
        %2038 = vmatprep.subr.mxu0 %v1626
        %2039 = vmatpush1.msra.mxu0 %v1625
        %2040 = vmatprep.subr.mxu0 %v1618
        %2041 = vmatpush1.msra.mxu0 %v1617
        %2042 = vmatprep.subr.mxu0 %v1610
        %2043 = vmatpush1.msra.mxu0 %v1609
        %2044 = vmatprep.subr.mxu0 %v1602
        %2045 = vmatpush1.msra.mxu0 %v1601
        %2046 = vmatprep.subr.mxu0 %v1594
        %2047 = vmatpush1.msra.mxu0 %v1593
        %2048 = vmatprep.subr.mxu0 %v1586
        %2049 = vmatpush1.msra.mxu0 %v1585
        %2050 = vmatprep.subr.mxu0 %v1578
        %2051 = vmatpush1.msra.mxu0 %v1577
        %2052 = vmatprep.subr.mxu0 %v1570
        %2053 = vmatpush1.msra.mxu0 %v1569
        %2054 = vmatprep.subr.mxu0 %v1562
        %2055 = vmatpush1.msra.mxu0 %v1561
        %2056 = vmatprep.subr.mxu0 %v1810
        %2057 = vmatpush2.msra.mxu0 %v1809
        %2058 = vmatprep.subr.mxu0 %v1802
        %2059 = vmatpush2.msra.mxu0 %v1801
        %2060 = vmatprep.subr.mxu0 %v1794
        %2061 = vmatpush2.msra.mxu0 %v1793
        %2062 = vmatprep.subr.mxu0 %v1786
        %2063 = vmatpush2.msra.mxu0 %v1785
        %2064 = vmatprep.subr.mxu0 %v1778
        %2065 = vmatpush2.msra.mxu0 %v1777
        %2066 = vmatprep.subr.mxu0 %v1770
        %2067 = vmatpush2.msra.mxu0 %v1769
        %2068 = vmatprep.subr.mxu0 %v1762
        %2069 = vmatpush2.msra.mxu0 %v1761
        %2070 = vmatprep.subr.mxu0 %v1754
        %2071 = vmatpush2.msra.mxu0 %v1753
        %2072 = vmatprep.subr.mxu0 %v1746
        %2073 = vmatpush2.msra.mxu0 %v1745
        %2074 = vmatprep.subr.mxu0 %v1738
        %2075 = vmatpush2.msra.mxu0 %v1737
        %2076 = vmatprep.subr.mxu0 %v1730
        %2077 = vmatpush2.msra.mxu0 %v1729
        %2078 = vmatprep.subr.mxu0 %v1722
        %2079 = vmatpush2.msra.mxu0 %v1721
        %2080 = vmatprep.subr.mxu0 %v1714
        %2081 = vmatpush2.msra.mxu0 %v1713
        %2082 = vmatprep.subr.mxu0 %v1706
        %2083 = vmatpush2.msra.mxu0 %v1705
        %2084 = vmatprep.subr.mxu0 %v1698
        %2085 = vmatpush2.msra.mxu0 %v1697
        %2086 = vmatprep.subr.mxu0 %v1690
        %2087 = vmatpush2.msra.mxu0 %v1689
        %2088 = vmatprep.mubr.f32.mxu0 %v1546
        %2089 = vmatmul.mubr.f32.gmra.mxu0 %v1545
        %v2090 = vpop.f32.mrf.mxu0
        %v2091 = vadd.f32 0.0, %v2090
        %v2092 = vpop.f32.mrf.mxu0
        %v2093 = vadd.f32 0.0, %v2092
        %2094 = vdwg.mxu0
        %v2095 = vadd.f32 %v1547, %v1878
        %v2096 = vadd.f32 %v1548, %v1880
        %v2097 = vadd.f32 %v1549, %v1949
        %v2098 = vadd.f32 %v1550, %v1951
        %v2099 = vadd.f32 %v1551, %v2020
        %v2100 = vadd.f32 %v1552, %v2022
        %v2101 = vadd.f32 %v1553, %v2091
        %v2102 = vadd.f32 %v1554, %v2093
        %v2103 = vxor.u32 %v2095, 2147483648
        %v2104 = vxor.u32 %v2096, 2147483648
        %v2105 = vmul.f32 %v2103, 1.442695
        %v2106 = vpow.pop %v2105
        %v2107 = vmul.f32 %v2104, 1.442695
        %v2108 = vpow.pop %v2107
        %v2109 = vadd.f32 %v2106, 1.0
        %v2110 = vadd.f32 %v2108, 1.0
        %v2111 = vrcp.pop %v2109
        %v2112 = vmul.f32 1.0, %v2111
        %v2113 = vrcp.pop %v2110
        %v2114 = vmul.f32 1.0, %v2113
        %v2115 = vxor.u32 %v2097, 2147483648
        %v2116 = vxor.u32 %v2098, 2147483648
        %v2117 = vmul.f32 %v2115, 1.442695
        %v2118 = vpow.pop %v2117
        %v2119 = vmul.f32 %v2116, 1.442695
        %v2120 = vpow.pop %v2119
        %v2121 = vadd.f32 %v2118, 1.0
        %v2122 = vadd.f32 %v2120, 1.0
        %v2123 = vrcp.pop %v2121
        %v2124 = vmul.f32 1.0, %v2123
        %v2125 = vrcp.pop %v2122
        %v2126 = vmul.f32 1.0, %v2125
        %v2127 = vtanh.pop %v2099
        %v2128 = vtanh.pop %v2100
        %v2129 = vxor.u32 %v2101, 2147483648
        %v2130 = vxor.u32 %v2102, 2147483648
        %v2131 = vmul.f32 %v2129, 1.442695
        %v2132 = vpow.pop %v2131
        %v2133 = vmul.f32 %v2130, 1.442695
        %v2134 = vpow.pop %v2133
        %v2135 = vadd.f32 %v2132, 1.0
        %v2136 = vadd.f32 %v2134, 1.0
        %v2137 = vrcp.pop %v2135
        %v2138 = vmul.f32 1.0, %v2137
        %v2139 = vrcp.pop %v2136
        %v2140 = vmul.f32 1.0, %v2139
        %v2141 = vld [vmem:[#allocation3] sm:$0xff]
        %v2142 = vld [vmem:[#allocation3 + $0x8] sm:$0xff]
        %v2143 = vmul.f32 %v2124, %v2141
        %v2144 = vmul.f32 %v2126, %v2142
        %v2145 = vmul.f32 %v2112, %v2127
        %v2146 = vmul.f32 %v2114, %v2128
        %v2147 = vadd.f32 %v2143, %v2145
        %v2148 = vadd.f32 %v2144, %v2146
        %2149 = vst [vmem:[#allocation3] sm:$0xff] %v2147
        %2150 = vst [vmem:[#allocation3 + $0x8] sm:$0xff] %v2148
        %v2151 = vtanh.pop %v2147
        %v2152 = vtanh.pop %v2148
        %v2153 = vmul.f32 %v2138, %v2151
        %v2154 = vmul.f32 %v2140, %v2152
        %2155 = vst [vmem:[#allocation2] sm:$0xff] %v2153
        %2156 = vst [vmem:[#allocation2 + $0x8] sm:$0xff] %v2154
        %v2157 = vld [vmem:[#allocation2] sm:$0xff]
        %v2158 = vld [vmem:[#allocation2 + $0x8] sm:$0xff]
        %v2159 = vld [vmem:[#allocation4 + $0x80] sm:$0xff]
        %v2160 = vld [vmem:[#allocation4 + $0x88] sm:$0xff]
        %v2161 = vld [vmem:[#allocation4 + $0x90] sm:$0xff]
        %v2162 = vld [vmem:[#allocation4 + $0x98] sm:$0xff]
        %v2163 = vld [vmem:[#allocation4 + $0xa0] sm:$0xff]
        %v2164 = vld [vmem:[#allocation4 + $0xa8] sm:$0xff]
        %v2165 = vld [vmem:[#allocation4 + $0xb0] sm:$0xff]
        %v2166 = vld [vmem:[#allocation4 + $0xb8] sm:$0xff]
        %v2167 = vld [vmem:[#allocation10] sm:$0xff]
        %v2168 = vld [vmem:[#allocation10 + $0x8] sm:$0xff]
        %v2169 = vld [vmem:[#allocation10 + $0x10] sm:$0xff]
        %v2170 = vld [vmem:[#allocation10 + $0x18] sm:$0xff]
        %v2171 = vld [vmem:[#allocation10 + $0x20] sm:$0xff]
        %v2172 = vld [vmem:[#allocation10 + $0x28] sm:$0xff]
        %v2173 = vld [vmem:[#allocation10 + $0x30] sm:$0xff]
        %v2174 = vld [vmem:[#allocation10 + $0x38] sm:$0xff]
        %v2175 = vld [vmem:[#allocation10 + $0x40] sm:$0xff]
        %v2176 = vld [vmem:[#allocation10 + $0x48] sm:$0xff]
        %v2177 = vld [vmem:[#allocation10 + $0x50] sm:$0xff]
        %v2178 = vld [vmem:[#allocation10 + $0x58] sm:$0xff]
        %v2179 = vld [vmem:[#allocation10 + $0x60] sm:$0xff]
        %v2180 = vld [vmem:[#allocation10 + $0x68] sm:$0xff]
        %v2181 = vld [vmem:[#allocation10 + $0x70] sm:$0xff]
        %v2182 = vld [vmem:[#allocation10 + $0x78] sm:$0xff]
        %v2183 = vld [vmem:[#allocation10 + $0x80] sm:$0xff]
        %v2184 = vld [vmem:[#allocation10 + $0x88] sm:$0xff]
        %v2185 = vld [vmem:[#allocation10 + $0x90] sm:$0xff]
        %v2186 = vld [vmem:[#allocation10 + $0x98] sm:$0xff]
        %v2187 = vld [vmem:[#allocation10 + $0xa0] sm:$0xff]
        %v2188 = vld [vmem:[#allocation10 + $0xa8] sm:$0xff]
        %v2189 = vld [vmem:[#allocation10 + $0xb0] sm:$0xff]
        %v2190 = vld [vmem:[#allocation10 + $0xb8] sm:$0xff]
        %v2191 = vld [vmem:[#allocation10 + $0xc0] sm:$0xff]
        %v2192 = vld [vmem:[#allocation10 + $0xc8] sm:$0xff]
        %v2193 = vld [vmem:[#allocation10 + $0xd0] sm:$0xff]
        %v2194 = vld [vmem:[#allocation10 + $0xd8] sm:$0xff]
        %v2195 = vld [vmem:[#allocation10 + $0xe0] sm:$0xff]
        %v2196 = vld [vmem:[#allocation10 + $0xe8] sm:$0xff]
        %v2197 = vld [vmem:[#allocation10 + $0xf0] sm:$0xff]
        %v2198 = vld [vmem:[#allocation10 + $0xf8] sm:$0xff]
        %v2199 = vld [vmem:[#allocation10 + $0x100] sm:$0xff]
        %v2200 = vld [vmem:[#allocation10 + $0x108] sm:$0xff]
        %v2201 = vld [vmem:[#allocation10 + $0x110] sm:$0xff]
        %v2202 = vld [vmem:[#allocation10 + $0x118] sm:$0xff]
        %v2203 = vld [vmem:[#allocation10 + $0x120] sm:$0xff]
        %v2204 = vld [vmem:[#allocation10 + $0x128] sm:$0xff]
        %v2205 = vld [vmem:[#allocation10 + $0x130] sm:$0xff]
        %v2206 = vld [vmem:[#allocation10 + $0x138] sm:$0xff]
        %v2207 = vld [vmem:[#allocation10 + $0x140] sm:$0xff]
        %v2208 = vld [vmem:[#allocation10 + $0x148] sm:$0xff]
        %v2209 = vld [vmem:[#allocation10 + $0x150] sm:$0xff]
        %v2210 = vld [vmem:[#allocation10 + $0x158] sm:$0xff]
        %v2211 = vld [vmem:[#allocation10 + $0x160] sm:$0xff]
        %v2212 = vld [vmem:[#allocation10 + $0x168] sm:$0xff]
        %v2213 = vld [vmem:[#allocation10 + $0x170] sm:$0xff]
        %v2214 = vld [vmem:[#allocation10 + $0x178] sm:$0xff]
        %v2215 = vld [vmem:[#allocation10 + $0x180] sm:$0xff]
        %v2216 = vld [vmem:[#allocation10 + $0x188] sm:$0xff]
        %v2217 = vld [vmem:[#allocation10 + $0x190] sm:$0xff]
        %v2218 = vld [vmem:[#allocation10 + $0x198] sm:$0xff]
        %v2219 = vld [vmem:[#allocation10 + $0x1a0] sm:$0xff]
        %v2220 = vld [vmem:[#allocation10 + $0x1a8] sm:$0xff]
        %v2221 = vld [vmem:[#allocation10 + $0x1b0] sm:$0xff]
        %v2222 = vld [vmem:[#allocation10 + $0x1b8] sm:$0xff]
        %v2223 = vld [vmem:[#allocation10 + $0x1c0] sm:$0xff]
        %v2224 = vld [vmem:[#allocation10 + $0x1c8] sm:$0xff]
        %v2225 = vld [vmem:[#allocation10 + $0x1d0] sm:$0xff]
        %v2226 = vld [vmem:[#allocation10 + $0x1d8] sm:$0xff]
        %v2227 = vld [vmem:[#allocation10 + $0x1e0] sm:$0xff]
        %v2228 = vld [vmem:[#allocation10 + $0x1e8] sm:$0xff]
        %v2229 = vld [vmem:[#allocation10 + $0x1f0] sm:$0xff]
        %v2230 = vld [vmem:[#allocation10 + $0x1f8] sm:$0xff]
        %v2231 = vld [vmem:[#allocation10 + $0x200] sm:$0xff]
        %v2232 = vld [vmem:[#allocation10 + $0x208] sm:$0xff]
        %v2233 = vld [vmem:[#allocation10 + $0x210] sm:$0xff]
        %v2234 = vld [vmem:[#allocation10 + $0x218] sm:$0xff]
        %v2235 = vld [vmem:[#allocation10 + $0x220] sm:$0xff]
        %v2236 = vld [vmem:[#allocation10 + $0x228] sm:$0xff]
        %v2237 = vld [vmem:[#allocation10 + $0x230] sm:$0xff]
        %v2238 = vld [vmem:[#allocation10 + $0x238] sm:$0xff]
        %v2239 = vld [vmem:[#allocation10 + $0x240] sm:$0xff]
        %v2240 = vld [vmem:[#allocation10 + $0x248] sm:$0xff]
        %v2241 = vld [vmem:[#allocation10 + $0x250] sm:$0xff]
        %v2242 = vld [vmem:[#allocation10 + $0x258] sm:$0xff]
        %v2243 = vld [vmem:[#allocation10 + $0x260] sm:$0xff]
        %v2244 = vld [vmem:[#allocation10 + $0x268] sm:$0xff]
        %v2245 = vld [vmem:[#allocation10 + $0x270] sm:$0xff]
        %v2246 = vld [vmem:[#allocation10 + $0x278] sm:$0xff]
        %v2247 = vld [vmem:[#allocation10 + $0x280] sm:$0xff]
        %v2248 = vld [vmem:[#allocation10 + $0x288] sm:$0xff]
        %v2249 = vld [vmem:[#allocation10 + $0x290] sm:$0xff]
        %v2250 = vld [vmem:[#allocation10 + $0x298] sm:$0xff]
        %v2251 = vld [vmem:[#allocation10 + $0x2a0] sm:$0xff]
        %v2252 = vld [vmem:[#allocation10 + $0x2a8] sm:$0xff]
        %v2253 = vld [vmem:[#allocation10 + $0x2b0] sm:$0xff]
        %v2254 = vld [vmem:[#allocation10 + $0x2b8] sm:$0xff]
        %v2255 = vld [vmem:[#allocation10 + $0x2c0] sm:$0xff]
        %v2256 = vld [vmem:[#allocation10 + $0x2c8] sm:$0xff]
        %v2257 = vld [vmem:[#allocation10 + $0x2d0] sm:$0xff]
        %v2258 = vld [vmem:[#allocation10 + $0x2d8] sm:$0xff]
        %v2259 = vld [vmem:[#allocation10 + $0x2e0] sm:$0xff]
        %v2260 = vld [vmem:[#allocation10 + $0x2e8] sm:$0xff]
        %v2261 = vld [vmem:[#allocation10 + $0x2f0] sm:$0xff]
        %v2262 = vld [vmem:[#allocation10 + $0x2f8] sm:$0xff]
        %v2263 = vld [vmem:[#allocation10 + $0x300] sm:$0xff]
        %v2264 = vld [vmem:[#allocation10 + $0x308] sm:$0xff]
        %v2265 = vld [vmem:[#allocation10 + $0x310] sm:$0xff]
        %v2266 = vld [vmem:[#allocation10 + $0x318] sm:$0xff]
        %v2267 = vld [vmem:[#allocation10 + $0x320] sm:$0xff]
        %v2268 = vld [vmem:[#allocation10 + $0x328] sm:$0xff]
        %v2269 = vld [vmem:[#allocation10 + $0x330] sm:$0xff]
        %v2270 = vld [vmem:[#allocation10 + $0x338] sm:$0xff]
        %v2271 = vld [vmem:[#allocation10 + $0x340] sm:$0xff]
        %v2272 = vld [vmem:[#allocation10 + $0x348] sm:$0xff]
        %v2273 = vld [vmem:[#allocation10 + $0x350] sm:$0xff]
        %v2274 = vld [vmem:[#allocation10 + $0x358] sm:$0xff]
        %v2275 = vld [vmem:[#allocation10 + $0x360] sm:$0xff]
        %v2276 = vld [vmem:[#allocation10 + $0x368] sm:$0xff]
        %v2277 = vld [vmem:[#allocation10 + $0x370] sm:$0xff]
        %v2278 = vld [vmem:[#allocation10 + $0x378] sm:$0xff]
        %v2279 = vld [vmem:[#allocation10 + $0x380] sm:$0xff]
        %v2280 = vld [vmem:[#allocation10 + $0x388] sm:$0xff]
        %v2281 = vld [vmem:[#allocation10 + $0x390] sm:$0xff]
        %v2282 = vld [vmem:[#allocation10 + $0x398] sm:$0xff]
        %v2283 = vld [vmem:[#allocation10 + $0x3a0] sm:$0xff]
        %v2284 = vld [vmem:[#allocation10 + $0x3a8] sm:$0xff]
        %v2285 = vld [vmem:[#allocation10 + $0x3b0] sm:$0xff]
        %v2286 = vld [vmem:[#allocation10 + $0x3b8] sm:$0xff]
        %v2287 = vld [vmem:[#allocation10 + $0x3c0] sm:$0xff]
        %v2288 = vld [vmem:[#allocation10 + $0x3c8] sm:$0xff]
        %v2289 = vld [vmem:[#allocation10 + $0x3d0] sm:$0xff]
        %v2290 = vld [vmem:[#allocation10 + $0x3d8] sm:$0xff]
        %v2291 = vld [vmem:[#allocation10 + $0x3e0] sm:$0xff]
        %v2292 = vld [vmem:[#allocation10 + $0x3e8] sm:$0xff]
        %v2293 = vld [vmem:[#allocation10 + $0x3f0] sm:$0xff]
        %v2294 = vld [vmem:[#allocation10 + $0x3f8] sm:$0xff]
        %v2295 = vld [vmem:[#allocation10 + $0x400] sm:$0xff]
        %v2296 = vld [vmem:[#allocation10 + $0x408] sm:$0xff]
        %v2297 = vld [vmem:[#allocation10 + $0x410] sm:$0xff]
        %v2298 = vld [vmem:[#allocation10 + $0x418] sm:$0xff]
        %v2299 = vld [vmem:[#allocation10 + $0x420] sm:$0xff]
        %v2300 = vld [vmem:[#allocation10 + $0x428] sm:$0xff]
        %v2301 = vld [vmem:[#allocation10 + $0x430] sm:$0xff]
        %v2302 = vld [vmem:[#allocation10 + $0x438] sm:$0xff]
        %v2303 = vld [vmem:[#allocation10 + $0x440] sm:$0xff]
        %v2304 = vld [vmem:[#allocation10 + $0x448] sm:$0xff]
        %v2305 = vld [vmem:[#allocation10 + $0x450] sm:$0xff]
        %v2306 = vld [vmem:[#allocation10 + $0x458] sm:$0xff]
        %v2307 = vld [vmem:[#allocation10 + $0x460] sm:$0xff]
        %v2308 = vld [vmem:[#allocation10 + $0x468] sm:$0xff]
        %v2309 = vld [vmem:[#allocation10 + $0x470] sm:$0xff]
        %v2310 = vld [vmem:[#allocation10 + $0x478] sm:$0xff]
        %v2311 = vld [vmem:[#allocation10 + $0x480] sm:$0xff]
        %v2312 = vld [vmem:[#allocation10 + $0x488] sm:$0xff]
        %v2313 = vld [vmem:[#allocation10 + $0x490] sm:$0xff]
        %v2314 = vld [vmem:[#allocation10 + $0x498] sm:$0xff]
        %v2315 = vld [vmem:[#allocation10 + $0x4a0] sm:$0xff]
        %v2316 = vld [vmem:[#allocation10 + $0x4a8] sm:$0xff]
        %v2317 = vld [vmem:[#allocation10 + $0x4b0] sm:$0xff]
        %v2318 = vld [vmem:[#allocation10 + $0x4b8] sm:$0xff]
        %v2319 = vld [vmem:[#allocation10 + $0x4c0] sm:$0xff]
        %v2320 = vld [vmem:[#allocation10 + $0x4c8] sm:$0xff]
        %v2321 = vld [vmem:[#allocation10 + $0x4d0] sm:$0xff]
        %v2322 = vld [vmem:[#allocation10 + $0x4d8] sm:$0xff]
        %v2323 = vld [vmem:[#allocation10 + $0x4e0] sm:$0xff]
        %v2324 = vld [vmem:[#allocation10 + $0x4e8] sm:$0xff]
        %v2325 = vld [vmem:[#allocation10 + $0x4f0] sm:$0xff]
        %v2326 = vld [vmem:[#allocation10 + $0x4f8] sm:$0xff]
        %v2327 = vld [vmem:[#allocation10 + $0x500] sm:$0xff]
        %v2328 = vld [vmem:[#allocation10 + $0x508] sm:$0xff]
        %v2329 = vld [vmem:[#allocation10 + $0x510] sm:$0xff]
        %v2330 = vld [vmem:[#allocation10 + $0x518] sm:$0xff]
        %v2331 = vld [vmem:[#allocation10 + $0x520] sm:$0xff]
        %v2332 = vld [vmem:[#allocation10 + $0x528] sm:$0xff]
        %v2333 = vld [vmem:[#allocation10 + $0x530] sm:$0xff]
        %v2334 = vld [vmem:[#allocation10 + $0x538] sm:$0xff]
        %v2335 = vld [vmem:[#allocation10 + $0x540] sm:$0xff]
        %v2336 = vld [vmem:[#allocation10 + $0x548] sm:$0xff]
        %v2337 = vld [vmem:[#allocation10 + $0x550] sm:$0xff]
        %v2338 = vld [vmem:[#allocation10 + $0x558] sm:$0xff]
        %v2339 = vld [vmem:[#allocation10 + $0x560] sm:$0xff]
        %v2340 = vld [vmem:[#allocation10 + $0x568] sm:$0xff]
        %v2341 = vld [vmem:[#allocation10 + $0x570] sm:$0xff]
        %v2342 = vld [vmem:[#allocation10 + $0x578] sm:$0xff]
        %v2343 = vld [vmem:[#allocation10 + $0x580] sm:$0xff]
        %v2344 = vld [vmem:[#allocation10 + $0x588] sm:$0xff]
        %v2345 = vld [vmem:[#allocation10 + $0x590] sm:$0xff]
        %v2346 = vld [vmem:[#allocation10 + $0x598] sm:$0xff]
        %v2347 = vld [vmem:[#allocation10 + $0x5a0] sm:$0xff]
        %v2348 = vld [vmem:[#allocation10 + $0x5a8] sm:$0xff]
        %v2349 = vld [vmem:[#allocation10 + $0x5b0] sm:$0xff]
        %v2350 = vld [vmem:[#allocation10 + $0x5b8] sm:$0xff]
        %v2351 = vld [vmem:[#allocation10 + $0x5c0] sm:$0xff]
        %v2352 = vld [vmem:[#allocation10 + $0x5c8] sm:$0xff]
        %v2353 = vld [vmem:[#allocation10 + $0x5d0] sm:$0xff]
        %v2354 = vld [vmem:[#allocation10 + $0x5d8] sm:$0xff]
        %v2355 = vld [vmem:[#allocation10 + $0x5e0] sm:$0xff]
        %v2356 = vld [vmem:[#allocation10 + $0x5e8] sm:$0xff]
        %v2357 = vld [vmem:[#allocation10 + $0x5f0] sm:$0xff]
        %v2358 = vld [vmem:[#allocation10 + $0x5f8] sm:$0xff]
        %v2359 = vld [vmem:[#allocation10 + $0x600] sm:$0xff]
        %v2360 = vld [vmem:[#allocation10 + $0x608] sm:$0xff]
        %v2361 = vld [vmem:[#allocation10 + $0x610] sm:$0xff]
        %v2362 = vld [vmem:[#allocation10 + $0x618] sm:$0xff]
        %v2363 = vld [vmem:[#allocation10 + $0x620] sm:$0xff]
        %v2364 = vld [vmem:[#allocation10 + $0x628] sm:$0xff]
        %v2365 = vld [vmem:[#allocation10 + $0x630] sm:$0xff]
        %v2366 = vld [vmem:[#allocation10 + $0x638] sm:$0xff]
        %v2367 = vld [vmem:[#allocation10 + $0x640] sm:$0xff]
        %v2368 = vld [vmem:[#allocation10 + $0x648] sm:$0xff]
        %v2369 = vld [vmem:[#allocation10 + $0x650] sm:$0xff]
        %v2370 = vld [vmem:[#allocation10 + $0x658] sm:$0xff]
        %v2371 = vld [vmem:[#allocation10 + $0x660] sm:$0xff]
        %v2372 = vld [vmem:[#allocation10 + $0x668] sm:$0xff]
        %v2373 = vld [vmem:[#allocation10 + $0x670] sm:$0xff]
        %v2374 = vld [vmem:[#allocation10 + $0x678] sm:$0xff]
        %v2375 = vld [vmem:[#allocation10 + $0x680] sm:$0xff]
        %v2376 = vld [vmem:[#allocation10 + $0x688] sm:$0xff]
        %v2377 = vld [vmem:[#allocation10 + $0x690] sm:$0xff]
        %v2378 = vld [vmem:[#allocation10 + $0x698] sm:$0xff]
        %v2379 = vld [vmem:[#allocation10 + $0x6a0] sm:$0xff]
        %v2380 = vld [vmem:[#allocation10 + $0x6a8] sm:$0xff]
        %v2381 = vld [vmem:[#allocation10 + $0x6b0] sm:$0xff]
        %v2382 = vld [vmem:[#allocation10 + $0x6b8] sm:$0xff]
        %v2383 = vld [vmem:[#allocation10 + $0x6c0] sm:$0xff]
        %v2384 = vld [vmem:[#allocation10 + $0x6c8] sm:$0xff]
        %v2385 = vld [vmem:[#allocation10 + $0x6d0] sm:$0xff]
        %v2386 = vld [vmem:[#allocation10 + $0x6d8] sm:$0xff]
        %v2387 = vld [vmem:[#allocation10 + $0x6e0] sm:$0xff]
        %v2388 = vld [vmem:[#allocation10 + $0x6e8] sm:$0xff]
        %v2389 = vld [vmem:[#allocation10 + $0x6f0] sm:$0xff]
        %v2390 = vld [vmem:[#allocation10 + $0x6f8] sm:$0xff]
        %v2391 = vld [vmem:[#allocation10 + $0x700] sm:$0xff]
        %v2392 = vld [vmem:[#allocation10 + $0x708] sm:$0xff]
        %v2393 = vld [vmem:[#allocation10 + $0x710] sm:$0xff]
        %v2394 = vld [vmem:[#allocation10 + $0x718] sm:$0xff]
        %v2395 = vld [vmem:[#allocation10 + $0x720] sm:$0xff]
        %v2396 = vld [vmem:[#allocation10 + $0x728] sm:$0xff]
        %v2397 = vld [vmem:[#allocation10 + $0x730] sm:$0xff]
        %v2398 = vld [vmem:[#allocation10 + $0x738] sm:$0xff]
        %v2399 = vld [vmem:[#allocation10 + $0x740] sm:$0xff]
        %v2400 = vld [vmem:[#allocation10 + $0x748] sm:$0xff]
        %v2401 = vld [vmem:[#allocation10 + $0x750] sm:$0xff]
        %v2402 = vld [vmem:[#allocation10 + $0x758] sm:$0xff]
        %v2403 = vld [vmem:[#allocation10 + $0x760] sm:$0xff]
        %v2404 = vld [vmem:[#allocation10 + $0x768] sm:$0xff]
        %v2405 = vld [vmem:[#allocation10 + $0x770] sm:$0xff]
        %v2406 = vld [vmem:[#allocation10 + $0x778] sm:$0xff]
        %v2407 = vld [vmem:[#allocation10 + $0x780] sm:$0xff]
        %v2408 = vld [vmem:[#allocation10 + $0x788] sm:$0xff]
        %v2409 = vld [vmem:[#allocation10 + $0x790] sm:$0xff]
        %v2410 = vld [vmem:[#allocation10 + $0x798] sm:$0xff]
        %v2411 = vld [vmem:[#allocation10 + $0x7a0] sm:$0xff]
        %v2412 = vld [vmem:[#allocation10 + $0x7a8] sm:$0xff]
        %v2413 = vld [vmem:[#allocation10 + $0x7b0] sm:$0xff]
        %v2414 = vld [vmem:[#allocation10 + $0x7b8] sm:$0xff]
        %v2415 = vld [vmem:[#allocation10 + $0x7c0] sm:$0xff]
        %v2416 = vld [vmem:[#allocation10 + $0x7c8] sm:$0xff]
        %v2417 = vld [vmem:[#allocation10 + $0x7d0] sm:$0xff]
        %v2418 = vld [vmem:[#allocation10 + $0x7d8] sm:$0xff]
        %v2419 = vld [vmem:[#allocation10 + $0x7e0] sm:$0xff]
        %v2420 = vld [vmem:[#allocation10 + $0x7e8] sm:$0xff]
        %v2421 = vld [vmem:[#allocation10 + $0x7f0] sm:$0xff]
        %v2422 = vld [vmem:[#allocation10 + $0x7f8] sm:$0xff]
        %2423 = vmatprep.subr.mxu0 %v2288
        %2424 = vmatpush1.msra.mxu0 %v2287
        %2425 = vmatprep.subr.mxu0 %v2280
        %2426 = vmatpush1.msra.mxu0 %v2279
        %2427 = vmatprep.subr.mxu0 %v2272
        %2428 = vmatpush1.msra.mxu0 %v2271
        %2429 = vmatprep.subr.mxu0 %v2264
        %2430 = vmatpush1.msra.mxu0 %v2263
        %2431 = vmatprep.subr.mxu0 %v2256
        %2432 = vmatpush1.msra.mxu0 %v2255
        %2433 = vmatprep.subr.mxu0 %v2248
        %2434 = vmatpush1.msra.mxu0 %v2247
        %2435 = vmatprep.subr.mxu0 %v2240
        %2436 = vmatpush1.msra.mxu0 %v2239
        %2437 = vmatprep.subr.mxu0 %v2232
        %2438 = vmatpush1.msra.mxu0 %v2231
        %2439 = vmatprep.subr.mxu0 %v2224
        %2440 = vmatpush1.msra.mxu0 %v2223
        %2441 = vmatprep.subr.mxu0 %v2216
        %2442 = vmatpush1.msra.mxu0 %v2215
        %2443 = vmatprep.subr.mxu0 %v2208
        %2444 = vmatpush1.msra.mxu0 %v2207
        %2445 = vmatprep.subr.mxu0 %v2200
        %2446 = vmatpush1.msra.mxu0 %v2199
        %2447 = vmatprep.subr.mxu0 %v2192
        %2448 = vmatpush1.msra.mxu0 %v2191
        %2449 = vmatprep.subr.mxu0 %v2184
        %2450 = vmatpush1.msra.mxu0 %v2183
        %2451 = vmatprep.subr.mxu0 %v2176
        %2452 = vmatpush1.msra.mxu0 %v2175
        %2453 = vmatprep.subr.mxu0 %v2168
        %2454 = vmatpush1.msra.mxu0 %v2167
        %2455 = vmatprep.subr.mxu0 %v2416
        %2456 = vmatpush2.msra.mxu0 %v2415
        %2457 = vmatprep.subr.mxu0 %v2408
        %2458 = vmatpush2.msra.mxu0 %v2407
        %2459 = vmatprep.subr.mxu0 %v2400
        %2460 = vmatpush2.msra.mxu0 %v2399
        %2461 = vmatprep.subr.mxu0 %v2392
        %2462 = vmatpush2.msra.mxu0 %v2391
        %2463 = vmatprep.subr.mxu0 %v2384
        %2464 = vmatpush2.msra.mxu0 %v2383
        %2465 = vmatprep.subr.mxu0 %v2376
        %2466 = vmatpush2.msra.mxu0 %v2375
        %2467 = vmatprep.subr.mxu0 %v2368
        %2468 = vmatpush2.msra.mxu0 %v2367
        %2469 = vmatprep.subr.mxu0 %v2360
        %2470 = vmatpush2.msra.mxu0 %v2359
        %2471 = vmatprep.subr.mxu0 %v2352
        %2472 = vmatpush2.msra.mxu0 %v2351
        %2473 = vmatprep.subr.mxu0 %v2344
        %2474 = vmatpush2.msra.mxu0 %v2343
        %2475 = vmatprep.subr.mxu0 %v2336
        %2476 = vmatpush2.msra.mxu0 %v2335
        %2477 = vmatprep.subr.mxu0 %v2328
        %2478 = vmatpush2.msra.mxu0 %v2327
        %2479 = vmatprep.subr.mxu0 %v2320
        %2480 = vmatpush2.msra.mxu0 %v2319
        %2481 = vmatprep.subr.mxu0 %v2312
        %2482 = vmatpush2.msra.mxu0 %v2311
        %2483 = vmatprep.subr.mxu0 %v2304
        %2484 = vmatpush2.msra.mxu0 %v2303
        %2485 = vmatprep.subr.mxu0 %v2296
        %2486 = vmatpush2.msra.mxu0 %v2295
        %2487 = vmatprep.mubr.f32.mxu0 %v2158
        %2488 = vmatmul.mubr.f32.gmra.mxu0 %v2157
        %v2489 = vpop.f32.mrf.mxu0
        %v2490 = vadd.f32 0.0, %v2489
        %v2491 = vpop.f32.mrf.mxu0
        %v2492 = vadd.f32 0.0, %v2491
        %2493 = vdwg.mxu0
        %2494 = vmatprep.subr.mxu0 %v2290
        %2495 = vmatpush1.msra.mxu0 %v2289
        %2496 = vmatprep.subr.mxu0 %v2282
        %2497 = vmatpush1.msra.mxu0 %v2281
        %2498 = vmatprep.subr.mxu0 %v2274
        %2499 = vmatpush1.msra.mxu0 %v2273
        %2500 = vmatprep.subr.mxu0 %v2266
        %2501 = vmatpush1.msra.mxu0 %v2265
        %2502 = vmatprep.subr.mxu0 %v2258
        %2503 = vmatpush1.msra.mxu0 %v2257
        %2504 = vmatprep.subr.mxu0 %v2250
        %2505 = vmatpush1.msra.mxu0 %v2249
        %2506 = vmatprep.subr.mxu0 %v2242
        %2507 = vmatpush1.msra.mxu0 %v2241
        %2508 = vmatprep.subr.mxu0 %v2234
        %2509 = vmatpush1.msra.mxu0 %v2233
        %2510 = vmatprep.subr.mxu0 %v2226
        %2511 = vmatpush1.msra.mxu0 %v2225
        %2512 = vmatprep.subr.mxu0 %v2218
        %2513 = vmatpush1.msra.mxu0 %v2217
        %2514 = vmatprep.subr.mxu0 %v2210
        %2515 = vmatpush1.msra.mxu0 %v2209
        %2516 = vmatprep.subr.mxu0 %v2202
        %2517 = vmatpush1.msra.mxu0 %v2201
        %2518 = vmatprep.subr.mxu0 %v2194
        %2519 = vmatpush1.msra.mxu0 %v2193
        %2520 = vmatprep.subr.mxu0 %v2186
        %2521 = vmatpush1.msra.mxu0 %v2185
        %2522 = vmatprep.subr.mxu0 %v2178
        %2523 = vmatpush1.msra.mxu0 %v2177
        %2524 = vmatprep.subr.mxu0 %v2170
        %2525 = vmatpush1.msra.mxu0 %v2169
        %2526 = vmatprep.subr.mxu0 %v2418
        %2527 = vmatpush2.msra.mxu0 %v2417
        %2528 = vmatprep.subr.mxu0 %v2410
        %2529 = vmatpush2.msra.mxu0 %v2409
        %2530 = vmatprep.subr.mxu0 %v2402
        %2531 = vmatpush2.msra.mxu0 %v2401
        %2532 = vmatprep.subr.mxu0 %v2394
        %2533 = vmatpush2.msra.mxu0 %v2393
        %2534 = vmatprep.subr.mxu0 %v2386
        %2535 = vmatpush2.msra.mxu0 %v2385
        %2536 = vmatprep.subr.mxu0 %v2378
        %2537 = vmatpush2.msra.mxu0 %v2377
        %2538 = vmatprep.subr.mxu0 %v2370
        %2539 = vmatpush2.msra.mxu0 %v2369
        %2540 = vmatprep.subr.mxu0 %v2362
        %2541 = vmatpush2.msra.mxu0 %v2361
        %2542 = vmatprep.subr.mxu0 %v2354
        %2543 = vmatpush2.msra.mxu0 %v2353
        %2544 = vmatprep.subr.mxu0 %v2346
        %2545 = vmatpush2.msra.mxu0 %v2345
        %2546 = vmatprep.subr.mxu0 %v2338
        %2547 = vmatpush2.msra.mxu0 %v2337
        %2548 = vmatprep.subr.mxu0 %v2330
        %2549 = vmatpush2.msra.mxu0 %v2329
        %2550 = vmatprep.subr.mxu0 %v2322
        %2551 = vmatpush2.msra.mxu0 %v2321
        %2552 = vmatprep.subr.mxu0 %v2314
        %2553 = vmatpush2.msra.mxu0 %v2313
        %2554 = vmatprep.subr.mxu0 %v2306
        %2555 = vmatpush2.msra.mxu0 %v2305
        %2556 = vmatprep.subr.mxu0 %v2298
        %2557 = vmatpush2.msra.mxu0 %v2297
        %2558 = vmatprep.mubr.f32.mxu0 %v2158
        %2559 = vmatmul.mubr.f32.gmra.mxu0 %v2157
        %v2560 = vpop.f32.mrf.mxu0
        %v2561 = vadd.f32 0.0, %v2560
        %v2562 = vpop.f32.mrf.mxu0
        %v2563 = vadd.f32 0.0, %v2562
        %2564 = vdwg.mxu0
        %2565 = vmatprep.subr.mxu0 %v2292
        %2566 = vmatpush1.msra.mxu0 %v2291
        %2567 = vmatprep.subr.mxu0 %v2284
        %2568 = vmatpush1.msra.mxu0 %v2283
        %2569 = vmatprep.subr.mxu0 %v2276
        %2570 = vmatpush1.msra.mxu0 %v2275
        %2571 = vmatprep.subr.mxu0 %v2268
        %2572 = vmatpush1.msra.mxu0 %v2267
        %2573 = vmatprep.subr.mxu0 %v2260
        %2574 = vmatpush1.msra.mxu0 %v2259
        %2575 = vmatprep.subr.mxu0 %v2252
        %2576 = vmatpush1.msra.mxu0 %v2251
        %2577 = vmatprep.subr.mxu0 %v2244
        %2578 = vmatpush1.msra.mxu0 %v2243
        %2579 = vmatprep.subr.mxu0 %v2236
        %2580 = vmatpush1.msra.mxu0 %v2235
        %2581 = vmatprep.subr.mxu0 %v2228
        %2582 = vmatpush1.msra.mxu0 %v2227
        %2583 = vmatprep.subr.mxu0 %v2220
        %2584 = vmatpush1.msra.mxu0 %v2219
        %2585 = vmatprep.subr.mxu0 %v2212
        %2586 = vmatpush1.msra.mxu0 %v2211
        %2587 = vmatprep.subr.mxu0 %v2204
        %2588 = vmatpush1.msra.mxu0 %v2203
        %2589 = vmatprep.subr.mxu0 %v2196
        %2590 = vmatpush1.msra.mxu0 %v2195
        %2591 = vmatprep.subr.mxu0 %v2188
        %2592 = vmatpush1.msra.mxu0 %v2187
        %2593 = vmatprep.subr.mxu0 %v2180
        %2594 = vmatpush1.msra.mxu0 %v2179
        %2595 = vmatprep.subr.mxu0 %v2172
        %2596 = vmatpush1.msra.mxu0 %v2171
        %2597 = vmatprep.subr.mxu0 %v2420
        %2598 = vmatpush2.msra.mxu0 %v2419
        %2599 = vmatprep.subr.mxu0 %v2412
        %2600 = vmatpush2.msra.mxu0 %v2411
        %2601 = vmatprep.subr.mxu0 %v2404
        %2602 = vmatpush2.msra.mxu0 %v2403
        %2603 = vmatprep.subr.mxu0 %v2396
        %2604 = vmatpush2.msra.mxu0 %v2395
        %2605 = vmatprep.subr.mxu0 %v2388
        %2606 = vmatpush2.msra.mxu0 %v2387
        %2607 = vmatprep.subr.mxu0 %v2380
        %2608 = vmatpush2.msra.mxu0 %v2379
        %2609 = vmatprep.subr.mxu0 %v2372
        %2610 = vmatpush2.msra.mxu0 %v2371
        %2611 = vmatprep.subr.mxu0 %v2364
        %2612 = vmatpush2.msra.mxu0 %v2363
        %2613 = vmatprep.subr.mxu0 %v2356
        %2614 = vmatpush2.msra.mxu0 %v2355
        %2615 = vmatprep.subr.mxu0 %v2348
        %2616 = vmatpush2.msra.mxu0 %v2347
        %2617 = vmatprep.subr.mxu0 %v2340
        %2618 = vmatpush2.msra.mxu0 %v2339
        %2619 = vmatprep.subr.mxu0 %v2332
        %2620 = vmatpush2.msra.mxu0 %v2331
        %2621 = vmatprep.subr.mxu0 %v2324
        %2622 = vmatpush2.msra.mxu0 %v2323
        %2623 = vmatprep.subr.mxu0 %v2316
        %2624 = vmatpush2.msra.mxu0 %v2315
        %2625 = vmatprep.subr.mxu0 %v2308
        %2626 = vmatpush2.msra.mxu0 %v2307
        %2627 = vmatprep.subr.mxu0 %v2300
        %2628 = vmatpush2.msra.mxu0 %v2299
        %2629 = vmatprep.mubr.f32.mxu0 %v2158
        %2630 = vmatmul.mubr.f32.gmra.mxu0 %v2157
        %v2631 = vpop.f32.mrf.mxu0
        %v2632 = vadd.f32 0.0, %v2631
        %v2633 = vpop.f32.mrf.mxu0
        %v2634 = vadd.f32 0.0, %v2633
        %2635 = vdwg.mxu0
        %2636 = vmatprep.subr.mxu0 %v2294
        %2637 = vmatpush1.msra.mxu0 %v2293
        %2638 = vmatprep.subr.mxu0 %v2286
        %2639 = vmatpush1.msra.mxu0 %v2285
        %2640 = vmatprep.subr.mxu0 %v2278
        %2641 = vmatpush1.msra.mxu0 %v2277
        %2642 = vmatprep.subr.mxu0 %v2270
        %2643 = vmatpush1.msra.mxu0 %v2269
        %2644 = vmatprep.subr.mxu0 %v2262
        %2645 = vmatpush1.msra.mxu0 %v2261
        %2646 = vmatprep.subr.mxu0 %v2254
        %2647 = vmatpush1.msra.mxu0 %v2253
        %2648 = vmatprep.subr.mxu0 %v2246
        %2649 = vmatpush1.msra.mxu0 %v2245
        %2650 = vmatprep.subr.mxu0 %v2238
        %2651 = vmatpush1.msra.mxu0 %v2237
        %2652 = vmatprep.subr.mxu0 %v2230
        %2653 = vmatpush1.msra.mxu0 %v2229
        %2654 = vmatprep.subr.mxu0 %v2222
        %2655 = vmatpush1.msra.mxu0 %v2221
        %2656 = vmatprep.subr.mxu0 %v2214
        %2657 = vmatpush1.msra.mxu0 %v2213
        %2658 = vmatprep.subr.mxu0 %v2206
        %2659 = vmatpush1.msra.mxu0 %v2205
        %2660 = vmatprep.subr.mxu0 %v2198
        %2661 = vmatpush1.msra.mxu0 %v2197
        %2662 = vmatprep.subr.mxu0 %v2190
        %2663 = vmatpush1.msra.mxu0 %v2189
        %2664 = vmatprep.subr.mxu0 %v2182
        %2665 = vmatpush1.msra.mxu0 %v2181
        %2666 = vmatprep.subr.mxu0 %v2174
        %2667 = vmatpush1.msra.mxu0 %v2173
        %2668 = vmatprep.subr.mxu0 %v2422
        %2669 = vmatpush2.msra.mxu0 %v2421
        %2670 = vmatprep.subr.mxu0 %v2414
        %2671 = vmatpush2.msra.mxu0 %v2413
        %2672 = vmatprep.subr.mxu0 %v2406
        %2673 = vmatpush2.msra.mxu0 %v2405
        %2674 = vmatprep.subr.mxu0 %v2398
        %2675 = vmatpush2.msra.mxu0 %v2397
        %2676 = vmatprep.subr.mxu0 %v2390
        %2677 = vmatpush2.msra.mxu0 %v2389
        %2678 = vmatprep.subr.mxu0 %v2382
        %2679 = vmatpush2.msra.mxu0 %v2381
        %2680 = vmatprep.subr.mxu0 %v2374
        %2681 = vmatpush2.msra.mxu0 %v2373
        %2682 = vmatprep.subr.mxu0 %v2366
        %2683 = vmatpush2.msra.mxu0 %v2365
        %2684 = vmatprep.subr.mxu0 %v2358
        %2685 = vmatpush2.msra.mxu0 %v2357
        %2686 = vmatprep.subr.mxu0 %v2350
        %2687 = vmatpush2.msra.mxu0 %v2349
        %2688 = vmatprep.subr.mxu0 %v2342
        %2689 = vmatpush2.msra.mxu0 %v2341
        %2690 = vmatprep.subr.mxu0 %v2334
        %2691 = vmatpush2.msra.mxu0 %v2333
        %2692 = vmatprep.subr.mxu0 %v2326
        %2693 = vmatpush2.msra.mxu0 %v2325
        %2694 = vmatprep.subr.mxu0 %v2318
        %2695 = vmatpush2.msra.mxu0 %v2317
        %2696 = vmatprep.subr.mxu0 %v2310
        %2697 = vmatpush2.msra.mxu0 %v2309
        %2698 = vmatprep.subr.mxu0 %v2302
        %2699 = vmatpush2.msra.mxu0 %v2301
        %2700 = vmatprep.mubr.f32.mxu0 %v2158
        %2701 = vmatmul.mubr.f32.gmra.mxu0 %v2157
        %v2702 = vpop.f32.mrf.mxu0
        %v2703 = vadd.f32 0.0, %v2702
        %v2704 = vpop.f32.mrf.mxu0
        %v2705 = vadd.f32 0.0, %v2704
        %2706 = vdwg.mxu0
        %v2707 = vadd.f32 %v2159, %v2490
        %v2708 = vadd.f32 %v2160, %v2492
        %v2709 = vadd.f32 %v2161, %v2561
        %v2710 = vadd.f32 %v2162, %v2563
        %v2711 = vadd.f32 %v2163, %v2632
        %v2712 = vadd.f32 %v2164, %v2634
        %v2713 = vadd.f32 %v2165, %v2703
        %v2714 = vadd.f32 %v2166, %v2705
        %v2715 = vxor.u32 %v2707, 2147483648
        %v2716 = vxor.u32 %v2708, 2147483648
        %v2717 = vmul.f32 %v2715, 1.442695
        %v2718 = vpow.pop %v2717
        %v2719 = vmul.f32 %v2716, 1.442695
        %v2720 = vpow.pop %v2719
        %v2721 = vadd.f32 %v2718, 1.0
        %v2722 = vadd.f32 %v2720, 1.0
        %v2723 = vrcp.pop %v2721
        %v2724 = vmul.f32 1.0, %v2723
        %v2725 = vrcp.pop %v2722
        %v2726 = vmul.f32 1.0, %v2725
        %v2727 = vxor.u32 %v2709, 2147483648
        %v2728 = vxor.u32 %v2710, 2147483648
        %v2729 = vmul.f32 %v2727, 1.442695
        %v2730 = vpow.pop %v2729
        %v2731 = vmul.f32 %v2728, 1.442695
        %v2732 = vpow.pop %v2731
        %v2733 = vadd.f32 %v2730, 1.0
        %v2734 = vadd.f32 %v2732, 1.0
        %v2735 = vrcp.pop %v2733
        %v2736 = vmul.f32 1.0, %v2735
        %v2737 = vrcp.pop %v2734
        %v2738 = vmul.f32 1.0, %v2737
        %v2739 = vtanh.pop %v2711
        %v2740 = vtanh.pop %v2712
        %v2741 = vxor.u32 %v2713, 2147483648
        %v2742 = vxor.u32 %v2714, 2147483648
        %v2743 = vmul.f32 %v2741, 1.442695
        %v2744 = vpow.pop %v2743
        %v2745 = vmul.f32 %v2742, 1.442695
        %v2746 = vpow.pop %v2745
        %v2747 = vadd.f32 %v2744, 1.0
        %v2748 = vadd.f32 %v2746, 1.0
        %v2749 = vrcp.pop %v2747
        %v2750 = vmul.f32 1.0, %v2749
        %v2751 = vrcp.pop %v2748
        %v2752 = vmul.f32 1.0, %v2751
        %v2753 = vld [vmem:[#allocation3] sm:$0xff]
        %v2754 = vld [vmem:[#allocation3 + $0x8] sm:$0xff]
        %v2755 = vmul.f32 %v2736, %v2753
        %v2756 = vmul.f32 %v2738, %v2754
        %v2757 = vmul.f32 %v2724, %v2739
        %v2758 = vmul.f32 %v2726, %v2740
        %v2759 = vadd.f32 %v2755, %v2757
        %v2760 = vadd.f32 %v2756, %v2758
        %2761 = vst [vmem:[#allocation3] sm:$0xff] %v2759
        %2762 = vst [vmem:[#allocation3 + $0x8] sm:$0xff] %v2760
        %v2763 = vtanh.pop %v2759
        %v2764 = vtanh.pop %v2760
        %v2765 = vmul.f32 %v2750, %v2763
        %v2766 = vmul.f32 %v2752, %v2764
        %2767 = vst [vmem:[#allocation2] sm:$0xff] %v2765
        %2768 = vst [vmem:[#allocation2 + $0x8] sm:$0xff] %v2766
        %v2769 = vld [vmem:[#allocation2] sm:$0xff]
        %v2770 = vld [vmem:[#allocation2 + $0x8] sm:$0xff]
        %v2771 = vld [vmem:[#allocation4 + $0xc0] sm:$0xff]
        %v2772 = vld [vmem:[#allocation4 + $0xc8] sm:$0xff]
        %v2773 = vld [vmem:[#allocation4 + $0xd0] sm:$0xff]
        %v2774 = vld [vmem:[#allocation4 + $0xd8] sm:$0xff]
        %v2775 = vld [vmem:[#allocation4 + $0xe0] sm:$0xff]
        %v2776 = vld [vmem:[#allocation4 + $0xe8] sm:$0xff]
        %v2777 = vld [vmem:[#allocation4 + $0xf0] sm:$0xff]
        %v2778 = vld [vmem:[#allocation4 + $0xf8] sm:$0xff]
        %v2779 = vld [vmem:[#allocation10] sm:$0xff]
        %v2780 = vld [vmem:[#allocation10 + $0x8] sm:$0xff]
        %v2781 = vld [vmem:[#allocation10 + $0x10] sm:$0xff]
        %v2782 = vld [vmem:[#allocation10 + $0x18] sm:$0xff]
        %v2783 = vld [vmem:[#allocation10 + $0x20] sm:$0xff]
        %v2784 = vld [vmem:[#allocation10 + $0x28] sm:$0xff]
        %v2785 = vld [vmem:[#allocation10 + $0x30] sm:$0xff]
        %v2786 = vld [vmem:[#allocation10 + $0x38] sm:$0xff]
        %v2787 = vld [vmem:[#allocation10 + $0x40] sm:$0xff]
        %v2788 = vld [vmem:[#allocation10 + $0x48] sm:$0xff]
        %v2789 = vld [vmem:[#allocation10 + $0x50] sm:$0xff]
        %v2790 = vld [vmem:[#allocation10 + $0x58] sm:$0xff]
        %v2791 = vld [vmem:[#allocation10 + $0x60] sm:$0xff]
        %v2792 = vld [vmem:[#allocation10 + $0x68] sm:$0xff]
        %v2793 = vld [vmem:[#allocation10 + $0x70] sm:$0xff]
        %v2794 = vld [vmem:[#allocation10 + $0x78] sm:$0xff]
        %v2795 = vld [vmem:[#allocation10 + $0x80] sm:$0xff]
        %v2796 = vld [vmem:[#allocation10 + $0x88] sm:$0xff]
        %v2797 = vld [vmem:[#allocation10 + $0x90] sm:$0xff]
        %v2798 = vld [vmem:[#allocation10 + $0x98] sm:$0xff]
        %v2799 = vld [vmem:[#allocation10 + $0xa0] sm:$0xff]
        %v2800 = vld [vmem:[#allocation10 + $0xa8] sm:$0xff]
        %v2801 = vld [vmem:[#allocation10 + $0xb0] sm:$0xff]
        %v2802 = vld [vmem:[#allocation10 + $0xb8] sm:$0xff]
        %v2803 = vld [vmem:[#allocation10 + $0xc0] sm:$0xff]
        %v2804 = vld [vmem:[#allocation10 + $0xc8] sm:$0xff]
        %v2805 = vld [vmem:[#allocation10 + $0xd0] sm:$0xff]
        %v2806 = vld [vmem:[#allocation10 + $0xd8] sm:$0xff]
        %v2807 = vld [vmem:[#allocation10 + $0xe0] sm:$0xff]
        %v2808 = vld [vmem:[#allocation10 + $0xe8] sm:$0xff]
        %v2809 = vld [vmem:[#allocation10 + $0xf0] sm:$0xff]
        %v2810 = vld [vmem:[#allocation10 + $0xf8] sm:$0xff]
        %v2811 = vld [vmem:[#allocation10 + $0x100] sm:$0xff]
        %v2812 = vld [vmem:[#allocation10 + $0x108] sm:$0xff]
        %v2813 = vld [vmem:[#allocation10 + $0x110] sm:$0xff]
        %v2814 = vld [vmem:[#allocation10 + $0x118] sm:$0xff]
        %v2815 = vld [vmem:[#allocation10 + $0x120] sm:$0xff]
        %v2816 = vld [vmem:[#allocation10 + $0x128] sm:$0xff]
        %v2817 = vld [vmem:[#allocation10 + $0x130] sm:$0xff]
        %v2818 = vld [vmem:[#allocation10 + $0x138] sm:$0xff]
        %v2819 = vld [vmem:[#allocation10 + $0x140] sm:$0xff]
        %v2820 = vld [vmem:[#allocation10 + $0x148] sm:$0xff]
        %v2821 = vld [vmem:[#allocation10 + $0x150] sm:$0xff]
        %v2822 = vld [vmem:[#allocation10 + $0x158] sm:$0xff]
        %v2823 = vld [vmem:[#allocation10 + $0x160] sm:$0xff]
        %v2824 = vld [vmem:[#allocation10 + $0x168] sm:$0xff]
        %v2825 = vld [vmem:[#allocation10 + $0x170] sm:$0xff]
        %v2826 = vld [vmem:[#allocation10 + $0x178] sm:$0xff]
        %v2827 = vld [vmem:[#allocation10 + $0x180] sm:$0xff]
        %v2828 = vld [vmem:[#allocation10 + $0x188] sm:$0xff]
        %v2829 = vld [vmem:[#allocation10 + $0x190] sm:$0xff]
        %v2830 = vld [vmem:[#allocation10 + $0x198] sm:$0xff]
        %v2831 = vld [vmem:[#allocation10 + $0x1a0] sm:$0xff]
        %v2832 = vld [vmem:[#allocation10 + $0x1a8] sm:$0xff]
        %v2833 = vld [vmem:[#allocation10 + $0x1b0] sm:$0xff]
        %v2834 = vld [vmem:[#allocation10 + $0x1b8] sm:$0xff]
        %v2835 = vld [vmem:[#allocation10 + $0x1c0] sm:$0xff]
        %v2836 = vld [vmem:[#allocation10 + $0x1c8] sm:$0xff]
        %v2837 = vld [vmem:[#allocation10 + $0x1d0] sm:$0xff]
        %v2838 = vld [vmem:[#allocation10 + $0x1d8] sm:$0xff]
        %v2839 = vld [vmem:[#allocation10 + $0x1e0] sm:$0xff]
        %v2840 = vld [vmem:[#allocation10 + $0x1e8] sm:$0xff]
        %v2841 = vld [vmem:[#allocation10 + $0x1f0] sm:$0xff]
        %v2842 = vld [vmem:[#allocation10 + $0x1f8] sm:$0xff]
        %v2843 = vld [vmem:[#allocation10 + $0x200] sm:$0xff]
        %v2844 = vld [vmem:[#allocation10 + $0x208] sm:$0xff]
        %v2845 = vld [vmem:[#allocation10 + $0x210] sm:$0xff]
        %v2846 = vld [vmem:[#allocation10 + $0x218] sm:$0xff]
        %v2847 = vld [vmem:[#allocation10 + $0x220] sm:$0xff]
        %v2848 = vld [vmem:[#allocation10 + $0x228] sm:$0xff]
        %v2849 = vld [vmem:[#allocation10 + $0x230] sm:$0xff]
        %v2850 = vld [vmem:[#allocation10 + $0x238] sm:$0xff]
        %v2851 = vld [vmem:[#allocation10 + $0x240] sm:$0xff]
        %v2852 = vld [vmem:[#allocation10 + $0x248] sm:$0xff]
        %v2853 = vld [vmem:[#allocation10 + $0x250] sm:$0xff]
        %v2854 = vld [vmem:[#allocation10 + $0x258] sm:$0xff]
        %v2855 = vld [vmem:[#allocation10 + $0x260] sm:$0xff]
        %v2856 = vld [vmem:[#allocation10 + $0x268] sm:$0xff]
        %v2857 = vld [vmem:[#allocation10 + $0x270] sm:$0xff]
        %v2858 = vld [vmem:[#allocation10 + $0x278] sm:$0xff]
        %v2859 = vld [vmem:[#allocation10 + $0x280] sm:$0xff]
        %v2860 = vld [vmem:[#allocation10 + $0x288] sm:$0xff]
        %v2861 = vld [vmem:[#allocation10 + $0x290] sm:$0xff]
        %v2862 = vld [vmem:[#allocation10 + $0x298] sm:$0xff]
        %v2863 = vld [vmem:[#allocation10 + $0x2a0] sm:$0xff]
        %v2864 = vld [vmem:[#allocation10 + $0x2a8] sm:$0xff]
        %v2865 = vld [vmem:[#allocation10 + $0x2b0] sm:$0xff]
        %v2866 = vld [vmem:[#allocation10 + $0x2b8] sm:$0xff]
        %v2867 = vld [vmem:[#allocation10 + $0x2c0] sm:$0xff]
        %v2868 = vld [vmem:[#allocation10 + $0x2c8] sm:$0xff]
        %v2869 = vld [vmem:[#allocation10 + $0x2d0] sm:$0xff]
        %v2870 = vld [vmem:[#allocation10 + $0x2d8] sm:$0xff]
        %v2871 = vld [vmem:[#allocation10 + $0x2e0] sm:$0xff]
        %v2872 = vld [vmem:[#allocation10 + $0x2e8] sm:$0xff]
        %v2873 = vld [vmem:[#allocation10 + $0x2f0] sm:$0xff]
        %v2874 = vld [vmem:[#allocation10 + $0x2f8] sm:$0xff]
        %v2875 = vld [vmem:[#allocation10 + $0x300] sm:$0xff]
        %v2876 = vld [vmem:[#allocation10 + $0x308] sm:$0xff]
        %v2877 = vld [vmem:[#allocation10 + $0x310] sm:$0xff]
        %v2878 = vld [vmem:[#allocation10 + $0x318] sm:$0xff]
        %v2879 = vld [vmem:[#allocation10 + $0x320] sm:$0xff]
        %v2880 = vld [vmem:[#allocation10 + $0x328] sm:$0xff]
        %v2881 = vld [vmem:[#allocation10 + $0x330] sm:$0xff]
        %v2882 = vld [vmem:[#allocation10 + $0x338] sm:$0xff]
        %v2883 = vld [vmem:[#allocation10 + $0x340] sm:$0xff]
        %v2884 = vld [vmem:[#allocation10 + $0x348] sm:$0xff]
        %v2885 = vld [vmem:[#allocation10 + $0x350] sm:$0xff]
        %v2886 = vld [vmem:[#allocation10 + $0x358] sm:$0xff]
        %v2887 = vld [vmem:[#allocation10 + $0x360] sm:$0xff]
        %v2888 = vld [vmem:[#allocation10 + $0x368] sm:$0xff]
        %v2889 = vld [vmem:[#allocation10 + $0x370] sm:$0xff]
        %v2890 = vld [vmem:[#allocation10 + $0x378] sm:$0xff]
        %v2891 = vld [vmem:[#allocation10 + $0x380] sm:$0xff]
        %v2892 = vld [vmem:[#allocation10 + $0x388] sm:$0xff]
        %v2893 = vld [vmem:[#allocation10 + $0x390] sm:$0xff]
        %v2894 = vld [vmem:[#allocation10 + $0x398] sm:$0xff]
        %v2895 = vld [vmem:[#allocation10 + $0x3a0] sm:$0xff]
        %v2896 = vld [vmem:[#allocation10 + $0x3a8] sm:$0xff]
        %v2897 = vld [vmem:[#allocation10 + $0x3b0] sm:$0xff]
        %v2898 = vld [vmem:[#allocation10 + $0x3b8] sm:$0xff]
        %v2899 = vld [vmem:[#allocation10 + $0x3c0] sm:$0xff]
        %v2900 = vld [vmem:[#allocation10 + $0x3c8] sm:$0xff]
        %v2901 = vld [vmem:[#allocation10 + $0x3d0] sm:$0xff]
        %v2902 = vld [vmem:[#allocation10 + $0x3d8] sm:$0xff]
        %v2903 = vld [vmem:[#allocation10 + $0x3e0] sm:$0xff]
        %v2904 = vld [vmem:[#allocation10 + $0x3e8] sm:$0xff]
        %v2905 = vld [vmem:[#allocation10 + $0x3f0] sm:$0xff]
        %v2906 = vld [vmem:[#allocation10 + $0x3f8] sm:$0xff]
        %v2907 = vld [vmem:[#allocation10 + $0x400] sm:$0xff]
        %v2908 = vld [vmem:[#allocation10 + $0x408] sm:$0xff]
        %v2909 = vld [vmem:[#allocation10 + $0x410] sm:$0xff]
        %v2910 = vld [vmem:[#allocation10 + $0x418] sm:$0xff]
        %v2911 = vld [vmem:[#allocation10 + $0x420] sm:$0xff]
        %v2912 = vld [vmem:[#allocation10 + $0x428] sm:$0xff]
        %v2913 = vld [vmem:[#allocation10 + $0x430] sm:$0xff]
        %v2914 = vld [vmem:[#allocation10 + $0x438] sm:$0xff]
        %v2915 = vld [vmem:[#allocation10 + $0x440] sm:$0xff]
        %v2916 = vld [vmem:[#allocation10 + $0x448] sm:$0xff]
        %v2917 = vld [vmem:[#allocation10 + $0x450] sm:$0xff]
        %v2918 = vld [vmem:[#allocation10 + $0x458] sm:$0xff]
        %v2919 = vld [vmem:[#allocation10 + $0x460] sm:$0xff]
        %v2920 = vld [vmem:[#allocation10 + $0x468] sm:$0xff]
        %v2921 = vld [vmem:[#allocation10 + $0x470] sm:$0xff]
        %v2922 = vld [vmem:[#allocation10 + $0x478] sm:$0xff]
        %v2923 = vld [vmem:[#allocation10 + $0x480] sm:$0xff]
        %v2924 = vld [vmem:[#allocation10 + $0x488] sm:$0xff]
        %v2925 = vld [vmem:[#allocation10 + $0x490] sm:$0xff]
        %v2926 = vld [vmem:[#allocation10 + $0x498] sm:$0xff]
        %v2927 = vld [vmem:[#allocation10 + $0x4a0] sm:$0xff]
        %v2928 = vld [vmem:[#allocation10 + $0x4a8] sm:$0xff]
        %v2929 = vld [vmem:[#allocation10 + $0x4b0] sm:$0xff]
        %v2930 = vld [vmem:[#allocation10 + $0x4b8] sm:$0xff]
        %v2931 = vld [vmem:[#allocation10 + $0x4c0] sm:$0xff]
        %v2932 = vld [vmem:[#allocation10 + $0x4c8] sm:$0xff]
        %v2933 = vld [vmem:[#allocation10 + $0x4d0] sm:$0xff]
        %v2934 = vld [vmem:[#allocation10 + $0x4d8] sm:$0xff]
        %v2935 = vld [vmem:[#allocation10 + $0x4e0] sm:$0xff]
        %v2936 = vld [vmem:[#allocation10 + $0x4e8] sm:$0xff]
        %v2937 = vld [vmem:[#allocation10 + $0x4f0] sm:$0xff]
        %v2938 = vld [vmem:[#allocation10 + $0x4f8] sm:$0xff]
        %v2939 = vld [vmem:[#allocation10 + $0x500] sm:$0xff]
        %v2940 = vld [vmem:[#allocation10 + $0x508] sm:$0xff]
        %v2941 = vld [vmem:[#allocation10 + $0x510] sm:$0xff]
        %v2942 = vld [vmem:[#allocation10 + $0x518] sm:$0xff]
        %v2943 = vld [vmem:[#allocation10 + $0x520] sm:$0xff]
        %v2944 = vld [vmem:[#allocation10 + $0x528] sm:$0xff]
        %v2945 = vld [vmem:[#allocation10 + $0x530] sm:$0xff]
        %v2946 = vld [vmem:[#allocation10 + $0x538] sm:$0xff]
        %v2947 = vld [vmem:[#allocation10 + $0x540] sm:$0xff]
        %v2948 = vld [vmem:[#allocation10 + $0x548] sm:$0xff]
        %v2949 = vld [vmem:[#allocation10 + $0x550] sm:$0xff]
        %v2950 = vld [vmem:[#allocation10 + $0x558] sm:$0xff]
        %v2951 = vld [vmem:[#allocation10 + $0x560] sm:$0xff]
        %v2952 = vld [vmem:[#allocation10 + $0x568] sm:$0xff]
        %v2953 = vld [vmem:[#allocation10 + $0x570] sm:$0xff]
        %v2954 = vld [vmem:[#allocation10 + $0x578] sm:$0xff]
        %v2955 = vld [vmem:[#allocation10 + $0x580] sm:$0xff]
        %v2956 = vld [vmem:[#allocation10 + $0x588] sm:$0xff]
        %v2957 = vld [vmem:[#allocation10 + $0x590] sm:$0xff]
        %v2958 = vld [vmem:[#allocation10 + $0x598] sm:$0xff]
        %v2959 = vld [vmem:[#allocation10 + $0x5a0] sm:$0xff]
        %v2960 = vld [vmem:[#allocation10 + $0x5a8] sm:$0xff]
        %v2961 = vld [vmem:[#allocation10 + $0x5b0] sm:$0xff]
        %v2962 = vld [vmem:[#allocation10 + $0x5b8] sm:$0xff]
        %v2963 = vld [vmem:[#allocation10 + $0x5c0] sm:$0xff]
        %v2964 = vld [vmem:[#allocation10 + $0x5c8] sm:$0xff]
        %v2965 = vld [vmem:[#allocation10 + $0x5d0] sm:$0xff]
        %v2966 = vld [vmem:[#allocation10 + $0x5d8] sm:$0xff]
        %v2967 = vld [vmem:[#allocation10 + $0x5e0] sm:$0xff]
        %v2968 = vld [vmem:[#allocation10 + $0x5e8] sm:$0xff]
        %v2969 = vld [vmem:[#allocation10 + $0x5f0] sm:$0xff]
        %v2970 = vld [vmem:[#allocation10 + $0x5f8] sm:$0xff]
        %v2971 = vld [vmem:[#allocation10 + $0x600] sm:$0xff]
        %v2972 = vld [vmem:[#allocation10 + $0x608] sm:$0xff]
        %v2973 = vld [vmem:[#allocation10 + $0x610] sm:$0xff]
        %v2974 = vld [vmem:[#allocation10 + $0x618] sm:$0xff]
        %v2975 = vld [vmem:[#allocation10 + $0x620] sm:$0xff]
        %v2976 = vld [vmem:[#allocation10 + $0x628] sm:$0xff]
        %v2977 = vld [vmem:[#allocation10 + $0x630] sm:$0xff]
        %v2978 = vld [vmem:[#allocation10 + $0x638] sm:$0xff]
        %v2979 = vld [vmem:[#allocation10 + $0x640] sm:$0xff]
        %v2980 = vld [vmem:[#allocation10 + $0x648] sm:$0xff]
        %v2981 = vld [vmem:[#allocation10 + $0x650] sm:$0xff]
        %v2982 = vld [vmem:[#allocation10 + $0x658] sm:$0xff]
        %v2983 = vld [vmem:[#allocation10 + $0x660] sm:$0xff]
        %v2984 = vld [vmem:[#allocation10 + $0x668] sm:$0xff]
        %v2985 = vld [vmem:[#allocation10 + $0x670] sm:$0xff]
        %v2986 = vld [vmem:[#allocation10 + $0x678] sm:$0xff]
        %v2987 = vld [vmem:[#allocation10 + $0x680] sm:$0xff]
        %v2988 = vld [vmem:[#allocation10 + $0x688] sm:$0xff]
        %v2989 = vld [vmem:[#allocation10 + $0x690] sm:$0xff]
        %v2990 = vld [vmem:[#allocation10 + $0x698] sm:$0xff]
        %v2991 = vld [vmem:[#allocation10 + $0x6a0] sm:$0xff]
        %v2992 = vld [vmem:[#allocation10 + $0x6a8] sm:$0xff]
        %v2993 = vld [vmem:[#allocation10 + $0x6b0] sm:$0xff]
        %v2994 = vld [vmem:[#allocation10 + $0x6b8] sm:$0xff]
        %v2995 = vld [vmem:[#allocation10 + $0x6c0] sm:$0xff]
        %v2996 = vld [vmem:[#allocation10 + $0x6c8] sm:$0xff]
        %v2997 = vld [vmem:[#allocation10 + $0x6d0] sm:$0xff]
        %v2998 = vld [vmem:[#allocation10 + $0x6d8] sm:$0xff]
        %v2999 = vld [vmem:[#allocation10 + $0x6e0] sm:$0xff]
        %v3000 = vld [vmem:[#allocation10 + $0x6e8] sm:$0xff]
        %v3001 = vld [vmem:[#allocation10 + $0x6f0] sm:$0xff]
        %v3002 = vld [vmem:[#allocation10 + $0x6f8] sm:$0xff]
        %v3003 = vld [vmem:[#allocation10 + $0x700] sm:$0xff]
        %v3004 = vld [vmem:[#allocation10 + $0x708] sm:$0xff]
        %v3005 = vld [vmem:[#allocation10 + $0x710] sm:$0xff]
        %v3006 = vld [vmem:[#allocation10 + $0x718] sm:$0xff]
        %v3007 = vld [vmem:[#allocation10 + $0x720] sm:$0xff]
        %v3008 = vld [vmem:[#allocation10 + $0x728] sm:$0xff]
        %v3009 = vld [vmem:[#allocation10 + $0x730] sm:$0xff]
        %v3010 = vld [vmem:[#allocation10 + $0x738] sm:$0xff]
        %v3011 = vld [vmem:[#allocation10 + $0x740] sm:$0xff]
        %v3012 = vld [vmem:[#allocation10 + $0x748] sm:$0xff]
        %v3013 = vld [vmem:[#allocation10 + $0x750] sm:$0xff]
        %v3014 = vld [vmem:[#allocation10 + $0x758] sm:$0xff]
        %v3015 = vld [vmem:[#allocation10 + $0x760] sm:$0xff]
        %v3016 = vld [vmem:[#allocation10 + $0x768] sm:$0xff]
        %v3017 = vld [vmem:[#allocation10 + $0x770] sm:$0xff]
        %v3018 = vld [vmem:[#allocation10 + $0x778] sm:$0xff]
        %v3019 = vld [vmem:[#allocation10 + $0x780] sm:$0xff]
        %v3020 = vld [vmem:[#allocation10 + $0x788] sm:$0xff]
        %v3021 = vld [vmem:[#allocation10 + $0x790] sm:$0xff]
        %v3022 = vld [vmem:[#allocation10 + $0x798] sm:$0xff]
        %v3023 = vld [vmem:[#allocation10 + $0x7a0] sm:$0xff]
        %v3024 = vld [vmem:[#allocation10 + $0x7a8] sm:$0xff]
        %v3025 = vld [vmem:[#allocation10 + $0x7b0] sm:$0xff]
        %v3026 = vld [vmem:[#allocation10 + $0x7b8] sm:$0xff]
        %v3027 = vld [vmem:[#allocation10 + $0x7c0] sm:$0xff]
        %v3028 = vld [vmem:[#allocation10 + $0x7c8] sm:$0xff]
        %v3029 = vld [vmem:[#allocation10 + $0x7d0] sm:$0xff]
        %v3030 = vld [vmem:[#allocation10 + $0x7d8] sm:$0xff]
        %v3031 = vld [vmem:[#allocation10 + $0x7e0] sm:$0xff]
        %v3032 = vld [vmem:[#allocation10 + $0x7e8] sm:$0xff]
        %v3033 = vld [vmem:[#allocation10 + $0x7f0] sm:$0xff]
        %v3034 = vld [vmem:[#allocation10 + $0x7f8] sm:$0xff]
        %3035 = vmatprep.subr.mxu0 %v2900
        %3036 = vmatpush1.msra.mxu0 %v2899
        %3037 = vmatprep.subr.mxu0 %v2892
        %3038 = vmatpush1.msra.mxu0 %v2891
        %3039 = vmatprep.subr.mxu0 %v2884
        %3040 = vmatpush1.msra.mxu0 %v2883
        %3041 = vmatprep.subr.mxu0 %v2876
        %3042 = vmatpush1.msra.mxu0 %v2875
        %3043 = vmatprep.subr.mxu0 %v2868
        %3044 = vmatpush1.msra.mxu0 %v2867
        %3045 = vmatprep.subr.mxu0 %v2860
        %3046 = vmatpush1.msra.mxu0 %v2859
        %3047 = vmatprep.subr.mxu0 %v2852
        %3048 = vmatpush1.msra.mxu0 %v2851
        %3049 = vmatprep.subr.mxu0 %v2844
        %3050 = vmatpush1.msra.mxu0 %v2843
        %3051 = vmatprep.subr.mxu0 %v2836
        %3052 = vmatpush1.msra.mxu0 %v2835
        %3053 = vmatprep.subr.mxu0 %v2828
        %3054 = vmatpush1.msra.mxu0 %v2827
        %3055 = vmatprep.subr.mxu0 %v2820
        %3056 = vmatpush1.msra.mxu0 %v2819
        %3057 = vmatprep.subr.mxu0 %v2812
        %3058 = vmatpush1.msra.mxu0 %v2811
        %3059 = vmatprep.subr.mxu0 %v2804
        %3060 = vmatpush1.msra.mxu0 %v2803
        %3061 = vmatprep.subr.mxu0 %v2796
        %3062 = vmatpush1.msra.mxu0 %v2795
        %3063 = vmatprep.subr.mxu0 %v2788
        %3064 = vmatpush1.msra.mxu0 %v2787
        %3065 = vmatprep.subr.mxu0 %v2780
        %3066 = vmatpush1.msra.mxu0 %v2779
        %3067 = vmatprep.subr.mxu0 %v3028
        %3068 = vmatpush2.msra.mxu0 %v3027
        %3069 = vmatprep.subr.mxu0 %v3020
        %3070 = vmatpush2.msra.mxu0 %v3019
        %3071 = vmatprep.subr.mxu0 %v3012
        %3072 = vmatpush2.msra.mxu0 %v3011
        %3073 = vmatprep.subr.mxu0 %v3004
        %3074 = vmatpush2.msra.mxu0 %v3003
        %3075 = vmatprep.subr.mxu0 %v2996
        %3076 = vmatpush2.msra.mxu0 %v2995
        %3077 = vmatprep.subr.mxu0 %v2988
        %3078 = vmatpush2.msra.mxu0 %v2987
        %3079 = vmatprep.subr.mxu0 %v2980
        %3080 = vmatpush2.msra.mxu0 %v2979
        %3081 = vmatprep.subr.mxu0 %v2972
        %3082 = vmatpush2.msra.mxu0 %v2971
        %3083 = vmatprep.subr.mxu0 %v2964
        %3084 = vmatpush2.msra.mxu0 %v2963
        %3085 = vmatprep.subr.mxu0 %v2956
        %3086 = vmatpush2.msra.mxu0 %v2955
        %3087 = vmatprep.subr.mxu0 %v2948
        %3088 = vmatpush2.msra.mxu0 %v2947
        %3089 = vmatprep.subr.mxu0 %v2940
        %3090 = vmatpush2.msra.mxu0 %v2939
        %3091 = vmatprep.subr.mxu0 %v2932
        %3092 = vmatpush2.msra.mxu0 %v2931
        %3093 = vmatprep.subr.mxu0 %v2924
        %3094 = vmatpush2.msra.mxu0 %v2923
        %3095 = vmatprep.subr.mxu0 %v2916
        %3096 = vmatpush2.msra.mxu0 %v2915
        %3097 = vmatprep.subr.mxu0 %v2908
        %3098 = vmatpush2.msra.mxu0 %v2907
        %3099 = vmatprep.mubr.f32.mxu0 %v2770
        %3100 = vmatmul.mubr.f32.gmra.mxu0 %v2769
        %v3101 = vpop.f32.mrf.mxu0
        %v3102 = vadd.f32 0.0, %v3101
        %v3103 = vpop.f32.mrf.mxu0
        %v3104 = vadd.f32 0.0, %v3103
        %3105 = vdwg.mxu0
        %3106 = vmatprep.subr.mxu0 %v2902
        %3107 = vmatpush1.msra.mxu0 %v2901
        %3108 = vmatprep.subr.mxu0 %v2894
        %3109 = vmatpush1.msra.mxu0 %v2893
        %3110 = vmatprep.subr.mxu0 %v2886
        %3111 = vmatpush1.msra.mxu0 %v2885
        %3112 = vmatprep.subr.mxu0 %v2878
        %3113 = vmatpush1.msra.mxu0 %v2877
        %3114 = vmatprep.subr.mxu0 %v2870
        %3115 = vmatpush1.msra.mxu0 %v2869
        %3116 = vmatprep.subr.mxu0 %v2862
        %3117 = vmatpush1.msra.mxu0 %v2861
        %3118 = vmatprep.subr.mxu0 %v2854
        %3119 = vmatpush1.msra.mxu0 %v2853
        %3120 = vmatprep.subr.mxu0 %v2846
        %3121 = vmatpush1.msra.mxu0 %v2845
        %3122 = vmatprep.subr.mxu0 %v2838
        %3123 = vmatpush1.msra.mxu0 %v2837
        %3124 = vmatprep.subr.mxu0 %v2830
        %3125 = vmatpush1.msra.mxu0 %v2829
        %3126 = vmatprep.subr.mxu0 %v2822
        %3127 = vmatpush1.msra.mxu0 %v2821
        %3128 = vmatprep.subr.mxu0 %v2814
        %3129 = vmatpush1.msra.mxu0 %v2813
        %3130 = vmatprep.subr.mxu0 %v2806
        %3131 = vmatpush1.msra.mxu0 %v2805
        %3132 = vmatprep.subr.mxu0 %v2798
        %3133 = vmatpush1.msra.mxu0 %v2797
        %3134 = vmatprep.subr.mxu0 %v2790
        %3135 = vmatpush1.msra.mxu0 %v2789
        %3136 = vmatprep.subr.mxu0 %v2782
        %3137 = vmatpush1.msra.mxu0 %v2781
        %3138 = vmatprep.subr.mxu0 %v3030
        %3139 = vmatpush2.msra.mxu0 %v3029
        %3140 = vmatprep.subr.mxu0 %v3022
        %3141 = vmatpush2.msra.mxu0 %v3021
        %3142 = vmatprep.subr.mxu0 %v3014
        %3143 = vmatpush2.msra.mxu0 %v3013
        %3144 = vmatprep.subr.mxu0 %v3006
        %3145 = vmatpush2.msra.mxu0 %v3005
        %3146 = vmatprep.subr.mxu0 %v2998
        %3147 = vmatpush2.msra.mxu0 %v2997
        %3148 = vmatprep.subr.mxu0 %v2990
        %3149 = vmatpush2.msra.mxu0 %v2989
        %3150 = vmatprep.subr.mxu0 %v2982
        %3151 = vmatpush2.msra.mxu0 %v2981
        %3152 = vmatprep.subr.mxu0 %v2974
        %3153 = vmatpush2.msra.mxu0 %v2973
        %3154 = vmatprep.subr.mxu0 %v2966
        %3155 = vmatpush2.msra.mxu0 %v2965
        %3156 = vmatprep.subr.mxu0 %v2958
        %3157 = vmatpush2.msra.mxu0 %v2957
        %3158 = vmatprep.subr.mxu0 %v2950
        %3159 = vmatpush2.msra.mxu0 %v2949
        %3160 = vmatprep.subr.mxu0 %v2942
        %3161 = vmatpush2.msra.mxu0 %v2941
        %3162 = vmatprep.subr.mxu0 %v2934
        %3163 = vmatpush2.msra.mxu0 %v2933
        %3164 = vmatprep.subr.mxu0 %v2926
        %3165 = vmatpush2.msra.mxu0 %v2925
        %3166 = vmatprep.subr.mxu0 %v2918
        %3167 = vmatpush2.msra.mxu0 %v2917
        %3168 = vmatprep.subr.mxu0 %v2910
        %3169 = vmatpush2.msra.mxu0 %v2909
        %3170 = vmatprep.mubr.f32.mxu0 %v2770
        %3171 = vmatmul.mubr.f32.gmra.mxu0 %v2769
        %v3172 = vpop.f32.mrf.mxu0
        %v3173 = vadd.f32 0.0, %v3172
        %v3174 = vpop.f32.mrf.mxu0
        %v3175 = vadd.f32 0.0, %v3174
        %3176 = vdwg.mxu0
        %3177 = vmatprep.subr.mxu0 %v2904
        %3178 = vmatpush1.msra.mxu0 %v2903
        %3179 = vmatprep.subr.mxu0 %v2896
        %3180 = vmatpush1.msra.mxu0 %v2895
        %3181 = vmatprep.subr.mxu0 %v2888
        %3182 = vmatpush1.msra.mxu0 %v2887
        %3183 = vmatprep.subr.mxu0 %v2880
        %3184 = vmatpush1.msra.mxu0 %v2879
        %3185 = vmatprep.subr.mxu0 %v2872
        %3186 = vmatpush1.msra.mxu0 %v2871
        %3187 = vmatprep.subr.mxu0 %v2864
        %3188 = vmatpush1.msra.mxu0 %v2863
        %3189 = vmatprep.subr.mxu0 %v2856
        %3190 = vmatpush1.msra.mxu0 %v2855
        %3191 = vmatprep.subr.mxu0 %v2848
        %3192 = vmatpush1.msra.mxu0 %v2847
        %3193 = vmatprep.subr.mxu0 %v2840
        %3194 = vmatpush1.msra.mxu0 %v2839
        %3195 = vmatprep.subr.mxu0 %v2832
        %3196 = vmatpush1.msra.mxu0 %v2831
        %3197 = vmatprep.subr.mxu0 %v2824
        %3198 = vmatpush1.msra.mxu0 %v2823
        %3199 = vmatprep.subr.mxu0 %v2816
        %3200 = vmatpush1.msra.mxu0 %v2815
        %3201 = vmatprep.subr.mxu0 %v2808
        %3202 = vmatpush1.msra.mxu0 %v2807
        %3203 = vmatprep.subr.mxu0 %v2800
        %3204 = vmatpush1.msra.mxu0 %v2799
        %3205 = vmatprep.subr.mxu0 %v2792
        %3206 = vmatpush1.msra.mxu0 %v2791
        %3207 = vmatprep.subr.mxu0 %v2784
        %3208 = vmatpush1.msra.mxu0 %v2783
        %3209 = vmatprep.subr.mxu0 %v3032
        %3210 = vmatpush2.msra.mxu0 %v3031
        %3211 = vmatprep.subr.mxu0 %v3024
        %3212 = vmatpush2.msra.mxu0 %v3023
        %3213 = vmatprep.subr.mxu0 %v3016
        %3214 = vmatpush2.msra.mxu0 %v3015
        %3215 = vmatprep.subr.mxu0 %v3008
        %3216 = vmatpush2.msra.mxu0 %v3007
        %3217 = vmatprep.subr.mxu0 %v3000
        %3218 = vmatpush2.msra.mxu0 %v2999
        %3219 = vmatprep.subr.mxu0 %v2992
        %3220 = vmatpush2.msra.mxu0 %v2991
        %3221 = vmatprep.subr.mxu0 %v2984
        %3222 = vmatpush2.msra.mxu0 %v2983
        %3223 = vmatprep.subr.mxu0 %v2976
        %3224 = vmatpush2.msra.mxu0 %v2975
        %3225 = vmatprep.subr.mxu0 %v2968
        %3226 = vmatpush2.msra.mxu0 %v2967
        %3227 = vmatprep.subr.mxu0 %v2960
        %3228 = vmatpush2.msra.mxu0 %v2959
        %3229 = vmatprep.subr.mxu0 %v2952
        %3230 = vmatpush2.msra.mxu0 %v2951
        %3231 = vmatprep.subr.mxu0 %v2944
        %3232 = vmatpush2.msra.mxu0 %v2943
        %3233 = vmatprep.subr.mxu0 %v2936
        %3234 = vmatpush2.msra.mxu0 %v2935
        %3235 = vmatprep.subr.mxu0 %v2928
        %3236 = vmatpush2.msra.mxu0 %v2927
        %3237 = vmatprep.subr.mxu0 %v2920
        %3238 = vmatpush2.msra.mxu0 %v2919
        %3239 = vmatprep.subr.mxu0 %v2912
        %3240 = vmatpush2.msra.mxu0 %v2911
        %3241 = vmatprep.mubr.f32.mxu0 %v2770
        %3242 = vmatmul.mubr.f32.gmra.mxu0 %v2769
        %v3243 = vpop.f32.mrf.mxu0
        %v3244 = vadd.f32 0.0, %v3243
        %v3245 = vpop.f32.mrf.mxu0
        %v3246 = vadd.f32 0.0, %v3245
        %3247 = vdwg.mxu0
        %3248 = vmatprep.subr.mxu0 %v2906
        %3249 = vmatpush1.msra.mxu0 %v2905
        %3250 = vmatprep.subr.mxu0 %v2898
        %3251 = vmatpush1.msra.mxu0 %v2897
        %3252 = vmatprep.subr.mxu0 %v2890
        %3253 = vmatpush1.msra.mxu0 %v2889
        %3254 = vmatprep.subr.mxu0 %v2882
        %3255 = vmatpush1.msra.mxu0 %v2881
        %3256 = vmatprep.subr.mxu0 %v2874
        %3257 = vmatpush1.msra.mxu0 %v2873
        %3258 = vmatprep.subr.mxu0 %v2866
        %3259 = vmatpush1.msra.mxu0 %v2865
        %3260 = vmatprep.subr.mxu0 %v2858
        %3261 = vmatpush1.msra.mxu0 %v2857
        %3262 = vmatprep.subr.mxu0 %v2850
        %3263 = vmatpush1.msra.mxu0 %v2849
        %3264 = vmatprep.subr.mxu0 %v2842
        %3265 = vmatpush1.msra.mxu0 %v2841
        %3266 = vmatprep.subr.mxu0 %v2834
        %3267 = vmatpush1.msra.mxu0 %v2833
        %3268 = vmatprep.subr.mxu0 %v2826
        %3269 = vmatpush1.msra.mxu0 %v2825
        %3270 = vmatprep.subr.mxu0 %v2818
        %3271 = vmatpush1.msra.mxu0 %v2817
        %3272 = vmatprep.subr.mxu0 %v2810
        %3273 = vmatpush1.msra.mxu0 %v2809
        %3274 = vmatprep.subr.mxu0 %v2802
        %3275 = vmatpush1.msra.mxu0 %v2801
        %3276 = vmatprep.subr.mxu0 %v2794
        %3277 = vmatpush1.msra.mxu0 %v2793
        %3278 = vmatprep.subr.mxu0 %v2786
        %3279 = vmatpush1.msra.mxu0 %v2785
        %3280 = vmatprep.subr.mxu0 %v3034
        %3281 = vmatpush2.msra.mxu0 %v3033
        %3282 = vmatprep.subr.mxu0 %v3026
        %3283 = vmatpush2.msra.mxu0 %v3025
        %3284 = vmatprep.subr.mxu0 %v3018
        %3285 = vmatpush2.msra.mxu0 %v3017
        %3286 = vmatprep.subr.mxu0 %v3010
        %3287 = vmatpush2.msra.mxu0 %v3009
        %3288 = vmatprep.subr.mxu0 %v3002
        %3289 = vmatpush2.msra.mxu0 %v3001
        %3290 = vmatprep.subr.mxu0 %v2994
        %3291 = vmatpush2.msra.mxu0 %v2993
        %3292 = vmatprep.subr.mxu0 %v2986
        %3293 = vmatpush2.msra.mxu0 %v2985
        %3294 = vmatprep.subr.mxu0 %v2978
        %3295 = vmatpush2.msra.mxu0 %v2977
        %3296 = vmatprep.subr.mxu0 %v2970
        %3297 = vmatpush2.msra.mxu0 %v2969
        %3298 = vmatprep.subr.mxu0 %v2962
        %3299 = vmatpush2.msra.mxu0 %v2961
        %3300 = vmatprep.subr.mxu0 %v2954
        %3301 = vmatpush2.msra.mxu0 %v2953
        %3302 = vmatprep.subr.mxu0 %v2946
        %3303 = vmatpush2.msra.mxu0 %v2945
        %3304 = vmatprep.subr.mxu0 %v2938
        %3305 = vmatpush2.msra.mxu0 %v2937
        %3306 = vmatprep.subr.mxu0 %v2930
        %3307 = vmatpush2.msra.mxu0 %v2929
        %3308 = vmatprep.subr.mxu0 %v2922
        %3309 = vmatpush2.msra.mxu0 %v2921
        %3310 = vmatprep.subr.mxu0 %v2914
        %3311 = vmatpush2.msra.mxu0 %v2913
        %3312 = vmatprep.mubr.f32.mxu0 %v2770
        %3313 = vmatmul.mubr.f32.gmra.mxu0 %v2769
        %v3314 = vpop.f32.mrf.mxu0
        %v3315 = vadd.f32 0.0, %v3314
        %v3316 = vpop.f32.mrf.mxu0
        %v3317 = vadd.f32 0.0, %v3316
        %3318 = vdwg.mxu0
        %v3319 = vadd.f32 %v2771, %v3102
        %v3320 = vadd.f32 %v2772, %v3104
        %v3321 = vadd.f32 %v2773, %v3173
        %v3322 = vadd.f32 %v2774, %v3175
        %v3323 = vadd.f32 %v2775, %v3244
        %v3324 = vadd.f32 %v2776, %v3246
        %v3325 = vadd.f32 %v2777, %v3315
        %v3326 = vadd.f32 %v2778, %v3317
        %v3327 = vxor.u32 %v3319, 2147483648
        %v3328 = vxor.u32 %v3320, 2147483648
        %v3329 = vmul.f32 %v3327, 1.442695
        %v3330 = vpow.pop %v3329
        %v3331 = vmul.f32 %v3328, 1.442695
        %v3332 = vpow.pop %v3331
        %v3333 = vadd.f32 %v3330, 1.0
        %v3334 = vadd.f32 %v3332, 1.0
        %v3335 = vrcp.pop %v3333
        %v3336 = vmul.f32 1.0, %v3335
        %v3337 = vrcp.pop %v3334
        %v3338 = vmul.f32 1.0, %v3337
        %v3339 = vxor.u32 %v3321, 2147483648
        %v3340 = vxor.u32 %v3322, 2147483648
        %v3341 = vmul.f32 %v3339, 1.442695
        %v3342 = vpow.pop %v3341
        %v3343 = vmul.f32 %v3340, 1.442695
        %v3344 = vpow.pop %v3343
        %v3345 = vadd.f32 %v3342, 1.0
        %v3346 = vadd.f32 %v3344, 1.0
        %v3347 = vrcp.pop %v3345
        %v3348 = vmul.f32 1.0, %v3347
        %v3349 = vrcp.pop %v3346
        %v3350 = vmul.f32 1.0, %v3349
        %v3351 = vtanh.pop %v3323
        %v3352 = vtanh.pop %v3324
        %v3353 = vxor.u32 %v3325, 2147483648
        %v3354 = vxor.u32 %v3326, 2147483648
        %v3355 = vmul.f32 %v3353, 1.442695
        %v3356 = vpow.pop %v3355
        %v3357 = vmul.f32 %v3354, 1.442695
        %v3358 = vpow.pop %v3357
        %v3359 = vadd.f32 %v3356, 1.0
        %v3360 = vadd.f32 %v3358, 1.0
        %v3361 = vrcp.pop %v3359
        %v3362 = vmul.f32 1.0, %v3361
        %v3363 = vrcp.pop %v3360
        %v3364 = vmul.f32 1.0, %v3363
        %v3365 = vld [vmem:[#allocation3] sm:$0xff]
        %v3366 = vld [vmem:[#allocation3 + $0x8] sm:$0xff]
        %v3367 = vmul.f32 %v3348, %v3365
        %v3368 = vmul.f32 %v3350, %v3366
        %v3369 = vmul.f32 %v3336, %v3351
        %v3370 = vmul.f32 %v3338, %v3352
        %v3371 = vadd.f32 %v3367, %v3369
        %v3372 = vadd.f32 %v3368, %v3370
        %3373 = vst [vmem:[#allocation3] sm:$0xff] %v3371
        %3374 = vst [vmem:[#allocation3 + $0x8] sm:$0xff] %v3372
        %v3375 = vtanh.pop %v3371
        %v3376 = vtanh.pop %v3372
        %v3377 = vmul.f32 %v3362, %v3375
        %v3378 = vmul.f32 %v3364, %v3376
        %3379 = vst [vmem:[#allocation2] sm:$0xff] %v3377
        %3380 = vst [vmem:[#allocation2 + $0x8] sm:$0xff] %v3378
        %v3381 = vld [vmem:[#allocation2] sm:$0xff]
        %v3382 = vld [vmem:[#allocation2 + $0x8] sm:$0xff]
        %v3383 = vld [vmem:[#allocation4 + $0x100] sm:$0xff]
        %v3384 = vld [vmem:[#allocation4 + $0x108] sm:$0xff]
        %v3385 = vld [vmem:[#allocation4 + $0x110] sm:$0xff]
        %v3386 = vld [vmem:[#allocation4 + $0x118] sm:$0xff]
        %v3387 = vld [vmem:[#allocation4 + $0x120] sm:$0xff]
        %v3388 = vld [vmem:[#allocation4 + $0x128] sm:$0xff]
        %v3389 = vld [vmem:[#allocation4 + $0x130] sm:$0xff]
        %v3390 = vld [vmem:[#allocation4 + $0x138] sm:$0xff]
        %v3391 = vld [vmem:[#allocation10] sm:$0xff]
        %v3392 = vld [vmem:[#allocation10 + $0x8] sm:$0xff]
        %v3393 = vld [vmem:[#allocation10 + $0x10] sm:$0xff]
        %v3394 = vld [vmem:[#allocation10 + $0x18] sm:$0xff]
        %v3395 = vld [vmem:[#allocation10 + $0x20] sm:$0xff]
        %v3396 = vld [vmem:[#allocation10 + $0x28] sm:$0xff]
        %v3397 = vld [vmem:[#allocation10 + $0x30] sm:$0xff]
        %v3398 = vld [vmem:[#allocation10 + $0x38] sm:$0xff]
        %v3399 = vld [vmem:[#allocation10 + $0x40] sm:$0xff]
        %v3400 = vld [vmem:[#allocation10 + $0x48] sm:$0xff]
        %v3401 = vld [vmem:[#allocation10 + $0x50] sm:$0xff]
        %v3402 = vld [vmem:[#allocation10 + $0x58] sm:$0xff]
        %v3403 = vld [vmem:[#allocation10 + $0x60] sm:$0xff]
        %v3404 = vld [vmem:[#allocation10 + $0x68] sm:$0xff]
        %v3405 = vld [vmem:[#allocation10 + $0x70] sm:$0xff]
        %v3406 = vld [vmem:[#allocation10 + $0x78] sm:$0xff]
        %v3407 = vld [vmem:[#allocation10 + $0x80] sm:$0xff]
        %v3408 = vld [vmem:[#allocation10 + $0x88] sm:$0xff]
        %v3409 = vld [vmem:[#allocation10 + $0x90] sm:$0xff]
        %v3410 = vld [vmem:[#allocation10 + $0x98] sm:$0xff]
        %v3411 = vld [vmem:[#allocation10 + $0xa0] sm:$0xff]
        %v3412 = vld [vmem:[#allocation10 + $0xa8] sm:$0xff]
        %v3413 = vld [vmem:[#allocation10 + $0xb0] sm:$0xff]
        %v3414 = vld [vmem:[#allocation10 + $0xb8] sm:$0xff]
        %v3415 = vld [vmem:[#allocation10 + $0xc0] sm:$0xff]
        %v3416 = vld [vmem:[#allocation10 + $0xc8] sm:$0xff]
        %v3417 = vld [vmem:[#allocation10 + $0xd0] sm:$0xff]
        %v3418 = vld [vmem:[#allocation10 + $0xd8] sm:$0xff]
        %v3419 = vld [vmem:[#allocation10 + $0xe0] sm:$0xff]
        %v3420 = vld [vmem:[#allocation10 + $0xe8] sm:$0xff]
        %v3421 = vld [vmem:[#allocation10 + $0xf0] sm:$0xff]
        %v3422 = vld [vmem:[#allocation10 + $0xf8] sm:$0xff]
        %v3423 = vld [vmem:[#allocation10 + $0x100] sm:$0xff]
        %v3424 = vld [vmem:[#allocation10 + $0x108] sm:$0xff]
        %v3425 = vld [vmem:[#allocation10 + $0x110] sm:$0xff]
        %v3426 = vld [vmem:[#allocation10 + $0x118] sm:$0xff]
        %v3427 = vld [vmem:[#allocation10 + $0x120] sm:$0xff]
        %v3428 = vld [vmem:[#allocation10 + $0x128] sm:$0xff]
        %v3429 = vld [vmem:[#allocation10 + $0x130] sm:$0xff]
        %v3430 = vld [vmem:[#allocation10 + $0x138] sm:$0xff]
        %v3431 = vld [vmem:[#allocation10 + $0x140] sm:$0xff]
        %v3432 = vld [vmem:[#allocation10 + $0x148] sm:$0xff]
        %v3433 = vld [vmem:[#allocation10 + $0x150] sm:$0xff]
        %v3434 = vld [vmem:[#allocation10 + $0x158] sm:$0xff]
        %v3435 = vld [vmem:[#allocation10 + $0x160] sm:$0xff]
        %v3436 = vld [vmem:[#allocation10 + $0x168] sm:$0xff]
        %v3437 = vld [vmem:[#allocation10 + $0x170] sm:$0xff]
        %v3438 = vld [vmem:[#allocation10 + $0x178] sm:$0xff]
        %v3439 = vld [vmem:[#allocation10 + $0x180] sm:$0xff]
        %v3440 = vld [vmem:[#allocation10 + $0x188] sm:$0xff]
        %v3441 = vld [vmem:[#allocation10 + $0x190] sm:$0xff]
        %v3442 = vld [vmem:[#allocation10 + $0x198] sm:$0xff]
        %v3443 = vld [vmem:[#allocation10 + $0x1a0] sm:$0xff]
        %v3444 = vld [vmem:[#allocation10 + $0x1a8] sm:$0xff]
        %v3445 = vld [vmem:[#allocation10 + $0x1b0] sm:$0xff]
        %v3446 = vld [vmem:[#allocation10 + $0x1b8] sm:$0xff]
        %v3447 = vld [vmem:[#allocation10 + $0x1c0] sm:$0xff]
        %v3448 = vld [vmem:[#allocation10 + $0x1c8] sm:$0xff]
        %v3449 = vld [vmem:[#allocation10 + $0x1d0] sm:$0xff]
        %v3450 = vld [vmem:[#allocation10 + $0x1d8] sm:$0xff]
        %v3451 = vld [vmem:[#allocation10 + $0x1e0] sm:$0xff]
        %v3452 = vld [vmem:[#allocation10 + $0x1e8] sm:$0xff]
        %v3453 = vld [vmem:[#allocation10 + $0x1f0] sm:$0xff]
        %v3454 = vld [vmem:[#allocation10 + $0x1f8] sm:$0xff]
        %v3455 = vld [vmem:[#allocation10 + $0x200] sm:$0xff]
        %v3456 = vld [vmem:[#allocation10 + $0x208] sm:$0xff]
        %v3457 = vld [vmem:[#allocation10 + $0x210] sm:$0xff]
        %v3458 = vld [vmem:[#allocation10 + $0x218] sm:$0xff]
        %v3459 = vld [vmem:[#allocation10 + $0x220] sm:$0xff]
        %v3460 = vld [vmem:[#allocation10 + $0x228] sm:$0xff]
        %v3461 = vld [vmem:[#allocation10 + $0x230] sm:$0xff]
        %v3462 = vld [vmem:[#allocation10 + $0x238] sm:$0xff]
        %v3463 = vld [vmem:[#allocation10 + $0x240] sm:$0xff]
        %v3464 = vld [vmem:[#allocation10 + $0x248] sm:$0xff]
        %v3465 = vld [vmem:[#allocation10 + $0x250] sm:$0xff]
        %v3466 = vld [vmem:[#allocation10 + $0x258] sm:$0xff]
        %v3467 = vld [vmem:[#allocation10 + $0x260] sm:$0xff]
        %v3468 = vld [vmem:[#allocation10 + $0x268] sm:$0xff]
        %v3469 = vld [vmem:[#allocation10 + $0x270] sm:$0xff]
        %v3470 = vld [vmem:[#allocation10 + $0x278] sm:$0xff]
        %v3471 = vld [vmem:[#allocation10 + $0x280] sm:$0xff]
        %v3472 = vld [vmem:[#allocation10 + $0x288] sm:$0xff]
        %v3473 = vld [vmem:[#allocation10 + $0x290] sm:$0xff]
        %v3474 = vld [vmem:[#allocation10 + $0x298] sm:$0xff]
        %v3475 = vld [vmem:[#allocation10 + $0x2a0] sm:$0xff]
        %v3476 = vld [vmem:[#allocation10 + $0x2a8] sm:$0xff]
        %v3477 = vld [vmem:[#allocation10 + $0x2b0] sm:$0xff]
        %v3478 = vld [vmem:[#allocation10 + $0x2b8] sm:$0xff]
        %v3479 = vld [vmem:[#allocation10 + $0x2c0] sm:$0xff]
        %v3480 = vld [vmem:[#allocation10 + $0x2c8] sm:$0xff]
        %v3481 = vld [vmem:[#allocation10 + $0x2d0] sm:$0xff]
        %v3482 = vld [vmem:[#allocation10 + $0x2d8] sm:$0xff]
        %v3483 = vld [vmem:[#allocation10 + $0x2e0] sm:$0xff]
        %v3484 = vld [vmem:[#allocation10 + $0x2e8] sm:$0xff]
        %v3485 = vld [vmem:[#allocation10 + $0x2f0] sm:$0xff]
        %v3486 = vld [vmem:[#allocation10 + $0x2f8] sm:$0xff]
        %v3487 = vld [vmem:[#allocation10 + $0x300] sm:$0xff]
        %v3488 = vld [vmem:[#allocation10 + $0x308] sm:$0xff]
        %v3489 = vld [vmem:[#allocation10 + $0x310] sm:$0xff]
        %v3490 = vld [vmem:[#allocation10 + $0x318] sm:$0xff]
        %v3491 = vld [vmem:[#allocation10 + $0x320] sm:$0xff]
        %v3492 = vld [vmem:[#allocation10 + $0x328] sm:$0xff]
        %v3493 = vld [vmem:[#allocation10 + $0x330] sm:$0xff]
        %v3494 = vld [vmem:[#allocation10 + $0x338] sm:$0xff]
        %v3495 = vld [vmem:[#allocation10 + $0x340] sm:$0xff]
        %v3496 = vld [vmem:[#allocation10 + $0x348] sm:$0xff]
        %v3497 = vld [vmem:[#allocation10 + $0x350] sm:$0xff]
        %v3498 = vld [vmem:[#allocation10 + $0x358] sm:$0xff]
        %v3499 = vld [vmem:[#allocation10 + $0x360] sm:$0xff]
        %v3500 = vld [vmem:[#allocation10 + $0x368] sm:$0xff]
        %v3501 = vld [vmem:[#allocation10 + $0x370] sm:$0xff]
        %v3502 = vld [vmem:[#allocation10 + $0x378] sm:$0xff]
        %v3503 = vld [vmem:[#allocation10 + $0x380] sm:$0xff]
        %v3504 = vld [vmem:[#allocation10 + $0x388] sm:$0xff]
        %v3505 = vld [vmem:[#allocation10 + $0x390] sm:$0xff]
        %v3506 = vld [vmem:[#allocation10 + $0x398] sm:$0xff]
        %v3507 = vld [vmem:[#allocation10 + $0x3a0] sm:$0xff]
        %v3508 = vld [vmem:[#allocation10 + $0x3a8] sm:$0xff]
        %v3509 = vld [vmem:[#allocation10 + $0x3b0] sm:$0xff]
        %v3510 = vld [vmem:[#allocation10 + $0x3b8] sm:$0xff]
        %v3511 = vld [vmem:[#allocation10 + $0x3c0] sm:$0xff]
        %v3512 = vld [vmem:[#allocation10 + $0x3c8] sm:$0xff]
        %v3513 = vld [vmem:[#allocation10 + $0x3d0] sm:$0xff]
        %v3514 = vld [vmem:[#allocation10 + $0x3d8] sm:$0xff]
        %v3515 = vld [vmem:[#allocation10 + $0x3e0] sm:$0xff]
        %v3516 = vld [vmem:[#allocation10 + $0x3e8] sm:$0xff]
        %v3517 = vld [vmem:[#allocation10 + $0x3f0] sm:$0xff]
        %v3518 = vld [vmem:[#allocation10 + $0x3f8] sm:$0xff]
        %v3519 = vld [vmem:[#allocation10 + $0x400] sm:$0xff]
        %v3520 = vld [vmem:[#allocation10 + $0x408] sm:$0xff]
        %v3521 = vld [vmem:[#allocation10 + $0x410] sm:$0xff]
        %v3522 = vld [vmem:[#allocation10 + $0x418] sm:$0xff]
        %v3523 = vld [vmem:[#allocation10 + $0x420] sm:$0xff]
        %v3524 = vld [vmem:[#allocation10 + $0x428] sm:$0xff]
        %v3525 = vld [vmem:[#allocation10 + $0x430] sm:$0xff]
        %v3526 = vld [vmem:[#allocation10 + $0x438] sm:$0xff]
        %v3527 = vld [vmem:[#allocation10 + $0x440] sm:$0xff]
        %v3528 = vld [vmem:[#allocation10 + $0x448] sm:$0xff]
        %v3529 = vld [vmem:[#allocation10 + $0x450] sm:$0xff]
        %v3530 = vld [vmem:[#allocation10 + $0x458] sm:$0xff]
        %v3531 = vld [vmem:[#allocation10 + $0x460] sm:$0xff]
        %v3532 = vld [vmem:[#allocation10 + $0x468] sm:$0xff]
        %v3533 = vld [vmem:[#allocation10 + $0x470] sm:$0xff]
        %v3534 = vld [vmem:[#allocation10 + $0x478] sm:$0xff]
        %v3535 = vld [vmem:[#allocation10 + $0x480] sm:$0xff]
        %v3536 = vld [vmem:[#allocation10 + $0x488] sm:$0xff]
        %v3537 = vld [vmem:[#allocation10 + $0x490] sm:$0xff]
        %v3538 = vld [vmem:[#allocation10 + $0x498] sm:$0xff]
        %v3539 = vld [vmem:[#allocation10 + $0x4a0] sm:$0xff]
        %v3540 = vld [vmem:[#allocation10 + $0x4a8] sm:$0xff]
        %v3541 = vld [vmem:[#allocation10 + $0x4b0] sm:$0xff]
        %v3542 = vld [vmem:[#allocation10 + $0x4b8] sm:$0xff]
        %v3543 = vld [vmem:[#allocation10 + $0x4c0] sm:$0xff]
        %v3544 = vld [vmem:[#allocation10 + $0x4c8] sm:$0xff]
        %v3545 = vld [vmem:[#allocation10 + $0x4d0] sm:$0xff]
        %v3546 = vld [vmem:[#allocation10 + $0x4d8] sm:$0xff]
        %v3547 = vld [vmem:[#allocation10 + $0x4e0] sm:$0xff]
        %v3548 = vld [vmem:[#allocation10 + $0x4e8] sm:$0xff]
        %v3549 = vld [vmem:[#allocation10 + $0x4f0] sm:$0xff]
        %v3550 = vld [vmem:[#allocation10 + $0x4f8] sm:$0xff]
        %v3551 = vld [vmem:[#allocation10 + $0x500] sm:$0xff]
        %v3552 = vld [vmem:[#allocation10 + $0x508] sm:$0xff]
        %v3553 = vld [vmem:[#allocation10 + $0x510] sm:$0xff]
        %v3554 = vld [vmem:[#allocation10 + $0x518] sm:$0xff]
        %v3555 = vld [vmem:[#allocation10 + $0x520] sm:$0xff]
        %v3556 = vld [vmem:[#allocation10 + $0x528] sm:$0xff]
        %v3557 = vld [vmem:[#allocation10 + $0x530] sm:$0xff]
        %v3558 = vld [vmem:[#allocation10 + $0x538] sm:$0xff]
        %v3559 = vld [vmem:[#allocation10 + $0x540] sm:$0xff]
        %v3560 = vld [vmem:[#allocation10 + $0x548] sm:$0xff]
        %v3561 = vld [vmem:[#allocation10 + $0x550] sm:$0xff]
        %v3562 = vld [vmem:[#allocation10 + $0x558] sm:$0xff]
        %v3563 = vld [vmem:[#allocation10 + $0x560] sm:$0xff]
        %v3564 = vld [vmem:[#allocation10 + $0x568] sm:$0xff]
        %v3565 = vld [vmem:[#allocation10 + $0x570] sm:$0xff]
        %v3566 = vld [vmem:[#allocation10 + $0x578] sm:$0xff]
        %v3567 = vld [vmem:[#allocation10 + $0x580] sm:$0xff]
        %v3568 = vld [vmem:[#allocation10 + $0x588] sm:$0xff]
        %v3569 = vld [vmem:[#allocation10 + $0x590] sm:$0xff]
        %v3570 = vld [vmem:[#allocation10 + $0x598] sm:$0xff]
        %v3571 = vld [vmem:[#allocation10 + $0x5a0] sm:$0xff]
        %v3572 = vld [vmem:[#allocation10 + $0x5a8] sm:$0xff]
        %v3573 = vld [vmem:[#allocation10 + $0x5b0] sm:$0xff]
        %v3574 = vld [vmem:[#allocation10 + $0x5b8] sm:$0xff]
        %v3575 = vld [vmem:[#allocation10 + $0x5c0] sm:$0xff]
        %v3576 = vld [vmem:[#allocation10 + $0x5c8] sm:$0xff]
        %v3577 = vld [vmem:[#allocation10 + $0x5d0] sm:$0xff]
        %v3578 = vld [vmem:[#allocation10 + $0x5d8] sm:$0xff]
        %v3579 = vld [vmem:[#allocation10 + $0x5e0] sm:$0xff]
        %v3580 = vld [vmem:[#allocation10 + $0x5e8] sm:$0xff]
        %v3581 = vld [vmem:[#allocation10 + $0x5f0] sm:$0xff]
        %v3582 = vld [vmem:[#allocation10 + $0x5f8] sm:$0xff]
        %v3583 = vld [vmem:[#allocation10 + $0x600] sm:$0xff]
        %v3584 = vld [vmem:[#allocation10 + $0x608] sm:$0xff]
        %v3585 = vld [vmem:[#allocation10 + $0x610] sm:$0xff]
        %v3586 = vld [vmem:[#allocation10 + $0x618] sm:$0xff]
        %v3587 = vld [vmem:[#allocation10 + $0x620] sm:$0xff]
        %v3588 = vld [vmem:[#allocation10 + $0x628] sm:$0xff]
        %v3589 = vld [vmem:[#allocation10 + $0x630] sm:$0xff]
        %v3590 = vld [vmem:[#allocation10 + $0x638] sm:$0xff]
        %v3591 = vld [vmem:[#allocation10 + $0x640] sm:$0xff]
        %v3592 = vld [vmem:[#allocation10 + $0x648] sm:$0xff]
        %v3593 = vld [vmem:[#allocation10 + $0x650] sm:$0xff]
        %v3594 = vld [vmem:[#allocation10 + $0x658] sm:$0xff]
        %v3595 = vld [vmem:[#allocation10 + $0x660] sm:$0xff]
        %v3596 = vld [vmem:[#allocation10 + $0x668] sm:$0xff]
        %v3597 = vld [vmem:[#allocation10 + $0x670] sm:$0xff]
        %v3598 = vld [vmem:[#allocation10 + $0x678] sm:$0xff]
        %v3599 = vld [vmem:[#allocation10 + $0x680] sm:$0xff]
        %v3600 = vld [vmem:[#allocation10 + $0x688] sm:$0xff]
        %v3601 = vld [vmem:[#allocation10 + $0x690] sm:$0xff]
        %v3602 = vld [vmem:[#allocation10 + $0x698] sm:$0xff]
        %v3603 = vld [vmem:[#allocation10 + $0x6a0] sm:$0xff]
        %v3604 = vld [vmem:[#allocation10 + $0x6a8] sm:$0xff]
        %v3605 = vld [vmem:[#allocation10 + $0x6b0] sm:$0xff]
        %v3606 = vld [vmem:[#allocation10 + $0x6b8] sm:$0xff]
        %v3607 = vld [vmem:[#allocation10 + $0x6c0] sm:$0xff]
        %v3608 = vld [vmem:[#allocation10 + $0x6c8] sm:$0xff]
        %v3609 = vld [vmem:[#allocation10 + $0x6d0] sm:$0xff]
        %v3610 = vld [vmem:[#allocation10 + $0x6d8] sm:$0xff]
        %v3611 = vld [vmem:[#allocation10 + $0x6e0] sm:$0xff]
        %v3612 = vld [vmem:[#allocation10 + $0x6e8] sm:$0xff]
        %v3613 = vld [vmem:[#allocation10 + $0x6f0] sm:$0xff]
        %v3614 = vld [vmem:[#allocation10 + $0x6f8] sm:$0xff]
        %v3615 = vld [vmem:[#allocation10 + $0x700] sm:$0xff]
        %v3616 = vld [vmem:[#allocation10 + $0x708] sm:$0xff]
        %v3617 = vld [vmem:[#allocation10 + $0x710] sm:$0xff]
        %v3618 = vld [vmem:[#allocation10 + $0x718] sm:$0xff]
        %v3619 = vld [vmem:[#allocation10 + $0x720] sm:$0xff]
        %v3620 = vld [vmem:[#allocation10 + $0x728] sm:$0xff]
        %v3621 = vld [vmem:[#allocation10 + $0x730] sm:$0xff]
        %v3622 = vld [vmem:[#allocation10 + $0x738] sm:$0xff]
        %v3623 = vld [vmem:[#allocation10 + $0x740] sm:$0xff]
        %v3624 = vld [vmem:[#allocation10 + $0x748] sm:$0xff]
        %v3625 = vld [vmem:[#allocation10 + $0x750] sm:$0xff]
        %v3626 = vld [vmem:[#allocation10 + $0x758] sm:$0xff]
        %v3627 = vld [vmem:[#allocation10 + $0x760] sm:$0xff]
        %v3628 = vld [vmem:[#allocation10 + $0x768] sm:$0xff]
        %v3629 = vld [vmem:[#allocation10 + $0x770] sm:$0xff]
        %v3630 = vld [vmem:[#allocation10 + $0x778] sm:$0xff]
        %v3631 = vld [vmem:[#allocation10 + $0x780] sm:$0xff]
        %v3632 = vld [vmem:[#allocation10 + $0x788] sm:$0xff]
        %v3633 = vld [vmem:[#allocation10 + $0x790] sm:$0xff]
        %v3634 = vld [vmem:[#allocation10 + $0x798] sm:$0xff]
        %v3635 = vld [vmem:[#allocation10 + $0x7a0] sm:$0xff]
        %v3636 = vld [vmem:[#allocation10 + $0x7a8] sm:$0xff]
        %v3637 = vld [vmem:[#allocation10 + $0x7b0] sm:$0xff]
        %v3638 = vld [vmem:[#allocation10 + $0x7b8] sm:$0xff]
        %v3639 = vld [vmem:[#allocation10 + $0x7c0] sm:$0xff]
        %v3640 = vld [vmem:[#allocation10 + $0x7c8] sm:$0xff]
        %v3641 = vld [vmem:[#allocation10 + $0x7d0] sm:$0xff]
        %v3642 = vld [vmem:[#allocation10 + $0x7d8] sm:$0xff]
        %v3643 = vld [vmem:[#allocation10 + $0x7e0] sm:$0xff]
        %v3644 = vld [vmem:[#allocation10 + $0x7e8] sm:$0xff]
        %v3645 = vld [vmem:[#allocation10 + $0x7f0] sm:$0xff]
        %v3646 = vld [vmem:[#allocation10 + $0x7f8] sm:$0xff]
        %3647 = vmatprep.subr.mxu0 %v3512
        %3648 = vmatpush1.msra.mxu0 %v3511
        %3649 = vmatprep.subr.mxu0 %v3504
        %3650 = vmatpush1.msra.mxu0 %v3503
        %3651 = vmatprep.subr.mxu0 %v3496
        %3652 = vmatpush1.msra.mxu0 %v3495
        %3653 = vmatprep.subr.mxu0 %v3488
        %3654 = vmatpush1.msra.mxu0 %v3487
        %3655 = vmatprep.subr.mxu0 %v3480
        %3656 = vmatpush1.msra.mxu0 %v3479
        %3657 = vmatprep.subr.mxu0 %v3472
        %3658 = vmatpush1.msra.mxu0 %v3471
        %3659 = vmatprep.subr.mxu0 %v3464
        %3660 = vmatpush1.msra.mxu0 %v3463
        %3661 = vmatprep.subr.mxu0 %v3456
        %3662 = vmatpush1.msra.mxu0 %v3455
        %3663 = vmatprep.subr.mxu0 %v3448
        %3664 = vmatpush1.msra.mxu0 %v3447
        %3665 = vmatprep.subr.mxu0 %v3440
        %3666 = vmatpush1.msra.mxu0 %v3439
        %3667 = vmatprep.subr.mxu0 %v3432
        %3668 = vmatpush1.msra.mxu0 %v3431
        %3669 = vmatprep.subr.mxu0 %v3424
        %3670 = vmatpush1.msra.mxu0 %v3423
        %3671 = vmatprep.subr.mxu0 %v3416
        %3672 = vmatpush1.msra.mxu0 %v3415
        %3673 = vmatprep.subr.mxu0 %v3408
        %3674 = vmatpush1.msra.mxu0 %v3407
        %3675 = vmatprep.subr.mxu0 %v3400
        %3676 = vmatpush1.msra.mxu0 %v3399
        %3677 = vmatprep.subr.mxu0 %v3392
        %3678 = vmatpush1.msra.mxu0 %v3391
        %3679 = vmatprep.subr.mxu0 %v3640
        %3680 = vmatpush2.msra.mxu0 %v3639
        %3681 = vmatprep.subr.mxu0 %v3632
        %3682 = vmatpush2.msra.mxu0 %v3631
        %3683 = vmatprep.subr.mxu0 %v3624
        %3684 = vmatpush2.msra.mxu0 %v3623
        %3685 = vmatprep.subr.mxu0 %v3616
        %3686 = vmatpush2.msra.mxu0 %v3615
        %3687 = vmatprep.subr.mxu0 %v3608
        %3688 = vmatpush2.msra.mxu0 %v3607
        %3689 = vmatprep.subr.mxu0 %v3600
        %3690 = vmatpush2.msra.mxu0 %v3599
        %3691 = vmatprep.subr.mxu0 %v3592
        %3692 = vmatpush2.msra.mxu0 %v3591
        %3693 = vmatprep.subr.mxu0 %v3584
        %3694 = vmatpush2.msra.mxu0 %v3583
        %3695 = vmatprep.subr.mxu0 %v3576
        %3696 = vmatpush2.msra.mxu0 %v3575
        %3697 = vmatprep.subr.mxu0 %v3568
        %3698 = vmatpush2.msra.mxu0 %v3567
        %3699 = vmatprep.subr.mxu0 %v3560
        %3700 = vmatpush2.msra.mxu0 %v3559
        %3701 = vmatprep.subr.mxu0 %v3552
        %3702 = vmatpush2.msra.mxu0 %v3551
        %3703 = vmatprep.subr.mxu0 %v3544
        %3704 = vmatpush2.msra.mxu0 %v3543
        %3705 = vmatprep.subr.mxu0 %v3536
        %3706 = vmatpush2.msra.mxu0 %v3535
        %3707 = vmatprep.subr.mxu0 %v3528
        %3708 = vmatpush2.msra.mxu0 %v3527
        %3709 = vmatprep.subr.mxu0 %v3520
        %3710 = vmatpush2.msra.mxu0 %v3519
        %3711 = vmatprep.mubr.f32.mxu0 %v3382
        %3712 = vmatmul.mubr.f32.gmra.mxu0 %v3381
        %v3713 = vpop.f32.mrf.mxu0
        %v3714 = vadd.f32 0.0, %v3713
        %v3715 = vpop.f32.mrf.mxu0
        %v3716 = vadd.f32 0.0, %v3715
        %3717 = vdwg.mxu0
        %3718 = vmatprep.subr.mxu0 %v3514
        %3719 = vmatpush1.msra.mxu0 %v3513
        %3720 = vmatprep.subr.mxu0 %v3506
        %3721 = vmatpush1.msra.mxu0 %v3505
        %3722 = vmatprep.subr.mxu0 %v3498
        %3723 = vmatpush1.msra.mxu0 %v3497
        %3724 = vmatprep.subr.mxu0 %v3490
        %3725 = vmatpush1.msra.mxu0 %v3489
        %3726 = vmatprep.subr.mxu0 %v3482
        %3727 = vmatpush1.msra.mxu0 %v3481
        %3728 = vmatprep.subr.mxu0 %v3474
        %3729 = vmatpush1.msra.mxu0 %v3473
        %3730 = vmatprep.subr.mxu0 %v3466
        %3731 = vmatpush1.msra.mxu0 %v3465
        %3732 = vmatprep.subr.mxu0 %v3458
        %3733 = vmatpush1.msra.mxu0 %v3457
        %3734 = vmatprep.subr.mxu0 %v3450
        %3735 = vmatpush1.msra.mxu0 %v3449
        %3736 = vmatprep.subr.mxu0 %v3442
        %3737 = vmatpush1.msra.mxu0 %v3441
        %3738 = vmatprep.subr.mxu0 %v3434
        %3739 = vmatpush1.msra.mxu0 %v3433
        %3740 = vmatprep.subr.mxu0 %v3426
        %3741 = vmatpush1.msra.mxu0 %v3425
        %3742 = vmatprep.subr.mxu0 %v3418
        %3743 = vmatpush1.msra.mxu0 %v3417
        %3744 = vmatprep.subr.mxu0 %v3410
        %3745 = vmatpush1.msra.mxu0 %v3409
        %3746 = vmatprep.subr.mxu0 %v3402
        %3747 = vmatpush1.msra.mxu0 %v3401
        %3748 = vmatprep.subr.mxu0 %v3394
        %3749 = vmatpush1.msra.mxu0 %v3393
        %3750 = vmatprep.subr.mxu0 %v3642
        %3751 = vmatpush2.msra.mxu0 %v3641
        %3752 = vmatprep.subr.mxu0 %v3634
        %3753 = vmatpush2.msra.mxu0 %v3633
        %3754 = vmatprep.subr.mxu0 %v3626
        %3755 = vmatpush2.msra.mxu0 %v3625
        %3756 = vmatprep.subr.mxu0 %v3618
        %3757 = vmatpush2.msra.mxu0 %v3617
        %3758 = vmatprep.subr.mxu0 %v3610
        %3759 = vmatpush2.msra.mxu0 %v3609
        %3760 = vmatprep.subr.mxu0 %v3602
        %3761 = vmatpush2.msra.mxu0 %v3601
        %3762 = vmatprep.subr.mxu0 %v3594
        %3763 = vmatpush2.msra.mxu0 %v3593
        %3764 = vmatprep.subr.mxu0 %v3586
        %3765 = vmatpush2.msra.mxu0 %v3585
        %3766 = vmatprep.subr.mxu0 %v3578
        %3767 = vmatpush2.msra.mxu0 %v3577
        %3768 = vmatprep.subr.mxu0 %v3570
        %3769 = vmatpush2.msra.mxu0 %v3569
        %3770 = vmatprep.subr.mxu0 %v3562
        %3771 = vmatpush2.msra.mxu0 %v3561
        %3772 = vmatprep.subr.mxu0 %v3554
        %3773 = vmatpush2.msra.mxu0 %v3553
        %3774 = vmatprep.subr.mxu0 %v3546
        %3775 = vmatpush2.msra.mxu0 %v3545
        %3776 = vmatprep.subr.mxu0 %v3538
        %3777 = vmatpush2.msra.mxu0 %v3537
        %3778 = vmatprep.subr.mxu0 %v3530
        %3779 = vmatpush2.msra.mxu0 %v3529
        %3780 = vmatprep.subr.mxu0 %v3522
        %3781 = vmatpush2.msra.mxu0 %v3521
        %3782 = vmatprep.mubr.f32.mxu0 %v3382
        %3783 = vmatmul.mubr.f32.gmra.mxu0 %v3381
        %v3784 = vpop.f32.mrf.mxu0
        %v3785 = vadd.f32 0.0, %v3784
        %v3786 = vpop.f32.mrf.mxu0
        %v3787 = vadd.f32 0.0, %v3786
        %3788 = vdwg.mxu0
        %3789 = vmatprep.subr.mxu0 %v3516
        %3790 = vmatpush1.msra.mxu0 %v3515
        %3791 = vmatprep.subr.mxu0 %v3508
        %3792 = vmatpush1.msra.mxu0 %v3507
        %3793 = vmatprep.subr.mxu0 %v3500
        %3794 = vmatpush1.msra.mxu0 %v3499
        %3795 = vmatprep.subr.mxu0 %v3492
        %3796 = vmatpush1.msra.mxu0 %v3491
        %3797 = vmatprep.subr.mxu0 %v3484
        %3798 = vmatpush1.msra.mxu0 %v3483
        %3799 = vmatprep.subr.mxu0 %v3476
        %3800 = vmatpush1.msra.mxu0 %v3475
        %3801 = vmatprep.subr.mxu0 %v3468
        %3802 = vmatpush1.msra.mxu0 %v3467
        %3803 = vmatprep.subr.mxu0 %v3460
        %3804 = vmatpush1.msra.mxu0 %v3459
        %3805 = vmatprep.subr.mxu0 %v3452
        %3806 = vmatpush1.msra.mxu0 %v3451
        %3807 = vmatprep.subr.mxu0 %v3444
        %3808 = vmatpush1.msra.mxu0 %v3443
        %3809 = vmatprep.subr.mxu0 %v3436
        %3810 = vmatpush1.msra.mxu0 %v3435
        %3811 = vmatprep.subr.mxu0 %v3428
        %3812 = vmatpush1.msra.mxu0 %v3427
        %3813 = vmatprep.subr.mxu0 %v3420
        %3814 = vmatpush1.msra.mxu0 %v3419
        %3815 = vmatprep.subr.mxu0 %v3412
        %3816 = vmatpush1.msra.mxu0 %v3411
        %3817 = vmatprep.subr.mxu0 %v3404
        %3818 = vmatpush1.msra.mxu0 %v3403
        %3819 = vmatprep.subr.mxu0 %v3396
        %3820 = vmatpush1.msra.mxu0 %v3395
        %3821 = vmatprep.subr.mxu0 %v3644
        %3822 = vmatpush2.msra.mxu0 %v3643
        %3823 = vmatprep.subr.mxu0 %v3636
        %3824 = vmatpush2.msra.mxu0 %v3635
        %3825 = vmatprep.subr.mxu0 %v3628
        %3826 = vmatpush2.msra.mxu0 %v3627
        %3827 = vmatprep.subr.mxu0 %v3620
        %3828 = vmatpush2.msra.mxu0 %v3619
        %3829 = vmatprep.subr.mxu0 %v3612
        %3830 = vmatpush2.msra.mxu0 %v3611
        %3831 = vmatprep.subr.mxu0 %v3604
        %3832 = vmatpush2.msra.mxu0 %v3603
        %3833 = vmatprep.subr.mxu0 %v3596
        %3834 = vmatpush2.msra.mxu0 %v3595
        %3835 = vmatprep.subr.mxu0 %v3588
        %3836 = vmatpush2.msra.mxu0 %v3587
        %3837 = vmatprep.subr.mxu0 %v3580
        %3838 = vmatpush2.msra.mxu0 %v3579
        %3839 = vmatprep.subr.mxu0 %v3572
        %3840 = vmatpush2.msra.mxu0 %v3571
        %3841 = vmatprep.subr.mxu0 %v3564
        %3842 = vmatpush2.msra.mxu0 %v3563
        %3843 = vmatprep.subr.mxu0 %v3556
        %3844 = vmatpush2.msra.mxu0 %v3555
        %3845 = vmatprep.subr.mxu0 %v3548
        %3846 = vmatpush2.msra.mxu0 %v3547
        %3847 = vmatprep.subr.mxu0 %v3540
        %3848 = vmatpush2.msra.mxu0 %v3539
        %3849 = vmatprep.subr.mxu0 %v3532
        %3850 = vmatpush2.msra.mxu0 %v3531
        %3851 = vmatprep.subr.mxu0 %v3524
        %3852 = vmatpush2.msra.mxu0 %v3523
        %3853 = vmatprep.mubr.f32.mxu0 %v3382
        %3854 = vmatmul.mubr.f32.gmra.mxu0 %v3381
        %v3855 = vpop.f32.mrf.mxu0
        %v3856 = vadd.f32 0.0, %v3855
        %v3857 = vpop.f32.mrf.mxu0
        %v3858 = vadd.f32 0.0, %v3857
        %3859 = vdwg.mxu0
        %3860 = vmatprep.subr.mxu0 %v3518
        %3861 = vmatpush1.msra.mxu0 %v3517
        %3862 = vmatprep.subr.mxu0 %v3510
        %3863 = vmatpush1.msra.mxu0 %v3509
        %3864 = vmatprep.subr.mxu0 %v3502
        %3865 = vmatpush1.msra.mxu0 %v3501
        %3866 = vmatprep.subr.mxu0 %v3494
        %3867 = vmatpush1.msra.mxu0 %v3493
        %3868 = vmatprep.subr.mxu0 %v3486
        %3869 = vmatpush1.msra.mxu0 %v3485
        %3870 = vmatprep.subr.mxu0 %v3478
        %3871 = vmatpush1.msra.mxu0 %v3477
        %3872 = vmatprep.subr.mxu0 %v3470
        %3873 = vmatpush1.msra.mxu0 %v3469
        %3874 = vmatprep.subr.mxu0 %v3462
        %3875 = vmatpush1.msra.mxu0 %v3461
        %3876 = vmatprep.subr.mxu0 %v3454
        %3877 = vmatpush1.msra.mxu0 %v3453
        %3878 = vmatprep.subr.mxu0 %v3446
        %3879 = vmatpush1.msra.mxu0 %v3445
        %3880 = vmatprep.subr.mxu0 %v3438
        %3881 = vmatpush1.msra.mxu0 %v3437
        %3882 = vmatprep.subr.mxu0 %v3430
        %3883 = vmatpush1.msra.mxu0 %v3429
        %3884 = vmatprep.subr.mxu0 %v3422
        %3885 = vmatpush1.msra.mxu0 %v3421
        %3886 = vmatprep.subr.mxu0 %v3414
        %3887 = vmatpush1.msra.mxu0 %v3413
        %3888 = vmatprep.subr.mxu0 %v3406
        %3889 = vmatpush1.msra.mxu0 %v3405
        %3890 = vmatprep.subr.mxu0 %v3398
        %3891 = vmatpush1.msra.mxu0 %v3397
        %3892 = vmatprep.subr.mxu0 %v3646
        %3893 = vmatpush2.msra.mxu0 %v3645
        %3894 = vmatprep.subr.mxu0 %v3638
        %3895 = vmatpush2.msra.mxu0 %v3637
        %3896 = vmatprep.subr.mxu0 %v3630
        %3897 = vmatpush2.msra.mxu0 %v3629
        %3898 = vmatprep.subr.mxu0 %v3622
        %3899 = vmatpush2.msra.mxu0 %v3621
        %3900 = vmatprep.subr.mxu0 %v3614
        %3901 = vmatpush2.msra.mxu0 %v3613
        %3902 = vmatprep.subr.mxu0 %v3606
        %3903 = vmatpush2.msra.mxu0 %v3605
        %3904 = vmatprep.subr.mxu0 %v3598
        %3905 = vmatpush2.msra.mxu0 %v3597
        %3906 = vmatprep.subr.mxu0 %v3590
        %3907 = vmatpush2.msra.mxu0 %v3589
        %3908 = vmatprep.subr.mxu0 %v3582
        %3909 = vmatpush2.msra.mxu0 %v3581
        %3910 = vmatprep.subr.mxu0 %v3574
        %3911 = vmatpush2.msra.mxu0 %v3573
        %3912 = vmatprep.subr.mxu0 %v3566
        %3913 = vmatpush2.msra.mxu0 %v3565
        %3914 = vmatprep.subr.mxu0 %v3558
        %3915 = vmatpush2.msra.mxu0 %v3557
        %3916 = vmatprep.subr.mxu0 %v3550
        %3917 = vmatpush2.msra.mxu0 %v3549
        %3918 = vmatprep.subr.mxu0 %v3542
        %3919 = vmatpush2.msra.mxu0 %v3541
        %3920 = vmatprep.subr.mxu0 %v3534
        %3921 = vmatpush2.msra.mxu0 %v3533
        %3922 = vmatprep.subr.mxu0 %v3526
        %3923 = vmatpush2.msra.mxu0 %v3525
        %3924 = vmatprep.mubr.f32.mxu0 %v3382
        %3925 = vmatmul.mubr.f32.gmra.mxu0 %v3381
        %v3926 = vpop.f32.mrf.mxu0
        %v3927 = vadd.f32 0.0, %v3926
        %v3928 = vpop.f32.mrf.mxu0
        %v3929 = vadd.f32 0.0, %v3928
        %3930 = vdwg.mxu0
        %v3931 = vadd.f32 %v3383, %v3714
        %v3932 = vadd.f32 %v3384, %v3716
        %v3933 = vadd.f32 %v3385, %v3785
        %v3934 = vadd.f32 %v3386, %v3787
        %v3935 = vadd.f32 %v3387, %v3856
        %v3936 = vadd.f32 %v3388, %v3858
        %v3937 = vadd.f32 %v3389, %v3927
        %v3938 = vadd.f32 %v3390, %v3929
        %v3939 = vxor.u32 %v3931, 2147483648
        %v3940 = vxor.u32 %v3932, 2147483648
        %v3941 = vmul.f32 %v3939, 1.442695
        %v3942 = vpow.pop %v3941
        %v3943 = vmul.f32 %v3940, 1.442695
        %v3944 = vpow.pop %v3943
        %v3945 = vadd.f32 %v3942, 1.0
        %v3946 = vadd.f32 %v3944, 1.0
        %v3947 = vrcp.pop %v3945
        %v3948 = vmul.f32 1.0, %v3947
        %v3949 = vrcp.pop %v3946
        %v3950 = vmul.f32 1.0, %v3949
        %v3951 = vxor.u32 %v3933, 2147483648
        %v3952 = vxor.u32 %v3934, 2147483648
        %v3953 = vmul.f32 %v3951, 1.442695
        %v3954 = vpow.pop %v3953
        %v3955 = vmul.f32 %v3952, 1.442695
        %v3956 = vpow.pop %v3955
        %v3957 = vadd.f32 %v3954, 1.0
        %v3958 = vadd.f32 %v3956, 1.0
        %v3959 = vrcp.pop %v3957
        %v3960 = vmul.f32 1.0, %v3959
        %v3961 = vrcp.pop %v3958
        %v3962 = vmul.f32 1.0, %v3961
        %v3963 = vtanh.pop %v3935
        %v3964 = vtanh.pop %v3936
        %v3965 = vxor.u32 %v3937, 2147483648
        %v3966 = vxor.u32 %v3938, 2147483648
        %v3967 = vmul.f32 %v3965, 1.442695
        %v3968 = vpow.pop %v3967
        %v3969 = vmul.f32 %v3966, 1.442695
        %v3970 = vpow.pop %v3969
        %v3971 = vadd.f32 %v3968, 1.0
        %v3972 = vadd.f32 %v3970, 1.0
        %v3973 = vrcp.pop %v3971
        %v3974 = vmul.f32 1.0, %v3973
        %v3975 = vrcp.pop %v3972
        %v3976 = vmul.f32 1.0, %v3975
        %v3977 = vld [vmem:[#allocation3] sm:$0xff]
        %v3978 = vld [vmem:[#allocation3 + $0x8] sm:$0xff]
        %v3979 = vmul.f32 %v3960, %v3977
        %v3980 = vmul.f32 %v3962, %v3978
        %v3981 = vmul.f32 %v3948, %v3963
        %v3982 = vmul.f32 %v3950, %v3964
        %v3983 = vadd.f32 %v3979, %v3981
        %v3984 = vadd.f32 %v3980, %v3982
        %3985 = vst [vmem:[#allocation3] sm:$0xff] %v3983
        %3986 = vst [vmem:[#allocation3 + $0x8] sm:$0xff] %v3984
        %v3987 = vtanh.pop %v3983
        %v3988 = vtanh.pop %v3984
        %v3989 = vmul.f32 %v3974, %v3987
        %v3990 = vmul.f32 %v3976, %v3988
        %3991 = vst [vmem:[#allocation2] sm:$0xff] %v3989
        %3992 = vst [vmem:[#allocation2 + $0x8] sm:$0xff] %v3990
        %v3993 = vld [vmem:[#allocation2] sm:$0xff]
        %v3994 = vld [vmem:[#allocation2 + $0x8] sm:$0xff]
        %v3995 = vld [vmem:[#allocation4 + $0x140] sm:$0xff]
        %v3996 = vld [vmem:[#allocation4 + $0x148] sm:$0xff]
        %v3997 = vld [vmem:[#allocation4 + $0x150] sm:$0xff]
        %v3998 = vld [vmem:[#allocation4 + $0x158] sm:$0xff]
        %v3999 = vld [vmem:[#allocation4 + $0x160] sm:$0xff]
        %v4000 = vld [vmem:[#allocation4 + $0x168] sm:$0xff]
        %v4001 = vld [vmem:[#allocation4 + $0x170] sm:$0xff]
        %v4002 = vld [vmem:[#allocation4 + $0x178] sm:$0xff]
        %v4003 = vld [vmem:[#allocation10] sm:$0xff]
        %v4004 = vld [vmem:[#allocation10 + $0x8] sm:$0xff]
        %v4005 = vld [vmem:[#allocation10 + $0x10] sm:$0xff]
        %v4006 = vld [vmem:[#allocation10 + $0x18] sm:$0xff]
        %v4007 = vld [vmem:[#allocation10 + $0x20] sm:$0xff]
        %v4008 = vld [vmem:[#allocation10 + $0x28] sm:$0xff]
        %v4009 = vld [vmem:[#allocation10 + $0x30] sm:$0xff]
        %v4010 = vld [vmem:[#allocation10 + $0x38] sm:$0xff]
        %v4011 = vld [vmem:[#allocation10 + $0x40] sm:$0xff]
        %v4012 = vld [vmem:[#allocation10 + $0x48] sm:$0xff]
        %v4013 = vld [vmem:[#allocation10 + $0x50] sm:$0xff]
        %v4014 = vld [vmem:[#allocation10 + $0x58] sm:$0xff]
        %v4015 = vld [vmem:[#allocation10 + $0x60] sm:$0xff]
        %v4016 = vld [vmem:[#allocation10 + $0x68] sm:$0xff]
        %v4017 = vld [vmem:[#allocation10 + $0x70] sm:$0xff]
        %v4018 = vld [vmem:[#allocation10 + $0x78] sm:$0xff]
        %v4019 = vld [vmem:[#allocation10 + $0x80] sm:$0xff]
        %v4020 = vld [vmem:[#allocation10 + $0x88] sm:$0xff]
        %v4021 = vld [vmem:[#allocation10 + $0x90] sm:$0xff]
        %v4022 = vld [vmem:[#allocation10 + $0x98] sm:$0xff]
        %v4023 = vld [vmem:[#allocation10 + $0xa0] sm:$0xff]
        %v4024 = vld [vmem:[#allocation10 + $0xa8] sm:$0xff]
        %v4025 = vld [vmem:[#allocation10 + $0xb0] sm:$0xff]
        %v4026 = vld [vmem:[#allocation10 + $0xb8] sm:$0xff]
        %v4027 = vld [vmem:[#allocation10 + $0xc0] sm:$0xff]
        %v4028 = vld [vmem:[#allocation10 + $0xc8] sm:$0xff]
        %v4029 = vld [vmem:[#allocation10 + $0xd0] sm:$0xff]
        %v4030 = vld [vmem:[#allocation10 + $0xd8] sm:$0xff]
        %v4031 = vld [vmem:[#allocation10 + $0xe0] sm:$0xff]
        %v4032 = vld [vmem:[#allocation10 + $0xe8] sm:$0xff]
        %v4033 = vld [vmem:[#allocation10 + $0xf0] sm:$0xff]
        %v4034 = vld [vmem:[#allocation10 + $0xf8] sm:$0xff]
        %v4035 = vld [vmem:[#allocation10 + $0x100] sm:$0xff]
        %v4036 = vld [vmem:[#allocation10 + $0x108] sm:$0xff]
        %v4037 = vld [vmem:[#allocation10 + $0x110] sm:$0xff]
        %v4038 = vld [vmem:[#allocation10 + $0x118] sm:$0xff]
        %v4039 = vld [vmem:[#allocation10 + $0x120] sm:$0xff]
        %v4040 = vld [vmem:[#allocation10 + $0x128] sm:$0xff]
        %v4041 = vld [vmem:[#allocation10 + $0x130] sm:$0xff]
        %v4042 = vld [vmem:[#allocation10 + $0x138] sm:$0xff]
        %v4043 = vld [vmem:[#allocation10 + $0x140] sm:$0xff]
        %v4044 = vld [vmem:[#allocation10 + $0x148] sm:$0xff]
        %v4045 = vld [vmem:[#allocation10 + $0x150] sm:$0xff]
        %v4046 = vld [vmem:[#allocation10 + $0x158] sm:$0xff]
        %v4047 = vld [vmem:[#allocation10 + $0x160] sm:$0xff]
        %v4048 = vld [vmem:[#allocation10 + $0x168] sm:$0xff]
        %v4049 = vld [vmem:[#allocation10 + $0x170] sm:$0xff]
        %v4050 = vld [vmem:[#allocation10 + $0x178] sm:$0xff]
        %v4051 = vld [vmem:[#allocation10 + $0x180] sm:$0xff]
        %v4052 = vld [vmem:[#allocation10 + $0x188] sm:$0xff]
        %v4053 = vld [vmem:[#allocation10 + $0x190] sm:$0xff]
        %v4054 = vld [vmem:[#allocation10 + $0x198] sm:$0xff]
        %v4055 = vld [vmem:[#allocation10 + $0x1a0] sm:$0xff]
        %v4056 = vld [vmem:[#allocation10 + $0x1a8] sm:$0xff]
        %v4057 = vld [vmem:[#allocation10 + $0x1b0] sm:$0xff]
        %v4058 = vld [vmem:[#allocation10 + $0x1b8] sm:$0xff]
        %v4059 = vld [vmem:[#allocation10 + $0x1c0] sm:$0xff]
        %v4060 = vld [vmem:[#allocation10 + $0x1c8] sm:$0xff]
        %v4061 = vld [vmem:[#allocation10 + $0x1d0] sm:$0xff]
        %v4062 = vld [vmem:[#allocation10 + $0x1d8] sm:$0xff]
        %v4063 = vld [vmem:[#allocation10 + $0x1e0] sm:$0xff]
        %v4064 = vld [vmem:[#allocation10 + $0x1e8] sm:$0xff]
        %v4065 = vld [vmem:[#allocation10 + $0x1f0] sm:$0xff]
        %v4066 = vld [vmem:[#allocation10 + $0x1f8] sm:$0xff]
        %v4067 = vld [vmem:[#allocation10 + $0x200] sm:$0xff]
        %v4068 = vld [vmem:[#allocation10 + $0x208] sm:$0xff]
        %v4069 = vld [vmem:[#allocation10 + $0x210] sm:$0xff]
        %v4070 = vld [vmem:[#allocation10 + $0x218] sm:$0xff]
        %v4071 = vld [vmem:[#allocation10 + $0x220] sm:$0xff]
        %v4072 = vld [vmem:[#allocation10 + $0x228] sm:$0xff]
        %v4073 = vld [vmem:[#allocation10 + $0x230] sm:$0xff]
        %v4074 = vld [vmem:[#allocation10 + $0x238] sm:$0xff]
        %v4075 = vld [vmem:[#allocation10 + $0x240] sm:$0xff]
        %v4076 = vld [vmem:[#allocation10 + $0x248] sm:$0xff]
        %v4077 = vld [vmem:[#allocation10 + $0x250] sm:$0xff]
        %v4078 = vld [vmem:[#allocation10 + $0x258] sm:$0xff]
        %v4079 = vld [vmem:[#allocation10 + $0x260] sm:$0xff]
        %v4080 = vld [vmem:[#allocation10 + $0x268] sm:$0xff]
        %v4081 = vld [vmem:[#allocation10 + $0x270] sm:$0xff]
        %v4082 = vld [vmem:[#allocation10 + $0x278] sm:$0xff]
        %v4083 = vld [vmem:[#allocation10 + $0x280] sm:$0xff]
        %v4084 = vld [vmem:[#allocation10 + $0x288] sm:$0xff]
        %v4085 = vld [vmem:[#allocation10 + $0x290] sm:$0xff]
        %v4086 = vld [vmem:[#allocation10 + $0x298] sm:$0xff]
        %v4087 = vld [vmem:[#allocation10 + $0x2a0] sm:$0xff]
        %v4088 = vld [vmem:[#allocation10 + $0x2a8] sm:$0xff]
        %v4089 = vld [vmem:[#allocation10 + $0x2b0] sm:$0xff]
        %v4090 = vld [vmem:[#allocation10 + $0x2b8] sm:$0xff]
        %v4091 = vld [vmem:[#allocation10 + $0x2c0] sm:$0xff]
        %v4092 = vld [vmem:[#allocation10 + $0x2c8] sm:$0xff]
        %v4093 = vld [vmem:[#allocation10 + $0x2d0] sm:$0xff]
        %v4094 = vld [vmem:[#allocation10 + $0x2d8] sm:$0xff]
        %v4095 = vld [vmem:[#allocation10 + $0x2e0] sm:$0xff]
        %v4096 = vld [vmem:[#allocation10 + $0x2e8] sm:$0xff]
        %v4097 = vld [vmem:[#allocation10 + $0x2f0] sm:$0xff]
        %v4098 = vld [vmem:[#allocation10 + $0x2f8] sm:$0xff]
        %v4099 = vld [vmem:[#allocation10 + $0x300] sm:$0xff]
        %v4100 = vld [vmem:[#allocation10 + $0x308] sm:$0xff]
        %v4101 = vld [vmem:[#allocation10 + $0x310] sm:$0xff]
        %v4102 = vld [vmem:[#allocation10 + $0x318] sm:$0xff]
        %v4103 = vld [vmem:[#allocation10 + $0x320] sm:$0xff]
        %v4104 = vld [vmem:[#allocation10 + $0x328] sm:$0xff]
        %v4105 = vld [vmem:[#allocation10 + $0x330] sm:$0xff]
        %v4106 = vld [vmem:[#allocation10 + $0x338] sm:$0xff]
        %v4107 = vld [vmem:[#allocation10 + $0x340] sm:$0xff]
        %v4108 = vld [vmem:[#allocation10 + $0x348] sm:$0xff]
        %v4109 = vld [vmem:[#allocation10 + $0x350] sm:$0xff]
        %v4110 = vld [vmem:[#allocation10 + $0x358] sm:$0xff]
        %v4111 = vld [vmem:[#allocation10 + $0x360] sm:$0xff]
        %v4112 = vld [vmem:[#allocation10 + $0x368] sm:$0xff]
        %v4113 = vld [vmem:[#allocation10 + $0x370] sm:$0xff]
        %v4114 = vld [vmem:[#allocation10 + $0x378] sm:$0xff]
        %v4115 = vld [vmem:[#allocation10 + $0x380] sm:$0xff]
        %v4116 = vld [vmem:[#allocation10 + $0x388] sm:$0xff]
        %v4117 = vld [vmem:[#allocation10 + $0x390] sm:$0xff]
        %v4118 = vld [vmem:[#allocation10 + $0x398] sm:$0xff]
        %v4119 = vld [vmem:[#allocation10 + $0x3a0] sm:$0xff]
        %v4120 = vld [vmem:[#allocation10 + $0x3a8] sm:$0xff]
        %v4121 = vld [vmem:[#allocation10 + $0x3b0] sm:$0xff]
        %v4122 = vld [vmem:[#allocation10 + $0x3b8] sm:$0xff]
        %v4123 = vld [vmem:[#allocation10 + $0x3c0] sm:$0xff]
        %v4124 = vld [vmem:[#allocation10 + $0x3c8] sm:$0xff]
        %v4125 = vld [vmem:[#allocation10 + $0x3d0] sm:$0xff]
        %v4126 = vld [vmem:[#allocation10 + $0x3d8] sm:$0xff]
        %v4127 = vld [vmem:[#allocation10 + $0x3e0] sm:$0xff]
        %v4128 = vld [vmem:[#allocation10 + $0x3e8] sm:$0xff]
        %v4129 = vld [vmem:[#allocation10 + $0x3f0] sm:$0xff]
        %v4130 = vld [vmem:[#allocation10 + $0x3f8] sm:$0xff]
        %v4131 = vld [vmem:[#allocation10 + $0x400] sm:$0xff]
        %v4132 = vld [vmem:[#allocation10 + $0x408] sm:$0xff]
        %v4133 = vld [vmem:[#allocation10 + $0x410] sm:$0xff]
        %v4134 = vld [vmem:[#allocation10 + $0x418] sm:$0xff]
        %v4135 = vld [vmem:[#allocation10 + $0x420] sm:$0xff]
        %v4136 = vld [vmem:[#allocation10 + $0x428] sm:$0xff]
        %v4137 = vld [vmem:[#allocation10 + $0x430] sm:$0xff]
        %v4138 = vld [vmem:[#allocation10 + $0x438] sm:$0xff]
        %v4139 = vld [vmem:[#allocation10 + $0x440] sm:$0xff]
        %v4140 = vld [vmem:[#allocation10 + $0x448] sm:$0xff]
        %v4141 = vld [vmem:[#allocation10 + $0x450] sm:$0xff]
        %v4142 = vld [vmem:[#allocation10 + $0x458] sm:$0xff]
        %v4143 = vld [vmem:[#allocation10 + $0x460] sm:$0xff]
        %v4144 = vld [vmem:[#allocation10 + $0x468] sm:$0xff]
        %v4145 = vld [vmem:[#allocation10 + $0x470] sm:$0xff]
        %v4146 = vld [vmem:[#allocation10 + $0x478] sm:$0xff]
        %v4147 = vld [vmem:[#allocation10 + $0x480] sm:$0xff]
        %v4148 = vld [vmem:[#allocation10 + $0x488] sm:$0xff]
        %v4149 = vld [vmem:[#allocation10 + $0x490] sm:$0xff]
        %v4150 = vld [vmem:[#allocation10 + $0x498] sm:$0xff]
        %v4151 = vld [vmem:[#allocation10 + $0x4a0] sm:$0xff]
        %v4152 = vld [vmem:[#allocation10 + $0x4a8] sm:$0xff]
        %v4153 = vld [vmem:[#allocation10 + $0x4b0] sm:$0xff]
        %v4154 = vld [vmem:[#allocation10 + $0x4b8] sm:$0xff]
        %v4155 = vld [vmem:[#allocation10 + $0x4c0] sm:$0xff]
        %v4156 = vld [vmem:[#allocation10 + $0x4c8] sm:$0xff]
        %v4157 = vld [vmem:[#allocation10 + $0x4d0] sm:$0xff]
        %v4158 = vld [vmem:[#allocation10 + $0x4d8] sm:$0xff]
        %v4159 = vld [vmem:[#allocation10 + $0x4e0] sm:$0xff]
        %v4160 = vld [vmem:[#allocation10 + $0x4e8] sm:$0xff]
        %v4161 = vld [vmem:[#allocation10 + $0x4f0] sm:$0xff]
        %v4162 = vld [vmem:[#allocation10 + $0x4f8] sm:$0xff]
        %v4163 = vld [vmem:[#allocation10 + $0x500] sm:$0xff]
        %v4164 = vld [vmem:[#allocation10 + $0x508] sm:$0xff]
        %v4165 = vld [vmem:[#allocation10 + $0x510] sm:$0xff]
        %v4166 = vld [vmem:[#allocation10 + $0x518] sm:$0xff]
        %v4167 = vld [vmem:[#allocation10 + $0x520] sm:$0xff]
        %v4168 = vld [vmem:[#allocation10 + $0x528] sm:$0xff]
        %v4169 = vld [vmem:[#allocation10 + $0x530] sm:$0xff]
        %v4170 = vld [vmem:[#allocation10 + $0x538] sm:$0xff]
        %v4171 = vld [vmem:[#allocation10 + $0x540] sm:$0xff]
        %v4172 = vld [vmem:[#allocation10 + $0x548] sm:$0xff]
        %v4173 = vld [vmem:[#allocation10 + $0x550] sm:$0xff]
        %v4174 = vld [vmem:[#allocation10 + $0x558] sm:$0xff]
        %v4175 = vld [vmem:[#allocation10 + $0x560] sm:$0xff]
        %v4176 = vld [vmem:[#allocation10 + $0x568] sm:$0xff]
        %v4177 = vld [vmem:[#allocation10 + $0x570] sm:$0xff]
        %v4178 = vld [vmem:[#allocation10 + $0x578] sm:$0xff]
        %v4179 = vld [vmem:[#allocation10 + $0x580] sm:$0xff]
        %v4180 = vld [vmem:[#allocation10 + $0x588] sm:$0xff]
        %v4181 = vld [vmem:[#allocation10 + $0x590] sm:$0xff]
        %v4182 = vld [vmem:[#allocation10 + $0x598] sm:$0xff]
        %v4183 = vld [vmem:[#allocation10 + $0x5a0] sm:$0xff]
        %v4184 = vld [vmem:[#allocation10 + $0x5a8] sm:$0xff]
        %v4185 = vld [vmem:[#allocation10 + $0x5b0] sm:$0xff]
        %v4186 = vld [vmem:[#allocation10 + $0x5b8] sm:$0xff]
        %v4187 = vld [vmem:[#allocation10 + $0x5c0] sm:$0xff]
        %v4188 = vld [vmem:[#allocation10 + $0x5c8] sm:$0xff]
        %v4189 = vld [vmem:[#allocation10 + $0x5d0] sm:$0xff]
        %v4190 = vld [vmem:[#allocation10 + $0x5d8] sm:$0xff]
        %v4191 = vld [vmem:[#allocation10 + $0x5e0] sm:$0xff]
        %v4192 = vld [vmem:[#allocation10 + $0x5e8] sm:$0xff]
        %v4193 = vld [vmem:[#allocation10 + $0x5f0] sm:$0xff]
        %v4194 = vld [vmem:[#allocation10 + $0x5f8] sm:$0xff]
        %v4195 = vld [vmem:[#allocation10 + $0x600] sm:$0xff]
        %v4196 = vld [vmem:[#allocation10 + $0x608] sm:$0xff]
        %v4197 = vld [vmem:[#allocation10 + $0x610] sm:$0xff]
        %v4198 = vld [vmem:[#allocation10 + $0x618] sm:$0xff]
        %v4199 = vld [vmem:[#allocation10 + $0x620] sm:$0xff]
        %v4200 = vld [vmem:[#allocation10 + $0x628] sm:$0xff]
        %v4201 = vld [vmem:[#allocation10 + $0x630] sm:$0xff]
        %v4202 = vld [vmem:[#allocation10 + $0x638] sm:$0xff]
        %v4203 = vld [vmem:[#allocation10 + $0x640] sm:$0xff]
        %v4204 = vld [vmem:[#allocation10 + $0x648] sm:$0xff]
        %v4205 = vld [vmem:[#allocation10 + $0x650] sm:$0xff]
        %v4206 = vld [vmem:[#allocation10 + $0x658] sm:$0xff]
        %v4207 = vld [vmem:[#allocation10 + $0x660] sm:$0xff]
        %v4208 = vld [vmem:[#allocation10 + $0x668] sm:$0xff]
        %v4209 = vld [vmem:[#allocation10 + $0x670] sm:$0xff]
        %v4210 = vld [vmem:[#allocation10 + $0x678] sm:$0xff]
        %v4211 = vld [vmem:[#allocation10 + $0x680] sm:$0xff]
        %v4212 = vld [vmem:[#allocation10 + $0x688] sm:$0xff]
        %v4213 = vld [vmem:[#allocation10 + $0x690] sm:$0xff]
        %v4214 = vld [vmem:[#allocation10 + $0x698] sm:$0xff]
        %v4215 = vld [vmem:[#allocation10 + $0x6a0] sm:$0xff]
        %v4216 = vld [vmem:[#allocation10 + $0x6a8] sm:$0xff]
        %v4217 = vld [vmem:[#allocation10 + $0x6b0] sm:$0xff]
        %v4218 = vld [vmem:[#allocation10 + $0x6b8] sm:$0xff]
        %v4219 = vld [vmem:[#allocation10 + $0x6c0] sm:$0xff]
        %v4220 = vld [vmem:[#allocation10 + $0x6c8] sm:$0xff]
        %v4221 = vld [vmem:[#allocation10 + $0x6d0] sm:$0xff]
        %v4222 = vld [vmem:[#allocation10 + $0x6d8] sm:$0xff]
        %v4223 = vld [vmem:[#allocation10 + $0x6e0] sm:$0xff]
        %v4224 = vld [vmem:[#allocation10 + $0x6e8] sm:$0xff]
        %v4225 = vld [vmem:[#allocation10 + $0x6f0] sm:$0xff]
        %v4226 = vld [vmem:[#allocation10 + $0x6f8] sm:$0xff]
        %v4227 = vld [vmem:[#allocation10 + $0x700] sm:$0xff]
        %v4228 = vld [vmem:[#allocation10 + $0x708] sm:$0xff]
        %v4229 = vld [vmem:[#allocation10 + $0x710] sm:$0xff]
        %v4230 = vld [vmem:[#allocation10 + $0x718] sm:$0xff]
        %v4231 = vld [vmem:[#allocation10 + $0x720] sm:$0xff]
        %v4232 = vld [vmem:[#allocation10 + $0x728] sm:$0xff]
        %v4233 = vld [vmem:[#allocation10 + $0x730] sm:$0xff]
        %v4234 = vld [vmem:[#allocation10 + $0x738] sm:$0xff]
        %v4235 = vld [vmem:[#allocation10 + $0x740] sm:$0xff]
        %v4236 = vld [vmem:[#allocation10 + $0x748] sm:$0xff]
        %v4237 = vld [vmem:[#allocation10 + $0x750] sm:$0xff]
        %v4238 = vld [vmem:[#allocation10 + $0x758] sm:$0xff]
        %v4239 = vld [vmem:[#allocation10 + $0x760] sm:$0xff]
        %v4240 = vld [vmem:[#allocation10 + $0x768] sm:$0xff]
        %v4241 = vld [vmem:[#allocation10 + $0x770] sm:$0xff]
        %v4242 = vld [vmem:[#allocation10 + $0x778] sm:$0xff]
        %v4243 = vld [vmem:[#allocation10 + $0x780] sm:$0xff]
        %v4244 = vld [vmem:[#allocation10 + $0x788] sm:$0xff]
        %v4245 = vld [vmem:[#allocation10 + $0x790] sm:$0xff]
        %v4246 = vld [vmem:[#allocation10 + $0x798] sm:$0xff]
        %v4247 = vld [vmem:[#allocation10 + $0x7a0] sm:$0xff]
        %v4248 = vld [vmem:[#allocation10 + $0x7a8] sm:$0xff]
        %v4249 = vld [vmem:[#allocation10 + $0x7b0] sm:$0xff]
        %v4250 = vld [vmem:[#allocation10 + $0x7b8] sm:$0xff]
        %v4251 = vld [vmem:[#allocation10 + $0x7c0] sm:$0xff]
        %v4252 = vld [vmem:[#allocation10 + $0x7c8] sm:$0xff]
        %v4253 = vld [vmem:[#allocation10 + $0x7d0] sm:$0xff]
        %v4254 = vld [vmem:[#allocation10 + $0x7d8] sm:$0xff]
        %v4255 = vld [vmem:[#allocation10 + $0x7e0] sm:$0xff]
        %v4256 = vld [vmem:[#allocation10 + $0x7e8] sm:$0xff]
        %v4257 = vld [vmem:[#allocation10 + $0x7f0] sm:$0xff]
        %v4258 = vld [vmem:[#allocation10 + $0x7f8] sm:$0xff]
        %4259 = vmatprep.subr.mxu0 %v4124
        %4260 = vmatpush1.msra.mxu0 %v4123
        %4261 = vmatprep.subr.mxu0 %v4116
        %4262 = vmatpush1.msra.mxu0 %v4115
        %4263 = vmatprep.subr.mxu0 %v4108
        %4264 = vmatpush1.msra.mxu0 %v4107
        %4265 = vmatprep.subr.mxu0 %v4100
        %4266 = vmatpush1.msra.mxu0 %v4099
        %4267 = vmatprep.subr.mxu0 %v4092
        %4268 = vmatpush1.msra.mxu0 %v4091
        %4269 = vmatprep.subr.mxu0 %v4084
        %4270 = vmatpush1.msra.mxu0 %v4083
        %4271 = vmatprep.subr.mxu0 %v4076
        %4272 = vmatpush1.msra.mxu0 %v4075
        %4273 = vmatprep.subr.mxu0 %v4068
        %4274 = vmatpush1.msra.mxu0 %v4067
        %4275 = vmatprep.subr.mxu0 %v4060
        %4276 = vmatpush1.msra.mxu0 %v4059
        %4277 = vmatprep.subr.mxu0 %v4052
        %4278 = vmatpush1.msra.mxu0 %v4051
        %4279 = vmatprep.subr.mxu0 %v4044
        %4280 = vmatpush1.msra.mxu0 %v4043
        %4281 = vmatprep.subr.mxu0 %v4036
        %4282 = vmatpush1.msra.mxu0 %v4035
        %4283 = vmatprep.subr.mxu0 %v4028
        %4284 = vmatpush1.msra.mxu0 %v4027
        %4285 = vmatprep.subr.mxu0 %v4020
        %4286 = vmatpush1.msra.mxu0 %v4019
        %4287 = vmatprep.subr.mxu0 %v4012
        %4288 = vmatpush1.msra.mxu0 %v4011
        %4289 = vmatprep.subr.mxu0 %v4004
        %4290 = vmatpush1.msra.mxu0 %v4003
        %4291 = vmatprep.subr.mxu0 %v4252
        %4292 = vmatpush2.msra.mxu0 %v4251
        %4293 = vmatprep.subr.mxu0 %v4244
        %4294 = vmatpush2.msra.mxu0 %v4243
        %4295 = vmatprep.subr.mxu0 %v4236
        %4296 = vmatpush2.msra.mxu0 %v4235
        %4297 = vmatprep.subr.mxu0 %v4228
        %4298 = vmatpush2.msra.mxu0 %v4227
        %4299 = vmatprep.subr.mxu0 %v4220
        %4300 = vmatpush2.msra.mxu0 %v4219
        %4301 = vmatprep.subr.mxu0 %v4212
        %4302 = vmatpush2.msra.mxu0 %v4211
        %4303 = vmatprep.subr.mxu0 %v4204
        %4304 = vmatpush2.msra.mxu0 %v4203
        %4305 = vmatprep.subr.mxu0 %v4196
        %4306 = vmatpush2.msra.mxu0 %v4195
        %4307 = vmatprep.subr.mxu0 %v4188
        %4308 = vmatpush2.msra.mxu0 %v4187
        %4309 = vmatprep.subr.mxu0 %v4180
        %4310 = vmatpush2.msra.mxu0 %v4179
        %4311 = vmatprep.subr.mxu0 %v4172
        %4312 = vmatpush2.msra.mxu0 %v4171
        %4313 = vmatprep.subr.mxu0 %v4164
        %4314 = vmatpush2.msra.mxu0 %v4163
        %4315 = vmatprep.subr.mxu0 %v4156
        %4316 = vmatpush2.msra.mxu0 %v4155
        %4317 = vmatprep.subr.mxu0 %v4148
        %4318 = vmatpush2.msra.mxu0 %v4147
        %4319 = vmatprep.subr.mxu0 %v4140
        %4320 = vmatpush2.msra.mxu0 %v4139
        %4321 = vmatprep.subr.mxu0 %v4132
        %4322 = vmatpush2.msra.mxu0 %v4131
        %4323 = vmatprep.mubr.f32.mxu0 %v3994
        %4324 = vmatmul.mubr.f32.gmra.mxu0 %v3993
        %v4325 = vpop.f32.mrf.mxu0
        %v4326 = vadd.f32 0.0, %v4325
        %v4327 = vpop.f32.mrf.mxu0
        %v4328 = vadd.f32 0.0, %v4327
        %4329 = vdwg.mxu0
        %4330 = vmatprep.subr.mxu0 %v4126
        %4331 = vmatpush1.msra.mxu0 %v4125
        %4332 = vmatprep.subr.mxu0 %v4118
        %4333 = vmatpush1.msra.mxu0 %v4117
        %4334 = vmatprep.subr.mxu0 %v4110
        %4335 = vmatpush1.msra.mxu0 %v4109
        %4336 = vmatprep.subr.mxu0 %v4102
        %4337 = vmatpush1.msra.mxu0 %v4101
        %4338 = vmatprep.subr.mxu0 %v4094
        %4339 = vmatpush1.msra.mxu0 %v4093
        %4340 = vmatprep.subr.mxu0 %v4086
        %4341 = vmatpush1.msra.mxu0 %v4085
        %4342 = vmatprep.subr.mxu0 %v4078
        %4343 = vmatpush1.msra.mxu0 %v4077
        %4344 = vmatprep.subr.mxu0 %v4070
        %4345 = vmatpush1.msra.mxu0 %v4069
        %4346 = vmatprep.subr.mxu0 %v4062
        %4347 = vmatpush1.msra.mxu0 %v4061
        %4348 = vmatprep.subr.mxu0 %v4054
        %4349 = vmatpush1.msra.mxu0 %v4053
        %4350 = vmatprep.subr.mxu0 %v4046
        %4351 = vmatpush1.msra.mxu0 %v4045
        %4352 = vmatprep.subr.mxu0 %v4038
        %4353 = vmatpush1.msra.mxu0 %v4037
        %4354 = vmatprep.subr.mxu0 %v4030
        %4355 = vmatpush1.msra.mxu0 %v4029
        %4356 = vmatprep.subr.mxu0 %v4022
        %4357 = vmatpush1.msra.mxu0 %v4021
        %4358 = vmatprep.subr.mxu0 %v4014
        %4359 = vmatpush1.msra.mxu0 %v4013
        %4360 = vmatprep.subr.mxu0 %v4006
        %4361 = vmatpush1.msra.mxu0 %v4005
        %4362 = vmatprep.subr.mxu0 %v4254
        %4363 = vmatpush2.msra.mxu0 %v4253
        %4364 = vmatprep.subr.mxu0 %v4246
        %4365 = vmatpush2.msra.mxu0 %v4245
        %4366 = vmatprep.subr.mxu0 %v4238
        %4367 = vmatpush2.msra.mxu0 %v4237
        %4368 = vmatprep.subr.mxu0 %v4230
        %4369 = vmatpush2.msra.mxu0 %v4229
        %4370 = vmatprep.subr.mxu0 %v4222
        %4371 = vmatpush2.msra.mxu0 %v4221
        %4372 = vmatprep.subr.mxu0 %v4214
        %4373 = vmatpush2.msra.mxu0 %v4213
        %4374 = vmatprep.subr.mxu0 %v4206
        %4375 = vmatpush2.msra.mxu0 %v4205
        %4376 = vmatprep.subr.mxu0 %v4198
        %4377 = vmatpush2.msra.mxu0 %v4197
        %4378 = vmatprep.subr.mxu0 %v4190
        %4379 = vmatpush2.msra.mxu0 %v4189
        %4380 = vmatprep.subr.mxu0 %v4182
        %4381 = vmatpush2.msra.mxu0 %v4181
        %4382 = vmatprep.subr.mxu0 %v4174
        %4383 = vmatpush2.msra.mxu0 %v4173
        %4384 = vmatprep.subr.mxu0 %v4166
        %4385 = vmatpush2.msra.mxu0 %v4165
        %4386 = vmatprep.subr.mxu0 %v4158
        %4387 = vmatpush2.msra.mxu0 %v4157
        %4388 = vmatprep.subr.mxu0 %v4150
        %4389 = vmatpush2.msra.mxu0 %v4149
        %4390 = vmatprep.subr.mxu0 %v4142
        %4391 = vmatpush2.msra.mxu0 %v4141
        %4392 = vmatprep.subr.mxu0 %v4134
        %4393 = vmatpush2.msra.mxu0 %v4133
        %4394 = vmatprep.mubr.f32.mxu0 %v3994
        %4395 = vmatmul.mubr.f32.gmra.mxu0 %v3993
        %v4396 = vpop.f32.mrf.mxu0
        %v4397 = vadd.f32 0.0, %v4396
        %v4398 = vpop.f32.mrf.mxu0
        %v4399 = vadd.f32 0.0, %v4398
        %4400 = vdwg.mxu0
        %4401 = vmatprep.subr.mxu0 %v4128
        %4402 = vmatpush1.msra.mxu0 %v4127
        %4403 = vmatprep.subr.mxu0 %v4120
        %4404 = vmatpush1.msra.mxu0 %v4119
        %4405 = vmatprep.subr.mxu0 %v4112
        %4406 = vmatpush1.msra.mxu0 %v4111
        %4407 = vmatprep.subr.mxu0 %v4104
        %4408 = vmatpush1.msra.mxu0 %v4103
        %4409 = vmatprep.subr.mxu0 %v4096
        %4410 = vmatpush1.msra.mxu0 %v4095
        %4411 = vmatprep.subr.mxu0 %v4088
        %4412 = vmatpush1.msra.mxu0 %v4087
        %4413 = vmatprep.subr.mxu0 %v4080
        %4414 = vmatpush1.msra.mxu0 %v4079
        %4415 = vmatprep.subr.mxu0 %v4072
        %4416 = vmatpush1.msra.mxu0 %v4071
        %4417 = vmatprep.subr.mxu0 %v4064
        %4418 = vmatpush1.msra.mxu0 %v4063
        %4419 = vmatprep.subr.mxu0 %v4056
        %4420 = vmatpush1.msra.mxu0 %v4055
        %4421 = vmatprep.subr.mxu0 %v4048
        %4422 = vmatpush1.msra.mxu0 %v4047
        %4423 = vmatprep.subr.mxu0 %v4040
        %4424 = vmatpush1.msra.mxu0 %v4039
        %4425 = vmatprep.subr.mxu0 %v4032
        %4426 = vmatpush1.msra.mxu0 %v4031
        %4427 = vmatprep.subr.mxu0 %v4024
        %4428 = vmatpush1.msra.mxu0 %v4023
        %4429 = vmatprep.subr.mxu0 %v4016
        %4430 = vmatpush1.msra.mxu0 %v4015
        %4431 = vmatprep.subr.mxu0 %v4008
        %4432 = vmatpush1.msra.mxu0 %v4007
        %4433 = vmatprep.subr.mxu0 %v4256
        %4434 = vmatpush2.msra.mxu0 %v4255
        %4435 = vmatprep.subr.mxu0 %v4248
        %4436 = vmatpush2.msra.mxu0 %v4247
        %4437 = vmatprep.subr.mxu0 %v4240
        %4438 = vmatpush2.msra.mxu0 %v4239
        %4439 = vmatprep.subr.mxu0 %v4232
        %4440 = vmatpush2.msra.mxu0 %v4231
        %4441 = vmatprep.subr.mxu0 %v4224
        %4442 = vmatpush2.msra.mxu0 %v4223
        %4443 = vmatprep.subr.mxu0 %v4216
        %4444 = vmatpush2.msra.mxu0 %v4215
        %4445 = vmatprep.subr.mxu0 %v4208
        %4446 = vmatpush2.msra.mxu0 %v4207
        %4447 = vmatprep.subr.mxu0 %v4200
        %4448 = vmatpush2.msra.mxu0 %v4199
        %4449 = vmatprep.subr.mxu0 %v4192
        %4450 = vmatpush2.msra.mxu0 %v4191
        %4451 = vmatprep.subr.mxu0 %v4184
        %4452 = vmatpush2.msra.mxu0 %v4183
        %4453 = vmatprep.subr.mxu0 %v4176
        %4454 = vmatpush2.msra.mxu0 %v4175
        %4455 = vmatprep.subr.mxu0 %v4168
        %4456 = vmatpush2.msra.mxu0 %v4167
        %4457 = vmatprep.subr.mxu0 %v4160
        %4458 = vmatpush2.msra.mxu0 %v4159
        %4459 = vmatprep.subr.mxu0 %v4152
        %4460 = vmatpush2.msra.mxu0 %v4151
        %4461 = vmatprep.subr.mxu0 %v4144
        %4462 = vmatpush2.msra.mxu0 %v4143
        %4463 = vmatprep.subr.mxu0 %v4136
        %4464 = vmatpush2.msra.mxu0 %v4135
        %4465 = vmatprep.mubr.f32.mxu0 %v3994
        %4466 = vmatmul.mubr.f32.gmra.mxu0 %v3993
        %v4467 = vpop.f32.mrf.mxu0
        %v4468 = vadd.f32 0.0, %v4467
        %v4469 = vpop.f32.mrf.mxu0
        %v4470 = vadd.f32 0.0, %v4469
        %4471 = vdwg.mxu0
        %4472 = vmatprep.subr.mxu0 %v4130
        %4473 = vmatpush1.msra.mxu0 %v4129
        %4474 = vmatprep.subr.mxu0 %v4122
        %4475 = vmatpush1.msra.mxu0 %v4121
        %4476 = vmatprep.subr.mxu0 %v4114
        %4477 = vmatpush1.msra.mxu0 %v4113
        %4478 = vmatprep.subr.mxu0 %v4106
        %4479 = vmatpush1.msra.mxu0 %v4105
        %4480 = vmatprep.subr.mxu0 %v4098
        %4481 = vmatpush1.msra.mxu0 %v4097
        %4482 = vmatprep.subr.mxu0 %v4090
        %4483 = vmatpush1.msra.mxu0 %v4089
        %4484 = vmatprep.subr.mxu0 %v4082
        %4485 = vmatpush1.msra.mxu0 %v4081
        %4486 = vmatprep.subr.mxu0 %v4074
        %4487 = vmatpush1.msra.mxu0 %v4073
        %4488 = vmatprep.subr.mxu0 %v4066
        %4489 = vmatpush1.msra.mxu0 %v4065
        %4490 = vmatprep.subr.mxu0 %v4058
        %4491 = vmatpush1.msra.mxu0 %v4057
        %4492 = vmatprep.subr.mxu0 %v4050
        %4493 = vmatpush1.msra.mxu0 %v4049
        %4494 = vmatprep.subr.mxu0 %v4042
        %4495 = vmatpush1.msra.mxu0 %v4041
        %4496 = vmatprep.subr.mxu0 %v4034
        %4497 = vmatpush1.msra.mxu0 %v4033
        %4498 = vmatprep.subr.mxu0 %v4026
        %4499 = vmatpush1.msra.mxu0 %v4025
        %4500 = vmatprep.subr.mxu0 %v4018
        %4501 = vmatpush1.msra.mxu0 %v4017
        %4502 = vmatprep.subr.mxu0 %v4010
        %4503 = vmatpush1.msra.mxu0 %v4009
        %4504 = vmatprep.subr.mxu0 %v4258
        %4505 = vmatpush2.msra.mxu0 %v4257
        %4506 = vmatprep.subr.mxu0 %v4250
        %4507 = vmatpush2.msra.mxu0 %v4249
        %4508 = vmatprep.subr.mxu0 %v4242
        %4509 = vmatpush2.msra.mxu0 %v4241
        %4510 = vmatprep.subr.mxu0 %v4234
        %4511 = vmatpush2.msra.mxu0 %v4233
        %4512 = vmatprep.subr.mxu0 %v4226
        %4513 = vmatpush2.msra.mxu0 %v4225
        %4514 = vmatprep.subr.mxu0 %v4218
        %4515 = vmatpush2.msra.mxu0 %v4217
        %4516 = vmatprep.subr.mxu0 %v4210
        %4517 = vmatpush2.msra.mxu0 %v4209
        %4518 = vmatprep.subr.mxu0 %v4202
        %4519 = vmatpush2.msra.mxu0 %v4201
        %4520 = vmatprep.subr.mxu0 %v4194
        %4521 = vmatpush2.msra.mxu0 %v4193
        %4522 = vmatprep.subr.mxu0 %v4186
        %4523 = vmatpush2.msra.mxu0 %v4185
        %4524 = vmatprep.subr.mxu0 %v4178
        %4525 = vmatpush2.msra.mxu0 %v4177
        %4526 = vmatprep.subr.mxu0 %v4170
        %4527 = vmatpush2.msra.mxu0 %v4169
        %4528 = vmatprep.subr.mxu0 %v4162
        %4529 = vmatpush2.msra.mxu0 %v4161
        %4530 = vmatprep.subr.mxu0 %v4154
        %4531 = vmatpush2.msra.mxu0 %v4153
        %4532 = vmatprep.subr.mxu0 %v4146
        %4533 = vmatpush2.msra.mxu0 %v4145
        %4534 = vmatprep.subr.mxu0 %v4138
        %4535 = vmatpush2.msra.mxu0 %v4137
        %4536 = vmatprep.mubr.f32.mxu0 %v3994
        %4537 = vmatmul.mubr.f32.gmra.mxu0 %v3993
        %v4538 = vpop.f32.mrf.mxu0
        %v4539 = vadd.f32 0.0, %v4538
        %v4540 = vpop.f32.mrf.mxu0
        %v4541 = vadd.f32 0.0, %v4540
        %4542 = vdwg.mxu0
        %v4543 = vadd.f32 %v3995, %v4326
        %v4544 = vadd.f32 %v3996, %v4328
        %v4545 = vadd.f32 %v3997, %v4397
        %v4546 = vadd.f32 %v3998, %v4399
        %v4547 = vadd.f32 %v3999, %v4468
        %v4548 = vadd.f32 %v4000, %v4470
        %v4549 = vadd.f32 %v4001, %v4539
        %v4550 = vadd.f32 %v4002, %v4541
        %v4551 = vxor.u32 %v4543, 2147483648
        %v4552 = vxor.u32 %v4544, 2147483648
        %v4553 = vmul.f32 %v4551, 1.442695
        %v4554 = vpow.pop %v4553
        %v4555 = vmul.f32 %v4552, 1.442695
        %v4556 = vpow.pop %v4555
        %v4557 = vadd.f32 %v4554, 1.0
        %v4558 = vadd.f32 %v4556, 1.0
        %v4559 = vrcp.pop %v4557
        %v4560 = vmul.f32 1.0, %v4559
        %v4561 = vrcp.pop %v4558
        %v4562 = vmul.f32 1.0, %v4561
        %v4563 = vxor.u32 %v4545, 2147483648
        %v4564 = vxor.u32 %v4546, 2147483648
        %v4565 = vmul.f32 %v4563, 1.442695
        %v4566 = vpow.pop %v4565
        %v4567 = vmul.f32 %v4564, 1.442695
        %v4568 = vpow.pop %v4567
        %v4569 = vadd.f32 %v4566, 1.0
        %v4570 = vadd.f32 %v4568, 1.0
        %v4571 = vrcp.pop %v4569
        %v4572 = vmul.f32 1.0, %v4571
        %v4573 = vrcp.pop %v4570
        %v4574 = vmul.f32 1.0, %v4573
        %v4575 = vtanh.pop %v4547
        %v4576 = vtanh.pop %v4548
        %v4577 = vxor.u32 %v4549, 2147483648
        %v4578 = vxor.u32 %v4550, 2147483648
        %v4579 = vmul.f32 %v4577, 1.442695
        %v4580 = vpow.pop %v4579
        %v4581 = vmul.f32 %v4578, 1.442695
        %v4582 = vpow.pop %v4581
        %v4583 = vadd.f32 %v4580, 1.0
        %v4584 = vadd.f32 %v4582, 1.0
        %v4585 = vrcp.pop %v4583
        %v4586 = vmul.f32 1.0, %v4585
        %v4587 = vrcp.pop %v4584
        %v4588 = vmul.f32 1.0, %v4587
        %v4589 = vld [vmem:[#allocation3] sm:$0xff]
        %v4590 = vld [vmem:[#allocation3 + $0x8] sm:$0xff]
        %v4591 = vmul.f32 %v4572, %v4589
        %v4592 = vmul.f32 %v4574, %v4590
        %v4593 = vmul.f32 %v4560, %v4575
        %v4594 = vmul.f32 %v4562, %v4576
        %v4595 = vadd.f32 %v4591, %v4593
        %v4596 = vadd.f32 %v4592, %v4594
        %4597 = vst [vmem:[#allocation3] sm:$0xff] %v4595
        %4598 = vst [vmem:[#allocation3 + $0x8] sm:$0xff] %v4596
        %v4599 = vtanh.pop %v4595
        %v4600 = vtanh.pop %v4596
        %v4601 = vmul.f32 %v4586, %v4599
        %v4602 = vmul.f32 %v4588, %v4600
        %4603 = vst [vmem:[#allocation2] sm:$0xff] %v4601
        %4604 = vst [vmem:[#allocation2 + $0x8] sm:$0xff] %v4602
        %v4605 = vld [vmem:[#allocation2] sm:$0xff]
        %v4606 = vld [vmem:[#allocation2 + $0x8] sm:$0xff]
        %v4607 = vld [vmem:[#allocation4 + $0x180] sm:$0xff]
        %v4608 = vld [vmem:[#allocation4 + $0x188] sm:$0xff]
        %v4609 = vld [vmem:[#allocation4 + $0x190] sm:$0xff]
        %v4610 = vld [vmem:[#allocation4 + $0x198] sm:$0xff]
        %v4611 = vld [vmem:[#allocation4 + $0x1a0] sm:$0xff]
        %v4612 = vld [vmem:[#allocation4 + $0x1a8] sm:$0xff]
        %v4613 = vld [vmem:[#allocation4 + $0x1b0] sm:$0xff]
        %v4614 = vld [vmem:[#allocation4 + $0x1b8] sm:$0xff]
        %v4615 = vld [vmem:[#allocation10] sm:$0xff]
        %v4616 = vld [vmem:[#allocation10 + $0x8] sm:$0xff]
        %v4617 = vld [vmem:[#allocation10 + $0x10] sm:$0xff]
        %v4618 = vld [vmem:[#allocation10 + $0x18] sm:$0xff]
        %v4619 = vld [vmem:[#allocation10 + $0x20] sm:$0xff]
        %v4620 = vld [vmem:[#allocation10 + $0x28] sm:$0xff]
        %v4621 = vld [vmem:[#allocation10 + $0x30] sm:$0xff]
        %v4622 = vld [vmem:[#allocation10 + $0x38] sm:$0xff]
        %v4623 = vld [vmem:[#allocation10 + $0x40] sm:$0xff]
        %v4624 = vld [vmem:[#allocation10 + $0x48] sm:$0xff]
        %v4625 = vld [vmem:[#allocation10 + $0x50] sm:$0xff]
        %v4626 = vld [vmem:[#allocation10 + $0x58] sm:$0xff]
        %v4627 = vld [vmem:[#allocation10 + $0x60] sm:$0xff]
        %v4628 = vld [vmem:[#allocation10 + $0x68] sm:$0xff]
        %v4629 = vld [vmem:[#allocation10 + $0x70] sm:$0xff]
        %v4630 = vld [vmem:[#allocation10 + $0x78] sm:$0xff]
        %v4631 = vld [vmem:[#allocation10 + $0x80] sm:$0xff]
        %v4632 = vld [vmem:[#allocation10 + $0x88] sm:$0xff]
        %v4633 = vld [vmem:[#allocation10 + $0x90] sm:$0xff]
        %v4634 = vld [vmem:[#allocation10 + $0x98] sm:$0xff]
        %v4635 = vld [vmem:[#allocation10 + $0xa0] sm:$0xff]
        %v4636 = vld [vmem:[#allocation10 + $0xa8] sm:$0xff]
        %v4637 = vld [vmem:[#allocation10 + $0xb0] sm:$0xff]
        %v4638 = vld [vmem:[#allocation10 + $0xb8] sm:$0xff]
        %v4639 = vld [vmem:[#allocation10 + $0xc0] sm:$0xff]
        %v4640 = vld [vmem:[#allocation10 + $0xc8] sm:$0xff]
        %v4641 = vld [vmem:[#allocation10 + $0xd0] sm:$0xff]
        %v4642 = vld [vmem:[#allocation10 + $0xd8] sm:$0xff]
        %v4643 = vld [vmem:[#allocation10 + $0xe0] sm:$0xff]
        %v4644 = vld [vmem:[#allocation10 + $0xe8] sm:$0xff]
        %v4645 = vld [vmem:[#allocation10 + $0xf0] sm:$0xff]
        %v4646 = vld [vmem:[#allocation10 + $0xf8] sm:$0xff]
        %v4647 = vld [vmem:[#allocation10 + $0x100] sm:$0xff]
        %v4648 = vld [vmem:[#allocation10 + $0x108] sm:$0xff]
        %v4649 = vld [vmem:[#allocation10 + $0x110] sm:$0xff]
        %v4650 = vld [vmem:[#allocation10 + $0x118] sm:$0xff]
        %v4651 = vld [vmem:[#allocation10 + $0x120] sm:$0xff]
        %v4652 = vld [vmem:[#allocation10 + $0x128] sm:$0xff]
        %v4653 = vld [vmem:[#allocation10 + $0x130] sm:$0xff]
        %v4654 = vld [vmem:[#allocation10 + $0x138] sm:$0xff]
        %v4655 = vld [vmem:[#allocation10 + $0x140] sm:$0xff]
        %v4656 = vld [vmem:[#allocation10 + $0x148] sm:$0xff]
        %v4657 = vld [vmem:[#allocation10 + $0x150] sm:$0xff]
        %v4658 = vld [vmem:[#allocation10 + $0x158] sm:$0xff]
        %v4659 = vld [vmem:[#allocation10 + $0x160] sm:$0xff]
        %v4660 = vld [vmem:[#allocation10 + $0x168] sm:$0xff]
        %v4661 = vld [vmem:[#allocation10 + $0x170] sm:$0xff]
        %v4662 = vld [vmem:[#allocation10 + $0x178] sm:$0xff]
        %v4663 = vld [vmem:[#allocation10 + $0x180] sm:$0xff]
        %v4664 = vld [vmem:[#allocation10 + $0x188] sm:$0xff]
        %v4665 = vld [vmem:[#allocation10 + $0x190] sm:$0xff]
        %v4666 = vld [vmem:[#allocation10 + $0x198] sm:$0xff]
        %v4667 = vld [vmem:[#allocation10 + $0x1a0] sm:$0xff]
        %v4668 = vld [vmem:[#allocation10 + $0x1a8] sm:$0xff]
        %v4669 = vld [vmem:[#allocation10 + $0x1b0] sm:$0xff]
        %v4670 = vld [vmem:[#allocation10 + $0x1b8] sm:$0xff]
        %v4671 = vld [vmem:[#allocation10 + $0x1c0] sm:$0xff]
        %v4672 = vld [vmem:[#allocation10 + $0x1c8] sm:$0xff]
        %v4673 = vld [vmem:[#allocation10 + $0x1d0] sm:$0xff]
        %v4674 = vld [vmem:[#allocation10 + $0x1d8] sm:$0xff]
        %v4675 = vld [vmem:[#allocation10 + $0x1e0] sm:$0xff]
        %v4676 = vld [vmem:[#allocation10 + $0x1e8] sm:$0xff]
        %v4677 = vld [vmem:[#allocation10 + $0x1f0] sm:$0xff]
        %v4678 = vld [vmem:[#allocation10 + $0x1f8] sm:$0xff]
        %v4679 = vld [vmem:[#allocation10 + $0x200] sm:$0xff]
        %v4680 = vld [vmem:[#allocation10 + $0x208] sm:$0xff]
        %v4681 = vld [vmem:[#allocation10 + $0x210] sm:$0xff]
        %v4682 = vld [vmem:[#allocation10 + $0x218] sm:$0xff]
        %v4683 = vld [vmem:[#allocation10 + $0x220] sm:$0xff]
        %v4684 = vld [vmem:[#allocation10 + $0x228] sm:$0xff]
        %v4685 = vld [vmem:[#allocation10 + $0x230] sm:$0xff]
        %v4686 = vld [vmem:[#allocation10 + $0x238] sm:$0xff]
        %v4687 = vld [vmem:[#allocation10 + $0x240] sm:$0xff]
        %v4688 = vld [vmem:[#allocation10 + $0x248] sm:$0xff]
        %v4689 = vld [vmem:[#allocation10 + $0x250] sm:$0xff]
        %v4690 = vld [vmem:[#allocation10 + $0x258] sm:$0xff]
        %v4691 = vld [vmem:[#allocation10 + $0x260] sm:$0xff]
        %v4692 = vld [vmem:[#allocation10 + $0x268] sm:$0xff]
        %v4693 = vld [vmem:[#allocation10 + $0x270] sm:$0xff]
        %v4694 = vld [vmem:[#allocation10 + $0x278] sm:$0xff]
        %v4695 = vld [vmem:[#allocation10 + $0x280] sm:$0xff]
        %v4696 = vld [vmem:[#allocation10 + $0x288] sm:$0xff]
        %v4697 = vld [vmem:[#allocation10 + $0x290] sm:$0xff]
        %v4698 = vld [vmem:[#allocation10 + $0x298] sm:$0xff]
        %v4699 = vld [vmem:[#allocation10 + $0x2a0] sm:$0xff]
        %v4700 = vld [vmem:[#allocation10 + $0x2a8] sm:$0xff]
        %v4701 = vld [vmem:[#allocation10 + $0x2b0] sm:$0xff]
        %v4702 = vld [vmem:[#allocation10 + $0x2b8] sm:$0xff]
        %v4703 = vld [vmem:[#allocation10 + $0x2c0] sm:$0xff]
        %v4704 = vld [vmem:[#allocation10 + $0x2c8] sm:$0xff]
        %v4705 = vld [vmem:[#allocation10 + $0x2d0] sm:$0xff]
        %v4706 = vld [vmem:[#allocation10 + $0x2d8] sm:$0xff]
        %v4707 = vld [vmem:[#allocation10 + $0x2e0] sm:$0xff]
        %v4708 = vld [vmem:[#allocation10 + $0x2e8] sm:$0xff]
        %v4709 = vld [vmem:[#allocation10 + $0x2f0] sm:$0xff]
        %v4710 = vld [vmem:[#allocation10 + $0x2f8] sm:$0xff]
        %v4711 = vld [vmem:[#allocation10 + $0x300] sm:$0xff]
        %v4712 = vld [vmem:[#allocation10 + $0x308] sm:$0xff]
        %v4713 = vld [vmem:[#allocation10 + $0x310] sm:$0xff]
        %v4714 = vld [vmem:[#allocation10 + $0x318] sm:$0xff]
        %v4715 = vld [vmem:[#allocation10 + $0x320] sm:$0xff]
        %v4716 = vld [vmem:[#allocation10 + $0x328] sm:$0xff]
        %v4717 = vld [vmem:[#allocation10 + $0x330] sm:$0xff]
        %v4718 = vld [vmem:[#allocation10 + $0x338] sm:$0xff]
        %v4719 = vld [vmem:[#allocation10 + $0x340] sm:$0xff]
        %v4720 = vld [vmem:[#allocation10 + $0x348] sm:$0xff]
        %v4721 = vld [vmem:[#allocation10 + $0x350] sm:$0xff]
        %v4722 = vld [vmem:[#allocation10 + $0x358] sm:$0xff]
        %v4723 = vld [vmem:[#allocation10 + $0x360] sm:$0xff]
        %v4724 = vld [vmem:[#allocation10 + $0x368] sm:$0xff]
        %v4725 = vld [vmem:[#allocation10 + $0x370] sm:$0xff]
        %v4726 = vld [vmem:[#allocation10 + $0x378] sm:$0xff]
        %v4727 = vld [vmem:[#allocation10 + $0x380] sm:$0xff]
        %v4728 = vld [vmem:[#allocation10 + $0x388] sm:$0xff]
        %v4729 = vld [vmem:[#allocation10 + $0x390] sm:$0xff]
        %v4730 = vld [vmem:[#allocation10 + $0x398] sm:$0xff]
        %v4731 = vld [vmem:[#allocation10 + $0x3a0] sm:$0xff]
        %v4732 = vld [vmem:[#allocation10 + $0x3a8] sm:$0xff]
        %v4733 = vld [vmem:[#allocation10 + $0x3b0] sm:$0xff]
        %v4734 = vld [vmem:[#allocation10 + $0x3b8] sm:$0xff]
        %v4735 = vld [vmem:[#allocation10 + $0x3c0] sm:$0xff]
        %v4736 = vld [vmem:[#allocation10 + $0x3c8] sm:$0xff]
        %v4737 = vld [vmem:[#allocation10 + $0x3d0] sm:$0xff]
        %v4738 = vld [vmem:[#allocation10 + $0x3d8] sm:$0xff]
        %v4739 = vld [vmem:[#allocation10 + $0x3e0] sm:$0xff]
        %v4740 = vld [vmem:[#allocation10 + $0x3e8] sm:$0xff]
        %v4741 = vld [vmem:[#allocation10 + $0x3f0] sm:$0xff]
        %v4742 = vld [vmem:[#allocation10 + $0x3f8] sm:$0xff]
        %v4743 = vld [vmem:[#allocation10 + $0x400] sm:$0xff]
        %v4744 = vld [vmem:[#allocation10 + $0x408] sm:$0xff]
        %v4745 = vld [vmem:[#allocation10 + $0x410] sm:$0xff]
        %v4746 = vld [vmem:[#allocation10 + $0x418] sm:$0xff]
        %v4747 = vld [vmem:[#allocation10 + $0x420] sm:$0xff]
        %v4748 = vld [vmem:[#allocation10 + $0x428] sm:$0xff]
        %v4749 = vld [vmem:[#allocation10 + $0x430] sm:$0xff]
        %v4750 = vld [vmem:[#allocation10 + $0x438] sm:$0xff]
        %v4751 = vld [vmem:[#allocation10 + $0x440] sm:$0xff]
        %v4752 = vld [vmem:[#allocation10 + $0x448] sm:$0xff]
        %v4753 = vld [vmem:[#allocation10 + $0x450] sm:$0xff]
        %v4754 = vld [vmem:[#allocation10 + $0x458] sm:$0xff]
        %v4755 = vld [vmem:[#allocation10 + $0x460] sm:$0xff]
        %v4756 = vld [vmem:[#allocation10 + $0x468] sm:$0xff]
        %v4757 = vld [vmem:[#allocation10 + $0x470] sm:$0xff]
        %v4758 = vld [vmem:[#allocation10 + $0x478] sm:$0xff]
        %v4759 = vld [vmem:[#allocation10 + $0x480] sm:$0xff]
        %v4760 = vld [vmem:[#allocation10 + $0x488] sm:$0xff]
        %v4761 = vld [vmem:[#allocation10 + $0x490] sm:$0xff]
        %v4762 = vld [vmem:[#allocation10 + $0x498] sm:$0xff]
        %v4763 = vld [vmem:[#allocation10 + $0x4a0] sm:$0xff]
        %v4764 = vld [vmem:[#allocation10 + $0x4a8] sm:$0xff]
        %v4765 = vld [vmem:[#allocation10 + $0x4b0] sm:$0xff]
        %v4766 = vld [vmem:[#allocation10 + $0x4b8] sm:$0xff]
        %v4767 = vld [vmem:[#allocation10 + $0x4c0] sm:$0xff]
        %v4768 = vld [vmem:[#allocation10 + $0x4c8] sm:$0xff]
        %v4769 = vld [vmem:[#allocation10 + $0x4d0] sm:$0xff]
        %v4770 = vld [vmem:[#allocation10 + $0x4d8] sm:$0xff]
        %v4771 = vld [vmem:[#allocation10 + $0x4e0] sm:$0xff]
        %v4772 = vld [vmem:[#allocation10 + $0x4e8] sm:$0xff]
        %v4773 = vld [vmem:[#allocation10 + $0x4f0] sm:$0xff]
        %v4774 = vld [vmem:[#allocation10 + $0x4f8] sm:$0xff]
        %v4775 = vld [vmem:[#allocation10 + $0x500] sm:$0xff]
        %v4776 = vld [vmem:[#allocation10 + $0x508] sm:$0xff]
        %v4777 = vld [vmem:[#allocation10 + $0x510] sm:$0xff]
        %v4778 = vld [vmem:[#allocation10 + $0x518] sm:$0xff]
        %v4779 = vld [vmem:[#allocation10 + $0x520] sm:$0xff]
        %v4780 = vld [vmem:[#allocation10 + $0x528] sm:$0xff]
        %v4781 = vld [vmem:[#allocation10 + $0x530] sm:$0xff]
        %v4782 = vld [vmem:[#allocation10 + $0x538] sm:$0xff]
        %v4783 = vld [vmem:[#allocation10 + $0x540] sm:$0xff]
        %v4784 = vld [vmem:[#allocation10 + $0x548] sm:$0xff]
        %v4785 = vld [vmem:[#allocation10 + $0x550] sm:$0xff]
        %v4786 = vld [vmem:[#allocation10 + $0x558] sm:$0xff]
        %v4787 = vld [vmem:[#allocation10 + $0x560] sm:$0xff]
        %v4788 = vld [vmem:[#allocation10 + $0x568] sm:$0xff]
        %v4789 = vld [vmem:[#allocation10 + $0x570] sm:$0xff]
        %v4790 = vld [vmem:[#allocation10 + $0x578] sm:$0xff]
        %v4791 = vld [vmem:[#allocation10 + $0x580] sm:$0xff]
        %v4792 = vld [vmem:[#allocation10 + $0x588] sm:$0xff]
        %v4793 = vld [vmem:[#allocation10 + $0x590] sm:$0xff]
        %v4794 = vld [vmem:[#allocation10 + $0x598] sm:$0xff]
        %v4795 = vld [vmem:[#allocation10 + $0x5a0] sm:$0xff]
        %v4796 = vld [vmem:[#allocation10 + $0x5a8] sm:$0xff]
        %v4797 = vld [vmem:[#allocation10 + $0x5b0] sm:$0xff]
        %v4798 = vld [vmem:[#allocation10 + $0x5b8] sm:$0xff]
        %v4799 = vld [vmem:[#allocation10 + $0x5c0] sm:$0xff]
        %v4800 = vld [vmem:[#allocation10 + $0x5c8] sm:$0xff]
        %v4801 = vld [vmem:[#allocation10 + $0x5d0] sm:$0xff]
        %v4802 = vld [vmem:[#allocation10 + $0x5d8] sm:$0xff]
        %v4803 = vld [vmem:[#allocation10 + $0x5e0] sm:$0xff]
        %v4804 = vld [vmem:[#allocation10 + $0x5e8] sm:$0xff]
        %v4805 = vld [vmem:[#allocation10 + $0x5f0] sm:$0xff]
        %v4806 = vld [vmem:[#allocation10 + $0x5f8] sm:$0xff]
        %v4807 = vld [vmem:[#allocation10 + $0x600] sm:$0xff]
        %v4808 = vld [vmem:[#allocation10 + $0x608] sm:$0xff]
        %v4809 = vld [vmem:[#allocation10 + $0x610] sm:$0xff]
        %v4810 = vld [vmem:[#allocation10 + $0x618] sm:$0xff]
        %v4811 = vld [vmem:[#allocation10 + $0x620] sm:$0xff]
        %v4812 = vld [vmem:[#allocation10 + $0x628] sm:$0xff]
        %v4813 = vld [vmem:[#allocation10 + $0x630] sm:$0xff]
        %v4814 = vld [vmem:[#allocation10 + $0x638] sm:$0xff]
        %v4815 = vld [vmem:[#allocation10 + $0x640] sm:$0xff]
        %v4816 = vld [vmem:[#allocation10 + $0x648] sm:$0xff]
        %v4817 = vld [vmem:[#allocation10 + $0x650] sm:$0xff]
        %v4818 = vld [vmem:[#allocation10 + $0x658] sm:$0xff]
        %v4819 = vld [vmem:[#allocation10 + $0x660] sm:$0xff]
        %v4820 = vld [vmem:[#allocation10 + $0x668] sm:$0xff]
        %v4821 = vld [vmem:[#allocation10 + $0x670] sm:$0xff]
        %v4822 = vld [vmem:[#allocation10 + $0x678] sm:$0xff]
        %v4823 = vld [vmem:[#allocation10 + $0x680] sm:$0xff]
        %v4824 = vld [vmem:[#allocation10 + $0x688] sm:$0xff]
        %v4825 = vld [vmem:[#allocation10 + $0x690] sm:$0xff]
        %v4826 = vld [vmem:[#allocation10 + $0x698] sm:$0xff]
        %v4827 = vld [vmem:[#allocation10 + $0x6a0] sm:$0xff]
        %v4828 = vld [vmem:[#allocation10 + $0x6a8] sm:$0xff]
        %v4829 = vld [vmem:[#allocation10 + $0x6b0] sm:$0xff]
        %v4830 = vld [vmem:[#allocation10 + $0x6b8] sm:$0xff]
        %v4831 = vld [vmem:[#allocation10 + $0x6c0] sm:$0xff]
        %v4832 = vld [vmem:[#allocation10 + $0x6c8] sm:$0xff]
        %v4833 = vld [vmem:[#allocation10 + $0x6d0] sm:$0xff]
        %v4834 = vld [vmem:[#allocation10 + $0x6d8] sm:$0xff]
        %v4835 = vld [vmem:[#allocation10 + $0x6e0] sm:$0xff]
        %v4836 = vld [vmem:[#allocation10 + $0x6e8] sm:$0xff]
        %v4837 = vld [vmem:[#allocation10 + $0x6f0] sm:$0xff]
        %v4838 = vld [vmem:[#allocation10 + $0x6f8] sm:$0xff]
        %v4839 = vld [vmem:[#allocation10 + $0x700] sm:$0xff]
        %v4840 = vld [vmem:[#allocation10 + $0x708] sm:$0xff]
        %v4841 = vld [vmem:[#allocation10 + $0x710] sm:$0xff]
        %v4842 = vld [vmem:[#allocation10 + $0x718] sm:$0xff]
        %v4843 = vld [vmem:[#allocation10 + $0x720] sm:$0xff]
        %v4844 = vld [vmem:[#allocation10 + $0x728] sm:$0xff]
        %v4845 = vld [vmem:[#allocation10 + $0x730] sm:$0xff]
        %v4846 = vld [vmem:[#allocation10 + $0x738] sm:$0xff]
        %v4847 = vld [vmem:[#allocation10 + $0x740] sm:$0xff]
        %v4848 = vld [vmem:[#allocation10 + $0x748] sm:$0xff]
        %v4849 = vld [vmem:[#allocation10 + $0x750] sm:$0xff]
        %v4850 = vld [vmem:[#allocation10 + $0x758] sm:$0xff]
        %v4851 = vld [vmem:[#allocation10 + $0x760] sm:$0xff]
        %v4852 = vld [vmem:[#allocation10 + $0x768] sm:$0xff]
        %v4853 = vld [vmem:[#allocation10 + $0x770] sm:$0xff]
        %v4854 = vld [vmem:[#allocation10 + $0x778] sm:$0xff]
        %v4855 = vld [vmem:[#allocation10 + $0x780] sm:$0xff]
        %v4856 = vld [vmem:[#allocation10 + $0x788] sm:$0xff]
        %v4857 = vld [vmem:[#allocation10 + $0x790] sm:$0xff]
        %v4858 = vld [vmem:[#allocation10 + $0x798] sm:$0xff]
        %v4859 = vld [vmem:[#allocation10 + $0x7a0] sm:$0xff]
        %v4860 = vld [vmem:[#allocation10 + $0x7a8] sm:$0xff]
        %v4861 = vld [vmem:[#allocation10 + $0x7b0] sm:$0xff]
        %v4862 = vld [vmem:[#allocation10 + $0x7b8] sm:$0xff]
        %v4863 = vld [vmem:[#allocation10 + $0x7c0] sm:$0xff]
        %v4864 = vld [vmem:[#allocation10 + $0x7c8] sm:$0xff]
        %v4865 = vld [vmem:[#allocation10 + $0x7d0] sm:$0xff]
        %v4866 = vld [vmem:[#allocation10 + $0x7d8] sm:$0xff]
        %v4867 = vld [vmem:[#allocation10 + $0x7e0] sm:$0xff]
        %v4868 = vld [vmem:[#allocation10 + $0x7e8] sm:$0xff]
        %v4869 = vld [vmem:[#allocation10 + $0x7f0] sm:$0xff]
        %v4870 = vld [vmem:[#allocation10 + $0x7f8] sm:$0xff]
        %4871 = vmatprep.subr.mxu0 %v4736
        %4872 = vmatpush1.msra.mxu0 %v4735
        %4873 = vmatprep.subr.mxu0 %v4728
        %4874 = vmatpush1.msra.mxu0 %v4727
        %4875 = vmatprep.subr.mxu0 %v4720
        %4876 = vmatpush1.msra.mxu0 %v4719
        %4877 = vmatprep.subr.mxu0 %v4712
        %4878 = vmatpush1.msra.mxu0 %v4711
        %4879 = vmatprep.subr.mxu0 %v4704
        %4880 = vmatpush1.msra.mxu0 %v4703
        %4881 = vmatprep.subr.mxu0 %v4696
        %4882 = vmatpush1.msra.mxu0 %v4695
        %4883 = vmatprep.subr.mxu0 %v4688
        %4884 = vmatpush1.msra.mxu0 %v4687
        %4885 = vmatprep.subr.mxu0 %v4680
        %4886 = vmatpush1.msra.mxu0 %v4679
        %4887 = vmatprep.subr.mxu0 %v4672
        %4888 = vmatpush1.msra.mxu0 %v4671
        %4889 = vmatprep.subr.mxu0 %v4664
        %4890 = vmatpush1.msra.mxu0 %v4663
        %4891 = vmatprep.subr.mxu0 %v4656
        %4892 = vmatpush1.msra.mxu0 %v4655
        %4893 = vmatprep.subr.mxu0 %v4648
        %4894 = vmatpush1.msra.mxu0 %v4647
        %4895 = vmatprep.subr.mxu0 %v4640
        %4896 = vmatpush1.msra.mxu0 %v4639
        %4897 = vmatprep.subr.mxu0 %v4632
        %4898 = vmatpush1.msra.mxu0 %v4631
        %4899 = vmatprep.subr.mxu0 %v4624
        %4900 = vmatpush1.msra.mxu0 %v4623
        %4901 = vmatprep.subr.mxu0 %v4616
        %4902 = vmatpush1.msra.mxu0 %v4615
        %4903 = vmatprep.subr.mxu0 %v4864
        %4904 = vmatpush2.msra.mxu0 %v4863
        %4905 = vmatprep.subr.mxu0 %v4856
        %4906 = vmatpush2.msra.mxu0 %v4855
        %4907 = vmatprep.subr.mxu0 %v4848
        %4908 = vmatpush2.msra.mxu0 %v4847
        %4909 = vmatprep.subr.mxu0 %v4840
        %4910 = vmatpush2.msra.mxu0 %v4839
        %4911 = vmatprep.subr.mxu0 %v4832
        %4912 = vmatpush2.msra.mxu0 %v4831
        %4913 = vmatprep.subr.mxu0 %v4824
        %4914 = vmatpush2.msra.mxu0 %v4823
        %4915 = vmatprep.subr.mxu0 %v4816
        %4916 = vmatpush2.msra.mxu0 %v4815
        %4917 = vmatprep.subr.mxu0 %v4808
        %4918 = vmatpush2.msra.mxu0 %v4807
        %4919 = vmatprep.subr.mxu0 %v4800
        %4920 = vmatpush2.msra.mxu0 %v4799
        %4921 = vmatprep.subr.mxu0 %v4792
        %4922 = vmatpush2.msra.mxu0 %v4791
        %4923 = vmatprep.subr.mxu0 %v4784
        %4924 = vmatpush2.msra.mxu0 %v4783
        %4925 = vmatprep.subr.mxu0 %v4776
        %4926 = vmatpush2.msra.mxu0 %v4775
        %4927 = vmatprep.subr.mxu0 %v4768
        %4928 = vmatpush2.msra.mxu0 %v4767
        %4929 = vmatprep.subr.mxu0 %v4760
        %4930 = vmatpush2.msra.mxu0 %v4759
        %4931 = vmatprep.subr.mxu0 %v4752
        %4932 = vmatpush2.msra.mxu0 %v4751
        %4933 = vmatprep.subr.mxu0 %v4744
        %4934 = vmatpush2.msra.mxu0 %v4743
        %4935 = vmatprep.mubr.f32.mxu0 %v4606
        %4936 = vmatmul.mubr.f32.gmra.mxu0 %v4605
        %v4937 = vpop.f32.mrf.mxu0
        %v4938 = vadd.f32 0.0, %v4937
        %v4939 = vpop.f32.mrf.mxu0
        %v4940 = vadd.f32 0.0, %v4939
        %4941 = vdwg.mxu0
        %4942 = vmatprep.subr.mxu0 %v4738
        %4943 = vmatpush1.msra.mxu0 %v4737
        %4944 = vmatprep.subr.mxu0 %v4730
        %4945 = vmatpush1.msra.mxu0 %v4729
        %4946 = vmatprep.subr.mxu0 %v4722
        %4947 = vmatpush1.msra.mxu0 %v4721
        %4948 = vmatprep.subr.mxu0 %v4714
        %4949 = vmatpush1.msra.mxu0 %v4713
        %4950 = vmatprep.subr.mxu0 %v4706
        %4951 = vmatpush1.msra.mxu0 %v4705
        %4952 = vmatprep.subr.mxu0 %v4698
        %4953 = vmatpush1.msra.mxu0 %v4697
        %4954 = vmatprep.subr.mxu0 %v4690
        %4955 = vmatpush1.msra.mxu0 %v4689
        %4956 = vmatprep.subr.mxu0 %v4682
        %4957 = vmatpush1.msra.mxu0 %v4681
        %4958 = vmatprep.subr.mxu0 %v4674
        %4959 = vmatpush1.msra.mxu0 %v4673
        %4960 = vmatprep.subr.mxu0 %v4666
        %4961 = vmatpush1.msra.mxu0 %v4665
        %4962 = vmatprep.subr.mxu0 %v4658
        %4963 = vmatpush1.msra.mxu0 %v4657
        %4964 = vmatprep.subr.mxu0 %v4650
        %4965 = vmatpush1.msra.mxu0 %v4649
        %4966 = vmatprep.subr.mxu0 %v4642
        %4967 = vmatpush1.msra.mxu0 %v4641
        %4968 = vmatprep.subr.mxu0 %v4634
        %4969 = vmatpush1.msra.mxu0 %v4633
        %4970 = vmatprep.subr.mxu0 %v4626
        %4971 = vmatpush1.msra.mxu0 %v4625
        %4972 = vmatprep.subr.mxu0 %v4618
        %4973 = vmatpush1.msra.mxu0 %v4617
        %4974 = vmatprep.subr.mxu0 %v4866
        %4975 = vmatpush2.msra.mxu0 %v4865
        %4976 = vmatprep.subr.mxu0 %v4858
        %4977 = vmatpush2.msra.mxu0 %v4857
        %4978 = vmatprep.subr.mxu0 %v4850
        %4979 = vmatpush2.msra.mxu0 %v4849
        %4980 = vmatprep.subr.mxu0 %v4842
        %4981 = vmatpush2.msra.mxu0 %v4841
        %4982 = vmatprep.subr.mxu0 %v4834
        %4983 = vmatpush2.msra.mxu0 %v4833
        %4984 = vmatprep.subr.mxu0 %v4826
        %4985 = vmatpush2.msra.mxu0 %v4825
        %4986 = vmatprep.subr.mxu0 %v4818
        %4987 = vmatpush2.msra.mxu0 %v4817
        %4988 = vmatprep.subr.mxu0 %v4810
        %4989 = vmatpush2.msra.mxu0 %v4809
        %4990 = vmatprep.subr.mxu0 %v4802
        %4991 = vmatpush2.msra.mxu0 %v4801
        %4992 = vmatprep.subr.mxu0 %v4794
        %4993 = vmatpush2.msra.mxu0 %v4793
        %4994 = vmatprep.subr.mxu0 %v4786
        %4995 = vmatpush2.msra.mxu0 %v4785
        %4996 = vmatprep.subr.mxu0 %v4778
        %4997 = vmatpush2.msra.mxu0 %v4777
        %4998 = vmatprep.subr.mxu0 %v4770
        %4999 = vmatpush2.msra.mxu0 %v4769
        %5000 = vmatprep.subr.mxu0 %v4762
        %5001 = vmatpush2.msra.mxu0 %v4761
        %5002 = vmatprep.subr.mxu0 %v4754
        %5003 = vmatpush2.msra.mxu0 %v4753
        %5004 = vmatprep.subr.mxu0 %v4746
        %5005 = vmatpush2.msra.mxu0 %v4745
        %5006 = vmatprep.mubr.f32.mxu0 %v4606
        %5007 = vmatmul.mubr.f32.gmra.mxu0 %v4605
        %v5008 = vpop.f32.mrf.mxu0
        %v5009 = vadd.f32 0.0, %v5008
        %v5010 = vpop.f32.mrf.mxu0
        %v5011 = vadd.f32 0.0, %v5010
        %5012 = vdwg.mxu0
        %5013 = vmatprep.subr.mxu0 %v4740
        %5014 = vmatpush1.msra.mxu0 %v4739
        %5015 = vmatprep.subr.mxu0 %v4732
        %5016 = vmatpush1.msra.mxu0 %v4731
        %5017 = vmatprep.subr.mxu0 %v4724
        %5018 = vmatpush1.msra.mxu0 %v4723
        %5019 = vmatprep.subr.mxu0 %v4716
        %5020 = vmatpush1.msra.mxu0 %v4715
        %5021 = vmatprep.subr.mxu0 %v4708
        %5022 = vmatpush1.msra.mxu0 %v4707
        %5023 = vmatprep.subr.mxu0 %v4700
        %5024 = vmatpush1.msra.mxu0 %v4699
        %5025 = vmatprep.subr.mxu0 %v4692
        %5026 = vmatpush1.msra.mxu0 %v4691
        %5027 = vmatprep.subr.mxu0 %v4684
        %5028 = vmatpush1.msra.mxu0 %v4683
        %5029 = vmatprep.subr.mxu0 %v4676
        %5030 = vmatpush1.msra.mxu0 %v4675
        %5031 = vmatprep.subr.mxu0 %v4668
        %5032 = vmatpush1.msra.mxu0 %v4667
        %5033 = vmatprep.subr.mxu0 %v4660
        %5034 = vmatpush1.msra.mxu0 %v4659
        %5035 = vmatprep.subr.mxu0 %v4652
        %5036 = vmatpush1.msra.mxu0 %v4651
        %5037 = vmatprep.subr.mxu0 %v4644
        %5038 = vmatpush1.msra.mxu0 %v4643
        %5039 = vmatprep.subr.mxu0 %v4636
        %5040 = vmatpush1.msra.mxu0 %v4635
        %5041 = vmatprep.subr.mxu0 %v4628
        %5042 = vmatpush1.msra.mxu0 %v4627
        %5043 = vmatprep.subr.mxu0 %v4620
        %5044 = vmatpush1.msra.mxu0 %v4619
        %5045 = vmatprep.subr.mxu0 %v4868
        %5046 = vmatpush2.msra.mxu0 %v4867
        %5047 = vmatprep.subr.mxu0 %v4860
        %5048 = vmatpush2.msra.mxu0 %v4859
        %5049 = vmatprep.subr.mxu0 %v4852
        %5050 = vmatpush2.msra.mxu0 %v4851
        %5051 = vmatprep.subr.mxu0 %v4844
        %5052 = vmatpush2.msra.mxu0 %v4843
        %5053 = vmatprep.subr.mxu0 %v4836
        %5054 = vmatpush2.msra.mxu0 %v4835
        %5055 = vmatprep.subr.mxu0 %v4828
        %5056 = vmatpush2.msra.mxu0 %v4827
        %5057 = vmatprep.subr.mxu0 %v4820
        %5058 = vmatpush2.msra.mxu0 %v4819
        %5059 = vmatprep.subr.mxu0 %v4812
        %5060 = vmatpush2.msra.mxu0 %v4811
        %5061 = vmatprep.subr.mxu0 %v4804
        %5062 = vmatpush2.msra.mxu0 %v4803
        %5063 = vmatprep.subr.mxu0 %v4796
        %5064 = vmatpush2.msra.mxu0 %v4795
        %5065 = vmatprep.subr.mxu0 %v4788
        %5066 = vmatpush2.msra.mxu0 %v4787
        %5067 = vmatprep.subr.mxu0 %v4780
        %5068 = vmatpush2.msra.mxu0 %v4779
        %5069 = vmatprep.subr.mxu0 %v4772
        %5070 = vmatpush2.msra.mxu0 %v4771
        %5071 = vmatprep.subr.mxu0 %v4764
        %5072 = vmatpush2.msra.mxu0 %v4763
        %5073 = vmatprep.subr.mxu0 %v4756
        %5074 = vmatpush2.msra.mxu0 %v4755
        %5075 = vmatprep.subr.mxu0 %v4748
        %5076 = vmatpush2.msra.mxu0 %v4747
        %5077 = vmatprep.mubr.f32.mxu0 %v4606
        %5078 = vmatmul.mubr.f32.gmra.mxu0 %v4605
        %v5079 = vpop.f32.mrf.mxu0
        %v5080 = vadd.f32 0.0, %v5079
        %v5081 = vpop.f32.mrf.mxu0
        %v5082 = vadd.f32 0.0, %v5081
        %5083 = vdwg.mxu0
        %5084 = vmatprep.subr.mxu0 %v4742
        %5085 = vmatpush1.msra.mxu0 %v4741
        %5086 = vmatprep.subr.mxu0 %v4734
        %5087 = vmatpush1.msra.mxu0 %v4733
        %5088 = vmatprep.subr.mxu0 %v4726
        %5089 = vmatpush1.msra.mxu0 %v4725
        %5090 = vmatprep.subr.mxu0 %v4718
        %5091 = vmatpush1.msra.mxu0 %v4717
        %5092 = vmatprep.subr.mxu0 %v4710
        %5093 = vmatpush1.msra.mxu0 %v4709
        %5094 = vmatprep.subr.mxu0 %v4702
        %5095 = vmatpush1.msra.mxu0 %v4701
        %5096 = vmatprep.subr.mxu0 %v4694
        %5097 = vmatpush1.msra.mxu0 %v4693
        %5098 = vmatprep.subr.mxu0 %v4686
        %5099 = vmatpush1.msra.mxu0 %v4685
        %5100 = vmatprep.subr.mxu0 %v4678
        %5101 = vmatpush1.msra.mxu0 %v4677
        %5102 = vmatprep.subr.mxu0 %v4670
        %5103 = vmatpush1.msra.mxu0 %v4669
        %5104 = vmatprep.subr.mxu0 %v4662
        %5105 = vmatpush1.msra.mxu0 %v4661
        %5106 = vmatprep.subr.mxu0 %v4654
        %5107 = vmatpush1.msra.mxu0 %v4653
        %5108 = vmatprep.subr.mxu0 %v4646
        %5109 = vmatpush1.msra.mxu0 %v4645
        %5110 = vmatprep.subr.mxu0 %v4638
        %5111 = vmatpush1.msra.mxu0 %v4637
        %5112 = vmatprep.subr.mxu0 %v4630
        %5113 = vmatpush1.msra.mxu0 %v4629
        %5114 = vmatprep.subr.mxu0 %v4622
        %5115 = vmatpush1.msra.mxu0 %v4621
        %5116 = vmatprep.subr.mxu0 %v4870
        %5117 = vmatpush2.msra.mxu0 %v4869
        %5118 = vmatprep.subr.mxu0 %v4862
        %5119 = vmatpush2.msra.mxu0 %v4861
        %5120 = vmatprep.subr.mxu0 %v4854
        %5121 = vmatpush2.msra.mxu0 %v4853
        %5122 = vmatprep.subr.mxu0 %v4846
        %5123 = vmatpush2.msra.mxu0 %v4845
        %5124 = vmatprep.subr.mxu0 %v4838
        %5125 = vmatpush2.msra.mxu0 %v4837
        %5126 = vmatprep.subr.mxu0 %v4830
        %5127 = vmatpush2.msra.mxu0 %v4829
        %5128 = vmatprep.subr.mxu0 %v4822
        %5129 = vmatpush2.msra.mxu0 %v4821
        %5130 = vmatprep.subr.mxu0 %v4814
        %5131 = vmatpush2.msra.mxu0 %v4813
        %5132 = vmatprep.subr.mxu0 %v4806
        %5133 = vmatpush2.msra.mxu0 %v4805
        %5134 = vmatprep.subr.mxu0 %v4798
        %5135 = vmatpush2.msra.mxu0 %v4797
        %5136 = vmatprep.subr.mxu0 %v4790
        %5137 = vmatpush2.msra.mxu0 %v4789
        %5138 = vmatprep.subr.mxu0 %v4782
        %5139 = vmatpush2.msra.mxu0 %v4781
        %5140 = vmatprep.subr.mxu0 %v4774
        %5141 = vmatpush2.msra.mxu0 %v4773
        %5142 = vmatprep.subr.mxu0 %v4766
        %5143 = vmatpush2.msra.mxu0 %v4765
        %5144 = vmatprep.subr.mxu0 %v4758
        %5145 = vmatpush2.msra.mxu0 %v4757
        %5146 = vmatprep.subr.mxu0 %v4750
        %5147 = vmatpush2.msra.mxu0 %v4749
        %5148 = vmatprep.mubr.f32.mxu0 %v4606
        %5149 = vmatmul.mubr.f32.gmra.mxu0 %v4605
        %v5150 = vpop.f32.mrf.mxu0
        %v5151 = vadd.f32 0.0, %v5150
        %v5152 = vpop.f32.mrf.mxu0
        %v5153 = vadd.f32 0.0, %v5152
        %5154 = vdwg.mxu0
        %v5155 = vadd.f32 %v4607, %v4938
        %v5156 = vadd.f32 %v4608, %v4940
        %v5157 = vadd.f32 %v4609, %v5009
        %v5158 = vadd.f32 %v4610, %v5011
        %v5159 = vadd.f32 %v4611, %v5080
        %v5160 = vadd.f32 %v4612, %v5082
        %v5161 = vadd.f32 %v4613, %v5151
        %v5162 = vadd.f32 %v4614, %v5153
        %v5163 = vxor.u32 %v5155, 2147483648
        %v5164 = vxor.u32 %v5156, 2147483648
        %v5165 = vmul.f32 %v5163, 1.442695
        %v5166 = vpow.pop %v5165
        %v5167 = vmul.f32 %v5164, 1.442695
        %v5168 = vpow.pop %v5167
        %v5169 = vadd.f32 %v5166, 1.0
        %v5170 = vadd.f32 %v5168, 1.0
        %v5171 = vrcp.pop %v5169
        %v5172 = vmul.f32 1.0, %v5171
        %v5173 = vrcp.pop %v5170
        %v5174 = vmul.f32 1.0, %v5173
        %v5175 = vxor.u32 %v5157, 2147483648
        %v5176 = vxor.u32 %v5158, 2147483648
        %v5177 = vmul.f32 %v5175, 1.442695
        %v5178 = vpow.pop %v5177
        %v5179 = vmul.f32 %v5176, 1.442695
        %v5180 = vpow.pop %v5179
        %v5181 = vadd.f32 %v5178, 1.0
        %v5182 = vadd.f32 %v5180, 1.0
        %v5183 = vrcp.pop %v5181
        %v5184 = vmul.f32 1.0, %v5183
        %v5185 = vrcp.pop %v5182
        %v5186 = vmul.f32 1.0, %v5185
        %v5187 = vtanh.pop %v5159
        %v5188 = vtanh.pop %v5160
        %v5189 = vxor.u32 %v5161, 2147483648
        %v5190 = vxor.u32 %v5162, 2147483648
        %v5191 = vmul.f32 %v5189, 1.442695
        %v5192 = vpow.pop %v5191
        %v5193 = vmul.f32 %v5190, 1.442695
        %v5194 = vpow.pop %v5193
        %v5195 = vadd.f32 %v5192, 1.0
        %v5196 = vadd.f32 %v5194, 1.0
        %v5197 = vrcp.pop %v5195
        %v5198 = vmul.f32 1.0, %v5197
        %v5199 = vrcp.pop %v5196
        %v5200 = vmul.f32 1.0, %v5199
        %v5201 = vld [vmem:[#allocation3] sm:$0xff]
        %v5202 = vld [vmem:[#allocation3 + $0x8] sm:$0xff]
        %v5203 = vmul.f32 %v5184, %v5201
        %v5204 = vmul.f32 %v5186, %v5202
        %v5205 = vmul.f32 %v5172, %v5187
        %v5206 = vmul.f32 %v5174, %v5188
        %v5207 = vadd.f32 %v5203, %v5205
        %v5208 = vadd.f32 %v5204, %v5206
        %5209 = vst [vmem:[#allocation3] sm:$0xff] %v5207
        %5210 = vst [vmem:[#allocation3 + $0x8] sm:$0xff] %v5208
        %v5211 = vtanh.pop %v5207
        %v5212 = vtanh.pop %v5208
        %v5213 = vmul.f32 %v5198, %v5211
        %v5214 = vmul.f32 %v5200, %v5212
        %5215 = vst [vmem:[#allocation2] sm:$0xff] %v5213
        %5216 = vst [vmem:[#allocation2 + $0x8] sm:$0xff] %v5214
        %v5217 = vld [vmem:[#allocation2] sm:$0xff]
        %v5218 = vld [vmem:[#allocation2 + $0x8] sm:$0xff]
        %v5219 = vld [vmem:[#allocation4 + $0x1c0] sm:$0xff]
        %v5220 = vld [vmem:[#allocation4 + $0x1c8] sm:$0xff]
        %v5221 = vld [vmem:[#allocation4 + $0x1d0] sm:$0xff]
        %v5222 = vld [vmem:[#allocation4 + $0x1d8] sm:$0xff]
        %v5223 = vld [vmem:[#allocation4 + $0x1e0] sm:$0xff]
        %v5224 = vld [vmem:[#allocation4 + $0x1e8] sm:$0xff]
        %v5225 = vld [vmem:[#allocation4 + $0x1f0] sm:$0xff]
        %v5226 = vld [vmem:[#allocation4 + $0x1f8] sm:$0xff]
        %v5227 = vld [vmem:[#allocation10] sm:$0xff]
        %v5228 = vld [vmem:[#allocation10 + $0x8] sm:$0xff]
        %v5229 = vld [vmem:[#allocation10 + $0x10] sm:$0xff]
        %v5230 = vld [vmem:[#allocation10 + $0x18] sm:$0xff]
        %v5231 = vld [vmem:[#allocation10 + $0x20] sm:$0xff]
        %v5232 = vld [vmem:[#allocation10 + $0x28] sm:$0xff]
        %v5233 = vld [vmem:[#allocation10 + $0x30] sm:$0xff]
        %v5234 = vld [vmem:[#allocation10 + $0x38] sm:$0xff]
        %v5235 = vld [vmem:[#allocation10 + $0x40] sm:$0xff]
        %v5236 = vld [vmem:[#allocation10 + $0x48] sm:$0xff]
        %v5237 = vld [vmem:[#allocation10 + $0x50] sm:$0xff]
        %v5238 = vld [vmem:[#allocation10 + $0x58] sm:$0xff]
        %v5239 = vld [vmem:[#allocation10 + $0x60] sm:$0xff]
        %v5240 = vld [vmem:[#allocation10 + $0x68] sm:$0xff]
        %v5241 = vld [vmem:[#allocation10 + $0x70] sm:$0xff]
        %v5242 = vld [vmem:[#allocation10 + $0x78] sm:$0xff]
        %v5243 = vld [vmem:[#allocation10 + $0x80] sm:$0xff]
        %v5244 = vld [vmem:[#allocation10 + $0x88] sm:$0xff]
        %v5245 = vld [vmem:[#allocation10 + $0x90] sm:$0xff]
        %v5246 = vld [vmem:[#allocation10 + $0x98] sm:$0xff]
        %v5247 = vld [vmem:[#allocation10 + $0xa0] sm:$0xff]
        %v5248 = vld [vmem:[#allocation10 + $0xa8] sm:$0xff]
        %v5249 = vld [vmem:[#allocation10 + $0xb0] sm:$0xff]
        %v5250 = vld [vmem:[#allocation10 + $0xb8] sm:$0xff]
        %v5251 = vld [vmem:[#allocation10 + $0xc0] sm:$0xff]
        %v5252 = vld [vmem:[#allocation10 + $0xc8] sm:$0xff]
        %v5253 = vld [vmem:[#allocation10 + $0xd0] sm:$0xff]
        %v5254 = vld [vmem:[#allocation10 + $0xd8] sm:$0xff]
        %v5255 = vld [vmem:[#allocation10 + $0xe0] sm:$0xff]
        %v5256 = vld [vmem:[#allocation10 + $0xe8] sm:$0xff]
        %v5257 = vld [vmem:[#allocation10 + $0xf0] sm:$0xff]
        %v5258 = vld [vmem:[#allocation10 + $0xf8] sm:$0xff]
        %v5259 = vld [vmem:[#allocation10 + $0x100] sm:$0xff]
        %v5260 = vld [vmem:[#allocation10 + $0x108] sm:$0xff]
        %v5261 = vld [vmem:[#allocation10 + $0x110] sm:$0xff]
        %v5262 = vld [vmem:[#allocation10 + $0x118] sm:$0xff]
        %v5263 = vld [vmem:[#allocation10 + $0x120] sm:$0xff]
        %v5264 = vld [vmem:[#allocation10 + $0x128] sm:$0xff]
        %v5265 = vld [vmem:[#allocation10 + $0x130] sm:$0xff]
        %v5266 = vld [vmem:[#allocation10 + $0x138] sm:$0xff]
        %v5267 = vld [vmem:[#allocation10 + $0x140] sm:$0xff]
        %v5268 = vld [vmem:[#allocation10 + $0x148] sm:$0xff]
        %v5269 = vld [vmem:[#allocation10 + $0x150] sm:$0xff]
        %v5270 = vld [vmem:[#allocation10 + $0x158] sm:$0xff]
        %v5271 = vld [vmem:[#allocation10 + $0x160] sm:$0xff]
        %v5272 = vld [vmem:[#allocation10 + $0x168] sm:$0xff]
        %v5273 = vld [vmem:[#allocation10 + $0x170] sm:$0xff]
        %v5274 = vld [vmem:[#allocation10 + $0x178] sm:$0xff]
        %v5275 = vld [vmem:[#allocation10 + $0x180] sm:$0xff]
        %v5276 = vld [vmem:[#allocation10 + $0x188] sm:$0xff]
        %v5277 = vld [vmem:[#allocation10 + $0x190] sm:$0xff]
        %v5278 = vld [vmem:[#allocation10 + $0x198] sm:$0xff]
        %v5279 = vld [vmem:[#allocation10 + $0x1a0] sm:$0xff]
        %v5280 = vld [vmem:[#allocation10 + $0x1a8] sm:$0xff]
        %v5281 = vld [vmem:[#allocation10 + $0x1b0] sm:$0xff]
        %v5282 = vld [vmem:[#allocation10 + $0x1b8] sm:$0xff]
        %v5283 = vld [vmem:[#allocation10 + $0x1c0] sm:$0xff]
        %v5284 = vld [vmem:[#allocation10 + $0x1c8] sm:$0xff]
        %v5285 = vld [vmem:[#allocation10 + $0x1d0] sm:$0xff]
        %v5286 = vld [vmem:[#allocation10 + $0x1d8] sm:$0xff]
        %v5287 = vld [vmem:[#allocation10 + $0x1e0] sm:$0xff]
        %v5288 = vld [vmem:[#allocation10 + $0x1e8] sm:$0xff]
        %v5289 = vld [vmem:[#allocation10 + $0x1f0] sm:$0xff]
        %v5290 = vld [vmem:[#allocation10 + $0x1f8] sm:$0xff]
        %v5291 = vld [vmem:[#allocation10 + $0x200] sm:$0xff]
        %v5292 = vld [vmem:[#allocation10 + $0x208] sm:$0xff]
        %v5293 = vld [vmem:[#allocation10 + $0x210] sm:$0xff]
        %v5294 = vld [vmem:[#allocation10 + $0x218] sm:$0xff]
        %v5295 = vld [vmem:[#allocation10 + $0x220] sm:$0xff]
        %v5296 = vld [vmem:[#allocation10 + $0x228] sm:$0xff]
        %v5297 = vld [vmem:[#allocation10 + $0x230] sm:$0xff]
        %v5298 = vld [vmem:[#allocation10 + $0x238] sm:$0xff]
        %v5299 = vld [vmem:[#allocation10 + $0x240] sm:$0xff]
        %v5300 = vld [vmem:[#allocation10 + $0x248] sm:$0xff]
        %v5301 = vld [vmem:[#allocation10 + $0x250] sm:$0xff]
        %v5302 = vld [vmem:[#allocation10 + $0x258] sm:$0xff]
        %v5303 = vld [vmem:[#allocation10 + $0x260] sm:$0xff]
        %v5304 = vld [vmem:[#allocation10 + $0x268] sm:$0xff]
        %v5305 = vld [vmem:[#allocation10 + $0x270] sm:$0xff]
        %v5306 = vld [vmem:[#allocation10 + $0x278] sm:$0xff]
        %v5307 = vld [vmem:[#allocation10 + $0x280] sm:$0xff]
        %v5308 = vld [vmem:[#allocation10 + $0x288] sm:$0xff]
        %v5309 = vld [vmem:[#allocation10 + $0x290] sm:$0xff]
        %v5310 = vld [vmem:[#allocation10 + $0x298] sm:$0xff]
        %v5311 = vld [vmem:[#allocation10 + $0x2a0] sm:$0xff]
        %v5312 = vld [vmem:[#allocation10 + $0x2a8] sm:$0xff]
        %v5313 = vld [vmem:[#allocation10 + $0x2b0] sm:$0xff]
        %v5314 = vld [vmem:[#allocation10 + $0x2b8] sm:$0xff]
        %v5315 = vld [vmem:[#allocation10 + $0x2c0] sm:$0xff]
        %v5316 = vld [vmem:[#allocation10 + $0x2c8] sm:$0xff]
        %v5317 = vld [vmem:[#allocation10 + $0x2d0] sm:$0xff]
        %v5318 = vld [vmem:[#allocation10 + $0x2d8] sm:$0xff]
        %v5319 = vld [vmem:[#allocation10 + $0x2e0] sm:$0xff]
        %v5320 = vld [vmem:[#allocation10 + $0x2e8] sm:$0xff]
        %v5321 = vld [vmem:[#allocation10 + $0x2f0] sm:$0xff]
        %v5322 = vld [vmem:[#allocation10 + $0x2f8] sm:$0xff]
        %v5323 = vld [vmem:[#allocation10 + $0x300] sm:$0xff]
        %v5324 = vld [vmem:[#allocation10 + $0x308] sm:$0xff]
        %v5325 = vld [vmem:[#allocation10 + $0x310] sm:$0xff]
        %v5326 = vld [vmem:[#allocation10 + $0x318] sm:$0xff]
        %v5327 = vld [vmem:[#allocation10 + $0x320] sm:$0xff]
        %v5328 = vld [vmem:[#allocation10 + $0x328] sm:$0xff]
        %v5329 = vld [vmem:[#allocation10 + $0x330] sm:$0xff]
        %v5330 = vld [vmem:[#allocation10 + $0x338] sm:$0xff]
        %v5331 = vld [vmem:[#allocation10 + $0x340] sm:$0xff]
        %v5332 = vld [vmem:[#allocation10 + $0x348] sm:$0xff]
        %v5333 = vld [vmem:[#allocation10 + $0x350] sm:$0xff]
        %v5334 = vld [vmem:[#allocation10 + $0x358] sm:$0xff]
        %v5335 = vld [vmem:[#allocation10 + $0x360] sm:$0xff]
        %v5336 = vld [vmem:[#allocation10 + $0x368] sm:$0xff]
        %v5337 = vld [vmem:[#allocation10 + $0x370] sm:$0xff]
        %v5338 = vld [vmem:[#allocation10 + $0x378] sm:$0xff]
        %v5339 = vld [vmem:[#allocation10 + $0x380] sm:$0xff]
        %v5340 = vld [vmem:[#allocation10 + $0x388] sm:$0xff]
        %v5341 = vld [vmem:[#allocation10 + $0x390] sm:$0xff]
        %v5342 = vld [vmem:[#allocation10 + $0x398] sm:$0xff]
        %v5343 = vld [vmem:[#allocation10 + $0x3a0] sm:$0xff]
        %v5344 = vld [vmem:[#allocation10 + $0x3a8] sm:$0xff]
        %v5345 = vld [vmem:[#allocation10 + $0x3b0] sm:$0xff]
        %v5346 = vld [vmem:[#allocation10 + $0x3b8] sm:$0xff]
        %v5347 = vld [vmem:[#allocation10 + $0x3c0] sm:$0xff]
        %v5348 = vld [vmem:[#allocation10 + $0x3c8] sm:$0xff]
        %v5349 = vld [vmem:[#allocation10 + $0x3d0] sm:$0xff]
        %v5350 = vld [vmem:[#allocation10 + $0x3d8] sm:$0xff]
        %v5351 = vld [vmem:[#allocation10 + $0x3e0] sm:$0xff]
        %v5352 = vld [vmem:[#allocation10 + $0x3e8] sm:$0xff]
        %v5353 = vld [vmem:[#allocation10 + $0x3f0] sm:$0xff]
        %v5354 = vld [vmem:[#allocation10 + $0x3f8] sm:$0xff]
        %v5355 = vld [vmem:[#allocation10 + $0x400] sm:$0xff]
        %v5356 = vld [vmem:[#allocation10 + $0x408] sm:$0xff]
        %v5357 = vld [vmem:[#allocation10 + $0x410] sm:$0xff]
        %v5358 = vld [vmem:[#allocation10 + $0x418] sm:$0xff]
        %v5359 = vld [vmem:[#allocation10 + $0x420] sm:$0xff]
        %v5360 = vld [vmem:[#allocation10 + $0x428] sm:$0xff]
        %v5361 = vld [vmem:[#allocation10 + $0x430] sm:$0xff]
        %v5362 = vld [vmem:[#allocation10 + $0x438] sm:$0xff]
        %v5363 = vld [vmem:[#allocation10 + $0x440] sm:$0xff]
        %v5364 = vld [vmem:[#allocation10 + $0x448] sm:$0xff]
        %v5365 = vld [vmem:[#allocation10 + $0x450] sm:$0xff]
        %v5366 = vld [vmem:[#allocation10 + $0x458] sm:$0xff]
        %v5367 = vld [vmem:[#allocation10 + $0x460] sm:$0xff]
        %v5368 = vld [vmem:[#allocation10 + $0x468] sm:$0xff]
        %v5369 = vld [vmem:[#allocation10 + $0x470] sm:$0xff]
        %v5370 = vld [vmem:[#allocation10 + $0x478] sm:$0xff]
        %v5371 = vld [vmem:[#allocation10 + $0x480] sm:$0xff]
        %v5372 = vld [vmem:[#allocation10 + $0x488] sm:$0xff]
        %v5373 = vld [vmem:[#allocation10 + $0x490] sm:$0xff]
        %v5374 = vld [vmem:[#allocation10 + $0x498] sm:$0xff]
        %v5375 = vld [vmem:[#allocation10 + $0x4a0] sm:$0xff]
        %v5376 = vld [vmem:[#allocation10 + $0x4a8] sm:$0xff]
        %v5377 = vld [vmem:[#allocation10 + $0x4b0] sm:$0xff]
        %v5378 = vld [vmem:[#allocation10 + $0x4b8] sm:$0xff]
        %v5379 = vld [vmem:[#allocation10 + $0x4c0] sm:$0xff]
        %v5380 = vld [vmem:[#allocation10 + $0x4c8] sm:$0xff]
        %v5381 = vld [vmem:[#allocation10 + $0x4d0] sm:$0xff]
        %v5382 = vld [vmem:[#allocation10 + $0x4d8] sm:$0xff]
        %v5383 = vld [vmem:[#allocation10 + $0x4e0] sm:$0xff]
        %v5384 = vld [vmem:[#allocation10 + $0x4e8] sm:$0xff]
        %v5385 = vld [vmem:[#allocation10 + $0x4f0] sm:$0xff]
        %v5386 = vld [vmem:[#allocation10 + $0x4f8] sm:$0xff]
        %v5387 = vld [vmem:[#allocation10 + $0x500] sm:$0xff]
        %v5388 = vld [vmem:[#allocation10 + $0x508] sm:$0xff]
        %v5389 = vld [vmem:[#allocation10 + $0x510] sm:$0xff]
        %v5390 = vld [vmem:[#allocation10 + $0x518] sm:$0xff]
        %v5391 = vld [vmem:[#allocation10 + $0x520] sm:$0xff]
        %v5392 = vld [vmem:[#allocation10 + $0x528] sm:$0xff]
        %v5393 = vld [vmem:[#allocation10 + $0x530] sm:$0xff]
        %v5394 = vld [vmem:[#allocation10 + $0x538] sm:$0xff]
        %v5395 = vld [vmem:[#allocation10 + $0x540] sm:$0xff]
        %v5396 = vld [vmem:[#allocation10 + $0x548] sm:$0xff]
        %v5397 = vld [vmem:[#allocation10 + $0x550] sm:$0xff]
        %v5398 = vld [vmem:[#allocation10 + $0x558] sm:$0xff]
        %v5399 = vld [vmem:[#allocation10 + $0x560] sm:$0xff]
        %v5400 = vld [vmem:[#allocation10 + $0x568] sm:$0xff]
        %v5401 = vld [vmem:[#allocation10 + $0x570] sm:$0xff]
        %v5402 = vld [vmem:[#allocation10 + $0x578] sm:$0xff]
        %v5403 = vld [vmem:[#allocation10 + $0x580] sm:$0xff]
        %v5404 = vld [vmem:[#allocation10 + $0x588] sm:$0xff]
        %v5405 = vld [vmem:[#allocation10 + $0x590] sm:$0xff]
        %v5406 = vld [vmem:[#allocation10 + $0x598] sm:$0xff]
        %v5407 = vld [vmem:[#allocation10 + $0x5a0] sm:$0xff]
        %v5408 = vld [vmem:[#allocation10 + $0x5a8] sm:$0xff]
        %v5409 = vld [vmem:[#allocation10 + $0x5b0] sm:$0xff]
        %v5410 = vld [vmem:[#allocation10 + $0x5b8] sm:$0xff]
        %v5411 = vld [vmem:[#allocation10 + $0x5c0] sm:$0xff]
        %v5412 = vld [vmem:[#allocation10 + $0x5c8] sm:$0xff]
        %v5413 = vld [vmem:[#allocation10 + $0x5d0] sm:$0xff]
        %v5414 = vld [vmem:[#allocation10 + $0x5d8] sm:$0xff]
        %v5415 = vld [vmem:[#allocation10 + $0x5e0] sm:$0xff]
        %v5416 = vld [vmem:[#allocation10 + $0x5e8] sm:$0xff]
        %v5417 = vld [vmem:[#allocation10 + $0x5f0] sm:$0xff]
        %v5418 = vld [vmem:[#allocation10 + $0x5f8] sm:$0xff]
        %v5419 = vld [vmem:[#allocation10 + $0x600] sm:$0xff]
        %v5420 = vld [vmem:[#allocation10 + $0x608] sm:$0xff]
        %v5421 = vld [vmem:[#allocation10 + $0x610] sm:$0xff]
        %v5422 = vld [vmem:[#allocation10 + $0x618] sm:$0xff]
        %v5423 = vld [vmem:[#allocation10 + $0x620] sm:$0xff]
        %v5424 = vld [vmem:[#allocation10 + $0x628] sm:$0xff]
        %v5425 = vld [vmem:[#allocation10 + $0x630] sm:$0xff]
        %v5426 = vld [vmem:[#allocation10 + $0x638] sm:$0xff]
        %v5427 = vld [vmem:[#allocation10 + $0x640] sm:$0xff]
        %v5428 = vld [vmem:[#allocation10 + $0x648] sm:$0xff]
        %v5429 = vld [vmem:[#allocation10 + $0x650] sm:$0xff]
        %v5430 = vld [vmem:[#allocation10 + $0x658] sm:$0xff]
        %v5431 = vld [vmem:[#allocation10 + $0x660] sm:$0xff]
        %v5432 = vld [vmem:[#allocation10 + $0x668] sm:$0xff]
        %v5433 = vld [vmem:[#allocation10 + $0x670] sm:$0xff]
        %v5434 = vld [vmem:[#allocation10 + $0x678] sm:$0xff]
        %v5435 = vld [vmem:[#allocation10 + $0x680] sm:$0xff]
        %v5436 = vld [vmem:[#allocation10 + $0x688] sm:$0xff]
        %v5437 = vld [vmem:[#allocation10 + $0x690] sm:$0xff]
        %v5438 = vld [vmem:[#allocation10 + $0x698] sm:$0xff]
        %v5439 = vld [vmem:[#allocation10 + $0x6a0] sm:$0xff]
        %v5440 = vld [vmem:[#allocation10 + $0x6a8] sm:$0xff]
        %v5441 = vld [vmem:[#allocation10 + $0x6b0] sm:$0xff]
        %v5442 = vld [vmem:[#allocation10 + $0x6b8] sm:$0xff]
        %v5443 = vld [vmem:[#allocation10 + $0x6c0] sm:$0xff]
        %v5444 = vld [vmem:[#allocation10 + $0x6c8] sm:$0xff]
        %v5445 = vld [vmem:[#allocation10 + $0x6d0] sm:$0xff]
        %v5446 = vld [vmem:[#allocation10 + $0x6d8] sm:$0xff]
        %v5447 = vld [vmem:[#allocation10 + $0x6e0] sm:$0xff]
        %v5448 = vld [vmem:[#allocation10 + $0x6e8] sm:$0xff]
        %v5449 = vld [vmem:[#allocation10 + $0x6f0] sm:$0xff]
        %v5450 = vld [vmem:[#allocation10 + $0x6f8] sm:$0xff]
        %v5451 = vld [vmem:[#allocation10 + $0x700] sm:$0xff]
        %v5452 = vld [vmem:[#allocation10 + $0x708] sm:$0xff]
        %v5453 = vld [vmem:[#allocation10 + $0x710] sm:$0xff]
        %v5454 = vld [vmem:[#allocation10 + $0x718] sm:$0xff]
        %v5455 = vld [vmem:[#allocation10 + $0x720] sm:$0xff]
        %v5456 = vld [vmem:[#allocation10 + $0x728] sm:$0xff]
        %v5457 = vld [vmem:[#allocation10 + $0x730] sm:$0xff]
        %v5458 = vld [vmem:[#allocation10 + $0x738] sm:$0xff]
        %v5459 = vld [vmem:[#allocation10 + $0x740] sm:$0xff]
        %v5460 = vld [vmem:[#allocation10 + $0x748] sm:$0xff]
        %v5461 = vld [vmem:[#allocation10 + $0x750] sm:$0xff]
        %v5462 = vld [vmem:[#allocation10 + $0x758] sm:$0xff]
        %v5463 = vld [vmem:[#allocation10 + $0x760] sm:$0xff]
        %v5464 = vld [vmem:[#allocation10 + $0x768] sm:$0xff]
        %v5465 = vld [vmem:[#allocation10 + $0x770] sm:$0xff]
        %v5466 = vld [vmem:[#allocation10 + $0x778] sm:$0xff]
        %v5467 = vld [vmem:[#allocation10 + $0x780] sm:$0xff]
        %v5468 = vld [vmem:[#allocation10 + $0x788] sm:$0xff]
        %v5469 = vld [vmem:[#allocation10 + $0x790] sm:$0xff]
        %v5470 = vld [vmem:[#allocation10 + $0x798] sm:$0xff]
        %v5471 = vld [vmem:[#allocation10 + $0x7a0] sm:$0xff]
        %v5472 = vld [vmem:[#allocation10 + $0x7a8] sm:$0xff]
        %v5473 = vld [vmem:[#allocation10 + $0x7b0] sm:$0xff]
        %v5474 = vld [vmem:[#allocation10 + $0x7b8] sm:$0xff]
        %v5475 = vld [vmem:[#allocation10 + $0x7c0] sm:$0xff]
        %v5476 = vld [vmem:[#allocation10 + $0x7c8] sm:$0xff]
        %v5477 = vld [vmem:[#allocation10 + $0x7d0] sm:$0xff]
        %v5478 = vld [vmem:[#allocation10 + $0x7d8] sm:$0xff]
        %v5479 = vld [vmem:[#allocation10 + $0x7e0] sm:$0xff]
        %v5480 = vld [vmem:[#allocation10 + $0x7e8] sm:$0xff]
        %v5481 = vld [vmem:[#allocation10 + $0x7f0] sm:$0xff]
        %v5482 = vld [vmem:[#allocation10 + $0x7f8] sm:$0xff]
        %5483 = vmatprep.subr.mxu0 %v5348
        %5484 = vmatpush1.msra.mxu0 %v5347
        %5485 = vmatprep.subr.mxu0 %v5340
        %5486 = vmatpush1.msra.mxu0 %v5339
        %5487 = vmatprep.subr.mxu0 %v5332
        %5488 = vmatpush1.msra.mxu0 %v5331
        %5489 = vmatprep.subr.mxu0 %v5324
        %5490 = vmatpush1.msra.mxu0 %v5323
        %5491 = vmatprep.subr.mxu0 %v5316
        %5492 = vmatpush1.msra.mxu0 %v5315
        %5493 = vmatprep.subr.mxu0 %v5308
        %5494 = vmatpush1.msra.mxu0 %v5307
        %5495 = vmatprep.subr.mxu0 %v5300
        %5496 = vmatpush1.msra.mxu0 %v5299
        %5497 = vmatprep.subr.mxu0 %v5292
        %5498 = vmatpush1.msra.mxu0 %v5291
        %5499 = vmatprep.subr.mxu0 %v5284
        %5500 = vmatpush1.msra.mxu0 %v5283
        %5501 = vmatprep.subr.mxu0 %v5276
        %5502 = vmatpush1.msra.mxu0 %v5275
        %5503 = vmatprep.subr.mxu0 %v5268
        %5504 = vmatpush1.msra.mxu0 %v5267
        %5505 = vmatprep.subr.mxu0 %v5260
        %5506 = vmatpush1.msra.mxu0 %v5259
        %5507 = vmatprep.subr.mxu0 %v5252
        %5508 = vmatpush1.msra.mxu0 %v5251
        %5509 = vmatprep.subr.mxu0 %v5244
        %5510 = vmatpush1.msra.mxu0 %v5243
        %5511 = vmatprep.subr.mxu0 %v5236
        %5512 = vmatpush1.msra.mxu0 %v5235
        %5513 = vmatprep.subr.mxu0 %v5228
        %5514 = vmatpush1.msra.mxu0 %v5227
        %5515 = vmatprep.subr.mxu0 %v5476
        %5516 = vmatpush2.msra.mxu0 %v5475
        %5517 = vmatprep.subr.mxu0 %v5468
        %5518 = vmatpush2.msra.mxu0 %v5467
        %5519 = vmatprep.subr.mxu0 %v5460
        %5520 = vmatpush2.msra.mxu0 %v5459
        %5521 = vmatprep.subr.mxu0 %v5452
        %5522 = vmatpush2.msra.mxu0 %v5451
        %5523 = vmatprep.subr.mxu0 %v5444
        %5524 = vmatpush2.msra.mxu0 %v5443
        %5525 = vmatprep.subr.mxu0 %v5436
        %5526 = vmatpush2.msra.mxu0 %v5435
        %5527 = vmatprep.subr.mxu0 %v5428
        %5528 = vmatpush2.msra.mxu0 %v5427
        %5529 = vmatprep.subr.mxu0 %v5420
        %5530 = vmatpush2.msra.mxu0 %v5419
        %5531 = vmatprep.subr.mxu0 %v5412
        %5532 = vmatpush2.msra.mxu0 %v5411
        %5533 = vmatprep.subr.mxu0 %v5404
        %5534 = vmatpush2.msra.mxu0 %v5403
        %5535 = vmatprep.subr.mxu0 %v5396
        %5536 = vmatpush2.msra.mxu0 %v5395
        %5537 = vmatprep.subr.mxu0 %v5388
        %5538 = vmatpush2.msra.mxu0 %v5387
        %5539 = vmatprep.subr.mxu0 %v5380
        %5540 = vmatpush2.msra.mxu0 %v5379
        %5541 = vmatprep.subr.mxu0 %v5372
        %5542 = vmatpush2.msra.mxu0 %v5371
        %5543 = vmatprep.subr.mxu0 %v5364
        %5544 = vmatpush2.msra.mxu0 %v5363
        %5545 = vmatprep.subr.mxu0 %v5356
        %5546 = vmatpush2.msra.mxu0 %v5355
        %5547 = vmatprep.mubr.f32.mxu0 %v5218
        %5548 = vmatmul.mubr.f32.gmra.mxu0 %v5217
        %v5549 = vpop.f32.mrf.mxu0
        %v5550 = vadd.f32 0.0, %v5549
        %v5551 = vpop.f32.mrf.mxu0
        %v5552 = vadd.f32 0.0, %v5551
        %5553 = vdwg.mxu0
        %5554 = vmatprep.subr.mxu0 %v5350
        %5555 = vmatpush1.msra.mxu0 %v5349
        %5556 = vmatprep.subr.mxu0 %v5342
        %5557 = vmatpush1.msra.mxu0 %v5341
        %5558 = vmatprep.subr.mxu0 %v5334
        %5559 = vmatpush1.msra.mxu0 %v5333
        %5560 = vmatprep.subr.mxu0 %v5326
        %5561 = vmatpush1.msra.mxu0 %v5325
        %5562 = vmatprep.subr.mxu0 %v5318
        %5563 = vmatpush1.msra.mxu0 %v5317
        %5564 = vmatprep.subr.mxu0 %v5310
        %5565 = vmatpush1.msra.mxu0 %v5309
        %5566 = vmatprep.subr.mxu0 %v5302
        %5567 = vmatpush1.msra.mxu0 %v5301
        %5568 = vmatprep.subr.mxu0 %v5294
        %5569 = vmatpush1.msra.mxu0 %v5293
        %5570 = vmatprep.subr.mxu0 %v5286
        %5571 = vmatpush1.msra.mxu0 %v5285
        %5572 = vmatprep.subr.mxu0 %v5278
        %5573 = vmatpush1.msra.mxu0 %v5277
        %5574 = vmatprep.subr.mxu0 %v5270
        %5575 = vmatpush1.msra.mxu0 %v5269
        %5576 = vmatprep.subr.mxu0 %v5262
        %5577 = vmatpush1.msra.mxu0 %v5261
        %5578 = vmatprep.subr.mxu0 %v5254
        %5579 = vmatpush1.msra.mxu0 %v5253
        %5580 = vmatprep.subr.mxu0 %v5246
        %5581 = vmatpush1.msra.mxu0 %v5245
        %5582 = vmatprep.subr.mxu0 %v5238
        %5583 = vmatpush1.msra.mxu0 %v5237
        %5584 = vmatprep.subr.mxu0 %v5230
        %5585 = vmatpush1.msra.mxu0 %v5229
        %5586 = vmatprep.subr.mxu0 %v5478
        %5587 = vmatpush2.msra.mxu0 %v5477
        %5588 = vmatprep.subr.mxu0 %v5470
        %5589 = vmatpush2.msra.mxu0 %v5469
        %5590 = vmatprep.subr.mxu0 %v5462
        %5591 = vmatpush2.msra.mxu0 %v5461
        %5592 = vmatprep.subr.mxu0 %v5454
        %5593 = vmatpush2.msra.mxu0 %v5453
        %5594 = vmatprep.subr.mxu0 %v5446
        %5595 = vmatpush2.msra.mxu0 %v5445
        %5596 = vmatprep.subr.mxu0 %v5438
        %5597 = vmatpush2.msra.mxu0 %v5437
        %5598 = vmatprep.subr.mxu0 %v5430
        %5599 = vmatpush2.msra.mxu0 %v5429
        %5600 = vmatprep.subr.mxu0 %v5422
        %5601 = vmatpush2.msra.mxu0 %v5421
        %5602 = vmatprep.subr.mxu0 %v5414
        %5603 = vmatpush2.msra.mxu0 %v5413
        %5604 = vmatprep.subr.mxu0 %v5406
        %5605 = vmatpush2.msra.mxu0 %v5405
        %5606 = vmatprep.subr.mxu0 %v5398
        %5607 = vmatpush2.msra.mxu0 %v5397
        %5608 = vmatprep.subr.mxu0 %v5390
        %5609 = vmatpush2.msra.mxu0 %v5389
        %5610 = vmatprep.subr.mxu0 %v5382
        %5611 = vmatpush2.msra.mxu0 %v5381
        %5612 = vmatprep.subr.mxu0 %v5374
        %5613 = vmatpush2.msra.mxu0 %v5373
        %5614 = vmatprep.subr.mxu0 %v5366
        %5615 = vmatpush2.msra.mxu0 %v5365
        %5616 = vmatprep.subr.mxu0 %v5358
        %5617 = vmatpush2.msra.mxu0 %v5357
        %5618 = vmatprep.mubr.f32.mxu0 %v5218
        %5619 = vmatmul.mubr.f32.gmra.mxu0 %v5217
        %v5620 = vpop.f32.mrf.mxu0
        %v5621 = vadd.f32 0.0, %v5620
        %v5622 = vpop.f32.mrf.mxu0
        %v5623 = vadd.f32 0.0, %v5622
        %5624 = vdwg.mxu0
        %5625 = vmatprep.subr.mxu0 %v5352
        %5626 = vmatpush1.msra.mxu0 %v5351
        %5627 = vmatprep.subr.mxu0 %v5344
        %5628 = vmatpush1.msra.mxu0 %v5343
        %5629 = vmatprep.subr.mxu0 %v5336
        %5630 = vmatpush1.msra.mxu0 %v5335
        %5631 = vmatprep.subr.mxu0 %v5328
        %5632 = vmatpush1.msra.mxu0 %v5327
        %5633 = vmatprep.subr.mxu0 %v5320
        %5634 = vmatpush1.msra.mxu0 %v5319
        %5635 = vmatprep.subr.mxu0 %v5312
        %5636 = vmatpush1.msra.mxu0 %v5311
        %5637 = vmatprep.subr.mxu0 %v5304
        %5638 = vmatpush1.msra.mxu0 %v5303
        %5639 = vmatprep.subr.mxu0 %v5296
        %5640 = vmatpush1.msra.mxu0 %v5295
        %5641 = vmatprep.subr.mxu0 %v5288
        %5642 = vmatpush1.msra.mxu0 %v5287
        %5643 = vmatprep.subr.mxu0 %v5280
        %5644 = vmatpush1.msra.mxu0 %v5279
        %5645 = vmatprep.subr.mxu0 %v5272
        %5646 = vmatpush1.msra.mxu0 %v5271
        %5647 = vmatprep.subr.mxu0 %v5264
        %5648 = vmatpush1.msra.mxu0 %v5263
        %5649 = vmatprep.subr.mxu0 %v5256
        %5650 = vmatpush1.msra.mxu0 %v5255
        %5651 = vmatprep.subr.mxu0 %v5248
        %5652 = vmatpush1.msra.mxu0 %v5247
        %5653 = vmatprep.subr.mxu0 %v5240
        %5654 = vmatpush1.msra.mxu0 %v5239
        %5655 = vmatprep.subr.mxu0 %v5232
        %5656 = vmatpush1.msra.mxu0 %v5231
        %5657 = vmatprep.subr.mxu0 %v5480
        %5658 = vmatpush2.msra.mxu0 %v5479
        %5659 = vmatprep.subr.mxu0 %v5472
        %5660 = vmatpush2.msra.mxu0 %v5471
        %5661 = vmatprep.subr.mxu0 %v5464
        %5662 = vmatpush2.msra.mxu0 %v5463
        %5663 = vmatprep.subr.mxu0 %v5456
        %5664 = vmatpush2.msra.mxu0 %v5455
        %5665 = vmatprep.subr.mxu0 %v5448
        %5666 = vmatpush2.msra.mxu0 %v5447
        %5667 = vmatprep.subr.mxu0 %v5440
        %5668 = vmatpush2.msra.mxu0 %v5439
        %5669 = vmatprep.subr.mxu0 %v5432
        %5670 = vmatpush2.msra.mxu0 %v5431
        %5671 = vmatprep.subr.mxu0 %v5424
        %5672 = vmatpush2.msra.mxu0 %v5423
        %5673 = vmatprep.subr.mxu0 %v5416
        %5674 = vmatpush2.msra.mxu0 %v5415
        %5675 = vmatprep.subr.mxu0 %v5408
        %5676 = vmatpush2.msra.mxu0 %v5407
        %5677 = vmatprep.subr.mxu0 %v5400
        %5678 = vmatpush2.msra.mxu0 %v5399
        %5679 = vmatprep.subr.mxu0 %v5392
        %5680 = vmatpush2.msra.mxu0 %v5391
        %5681 = vmatprep.subr.mxu0 %v5384
        %5682 = vmatpush2.msra.mxu0 %v5383
        %5683 = vmatprep.subr.mxu0 %v5376
        %5684 = vmatpush2.msra.mxu0 %v5375
        %5685 = vmatprep.subr.mxu0 %v5368
        %5686 = vmatpush2.msra.mxu0 %v5367
        %5687 = vmatprep.subr.mxu0 %v5360
        %5688 = vmatpush2.msra.mxu0 %v5359
        %5689 = vmatprep.mubr.f32.mxu0 %v5218
        %5690 = vmatmul.mubr.f32.gmra.mxu0 %v5217
        %v5691 = vpop.f32.mrf.mxu0
        %v5692 = vadd.f32 0.0, %v5691
        %v5693 = vpop.f32.mrf.mxu0
        %v5694 = vadd.f32 0.0, %v5693
        %5695 = vdwg.mxu0
        %5696 = vmatprep.subr.mxu0 %v5354
        %5697 = vmatpush1.msra.mxu0 %v5353
        %5698 = vmatprep.subr.mxu0 %v5346
        %5699 = vmatpush1.msra.mxu0 %v5345
        %5700 = vmatprep.subr.mxu0 %v5338
        %5701 = vmatpush1.msra.mxu0 %v5337
        %5702 = vmatprep.subr.mxu0 %v5330
        %5703 = vmatpush1.msra.mxu0 %v5329
        %5704 = vmatprep.subr.mxu0 %v5322
        %5705 = vmatpush1.msra.mxu0 %v5321
        %5706 = vmatprep.subr.mxu0 %v5314
        %5707 = vmatpush1.msra.mxu0 %v5313
        %5708 = vmatprep.subr.mxu0 %v5306
        %5709 = vmatpush1.msra.mxu0 %v5305
        %5710 = vmatprep.subr.mxu0 %v5298
        %5711 = vmatpush1.msra.mxu0 %v5297
        %5712 = vmatprep.subr.mxu0 %v5290
        %5713 = vmatpush1.msra.mxu0 %v5289
        %5714 = vmatprep.subr.mxu0 %v5282
        %5715 = vmatpush1.msra.mxu0 %v5281
        %5716 = vmatprep.subr.mxu0 %v5274
        %5717 = vmatpush1.msra.mxu0 %v5273
        %5718 = vmatprep.subr.mxu0 %v5266
        %5719 = vmatpush1.msra.mxu0 %v5265
        %5720 = vmatprep.subr.mxu0 %v5258
        %5721 = vmatpush1.msra.mxu0 %v5257
        %5722 = vmatprep.subr.mxu0 %v5250
        %5723 = vmatpush1.msra.mxu0 %v5249
        %5724 = vmatprep.subr.mxu0 %v5242
        %5725 = vmatpush1.msra.mxu0 %v5241
        %5726 = vmatprep.subr.mxu0 %v5234
        %5727 = vmatpush1.msra.mxu0 %v5233
        %5728 = vmatprep.subr.mxu0 %v5482
        %5729 = vmatpush2.msra.mxu0 %v5481
        %5730 = vmatprep.subr.mxu0 %v5474
        %5731 = vmatpush2.msra.mxu0 %v5473
        %5732 = vmatprep.subr.mxu0 %v5466
        %5733 = vmatpush2.msra.mxu0 %v5465
        %5734 = vmatprep.subr.mxu0 %v5458
        %5735 = vmatpush2.msra.mxu0 %v5457
        %5736 = vmatprep.subr.mxu0 %v5450
        %5737 = vmatpush2.msra.mxu0 %v5449
        %5738 = vmatprep.subr.mxu0 %v5442
        %5739 = vmatpush2.msra.mxu0 %v5441
        %5740 = vmatprep.subr.mxu0 %v5434
        %5741 = vmatpush2.msra.mxu0 %v5433
        %5742 = vmatprep.subr.mxu0 %v5426
        %5743 = vmatpush2.msra.mxu0 %v5425
        %5744 = vmatprep.subr.mxu0 %v5418
        %5745 = vmatpush2.msra.mxu0 %v5417
        %5746 = vmatprep.subr.mxu0 %v5410
        %5747 = vmatpush2.msra.mxu0 %v5409
        %5748 = vmatprep.subr.mxu0 %v5402
        %5749 = vmatpush2.msra.mxu0 %v5401
        %5750 = vmatprep.subr.mxu0 %v5394
        %5751 = vmatpush2.msra.mxu0 %v5393
        %5752 = vmatprep.subr.mxu0 %v5386
        %5753 = vmatpush2.msra.mxu0 %v5385
        %5754 = vmatprep.subr.mxu0 %v5378
        %5755 = vmatpush2.msra.mxu0 %v5377
        %5756 = vmatprep.subr.mxu0 %v5370
        %5757 = vmatpush2.msra.mxu0 %v5369
        %5758 = vmatprep.subr.mxu0 %v5362
        %5759 = vmatpush2.msra.mxu0 %v5361
        %5760 = vmatprep.mubr.f32.mxu0 %v5218
        %5761 = vmatmul.mubr.f32.gmra.mxu0 %v5217
        %v5762 = vpop.f32.mrf.mxu0
        %v5763 = vadd.f32 0.0, %v5762
        %v5764 = vpop.f32.mrf.mxu0
        %v5765 = vadd.f32 0.0, %v5764
        %5766 = vdwg.mxu0
        %v5767 = vadd.f32 %v5219, %v5550
        %v5768 = vadd.f32 %v5220, %v5552
        %v5769 = vadd.f32 %v5221, %v5621
        %v5770 = vadd.f32 %v5222, %v5623
        %v5771 = vadd.f32 %v5223, %v5692
        %v5772 = vadd.f32 %v5224, %v5694
        %v5773 = vadd.f32 %v5225, %v5763
        %v5774 = vadd.f32 %v5226, %v5765
        %v5775 = vxor.u32 %v5767, 2147483648
        %v5776 = vxor.u32 %v5768, 2147483648
        %v5777 = vmul.f32 %v5775, 1.442695
        %v5778 = vpow.pop %v5777
        %v5779 = vmul.f32 %v5776, 1.442695
        %v5780 = vpow.pop %v5779
        %v5781 = vadd.f32 %v5778, 1.0
        %v5782 = vadd.f32 %v5780, 1.0
        %v5783 = vrcp.pop %v5781
        %v5784 = vmul.f32 1.0, %v5783
        %v5785 = vrcp.pop %v5782
        %v5786 = vmul.f32 1.0, %v5785
        %v5787 = vxor.u32 %v5769, 2147483648
        %v5788 = vxor.u32 %v5770, 2147483648
        %v5789 = vmul.f32 %v5787, 1.442695
        %v5790 = vpow.pop %v5789
        %v5791 = vmul.f32 %v5788, 1.442695
        %v5792 = vpow.pop %v5791
        %v5793 = vadd.f32 %v5790, 1.0
        %v5794 = vadd.f32 %v5792, 1.0
        %v5795 = vrcp.pop %v5793
        %v5796 = vmul.f32 1.0, %v5795
        %v5797 = vrcp.pop %v5794
        %v5798 = vmul.f32 1.0, %v5797
        %v5799 = vtanh.pop %v5771
        %v5800 = vtanh.pop %v5772
        %v5801 = vxor.u32 %v5773, 2147483648
        %v5802 = vxor.u32 %v5774, 2147483648
        %v5803 = vmul.f32 %v5801, 1.442695
        %v5804 = vpow.pop %v5803
        %v5805 = vmul.f32 %v5802, 1.442695
        %v5806 = vpow.pop %v5805
        %v5807 = vadd.f32 %v5804, 1.0
        %v5808 = vadd.f32 %v5806, 1.0
        %v5809 = vrcp.pop %v5807
        %v5810 = vmul.f32 1.0, %v5809
        %v5811 = vrcp.pop %v5808
        %v5812 = vmul.f32 1.0, %v5811
        %v5813 = vld [vmem:[#allocation3] sm:$0xff]
        %v5814 = vld [vmem:[#allocation3 + $0x8] sm:$0xff]
        %v5815 = vmul.f32 %v5796, %v5813
        %v5816 = vmul.f32 %v5798, %v5814
        %v5817 = vmul.f32 %v5784, %v5799
        %v5818 = vmul.f32 %v5786, %v5800
        %v5819 = vadd.f32 %v5815, %v5817
        %v5820 = vadd.f32 %v5816, %v5818
        %5821 = vst [vmem:[#allocation3] sm:$0xff] %v5819
        %5822 = vst [vmem:[#allocation3 + $0x8] sm:$0xff] %v5820
        %v5823 = vtanh.pop %v5819
        %v5824 = vtanh.pop %v5820
        %v5825 = vmul.f32 %v5810, %v5823
        %v5826 = vmul.f32 %v5812, %v5824
        %5827 = vst [vmem:[#allocation2] sm:$0xff] %v5825
        %5828 = vst [vmem:[#allocation2 + $0x8] sm:$0xff] %v5826
        %p5829 = scmp.eq.s32.totalorder %s24, 1
        // Predicated region
        $region65: #{tpu_custom_call.1} parent=43 // pred_check
          %p5830 = pneg %p5829
        $region66: #{tpu_custom_call.1} parent=43 // pred_check_branch
          %5832 = sbr.rel (%p5830) target = $region68
        $region67: #{tpu_custom_call.1} parent=43 // pred_region
          %v5833 = vld [vmem:[#allocation2] sm:$0xff]
          %v5834 = vld [vmem:[#allocation2 + $0x8] sm:$0xff]
          %v5835 = vld [vmem:[%s4] sm:$0x3]
          %v5837 = vlaneseq
          %v5838 = vshrl.u32 %v5837, 7
          %v5839 = vsub.s32 0, %v5838
          %v5840 = vrot.slane %v5835, %v5839
          %v5841 = vlaneseq
          %v5842 = vshrl.u32 %v5841, 7
          %v5843 = vsub.s32 1, %v5842
          %v5844 = vrot.slane %v5835, %v5843
          %v5847 = vmul.f32 %v5833, %v5840
          %v5848 = vmul.f32 %v5834, %v5844
          %v5849 = vadd.f32 %v5847, %v5848
          %5850 = vadd.xlane.f32.xlu0 %v5849
          %v5851 = vpop.xlane.xlu0 %5850
          %v5852 = vld [vmem:[#allocation5] sm:$0x1]
          %v5854 = vlaneseq
          %v5855 = vshrl.u32 %v5854, 7
          %v5856 = vsub.s32 0, %v5855
          %v5857 = vrot.slane %v5852, %v5856
          %v5859 = vadd.f32 %v5851, %v5857
          %vm5860 = vcmask 7168
          %5861 = vst.msk [vmem:[%s6] sm:$0xff] %vm5860, %v5859
        $region68: #{tpu_custom_call.1} parent=43 // pred_fallthru
          _
        // Predicated region
        $region69: #{tpu_custom_call.1} parent=43 // pred_check
          %p5862 = pneg %p168
        $region70: #{tpu_custom_call.1} parent=43 // pred_check_branch
          %5864 = sbr.rel (%p5862) target = $region72
        $region71: #{tpu_custom_call.1} parent=43 // pred_region
          _
        $region72: #{tpu_custom_call.1} parent=43 // pred_fallthru
          _
        // Predicated region
        $region73: #{tpu_custom_call.1} parent=43 // pred_check
          %p5865 = pneg %p168
        $region74: #{tpu_custom_call.1} parent=43 // pred_check_branch
          %5867 = sbr.rel (%p5865) target = $region76
        $region75: #{tpu_custom_call.1} parent=43 // pred_region
          _
        $region76: #{tpu_custom_call.1} parent=43 // pred_fallthru
          _
      $region44: #{tpu_custom_call.1} parent=5 // pred_fallthru
        _
      %p5868 = scmp.le.s32.totalorder 2, %s19
      // Predicated region
      $region77: #{tpu_custom_call.1} parent=5 // pred_check
        %p5869 = pneg %p5868
      $region78: #{tpu_custom_call.1} parent=5 // pred_check_branch
        %5871 = sbr.rel (%p5869) target = $region80
      $region79: #{tpu_custom_call.1} parent=5 // pred_region
        %s5872 = ssub.s32 %s19, 2
      $region80: #{tpu_custom_call.1} parent=5 // pred_fallthru
        _
    $region6: #{tpu_custom_call.1} parent=1 // loop_footer
      %s23 = sadd.s32 1, %s19
    $region7: #{tpu_custom_call.1} parent=1 // loop_footer_branch
      %18 = sbr.rel target = $region3
    $region8: #{tpu_custom_call.1} parent=1 // loop_exit
      _
    %5873 = vsyncpa [#allocation7], 1
    %s5874 = scalar_lea.sflag [#allocation7], 1
    %5875 = vsyncpa %s5874, 1
    %5876 = vsyncpa [#allocation9], 1
    %5877 = vsyncpa [#allocation12], 1

</llo_original>
